<compile_context>
chip_gen: v6e
topology: v6e:2x2x1
jax: 0.10.0
libtpu: 0.0.40
codegen_flags: <defaults>
</compile_context>

<pallas_src>
import functools

import jax
import jax.numpy as jnp
from jax import lax
from jax.experimental import pallas as pl
from jax.experimental.pallas import tpu as pltpu

EPS = 1e-5
NEG_SLOPE = 0.01          # nn.LeakyReLU default


def _round_up(x, m):
    return (x + m - 1) // m * m


@functools.lru_cache(maxsize=None)
def _vmem_limit_bytes():
    """Per-generation scoped-VMEM limit with headroom (review: robust v7x path)."""
    mib = 1 << 20
    cap = 0
    try:
        cap = int(getattr(pltpu.get_tpu_info(), "vmem_capacity_bytes", 0) or 0)
    except Exception:
        cap = 0
    kind = ""
    try:
        kind = jax.devices()[0].device_kind.lower()
    except Exception:
        pass
    if cap <= 0:
        cap = 64 * mib if "v7" in kind else 128 * mib
    if cap <= 64 * mib or "v7" in kind:
        # v7x: 64 MiB per TensorCore -> leave headroom for compiler buffering.
        return int(min(max(cap - 20 * mib, 24 * mib), 44 * mib))
    # v5e / v6e: 128 MiB physical VMEM; raise well above the default scoped limit.
    return int(min(cap - 28 * mib, 100 * mib))


def _pick_tiles(OH, OW, H, W, Cin, KH, KW, padding, stride, cout_pad, vmem_limit):
    """Choose the output-row tile height (toh) against the VMEM budget."""
    mib = 1 << 20
    hp_est = max(H + 2 * padding, OH * stride + KH)
    wp = W + 2 * padding
    # VMEM footprint of the resident bf16 image block (minor dim lane-padded
    # to 128, second-minor to the bf16 sublane tile), double-buffered.
    img_vmem = hp_est * _round_up(wp, 16) * _round_up(Cin, 128) * 2
    w_vmem = KH * KW * _round_up(Cin, 16) * cout_pad * 2
    fixed = 2 * img_vmem + 2 * w_vmem + 2 * mib
    # per output row: f32 accumulator + double-buffered bf16 output tile + band slack
    per_row = OW * cout_pad * (4 + 2 * 2) + _round_up(wp, 16) * _round_up(Cin, 128) * 2
    budget = max(vmem_limit - fixed, 8 * per_row)
    toh = int(budget // (2 * per_row))
    toh = max(1, min(toh, OH, max(1, 4096 // max(OW, 1))))
    OH_pad = _round_up(OH, toh)
    return toh, OH_pad, OH_pad // toh


def _conv_tile(x_ref, w_ref, *, oh0, toh, OW, KH, KW, Cin, stride, cout_pad):
    """f32 conv output tile (toh*OW, cout_pad) for output rows [oh0, oh0+toh).

    Fused im2col: the KH*KW taps are walked in-kernel with pl.ds row-band
    loads + static W slices feeding bf16 MXU matmuls (f32 accumulation in
    values -- no scratch ref, no K grid axis).
    """
    rows = toh * OW
    acc = jnp.zeros((rows, cout_pad), jnp.float32)
    for kh in range(KH):
        if stride == 1:
            band = x_ref[pl.ds(oh0 + kh, toh)]                        # (toh, Wp, Cin)
        else:
            band = x_ref[pl.ds(oh0 * stride + kh, toh, stride=stride)]
        for kw in range(KW):
            if stride == 1:
                a = band[:, kw:kw + OW, :]
            else:
                a = band[:, kw:kw + (OW - 1) * stride + 1:stride, :]
            a2 = a.reshape(rows, Cin)                                  # bf16
            w_tap = w_ref[kh * KW + kw]                                # (Cin, cout_pad) bf16
            acc = acc + jnp.dot(a2, w_tap, preferred_element_type=jnp.float32)
    return acc


def _conv_stats_kernel(x_ref, w_ref, psum_ref, pssq_ref, *,
                       toh, OW, KH, KW, Cin, OH, stride, cout_pad):
    """Pass 1: conv tile + per-tile partial batch statistics (megacore-parallel)."""
    t = pl.program_id(1)
    oh0 = t * toh
    rows = toh * OW
    c = _conv_tile(x_ref, w_ref, oh0=oh0, toh=toh, OW=OW, KH=KH, KW=KW,
                   Cin=Cin, stride=stride, cout_pad=cout_pad)
    # Exclude padded output rows (oh >= OH) from the batch statistics.
    row_ids = lax.broadcasted_iota(jnp.int32, (rows, cout_pad), 0)
    n_valid = jnp.clip((OH - oh0) * OW, 0, rows)
    cm = jnp.where(row_ids < n_valid, c, 0.0)
    psum_ref[...] = jnp.sum(cm, axis=0, keepdims=True).reshape(1, 1, cout_pad)
    pssq_ref[...] = jnp.sum(cm * cm, axis=0, keepdims=True).reshape(1, 1, cout_pad)


def _bn_finalize_kernel(psum_ref, pssq_ref, gamma_ref, beta_ref,
                        scale_ref, shift_ref, *, count):
    """Reduce per-tile partials; hoist BN scale/shift (and rsqrt) out of pass 2.

    Note: the Conv2d bias shifts mean(y) by the same per-channel constant, so
    (y - mean) -- and therefore scale/shift below -- are exactly independent of
    it under training-mode BN; the bias never enters the kernels.
    """
    inv_n = 1.0 / float(count)
    s = jnp.sum(psum_ref[...], axis=0)          # (1, cout_pad)
    sq = jnp.sum(pssq_ref[...], axis=0)
    mean = s * inv_n
    var = jnp.maximum(sq * inv_n - mean * mean, 0.0)   # biased, like torch BN
    inv_std = lax.rsqrt(var + EPS)
    scale = gamma_ref[...] * inv_std
    shift = beta_ref[...] - mean * scale
    scale_ref[...] = scale
    shift_ref[...] = shift


def _conv_bn_act_kernel(x_ref, w_ref, scale_ref, shift_ref, o_ref, *,
                        toh, OW, KH, KW, Cin, stride, cout_pad, neg_slope):
    """Pass 2: recompute conv tile, apply fused BN affine + LeakyReLU, bf16 out."""
    t = pl.program_id(1)
    oh0 = t * toh
    c = _conv_tile(x_ref, w_ref, oh0=oh0, toh=toh, OW=OW, KH=KH, KW=KW,
                   Cin=Cin, stride=stride, cout_pad=cout_pad)
    z = c * scale_ref[...] + shift_ref[...]
    o_ref[...] = jnp.where(z > 0.0, z, neg_slope * z).astype(o_ref.dtype)


@functools.partial(jax.jit, static_argnames=("padding", "stride"))
def dbl_forward(x_nchw, w_oihw, conv_bias, gamma, beta, *, padding=1, stride=1):
    """DBL forward. x_nchw: (N, Cin, H, W); w_oihw: (Cout, Cin, KH, KW)."""
    # conv_bias is provably a no-op under training-mode BatchNorm (it is removed
    # by the mean subtraction); kept as an argument for interface parity.
    del conv_bias
    N, Cin, H, W = x_nchw.shape
    Cout, _, KH, KW = w_oihw.shape
    OH = (H + 2 * padding - KH) // stride + 1
    OW = (W + 2 * padding - KW) // stride + 1
    cout_pad = _round_up(Cout, 128)
    vmem = _vmem_limit_bytes()
    toh, OH_pad, T = _pick_tiles(OH, OW, H, W, Cin, KH, KW, padding, stride,
                                 cout_pad, vmem)

    Hp = H + 2 * padding
    Wp = W + 2 * padding
    Hp_pad = max(Hp, (OH_pad - 1) * stride + KH)

    # --- glue: NCHW -> padded NHWC (bf16); images stacked along H so the
    # kernels see a plain 3-D (rows, Wp, Cin) array (one Hp_pad band / image).
    x = jnp.transpose(x_nchw, (0, 2, 3, 1)).astype(jnp.bfloat16)
    x = jnp.pad(x, ((0, 0), (padding, padding + (Hp_pad - Hp)),
                    (padding, padding), (0, 0)))
    x = x.reshape(N * Hp_pad, Wp, Cin)

    # weights: OIHW -> (KH*KW, Cin, cout_pad) bf16 (lane-dense output panel)
    w = jnp.transpose(w_oihw, (2, 3, 1, 0)).reshape(KH * KW, Cin, Cout)
    w = jnp.pad(w.astype(jnp.bfloat16), ((0, 0), (0, 0), (0, cout_pad - Cout)))

    g = jnp.pad(gamma.astype(jnp.float32).reshape(1, Cout),
                ((0, 0), (0, cout_pad - Cout)))
    b = jnp.pad(beta.astype(jnp.float32).reshape(1, Cout),
                ((0, 0), (0, cout_pad - Cout)))

    x_spec = pl.BlockSpec((Hp_pad, Wp, Cin), lambda n, t: (n, 0, 0))
    w_spec = pl.BlockSpec((KH * KW, Cin, cout_pad), lambda n, t: (0, 0, 0))
    vec_spec = pl.BlockSpec((1, cout_pad), lambda n, t: (0, 0))
    stat_spec = pl.BlockSpec((1, 1, cout_pad), lambda n, t: (n * T + t, 0, 0))

    conv_kwargs = dict(toh=toh, OW=OW, KH=KH, KW=KW, Cin=Cin, stride=stride,
                       cout_pad=cout_pad)

    # --- pass 1: fused-im2col conv + per-tile batch statistics ---------------
    psum, pssq = pl.pallas_call(
        functools.partial(_conv_stats_kernel, OH=OH, **conv_kwargs),
        out_shape=(jax.ShapeDtypeStruct((N * T, 1, cout_pad), jnp.float32),
                   jax.ShapeDtypeStruct((N * T, 1, cout_pad), jnp.float32)),
        grid_spec=pltpu.PrefetchScalarGridSpec(
            num_scalar_prefetch=0, grid=(N, T),
            in_specs=[x_spec, w_spec],
            out_specs=(stat_spec, stat_spec)),
        compiler_params=pltpu.CompilerParams(
            dimension_semantics=("parallel", "parallel"),
            vmem_limit_bytes=vmem),
    )(x, w)

    # --- finalize: reduce partials, compute BN scale/shift once (tiny) -------
    full3 = pl.BlockSpec((N * T, 1, cout_pad), lambda i: (0, 0, 0))
    full2 = pl.BlockSpec((1, cout_pad), lambda i: (0, 0))
    scale, shift = pl.pallas_call(
        functools.partial(_bn_finalize_kernel, count=N * OH * OW),
        out_shape=(jax.ShapeDtypeStruct((1, cout_pad), jnp.float32),
                   jax.ShapeDtypeStruct((1, cout_pad), jnp.float32)),
        grid_spec=pltpu.PrefetchScalarGridSpec(
            num_scalar_prefetch=0, grid=(1,),
            in_specs=[full3, full3, full2, full2],
            out_specs=(full2, full2)),
        compiler_params=pltpu.CompilerParams(
            dimension_semantics=("arbitrary",),
            vmem_limit_bytes=vmem),
    )(psum, pssq, g, b)

    # --- pass 2: recompute conv + BN affine + LeakyReLU -> bf16, lane-dense --
    out_flat = pl.pallas_call(
        functools.partial(_conv_bn_act_kernel, neg_slope=NEG_SLOPE, **conv_kwargs),
        out_shape=jax.ShapeDtypeStruct((N * OH_pad * OW, cout_pad), jnp.bfloat16),
        grid_spec=pltpu.PrefetchScalarGridSpec(
            num_scalar_prefetch=0, grid=(N, T),
            in_specs=[x_spec, w_spec, vec_spec, vec_spec],
            out_specs=pl.BlockSpec((toh * OW, cout_pad),
                                   lambda n, t: (n * T + t, 0))),
        compiler_params=pltpu.CompilerParams(
            dimension_semantics=("parallel", "parallel"),
            vmem_limit_bytes=vmem),
    )(x, w, scale, shift)

    # --- glue: drop padding; NCHW for PyTorch interface parity.  (When chaining
    # DBL blocks, keep the lane-padded NHWC layout instead of this transpose.)
    out = out_flat.reshape(N, OH_pad, OW, cout_pad)[:, :OH, :, :Cout]
    return jnp.transpose(out, (0, 3, 1, 2)).astype(jnp.float32)


def _reference(x_nchw, w_oihw, conv_bias, gamma, beta, *, padding=1, stride=1):
    """Pure-JAX reference matching PyTorch DBL (fresh module, training-mode BN).

    Inputs are bf16-rounded to match the kernel's bf16 MXU feed; all other math f32.
    """
    xq = x_nchw.astype(jnp.bfloat16).astype(jnp.float32)
    wq = w_oihw.astype(jnp.bfloat16).astype(jnp.float32)
    y = lax.conv_general_dilated(
        xq, wq, window_strides=(stride, stride),
        padding=[(padding, padding), (padding, padding)],
        dimension_numbers=("NCHW", "OIHW", "NCHW"),
        precision=lax.Precision.HIGHEST)
    y = y + conv_bias.reshape(1, -1, 1, 1)
    mean = jnp.mean(y, axis=(0, 2, 3), keepdims=True)
    var = jnp.mean((y - mean) ** 2, axis=(0, 2, 3), keepdims=True)  # biased, like torch BN
    yn = (gamma.reshape(1, -1, 1, 1) * (y - mean) * lax.rsqrt(var + EPS)
          + beta.reshape(1, -1, 1, 1))
    return jnp.where(yn > 0, yn, NEG_SLOPE * yn)


if __name__ == "__main__":
    # DBL(in_ch=4, out_ch=8, kernal_size=3, padding=1, strides=1)
    N, Cin, H, W = 2, 4, 16, 16
    Cout, KH, KW = 8, 3, 3
    padding, stride = 1, 1

    key = jax.random.PRNGKey(0)
    kx, kw, kb, kg, kbe = jax.random.split(key, 5)
    x = jax.random.normal(kx, (N, Cin, H, W), dtype=jnp.float32)
    w = jax.random.normal(kw, (Cout, Cin, KH, KW), dtype=jnp.float32) * 0.1
    conv_bias = jax.random.normal(kb, (Cout,), dtype=jnp.float32) * 0.1
    gamma = 1.0 + 0.1 * jax.random.normal(kg, (Cout,), dtype=jnp.float32)
    beta = 0.1 * jax.random.normal(kbe, (Cout,), dtype=jnp.float32)

    out = dbl_forward(x, w, conv_bias, gamma, beta, padding=padding, stride=stride)
    out = jax.block_until_ready(out)

    ref = _reference(x, w, conv_bias, gamma, beta, padding=padding, stride=stride)
    assert out.shape == (N, Cout, H, W), out.shape
    err = float(jnp.max(jnp.abs(out - ref)))
    # The kernel emits bf16 activations (lane-dense, half the HBM writeback);
    # with |z| <~ 4.5 the final bf16 rounding bounds the error well under 2.5e-2.
    assert err < 2.5e-2, err
    print("KERNEL_OK")
</pallas_src>

<mosaic_0001>
module attributes {stable_mosaic.version = 11 : i64} {
  func.func @_bn_finalize_kernel(%arg0: i32, %arg1: memref<2x1x128xf32, #tpu.memory_space<vmem>>, %arg2: memref<2x1x128xf32, #tpu.memory_space<vmem>>, %arg3: memref<1x128xf32, #tpu.memory_space<vmem>>, %arg4: memref<1x128xf32, #tpu.memory_space<vmem>>, %arg5: memref<1x128xf32, #tpu.memory_space<vmem>>, %arg6: memref<1x128xf32, #tpu.memory_space<vmem>>) attributes {dimension_semantics = [#tpu.dimension_semantics<arbitrary>], iteration_bounds = array<i64: 1>, scalar_prefetch = 0 : i64, scratch_operands = 0 : i64, tpu.core_type = #tpu.core_type<tc>, window_params = [{pipeline_mode = #tpu.pipeline_mode<synchronous>, transform_indices = @transform_0, window_bounds = array<i64: 2, 1, 128>}, {pipeline_mode = #tpu.pipeline_mode<synchronous>, transform_indices = @transform_1, window_bounds = array<i64: 2, 1, 128>}, {pipeline_mode = #tpu.pipeline_mode<synchronous>, transform_indices = @transform_2, window_bounds = array<i64: 1, 128>}, {pipeline_mode = #tpu.pipeline_mode<synchronous>, transform_indices = @transform_3, window_bounds = array<i64: 1, 128>}, {pipeline_mode = #tpu.pipeline_mode<synchronous>, transform_indices = @transform_4, window_bounds = array<i64: 1, 128>}, {pipeline_mode = #tpu.pipeline_mode<synchronous>, transform_indices = @transform_5, window_bounds = array<i64: 1, 128>}]} {
    %c0 = arith.constant 0 : index
    %c0_0 = arith.constant 0 : index
    %c0_1 = arith.constant 0 : index
    %0 = vector.load %arg1[%c0, %c0_0, %c0_1] : memref<2x1x128xf32, #tpu.memory_space<vmem>>, vector<2x1x128xf32>
    %cst = arith.constant dense<0.000000e+00> : vector<1x128xf32>
    %1 = vector.multi_reduction <add>, %0, %cst [0] : vector<2x1x128xf32> to vector<1x128xf32>
    %c0_2 = arith.constant 0 : index
    %c0_3 = arith.constant 0 : index
    %c0_4 = arith.constant 0 : index
    %2 = vector.load %arg2[%c0_2, %c0_3, %c0_4] : memref<2x1x128xf32, #tpu.memory_space<vmem>>, vector<2x1x128xf32>
    %cst_5 = arith.constant dense<0.000000e+00> : vector<1x128xf32>
    %3 = vector.multi_reduction <add>, %2, %cst_5 [0] : vector<2x1x128xf32> to vector<1x128xf32>
    %cst_6 = arith.constant 0.001953125 : f32
    %4 = vector.broadcast %cst_6 : f32 to vector<1x128xf32>
    %5 = arith.mulf %1, %4 : vector<1x128xf32>
    %cst_7 = arith.constant 0.001953125 : f32
    %6 = vector.broadcast %cst_7 : f32 to vector<1x128xf32>
    %7 = arith.mulf %3, %6 : vector<1x128xf32>
    %8 = arith.mulf %5, %5 : vector<1x128xf32>
    %9 = arith.subf %7, %8 : vector<1x128xf32>
    %cst_8 = arith.constant 0.000000e+00 : f32
    %10 = vector.broadcast %cst_8 : f32 to vector<1x128xf32>
    %11 = arith.maximumf %9, %10 : vector<1x128xf32>
    %cst_9 = arith.constant 9.99999974E-6 : f32
    %12 = vector.broadcast %cst_9 : f32 to vector<1x128xf32>
    %13 = arith.addf %11, %12 : vector<1x128xf32>
    %14 = math.rsqrt %13 : vector<1x128xf32>
    %c0_10 = arith.constant 0 : index
    %c0_11 = arith.constant 0 : index
    %15 = vector.load %arg3[%c0_10, %c0_11] : memref<1x128xf32, #tpu.memory_space<vmem>>, vector<1x128xf32>
    %16 = arith.mulf %15, %14 : vector<1x128xf32>
    %c0_12 = arith.constant 0 : index
    %c0_13 = arith.constant 0 : index
    %17 = vector.load %arg4[%c0_12, %c0_13] : memref<1x128xf32, #tpu.memory_space<vmem>>, vector<1x128xf32>
    %18 = arith.mulf %5, %16 : vector<1x128xf32>
    %19 = arith.subf %17, %18 : vector<1x128xf32>
    %c0_14 = arith.constant 0 : index
    %c0_15 = arith.constant 0 : index
    %20 = vector.load %arg5[%c0_14, %c0_15] : memref<1x128xf32, #tpu.memory_space<vmem>>, vector<1x128xf32>
    tpu.vector_store %arg5[%c0_14, %c0_15], %16 {strides = array<i32>} : memref<1x128xf32, #tpu.memory_space<vmem>>, vector<1x128xf32>,
    %c0_16 = arith.constant 0 : index
    %c0_17 = arith.constant 0 : index
    %21 = vector.load %arg6[%c0_16, %c0_17] : memref<1x128xf32, #tpu.memory_space<vmem>>, vector<1x128xf32>
    tpu.vector_store %arg6[%c0_16, %c0_17], %19 {strides = array<i32>} : memref<1x128xf32, #tpu.memory_space<vmem>>, vector<1x128xf32>,
    return
  }
  func.func @transform_0(%arg0: i32) -> (i32, i32, i32) {
    %c0_i32 = arith.constant 0 : i32
    %c0_i32_0 = arith.constant 0 : i32
    %c0_i32_1 = arith.constant 0 : i32
    %c0_i32_2 = arith.constant 0 : i32
    return %c0_i32, %c0_i32_0, %c0_i32_1 : i32, i32, i32
  }
  func.func @transform_1(%arg0: i32) -> (i32, i32, i32) {
    %c0_i32 = arith.constant 0 : i32
    %c0_i32_0 = arith.constant 0 : i32
    %c0_i32_1 = arith.constant 0 : i32
    %c0_i32_2 = arith.constant 0 : i32
    return %c0_i32, %c0_i32_0, %c0_i32_1 : i32, i32, i32
  }
  func.func @transform_2(%arg0: i32) -> (i32, i32) {
    %c0_i32 = arith.constant 0 : i32
    %c0_i32_0 = arith.constant 0 : i32
    %c0_i32_1 = arith.constant 0 : i32
    return %c0_i32, %c0_i32_0 : i32, i32
  }
  func.func @transform_3(%arg0: i32) -> (i32, i32) {
    %c0_i32 = arith.constant 0 : i32
    %c0_i32_0 = arith.constant 0 : i32
    %c0_i32_1 = arith.constant 0 : i32
    return %c0_i32, %c0_i32_0 : i32, i32
  }
  func.func @transform_4(%arg0: i32) -> (i32, i32) {
    %c0_i32 = arith.constant 0 : i32
    %c0_i32_0 = arith.constant 0 : i32
    %c0_i32_1 = arith.constant 0 : i32
    return %c0_i32, %c0_i32_0 : i32, i32
  }
  func.func @transform_5(%arg0: i32) -> (i32, i32) {
    %c0_i32 = arith.constant 0 : i32
    %c0_i32_0 = arith.constant 0 : i32
    %c0_i32_1 = arith.constant 0 : i32
    return %c0_i32, %c0_i32_0 : i32, i32
  }
}

module attributes {stable_mosaic.version = 11 : i64} {
  func.func @_conv_stats_kernel(%arg0: i32, %arg1: i32, %arg2: memref<18x18x4xbf16, #tpu.memory_space<vmem>>, %arg3: memref<9x4x128xbf16, #tpu.memory_space<vmem>>, %arg4: memref<1x1x128xf32, #tpu.memory_space<vmem>>, %arg5: memref<1x1x128xf32, #tpu.memory_space<vmem>>) attributes {dimension_semantics = [#tpu.dimension_semantics<parallel>, #tpu.dimension_semantics<parallel>], iteration_bounds = array<i64: 2, 1>, scalar_prefetch = 0 : i64, scratch_operands = 0 : i64, tpu.core_type = #tpu.core_type<tc>, window_params = [{transform_indices = @transform_0, window_bounds = array<i64: 18, 18, 4>}, {pipeline_mode = #tpu.pipeline_mode<synchronous>, transform_indices = @transform_1, window_bounds = array<i64: 9, 4, 128>}, {transform_indices = @transform_2, window_bounds = array<i64: 1, 1, 128>}, {transform_indices = @transform_3, window_bounds = array<i64: 1, 1, 128>}]} {
    %c16_i32 = arith.constant 16 : i32
    %0 = arith.muli %arg1, %c16_i32 : i32
    %cst = arith.constant 0.000000e+00 : f32
    %1 = vector.broadcast %cst : f32 to vector<256x128xf32>
    %c0_i32 = arith.constant 0 : i32
    %2 = arith.addi %0, %c0_i32 : i32
    %3 = arith.index_cast %2 : i32 to index
    %c0 = arith.constant 0 : index
    %c0_0 = arith.constant 0 : index
    %4 = vector.load %arg2[%3, %c0, %c0_0] : memref<18x18x4xbf16, #tpu.memory_space<vmem>>, vector<16x18x4xbf16>
    %5 = vector.extract_strided_slice %4 {offsets = [0, 0, 0], sizes = [16, 16, 4], strides = [1, 1, 1]} : vector<16x18x4xbf16> to vector<16x16x4xbf16>
    %6 = vector.shape_cast %5 : vector<16x16x4xbf16> to vector<256x4xbf16>
    %c0_1 = arith.constant 0 : index
    %c0_2 = arith.constant 0 : index
    %c0_3 = arith.constant 0 : index
    %7 = vector.load %arg3[%c0_1, %c0_2, %c0_3] : memref<9x4x128xbf16, #tpu.memory_space<vmem>>, vector<1x4x128xbf16>
    %8 = vector.shape_cast %7 : vector<1x4x128xbf16> to vector<4x128xbf16>
    %cst_4 = arith.constant dense<0.000000e+00> : vector<256x128xf32>
    %9 = tpu.matmul %6, %8, %cst_4 {dimension_numbers = #tpu.dot_dimension_numbers<[1], [0], [0], [1], [0, 0, 1, 1], [], []>} : vector<256x4xbf16>, vector<4x128xbf16>, vector<256x128xf32> -> vector<256x128xf32>
    %10 = arith.addf %1, %9 : vector<256x128xf32>
    %11 = vector.extract_strided_slice %4 {offsets = [0, 1, 0], sizes = [16, 16, 4], strides = [1, 1, 1]} : vector<16x18x4xbf16> to vector<16x16x4xbf16>
    %12 = vector.shape_cast %11 : vector<16x16x4xbf16> to vector<256x4xbf16>
    %c1 = arith.constant 1 : index
    %c0_5 = arith.constant 0 : index
    %c0_6 = arith.constant 0 : index
    %13 = vector.load %arg3[%c1, %c0_5, %c0_6] : memref<9x4x128xbf16, #tpu.memory_space<vmem>>, vector<1x4x128xbf16>
    %14 = vector.shape_cast %13 : vector<1x4x128xbf16> to vector<4x128xbf16>
    %cst_7 = arith.constant dense<0.000000e+00> : vector<256x128xf32>
    %15 = tpu.matmul %12, %14, %cst_7 {dimension_numbers = #tpu.dot_dimension_numbers<[1], [0], [0], [1], [0, 0, 1, 1], [], []>} : vector<256x4xbf16>, vector<4x128xbf16>, vector<256x128xf32> -> vector<256x128xf32>
    %16 = arith.addf %10, %15 : vector<256x128xf32>
    %17 = vector.extract_strided_slice %4 {offsets = [0, 2, 0], sizes = [16, 16, 4], strides = [1, 1, 1]} : vector<16x18x4xbf16> to vector<16x16x4xbf16>
    %18 = vector.shape_cast %17 : vector<16x16x4xbf16> to vector<256x4xbf16>
    %c2 = arith.constant 2 : index
    %c0_8 = arith.constant 0 : index
    %c0_9 = arith.constant 0 : index
    %19 = vector.load %arg3[%c2, %c0_8, %c0_9] : memref<9x4x128xbf16, #tpu.memory_space<vmem>>, vector<1x4x128xbf16>
    %20 = vector.shape_cast %19 : vector<1x4x128xbf16> to vector<4x128xbf16>
    %cst_10 = arith.constant dense<0.000000e+00> : vector<256x128xf32>
    %21 = tpu.matmul %18, %20, %cst_10 {dimension_numbers = #tpu.dot_dimension_numbers<[1], [0], [0], [1], [0, 0, 1, 1], [], []>} : vector<256x4xbf16>, vector<4x128xbf16>, vector<256x128xf32> -> vector<256x128xf32>
    %22 = arith.addf %16, %21 : vector<256x128xf32>
    %c1_i32 = arith.constant 1 : i32
    %23 = arith.addi %0, %c1_i32 : i32
    %24 = arith.index_cast %23 : i32 to index
    %c0_11 = arith.constant 0 : index
    %c0_12 = arith.constant 0 : index
    %25 = vector.load %arg2[%24, %c0_11, %c0_12] : memref<18x18x4xbf16, #tpu.memory_space<vmem>>, vector<16x18x4xbf16>
    %26 = vector.extract_strided_slice %25 {offsets = [0, 0, 0], sizes = [16, 16, 4], strides = [1, 1, 1]} : vector<16x18x4xbf16> to vector<16x16x4xbf16>
    %27 = vector.shape_cast %26 : vector<16x16x4xbf16> to vector<256x4xbf16>
    %c3 = arith.constant 3 : index
    %c0_13 = arith.constant 0 : index
    %c0_14 = arith.constant 0 : index
    %28 = vector.load %arg3[%c3, %c0_13, %c0_14] : memref<9x4x128xbf16, #tpu.memory_space<vmem>>, vector<1x4x128xbf16>
    %29 = vector.shape_cast %28 : vector<1x4x128xbf16> to vector<4x128xbf16>
    %cst_15 = arith.constant dense<0.000000e+00> : vector<256x128xf32>
    %30 = tpu.matmul %27, %29, %cst_15 {dimension_numbers = #tpu.dot_dimension_numbers<[1], [0], [0], [1], [0, 0, 1, 1], [], []>} : vector<256x4xbf16>, vector<4x128xbf16>, vector<256x128xf32> -> vector<256x128xf32>
    %31 = arith.addf %22, %30 : vector<256x128xf32>
    %32 = vector.extract_strided_slice %25 {offsets = [0, 1, 0], sizes = [16, 16, 4], strides = [1, 1, 1]} : vector<16x18x4xbf16> to vector<16x16x4xbf16>
    %33 = vector.shape_cast %32 : vector<16x16x4xbf16> to vector<256x4xbf16>
    %c4 = arith.constant 4 : index
    %c0_16 = arith.constant 0 : index
    %c0_17 = arith.constant 0 : index
    %34 = vector.load %arg3[%c4, %c0_16, %c0_17] : memref<9x4x128xbf16, #tpu.memory_space<vmem>>, vector<1x4x128xbf16>
    %35 = vector.shape_cast %34 : vector<1x4x128xbf16> to vector<4x128xbf16>
    %cst_18 = arith.constant dense<0.000000e+00> : vector<256x128xf32>
    %36 = tpu.matmul %33, %35, %cst_18 {dimension_numbers = #tpu.dot_dimension_numbers<[1], [0], [0], [1], [0, 0, 1, 1], [], []>} : vector<256x4xbf16>, vector<4x128xbf16>, vector<256x128xf32> -> vector<256x128xf32>
    %37 = arith.addf %31, %36 : vector<256x128xf32>
    %38 = vector.extract_strided_slice %25 {offsets = [0, 2, 0], sizes = [16, 16, 4], strides = [1, 1, 1]} : vector<16x18x4xbf16> to vector<16x16x4xbf16>
    %39 = vector.shape_cast %38 : vector<16x16x4xbf16> to vector<256x4xbf16>
    %c5 = arith.constant 5 : index
    %c0_19 = arith.constant 0 : index
    %c0_20 = arith.constant 0 : index
    %40 = vector.load %arg3[%c5, %c0_19, %c0_20] : memref<9x4x128xbf16, #tpu.memory_space<vmem>>, vector<1x4x128xbf16>
    %41 = vector.shape_cast %40 : vector<1x4x128xbf16> to vector<4x128xbf16>
    %cst_21 = arith.constant dense<0.000000e+00> : vector<256x128xf32>
    %42 = tpu.matmul %39, %41, %cst_21 {dimension_numbers = #tpu.dot_dimension_numbers<[1], [0], [0], [1], [0, 0, 1, 1], [], []>} : vector<256x4xbf16>, vector<4x128xbf16>, vector<256x128xf32> -> vector<256x128xf32>
    %43 = arith.addf %37, %42 : vector<256x128xf32>
    %c2_i32 = arith.constant 2 : i32
    %44 = arith.addi %0, %c2_i32 : i32
    %45 = arith.index_cast %44 : i32 to index
    %c0_22 = arith.constant 0 : index
    %c0_23 = arith.constant 0 : index
    %46 = vector.load %arg2[%45, %c0_22, %c0_23] : memref<18x18x4xbf16, #tpu.memory_space<vmem>>, vector<16x18x4xbf16>
    %47 = vector.extract_strided_slice %46 {offsets = [0, 0, 0], sizes = [16, 16, 4], strides = [1, 1, 1]} : vector<16x18x4xbf16> to vector<16x16x4xbf16>
    %48 = vector.shape_cast %47 : vector<16x16x4xbf16> to vector<256x4xbf16>
    %c6 = arith.constant 6 : index
    %c0_24 = arith.constant 0 : index
    %c0_25 = arith.constant 0 : index
    %49 = vector.load %arg3[%c6, %c0_24, %c0_25] : memref<9x4x128xbf16, #tpu.memory_space<vmem>>, vector<1x4x128xbf16>
    %50 = vector.shape_cast %49 : vector<1x4x128xbf16> to vector<4x128xbf16>
    %cst_26 = arith.constant dense<0.000000e+00> : vector<256x128xf32>
    %51 = tpu.matmul %48, %50, %cst_26 {dimension_numbers = #tpu.dot_dimension_numbers<[1], [0], [0], [1], [0, 0, 1, 1], [], []>} : vector<256x4xbf16>, vector<4x128xbf16>, vector<256x128xf32> -> vector<256x128xf32>
    %52 = arith.addf %43, %51 : vector<256x128xf32>
    %53 = vector.extract_strided_slice %46 {offsets = [0, 1, 0], sizes = [16, 16, 4], strides = [1, 1, 1]} : vector<16x18x4xbf16> to vector<16x16x4xbf16>
    %54 = vector.shape_cast %53 : vector<16x16x4xbf16> to vector<256x4xbf16>
    %c7 = arith.constant 7 : index
    %c0_27 = arith.constant 0 : index
    %c0_28 = arith.constant 0 : index
    %55 = vector.load %arg3[%c7, %c0_27, %c0_28] : memref<9x4x128xbf16, #tpu.memory_space<vmem>>, vector<1x4x128xbf16>
    %56 = vector.shape_cast %55 : vector<1x4x128xbf16> to vector<4x128xbf16>
    %cst_29 = arith.constant dense<0.000000e+00> : vector<256x128xf32>
    %57 = tpu.matmul %54, %56, %cst_29 {dimension_numbers = #tpu.dot_dimension_numbers<[1], [0], [0], [1], [0, 0, 1, 1], [], []>} : vector<256x4xbf16>, vector<4x128xbf16>, vector<256x128xf32> -> vector<256x128xf32>
    %58 = arith.addf %52, %57 : vector<256x128xf32>
    %59 = vector.extract_strided_slice %46 {offsets = [0, 2, 0], sizes = [16, 16, 4], strides = [1, 1, 1]} : vector<16x18x4xbf16> to vector<16x16x4xbf16>
    %60 = vector.shape_cast %59 : vector<16x16x4xbf16> to vector<256x4xbf16>
    %c8 = arith.constant 8 : index
    %c0_30 = arith.constant 0 : index
    %c0_31 = arith.constant 0 : index
    %61 = vector.load %arg3[%c8, %c0_30, %c0_31] : memref<9x4x128xbf16, #tpu.memory_space<vmem>>, vector<1x4x128xbf16>
    %62 = vector.shape_cast %61 : vector<1x4x128xbf16> to vector<4x128xbf16>
    %cst_32 = arith.constant dense<0.000000e+00> : vector<256x128xf32>
    %63 = tpu.matmul %60, %62, %cst_32 {dimension_numbers = #tpu.dot_dimension_numbers<[1], [0], [0], [1], [0, 0, 1, 1], [], []>} : vector<256x4xbf16>, vector<4x128xbf16>, vector<256x128xf32> -> vector<256x128xf32>
    %64 = arith.addf %58, %63 : vector<256x128xf32>
    %65 = tpu.iota {dimensions = array<i32: 0>} : vector<256x128xi32>
    %c16_i32_33 = arith.constant 16 : i32
    %66 = arith.subi %c16_i32_33, %0 : i32
    %c16_i32_34 = arith.constant 16 : i32
    %67 = arith.muli %66, %c16_i32_34 : i32
    %c0_i32_35 = arith.constant 0 : i32
    %c256_i32 = arith.constant 256 : i32
    %68 = arith.maxsi %c0_i32_35, %67 : i32
    %69 = arith.minsi %c256_i32, %68 : i32
    %70 = vector.broadcast %69 : i32 to vector<256x128xi32>
    %71 = arith.cmpi slt, %65, %70 : vector<256x128xi32>
    %cst_36 = arith.constant 0.000000e+00 : f32
    %72 = vector.broadcast %cst_36 : f32 to vector<256x128xf32>
    %73 = arith.select %71, %64, %72 : vector<256x128xi1>, vector<256x128xf32>
    %cst_37 = arith.constant dense<0.000000e+00> : vector<128xf32>
    %74 = vector.multi_reduction <add>, %73, %cst_37 [0] : vector<256x128xf32> to vector<128xf32>
    %75 = vector.shape_cast %74 : vector<128xf32> to vector<1x128xf32>
    %76 = vector.shape_cast %75 : vector<1x128xf32> to vector<1x1x128xf32>
    %c0_38 = arith.constant 0 : index
    %c0_39 = arith.constant 0 : index
    %c0_40 = arith.constant 0 : index
    %77 = vector.load %arg4[%c0_38, %c0_39, %c0_40] : memref<1x1x128xf32, #tpu.memory_space<vmem>>, vector<1x1x128xf32>
    tpu.vector_store %arg4[%c0_38, %c0_39, %c0_40], %76 {strides = array<i32>} : memref<1x1x128xf32, #tpu.memory_space<vmem>>, vector<1x1x128xf32>,
    %78 = arith.mulf %73, %73 : vector<256x128xf32>
    %cst_41 = arith.constant dense<0.000000e+00> : vector<128xf32>
    %79 = vector.multi_reduction <add>, %78, %cst_41 [0] : vector<256x128xf32> to vector<128xf32>
    %80 = vector.shape_cast %79 : vector<128xf32> to vector<1x128xf32>
    %81 = vector.shape_cast %80 : vector<1x128xf32> to vector<1x1x128xf32>
    %c0_42 = arith.constant 0 : index
    %c0_43 = arith.constant 0 : index
    %c0_44 = arith.constant 0 : index
    %82 = vector.load %arg5[%c0_42, %c0_43, %c0_44] : memref<1x1x128xf32, #tpu.memory_space<vmem>>, vector<1x1x128xf32>
    tpu.vector_store %arg5[%c0_42, %c0_43, %c0_44], %81 {strides = array<i32>} : memref<1x1x128xf32, #tpu.memory_space<vmem>>, vector<1x1x128xf32>,
    return
  }
  func.func @transform_0(%arg0: i32, %arg1: i32) -> (i32, i32, i32) {
    %c0_i32 = arith.constant 0 : i32
    %c0_i32_0 = arith.constant 0 : i32
    %c0_i32_1 = arith.constant 0 : i32
    return %arg0, %c0_i32, %c0_i32_0 : i32, i32, i32
  }
  func.func @transform_1(%arg0: i32, %arg1: i32) -> (i32, i32, i32) {
    %c0_i32 = arith.constant 0 : i32
    %c0_i32_0 = arith.constant 0 : i32
    %c0_i32_1 = arith.constant 0 : i32
    %c0_i32_2 = arith.constant 0 : i32
    return %c0_i32, %c0_i32_0, %c0_i32_1 : i32, i32, i32
  }
  func.func @transform_2(%arg0: i32, %arg1: i32) -> (i32, i32, i32) {
    %c1_i32 = arith.constant 1 : i32
    %0 = arith.muli %arg0, %c1_i32 : i32
    %1 = arith.addi %0, %arg1 : i32
    %c0_i32 = arith.constant 0 : i32
    %c0_i32_0 = arith.constant 0 : i32
    %c0_i32_1 = arith.constant 0 : i32
    return %1, %c0_i32, %c0_i32_0 : i32, i32, i32
  }
  func.func @transform_3(%arg0: i32, %arg1: i32) -> (i32, i32, i32) {
    %c1_i32 = arith.constant 1 : i32
    %0 = arith.muli %arg0, %c1_i32 : i32
    %1 = arith.addi %0, %arg1 : i32
    %c0_i32 = arith.constant 0 : i32
    %c0_i32_0 = arith.constant 0 : i32
    %c0_i32_1 = arith.constant 0 : i32
    return %1, %c0_i32, %c0_i32_0 : i32, i32, i32
  }
}

module attributes {stable_mosaic.version = 11 : i64} {
  func.func @_conv_bn_act_kernel(%arg0: i32, %arg1: i32, %arg2: memref<18x18x4xbf16, #tpu.memory_space<vmem>>, %arg3: memref<9x4x128xbf16, #tpu.memory_space<vmem>>, %arg4: memref<1x128xf32, #tpu.memory_space<vmem>>, %arg5: memref<1x128xf32, #tpu.memory_space<vmem>>, %arg6: memref<256x128xbf16, #tpu.memory_space<vmem>>) attributes {dimension_semantics = [#tpu.dimension_semantics<parallel>, #tpu.dimension_semantics<parallel>], iteration_bounds = array<i64: 2, 1>, scalar_prefetch = 0 : i64, scratch_operands = 0 : i64, tpu.core_type = #tpu.core_type<tc>, window_params = [{transform_indices = @transform_0, window_bounds = array<i64: 18, 18, 4>}, {pipeline_mode = #tpu.pipeline_mode<synchronous>, transform_indices = @transform_1, window_bounds = array<i64: 9, 4, 128>}, {pipeline_mode = #tpu.pipeline_mode<synchronous>, transform_indices = @transform_2, window_bounds = array<i64: 1, 128>}, {pipeline_mode = #tpu.pipeline_mode<synchronous>, transform_indices = @transform_3, window_bounds = array<i64: 1, 128>}, {transform_indices = @transform_4, window_bounds = array<i64: 256, 128>}]} {
    %c16_i32 = arith.constant 16 : i32
    %0 = arith.muli %arg1, %c16_i32 : i32
    %cst = arith.constant 0.000000e+00 : f32
    %1 = vector.broadcast %cst : f32 to vector<256x128xf32>
    %c0_i32 = arith.constant 0 : i32
    %2 = arith.addi %0, %c0_i32 : i32
    %3 = arith.index_cast %2 : i32 to index
    %c0 = arith.constant 0 : index
    %c0_0 = arith.constant 0 : index
    %4 = vector.load %arg2[%3, %c0, %c0_0] : memref<18x18x4xbf16, #tpu.memory_space<vmem>>, vector<16x18x4xbf16>
    %5 = vector.extract_strided_slice %4 {offsets = [0, 0, 0], sizes = [16, 16, 4], strides = [1, 1, 1]} : vector<16x18x4xbf16> to vector<16x16x4xbf16>
    %6 = vector.shape_cast %5 : vector<16x16x4xbf16> to vector<256x4xbf16>
    %c0_1 = arith.constant 0 : index
    %c0_2 = arith.constant 0 : index
    %c0_3 = arith.constant 0 : index
    %7 = vector.load %arg3[%c0_1, %c0_2, %c0_3] : memref<9x4x128xbf16, #tpu.memory_space<vmem>>, vector<1x4x128xbf16>
    %8 = vector.shape_cast %7 : vector<1x4x128xbf16> to vector<4x128xbf16>
    %cst_4 = arith.constant dense<0.000000e+00> : vector<256x128xf32>
    %9 = tpu.matmul %6, %8, %cst_4 {dimension_numbers = #tpu.dot_dimension_numbers<[1], [0], [0], [1], [0, 0, 1, 1], [], []>} : vector<256x4xbf16>, vector<4x128xbf16>, vector<256x128xf32> -> vector<256x128xf32>
    %10 = arith.addf %1, %9 : vector<256x128xf32>
    %11 = vector.extract_strided_slice %4 {offsets = [0, 1, 0], sizes = [16, 16, 4], strides = [1, 1, 1]} : vector<16x18x4xbf16> to vector<16x16x4xbf16>
    %12 = vector.shape_cast %11 : vector<16x16x4xbf16> to vector<256x4xbf16>
    %c1 = arith.constant 1 : index
    %c0_5 = arith.constant 0 : index
    %c0_6 = arith.constant 0 : index
    %13 = vector.load %arg3[%c1, %c0_5, %c0_6] : memref<9x4x128xbf16, #tpu.memory_space<vmem>>, vector<1x4x128xbf16>
    %14 = vector.shape_cast %13 : vector<1x4x128xbf16> to vector<4x128xbf16>
    %cst_7 = arith.constant dense<0.000000e+00> : vector<256x128xf32>
    %15 = tpu.matmul %12, %14, %cst_7 {dimension_numbers = #tpu.dot_dimension_numbers<[1], [0], [0], [1], [0, 0, 1, 1], [], []>} : vector<256x4xbf16>, vector<4x128xbf16>, vector<256x128xf32> -> vector<256x128xf32>
    %16 = arith.addf %10, %15 : vector<256x128xf32>
    %17 = vector.extract_strided_slice %4 {offsets = [0, 2, 0], sizes = [16, 16, 4], strides = [1, 1, 1]} : vector<16x18x4xbf16> to vector<16x16x4xbf16>
    %18 = vector.shape_cast %17 : vector<16x16x4xbf16> to vector<256x4xbf16>
    %c2 = arith.constant 2 : index
    %c0_8 = arith.constant 0 : index
    %c0_9 = arith.constant 0 : index
    %19 = vector.load %arg3[%c2, %c0_8, %c0_9] : memref<9x4x128xbf16, #tpu.memory_space<vmem>>, vector<1x4x128xbf16>
    %20 = vector.shape_cast %19 : vector<1x4x128xbf16> to vector<4x128xbf16>
    %cst_10 = arith.constant dense<0.000000e+00> : vector<256x128xf32>
    %21 = tpu.matmul %18, %20, %cst_10 {dimension_numbers = #tpu.dot_dimension_numbers<[1], [0], [0], [1], [0, 0, 1, 1], [], []>} : vector<256x4xbf16>, vector<4x128xbf16>, vector<256x128xf32> -> vector<256x128xf32>
    %22 = arith.addf %16, %21 : vector<256x128xf32>
    %c1_i32 = arith.constant 1 : i32
    %23 = arith.addi %0, %c1_i32 : i32
    %24 = arith.index_cast %23 : i32 to index
    %c0_11 = arith.constant 0 : index
    %c0_12 = arith.constant 0 : index
    %25 = vector.load %arg2[%24, %c0_11, %c0_12] : memref<18x18x4xbf16, #tpu.memory_space<vmem>>, vector<16x18x4xbf16>
    %26 = vector.extract_strided_slice %25 {offsets = [0, 0, 0], sizes = [16, 16, 4], strides = [1, 1, 1]} : vector<16x18x4xbf16> to vector<16x16x4xbf16>
    %27 = vector.shape_cast %26 : vector<16x16x4xbf16> to vector<256x4xbf16>
    %c3 = arith.constant 3 : index
    %c0_13 = arith.constant 0 : index
    %c0_14 = arith.constant 0 : index
    %28 = vector.load %arg3[%c3, %c0_13, %c0_14] : memref<9x4x128xbf16, #tpu.memory_space<vmem>>, vector<1x4x128xbf16>
    %29 = vector.shape_cast %28 : vector<1x4x128xbf16> to vector<4x128xbf16>
    %cst_15 = arith.constant dense<0.000000e+00> : vector<256x128xf32>
    %30 = tpu.matmul %27, %29, %cst_15 {dimension_numbers = #tpu.dot_dimension_numbers<[1], [0], [0], [1], [0, 0, 1, 1], [], []>} : vector<256x4xbf16>, vector<4x128xbf16>, vector<256x128xf32> -> vector<256x128xf32>
    %31 = arith.addf %22, %30 : vector<256x128xf32>
    %32 = vector.extract_strided_slice %25 {offsets = [0, 1, 0], sizes = [16, 16, 4], strides = [1, 1, 1]} : vector<16x18x4xbf16> to vector<16x16x4xbf16>
    %33 = vector.shape_cast %32 : vector<16x16x4xbf16> to vector<256x4xbf16>
    %c4 = arith.constant 4 : index
    %c0_16 = arith.constant 0 : index
    %c0_17 = arith.constant 0 : index
    %34 = vector.load %arg3[%c4, %c0_16, %c0_17] : memref<9x4x128xbf16, #tpu.memory_space<vmem>>, vector<1x4x128xbf16>
    %35 = vector.shape_cast %34 : vector<1x4x128xbf16> to vector<4x128xbf16>
    %cst_18 = arith.constant dense<0.000000e+00> : vector<256x128xf32>
    %36 = tpu.matmul %33, %35, %cst_18 {dimension_numbers = #tpu.dot_dimension_numbers<[1], [0], [0], [1], [0, 0, 1, 1], [], []>} : vector<256x4xbf16>, vector<4x128xbf16>, vector<256x128xf32> -> vector<256x128xf32>
    %37 = arith.addf %31, %36 : vector<256x128xf32>
    %38 = vector.extract_strided_slice %25 {offsets = [0, 2, 0], sizes = [16, 16, 4], strides = [1, 1, 1]} : vector<16x18x4xbf16> to vector<16x16x4xbf16>
    %39 = vector.shape_cast %38 : vector<16x16x4xbf16> to vector<256x4xbf16>
    %c5 = arith.constant 5 : index
    %c0_19 = arith.constant 0 : index
    %c0_20 = arith.constant 0 : index
    %40 = vector.load %arg3[%c5, %c0_19, %c0_20] : memref<9x4x128xbf16, #tpu.memory_space<vmem>>, vector<1x4x128xbf16>
    %41 = vector.shape_cast %40 : vector<1x4x128xbf16> to vector<4x128xbf16>
    %cst_21 = arith.constant dense<0.000000e+00> : vector<256x128xf32>
    %42 = tpu.matmul %39, %41, %cst_21 {dimension_numbers = #tpu.dot_dimension_numbers<[1], [0], [0], [1], [0, 0, 1, 1], [], []>} : vector<256x4xbf16>, vector<4x128xbf16>, vector<256x128xf32> -> vector<256x128xf32>
    %43 = arith.addf %37, %42 : vector<256x128xf32>
    %c2_i32 = arith.constant 2 : i32
    %44 = arith.addi %0, %c2_i32 : i32
    %45 = arith.index_cast %44 : i32 to index
    %c0_22 = arith.constant 0 : index
    %c0_23 = arith.constant 0 : index
    %46 = vector.load %arg2[%45, %c0_22, %c0_23] : memref<18x18x4xbf16, #tpu.memory_space<vmem>>, vector<16x18x4xbf16>
    %47 = vector.extract_strided_slice %46 {offsets = [0, 0, 0], sizes = [16, 16, 4], strides = [1, 1, 1]} : vector<16x18x4xbf16> to vector<16x16x4xbf16>
    %48 = vector.shape_cast %47 : vector<16x16x4xbf16> to vector<256x4xbf16>
    %c6 = arith.constant 6 : index
    %c0_24 = arith.constant 0 : index
    %c0_25 = arith.constant 0 : index
    %49 = vector.load %arg3[%c6, %c0_24, %c0_25] : memref<9x4x128xbf16, #tpu.memory_space<vmem>>, vector<1x4x128xbf16>
    %50 = vector.shape_cast %49 : vector<1x4x128xbf16> to vector<4x128xbf16>
    %cst_26 = arith.constant dense<0.000000e+00> : vector<256x128xf32>
    %51 = tpu.matmul %48, %50, %cst_26 {dimension_numbers = #tpu.dot_dimension_numbers<[1], [0], [0], [1], [0, 0, 1, 1], [], []>} : vector<256x4xbf16>, vector<4x128xbf16>, vector<256x128xf32> -> vector<256x128xf32>
    %52 = arith.addf %43, %51 : vector<256x128xf32>
    %53 = vector.extract_strided_slice %46 {offsets = [0, 1, 0], sizes = [16, 16, 4], strides = [1, 1, 1]} : vector<16x18x4xbf16> to vector<16x16x4xbf16>
    %54 = vector.shape_cast %53 : vector<16x16x4xbf16> to vector<256x4xbf16>
    %c7 = arith.constant 7 : index
    %c0_27 = arith.constant 0 : index
    %c0_28 = arith.constant 0 : index
    %55 = vector.load %arg3[%c7, %c0_27, %c0_28] : memref<9x4x128xbf16, #tpu.memory_space<vmem>>, vector<1x4x128xbf16>
    %56 = vector.shape_cast %55 : vector<1x4x128xbf16> to vector<4x128xbf16>
    %cst_29 = arith.constant dense<0.000000e+00> : vector<256x128xf32>
    %57 = tpu.matmul %54, %56, %cst_29 {dimension_numbers = #tpu.dot_dimension_numbers<[1], [0], [0], [1], [0, 0, 1, 1], [], []>} : vector<256x4xbf16>, vector<4x128xbf16>, vector<256x128xf32> -> vector<256x128xf32>
    %58 = arith.addf %52, %57 : vector<256x128xf32>
    %59 = vector.extract_strided_slice %46 {offsets = [0, 2, 0], sizes = [16, 16, 4], strides = [1, 1, 1]} : vector<16x18x4xbf16> to vector<16x16x4xbf16>
    %60 = vector.shape_cast %59 : vector<16x16x4xbf16> to vector<256x4xbf16>
    %c8 = arith.constant 8 : index
    %c0_30 = arith.constant 0 : index
    %c0_31 = arith.constant 0 : index
    %61 = vector.load %arg3[%c8, %c0_30, %c0_31] : memref<9x4x128xbf16, #tpu.memory_space<vmem>>, vector<1x4x128xbf16>
    %62 = vector.shape_cast %61 : vector<1x4x128xbf16> to vector<4x128xbf16>
    %cst_32 = arith.constant dense<0.000000e+00> : vector<256x128xf32>
    %63 = tpu.matmul %60, %62, %cst_32 {dimension_numbers = #tpu.dot_dimension_numbers<[1], [0], [0], [1], [0, 0, 1, 1], [], []>} : vector<256x4xbf16>, vector<4x128xbf16>, vector<256x128xf32> -> vector<256x128xf32>
    %64 = arith.addf %58, %63 : vector<256x128xf32>
    %c0_33 = arith.constant 0 : index
    %c0_34 = arith.constant 0 : index
    %65 = vector.load %arg4[%c0_33, %c0_34] : memref<1x128xf32, #tpu.memory_space<vmem>>, vector<1x128xf32>
    %66 = vector.broadcast %65 : vector<1x128xf32> to vector<256x128xf32>
    %67 = arith.mulf %64, %66 : vector<256x128xf32>
    %c0_35 = arith.constant 0 : index
    %c0_36 = arith.constant 0 : index
    %68 = vector.load %arg5[%c0_35, %c0_36] : memref<1x128xf32, #tpu.memory_space<vmem>>, vector<1x128xf32>
    %69 = vector.broadcast %68 : vector<1x128xf32> to vector<256x128xf32>
    %70 = arith.addf %67, %69 : vector<256x128xf32>
    %cst_37 = arith.constant 0.000000e+00 : f32
    %71 = vector.broadcast %cst_37 : f32 to vector<256x128xf32>
    %72 = arith.cmpf ogt, %70, %71 : vector<256x128xf32>
    %cst_38 = arith.constant 0.00999999977 : f32
    %73 = vector.broadcast %cst_38 : f32 to vector<256x128xf32>
    %74 = arith.mulf %73, %70 : vector<256x128xf32>
    %75 = arith.select %72, %70, %74 : vector<256x128xi1>, vector<256x128xf32>
    %76 = arith.truncf %75 : vector<256x128xf32> to vector<256x128xbf16>
    %c0_39 = arith.constant 0 : index
    %c0_40 = arith.constant 0 : index
    %77 = vector.load %arg6[%c0_39, %c0_40] : memref<256x128xbf16, #tpu.memory_space<vmem>>, vector<256x128xbf16>
    tpu.vector_store %arg6[%c0_39, %c0_40], %76 {strides = array<i32>} : memref<256x128xbf16, #tpu.memory_space<vmem>>, vector<256x128xbf16>,
    return
  }
  func.func @transform_0(%arg0: i32, %arg1: i32) -> (i32, i32, i32) {
    %c0_i32 = arith.constant 0 : i32
    %c0_i32_0 = arith.constant 0 : i32
    %c0_i32_1 = arith.constant 0 : i32
    return %arg0, %c0_i32, %c0_i32_0 : i32, i32, i32
  }
  func.func @transform_1(%arg0: i32, %arg1: i32) -> (i32, i32, i32) {
    %c0_i32 = arith.constant 0 : i32
    %c0_i32_0 = arith.constant 0 : i32
    %c0_i32_1 = arith.constant 0 : i32
    %c0_i32_2 = arith.constant 0 : i32
    return %c0_i32, %c0_i32_0, %c0_i32_1 : i32, i32, i32
  }
  func.func @transform_2(%arg0: i32, %arg1: i32) -> (i32, i32) {
    %c0_i32 = arith.constant 0 : i32
    %c0_i32_0 = arith.constant 0 : i32
    %c0_i32_1 = arith.constant 0 : i32
    return %c0_i32, %c0_i32_0 : i32, i32
  }
  func.func @transform_3(%arg0: i32, %arg1: i32) -> (i32, i32) {
    %c0_i32 = arith.constant 0 : i32
    %c0_i32_0 = arith.constant 0 : i32
    %c0_i32_1 = arith.constant 0 : i32
    return %c0_i32, %c0_i32_0 : i32, i32
  }
  func.func @transform_4(%arg0: i32, %arg1: i32) -> (i32, i32) {
    %c1_i32 = arith.constant 1 : i32
    %0 = arith.muli %arg0, %c1_i32 : i32
    %1 = arith.addi %0, %arg1 : i32
    %c0_i32 = arith.constant 0 : i32
    %c0_i32_0 = arith.constant 0 : i32
    return %1, %c0_i32 : i32, i32
  }
}

</mosaic_0001>

<llo_original>
// kernel: dbl_forward.4
$region0: #{dbl_forward.4}
  #allocation0 [shape = 'u32[]', space=smem, size = 0x4, offset = 0x4, fixed_abs, tag = 'smem constant byte address 0x4 - core index']
  #allocation1 [shape = 'u32[144,128]{1,0:T(1,128)}', space=vmem, size = 0x12000, scoped, tag = 'internal scratch']
  %s0 = inlined_call_operand.vmem [shape: f32[2,1,128], index: 0, kind: input, shape index: {}]
  %s1 = inlined_call_operand.vmem [shape: f32[2,1,128], index: 1, kind: input, shape index: {}]
  %s2 = inlined_call_operand.vmem [shape: f32[1,128], index: 2, kind: input, shape index: {}]
  %s3 = inlined_call_operand.vmem [shape: f32[1,128], index: 3, kind: input, shape index: {}]
  %s4 = inlined_call_operand.vmem [shape: f32[1,128], index: 4, kind: output, shape index: {0}]
  %s5 = inlined_call_operand.vmem [shape: f32[1,128], index: 5, kind: output, shape index: {1}]
  %6 = xla_tuple %s4, %s5
  %s7 = sld [smem:[#allocation0]]
  $region34: #{dbl_forward.4} parent=0
    _
  %s9 = ssub.s32 1, %s7
  %s10 = scalar_select 0, %s9, %s7
  // Predicated region
  $region2: #{dbl_forward.4} parent=0 // pred_check
    _
  $region3: #{dbl_forward.4} parent=0 // pred_check_branch
    %12 = sbr.rel (0) target = $region5
  $region4: #{dbl_forward.4} parent=0 // pred_region
    _
  $region5: #{dbl_forward.4} parent=0 // pred_fallthru
    _
  // Predicated region
  $region6: #{dbl_forward.4} parent=0 // pred_check
    _
  $region7: #{dbl_forward.4} parent=0 // pred_check_branch
    %14 = sbr.rel (0) target = $region9
  $region8: #{dbl_forward.4} parent=0 // pred_region
    _
  $region9: #{dbl_forward.4} parent=0 // pred_fallthru
    _
  // Predicated region
  $region10: #{dbl_forward.4} parent=0 // pred_check
    _
  $region11: #{dbl_forward.4} parent=0 // pred_check_branch
    %16 = sbr.rel (0) target = $region13
  $region12: #{dbl_forward.4} parent=0 // pred_region
    _
  $region13: #{dbl_forward.4} parent=0 // pred_fallthru
    _
  // Predicated region
  $region14: #{dbl_forward.4} parent=0 // pred_check
    _
  $region15: #{dbl_forward.4} parent=0 // pred_check_branch
    %18 = sbr.rel (0) target = $region17
  $region16: #{dbl_forward.4} parent=0 // pred_region
    _
  $region17: #{dbl_forward.4} parent=0 // pred_fallthru
    _
  %v19 = vld [vmem:[%s0] sm:$0x1]
  %v20 = vld [vmem:[%s0 + $0x1] sm:$0x1]
  %vm21 = vcmask 1040384
  %v22 = vsel %vm21, %v19, 0.0
  %v23 = vsel %vm21, %v20, 0.0
  %v24 = vadd.f32 %v22, %v23
  %v25 = vld [vmem:[%s1] sm:$0x1]
  %v26 = vld [vmem:[%s1 + $0x1] sm:$0x1]
  %v27 = vsel %vm21, %v25, 0.0
  %v28 = vsel %vm21, %v26, 0.0
  %v29 = vadd.f32 %v27, %v28
  %v30 = vmul.f32 %v24, 0.001953125
  %v31 = vmul.f32 %v29, 0.001953125
  %v32 = vmul.f32 %v30, %v30
  %v33 = vsub.f32 %v31, %v32
  %v34 = vmax.f32 %v33, 0.0
  %v35 = vadd.f32 %v34, 1e-05
  %v36 = vrsqrt.pop %v35
  %v37 = vld [vmem:[%s2] sm:$0x1]
  %v38 = vmul.f32 %v37, %v36
  %v39 = vld [vmem:[%s3] sm:$0x1]
  %v40 = vmul.f32 %v30, %v38
  %v41 = vsub.f32 %v39, %v40
  %42 = vst [vmem:[%s4] sm:$0x1] %v38
  %43 = vst [vmem:[%s5] sm:$0x1] %v41
  // Predicated region
  $region18: #{dbl_forward.4} parent=0 // pred_check
    _
  $region19: #{dbl_forward.4} parent=0 // pred_check_branch
    %45 = sbr.rel (0) target = $region21
  $region20: #{dbl_forward.4} parent=0 // pred_region
    _
  $region21: #{dbl_forward.4} parent=0 // pred_fallthru
    _
  // Predicated region
  $region22: #{dbl_forward.4} parent=0 // pred_check
    _
  $region23: #{dbl_forward.4} parent=0 // pred_check_branch
    %47 = sbr.rel (0) target = $region25
  $region24: #{dbl_forward.4} parent=0 // pred_region
    _
  $region25: #{dbl_forward.4} parent=0 // pred_fallthru
    _
  // Predicated region
  $region26: #{dbl_forward.4} parent=0 // pred_check
    _
  $region27: #{dbl_forward.4} parent=0 // pred_check_branch
    %49 = sbr.rel (0) target = $region29
  $region28: #{dbl_forward.4} parent=0 // pred_region
    _
  $region29: #{dbl_forward.4} parent=0 // pred_fallthru
    _
  // Predicated region
  $region30: #{dbl_forward.4} parent=0 // pred_check
    _
  $region31: #{dbl_forward.4} parent=0 // pred_check_branch
    %51 = sbr.rel (0) target = $region33
  $region32: #{dbl_forward.4} parent=0 // pred_region
    _
  $region33: #{dbl_forward.4} parent=0 // pred_fallthru
    _

// kernel: dbl_forward.5
$region0: #{dbl_forward.5}
  #allocation0 [shape = 'u32[]', space=smem, size = 0x4, offset = 0x4, fixed_abs, tag = 'smem constant byte address 0x4 - core index']
  #allocation1 [shape = 'u32[144,128]{1,0:T(1,128)}', space=vmem, size = 0x12000, scoped, tag = 'internal scratch']
  %s0 = inlined_call_operand.vmem [shape: bf16[36,18,4], index: 0, kind: input, shape index: {}]
  %s1 = inlined_call_operand.vmem [shape: bf16[9,4,128], index: 1, kind: input, shape index: {}]
  %s2 = inlined_call_operand.vmem [shape: f32[1,128], index: 2, kind: input, shape index: {}]
  %s3 = inlined_call_operand.vmem [shape: f32[1,128], index: 3, kind: input, shape index: {}]
  %s4 = inlined_call_operand.vmem [shape: bf16[512,128], index: 4, kind: output, shape index: {}]
  %s5 = sld [smem:[#allocation0]]
  $region49: #{dbl_forward.5} parent=0
    _
  %s7 = ssub.s32 1, %s5
  %s8 = scalar_select 0, %s7, %s5
  loop: start=0, step=1, limit=4
  $region2: #{dbl_forward.5} parent=0 // loop_pre_header
    _
  $region3: #{dbl_forward.5} parent=0 // loop_header
    %s10 = sphi 0, %s14
    %p11 = scmp.ge.s32.totalorder %s10, 4
    %s17 = sphi 0, %s29
    %s18 = sphi 0, %s25
    %s19 = sphi 0, %s17
    %s20 = sphi 0, %s18
    %s21 = sphi 0, %s19
    %s22 = sphi 0, %s20
    %s32 = sphi 0, %s34
    %s35 = sphi 0, %s32
    %s36 = sphi 0, %s35
    %s52 = sphi 0, %s36
    %s56 = sphi 0, %s56
    %s58 = sphi 0, %s56
    %s59 = sphi 0, %s58
    %s73 = sphi 0, %s59
    %s77 = sphi 0, %s77
    %s79 = sphi 0, %s77
    %s80 = sphi 0, %s79
    %s94 = sphi 0, %s80
    %s98 = sphi 0, %s98
    %s100 = sphi 0, %s98
    %s101 = sphi 0, %s100
    %s115 = sphi 0, %s101
    %s123 = sphi 0, %s125
    %s126 = sphi 0, %s123
    %s127 = sphi 0, %s126
    %s143 = sphi 0, %s127
  $region4: #{dbl_forward.5} parent=0 // loop_header_branch
    %13 = sbr.rel (%p11) target = $region8
  $region5: #{dbl_forward.5} parent=0 // loop_body
    %s15 = ssub.s32 %s10, 1
    %s16 = ssub.s32 %s10, 2
    %s23 = sadd.s32 1, %s18
    %p24 = scmp.ge.s32.totalorder %s23, 1
    %s25 = scalar_select %p24, 0, %s23
    %s26 = sadd.s32 1, %s17
    %s27 = scalar_select %p24, %s26, %s17
    %p28 = scmp.ge.s32.totalorder %s27, 2
    %s29 = scalar_select %p28, 0, %s27
    %s30 = ssub.s32 %s17, %s29
    %p31 = scmp.eq.s32.totalorder %s30, 0
    %s33 = sadd.s32 %s32, 1
    %s34 = scalar_select %p31, %s32, %s33
    %p37 = pneg %p31
    %p38 = scmp.eq.s32.totalorder %s10, 1
    %p39 = por %p37, %p38
    %p40 = scmp.ne.s32.totalorder %s32, %s35
    %p41 = scmp.eq.s32.totalorder %s10, 0
    %p42 = por %p40, %p41
    %p43 = scmp.ne.s32.totalorder %s32, %s35
    %p44 = scmp.eq.s32.totalorder %s15, 1
    %p45 = por %p43, %p44
    %p46 = scmp.ne.s32.totalorder %s35, %s36
    %p47 = scmp.eq.s32.totalorder %s15, 0
    %p48 = por %p46, %p47
    %p49 = scmp.ne.s32.totalorder %s35, %s36
    %p50 = scmp.eq.s32.totalorder %s16, 1
    %p51 = por %p49, %p50
    %p53 = scmp.ne.s32.totalorder %s36, %s52
    %p54 = scmp.eq.s32.totalorder %s16, 0
    %p55 = por %p53, %p54
    %s57 = sadd.s32 %s56, 1
    %p60 = scmp.eq.s32.totalorder %s10, 1
    %p61 = scmp.ne.s32.totalorder %s56, %s58
    %p62 = scmp.eq.s32.totalorder %s10, 0
    %p63 = por %p61, %p62
    %p64 = scmp.ne.s32.totalorder %s56, %s58
    %p65 = scmp.eq.s32.totalorder %s15, 1
    %p66 = por %p64, %p65
    %p67 = scmp.ne.s32.totalorder %s58, %s59
    %p68 = scmp.eq.s32.totalorder %s15, 0
    %p69 = por %p67, %p68
    %p70 = scmp.ne.s32.totalorder %s58, %s59
    %p71 = scmp.eq.s32.totalorder %s16, 1
    %p72 = por %p70, %p71
    %p74 = scmp.ne.s32.totalorder %s59, %s73
    %p75 = scmp.eq.s32.totalorder %s16, 0
    %p76 = por %p74, %p75
    %s78 = sadd.s32 %s77, 1
    %p81 = scmp.eq.s32.totalorder %s10, 1
    %p82 = scmp.ne.s32.totalorder %s77, %s79
    %p83 = scmp.eq.s32.totalorder %s10, 0
    %p84 = por %p82, %p83
    %p85 = scmp.ne.s32.totalorder %s77, %s79
    %p86 = scmp.eq.s32.totalorder %s15, 1
    %p87 = por %p85, %p86
    %p88 = scmp.ne.s32.totalorder %s79, %s80
    %p89 = scmp.eq.s32.totalorder %s15, 0
    %p90 = por %p88, %p89
    %p91 = scmp.ne.s32.totalorder %s79, %s80
    %p92 = scmp.eq.s32.totalorder %s16, 1
    %p93 = por %p91, %p92
    %p95 = scmp.ne.s32.totalorder %s80, %s94
    %p96 = scmp.eq.s32.totalorder %s16, 0
    %p97 = por %p95, %p96
    %s99 = sadd.s32 %s98, 1
    %p102 = scmp.eq.s32.totalorder %s10, 1
    %p103 = scmp.ne.s32.totalorder %s98, %s100
    %p104 = scmp.eq.s32.totalorder %s10, 0
    %p105 = por %p103, %p104
    %p106 = scmp.ne.s32.totalorder %s98, %s100
    %p107 = scmp.eq.s32.totalorder %s15, 1
    %p108 = por %p106, %p107
    %p109 = scmp.ne.s32.totalorder %s100, %s101
    %p110 = scmp.eq.s32.totalorder %s15, 0
    %p111 = por %p109, %p110
    %p112 = scmp.ne.s32.totalorder %s100, %s101
    %p113 = scmp.eq.s32.totalorder %s16, 1
    %p114 = por %p112, %p113
    %p116 = scmp.ne.s32.totalorder %s101, %s115
    %p117 = scmp.eq.s32.totalorder %s16, 0
    %p118 = por %p116, %p117
    %s119 = sadd.s32 %s17, %s18
    %s120 = sadd.s32 %s29, %s25
    %s121 = ssub.s32 %s119, %s120
    %p122 = scmp.eq.s32.totalorder %s121, 0
    %s124 = sadd.s32 %s123, 1
    %s125 = scalar_select %p122, %s123, %s124
    %p128 = pneg %p122
    %p129 = scmp.eq.s32.totalorder %s10, 1
    %p130 = por %p128, %p129
    %p131 = scmp.ne.s32.totalorder %s123, %s126
    %p132 = scmp.eq.s32.totalorder %s10, 0
    %p133 = por %p131, %p132
    %p134 = scmp.ne.s32.totalorder %s123, %s126
    %p135 = scmp.eq.s32.totalorder %s15, 1
    %p136 = por %p134, %p135
    %p137 = scmp.ne.s32.totalorder %s126, %s127
    %p138 = scmp.eq.s32.totalorder %s15, 0
    %p139 = por %p137, %p138
    %p140 = scmp.ne.s32.totalorder %s126, %s127
    %p141 = scmp.eq.s32.totalorder %s16, 1
    %p142 = por %p140, %p141
    %p144 = scmp.ne.s32.totalorder %s127, %s143
    %p145 = scmp.eq.s32.totalorder %s16, 0
    %p146 = por %p144, %p145
    %p147 = scmp.le.s32.totalorder 1, %s10
    %p148 = scmp.lt.s32.totalorder %s10, 3
    %p149 = pnand %p147, %p148
    %p150 = pneg %p149
    // Predicated region
    $region9: #{dbl_forward.5} parent=5 // pred_check
      _
    $region10: #{dbl_forward.5} parent=5 // pred_check_branch
      %152 = sbr.rel (%p149) target = $region12
    $region11: #{dbl_forward.5} parent=5 // pred_region
      %s153 = ssub.s32 %s10, 1
      // Predicated region
      $region13: #{dbl_forward.5} parent=11 // pred_check
        %p154 = pneg %p69
      $region14: #{dbl_forward.5} parent=11 // pred_check_branch
        %156 = sbr.rel (%p154) target = $region16
      $region15: #{dbl_forward.5} parent=11 // pred_region
        _
      $region16: #{dbl_forward.5} parent=11 // pred_fallthru
        _
      // Predicated region
      $region17: #{dbl_forward.5} parent=11 // pred_check
        %p157 = pneg %p90
      $region18: #{dbl_forward.5} parent=11 // pred_check_branch
        %159 = sbr.rel (%p157) target = $region20
      $region19: #{dbl_forward.5} parent=11 // pred_region
        _
      $region20: #{dbl_forward.5} parent=11 // pred_fallthru
        _
      // Predicated region
      $region21: #{dbl_forward.5} parent=11 // pred_check
        %p160 = pneg %p111
      $region22: #{dbl_forward.5} parent=11 // pred_check_branch
        %162 = sbr.rel (%p160) target = $region24
      $region23: #{dbl_forward.5} parent=11 // pred_region
        _
      $region24: #{dbl_forward.5} parent=11 // pred_fallthru
        _
    $region12: #{dbl_forward.5} parent=5 // pred_fallthru
      _
    %p163 = scmp.lt.s32.totalorder %s10, 2
    // Predicated region
    $region25: #{dbl_forward.5} parent=5 // pred_check
      %p164 = pneg %p163
    $region26: #{dbl_forward.5} parent=5 // pred_check_branch
      %166 = sbr.rel (%p164) target = $region28
    $region27: #{dbl_forward.5} parent=5 // pred_region
      // Predicated region
      $region29: #{dbl_forward.5} parent=27 // pred_check
        %p167 = pneg %p42
      $region30: #{dbl_forward.5} parent=27 // pred_check_branch
        %169 = sbr.rel (%p167) target = $region32
      $region31: #{dbl_forward.5} parent=27 // pred_region
        %s170 = smul.u32 18, %s17
        %p171 = scmp.lt.s32.totalorder %s170, 35
        %s172 = scalar_select %p171, %s170, 35
        %s173 = smul.addr %s172, 3
        %s174 = smul.addr %s173, 4
        %s175 = scalar_lea.vmem %s0, %s174
        %s176 = smul.u32 18, %s17
      $region32: #{dbl_forward.5} parent=27 // pred_fallthru
        _
    $region28: #{dbl_forward.5} parent=5 // pred_fallthru
      _
    %p177 = scmp.le.s32.totalorder 1, %s10
    %p178 = scmp.lt.s32.totalorder %s10, 3
    %p179 = pnand %p177, %p178
    %p180 = pneg %p179
    // Predicated region
    $region33: #{dbl_forward.5} parent=5 // pred_check
      _
    $region34: #{dbl_forward.5} parent=5 // pred_check_branch
      %182 = sbr.rel (%p179) target = $region36
    $region35: #{dbl_forward.5} parent=5 // pred_region
      %s183 = ssub.s32 %s10, 1
      %s184 = smul.u32 18, %s19
      %p185 = scmp.lt.s32.totalorder %s184, 35
      %s186 = scalar_select %p185, %s184, 35
      %s187 = smul.addr %s186, 3
      %s188 = smul.addr %s187, 4
      %s189 = scalar_lea.vmem %s0, %s188
      %p190 = pneg %p48
      %p191 = pneg %p45
      %p192 = pneg %p69
      %p193 = pneg %p66
      %p194 = pneg %p90
      %p195 = pneg %p87
      %p196 = pneg %p111
      %p197 = pneg %p108
      %p198 = pneg %p139
      %p199 = pneg %p136
      %s200 = sadd.s32 %s19, %s20
      %s201 = smul.u32 32, %s200
      %p202 = scmp.lt.s32.totalorder %s201, 63
      %s203 = scalar_select %p202, %s201, 63
      %s204 = smul.addr %s203, 4
      %s205 = scalar_lea.vmem %s4, %s204
      %s206 = smul.u32 18, %s19
      %p207 = scmp.lt.s32.totalorder %s206, 35
      %s208 = scalar_select %p207, %s206, 35
      %s209 = smul.addr %s208, 3
      %s210 = smul.addr %s209, 4
      %s211 = scalar_lea.vmem %s0, %s210
      %s212 = smul.u32 18, %s19
      %s213 = sadd.s32 %s19, %s20
      %s214 = smul.u32 32, %s213
      %p215 = scmp.lt.s32.totalorder %s214, 63
      %s216 = scalar_select %p215, %s214, 63
      %s217 = smul.addr %s216, 4
      %s218 = scalar_lea.vmem %s4, %s217
      %s219 = sadd.s32 %s19, %s20
      %s220 = smul.u32 32, %s219
      %s222 = smul.u32 %s20, 16
      %s223 = smul.u32 %s222, 3
      %s224 = smul.addr %s223, 4
      %s225 = scalar_lea.vmem %s211, %s224
      %v226 = vld [vmem:[%s225] sm:$0xf]
      %v227 = vld [vmem:[%s225 + $0x4] sm:$0xf]
      %v228 = vld [vmem:[%s225 + $0x8] sm:$0x1]
      %v229 = vld [vmem:[%s225 + $0xc] sm:$0xf]
      %v230 = vld [vmem:[%s225 + $0x10] sm:$0xf]
      %v231 = vld [vmem:[%s225 + $0x14] sm:$0x1]
      %v232 = vld [vmem:[%s225 + $0x18] sm:$0xf]
      %v233 = vld [vmem:[%s225 + $0x1c] sm:$0xf]
      %v234 = vld [vmem:[%s225 + $0x20] sm:$0x1]
      %v235 = vld [vmem:[%s225 + $0x24] sm:$0xf]
      %v236 = vld [vmem:[%s225 + $0x28] sm:$0xf]
      %v237 = vld [vmem:[%s225 + $0x2c] sm:$0x1]
      %v238 = vld [vmem:[%s225 + $0x30] sm:$0xf]
      %v239 = vld [vmem:[%s225 + $0x34] sm:$0xf]
      %v240 = vld [vmem:[%s225 + $0x38] sm:$0x1]
      %v241 = vld [vmem:[%s225 + $0x3c] sm:$0xf]
      %v242 = vld [vmem:[%s225 + $0x40] sm:$0xf]
      %v243 = vld [vmem:[%s225 + $0x44] sm:$0x1]
      %v244 = vld [vmem:[%s225 + $0x48] sm:$0xf]
      %v245 = vld [vmem:[%s225 + $0x4c] sm:$0xf]
      %v246 = vld [vmem:[%s225 + $0x50] sm:$0x1]
      %v247 = vld [vmem:[%s225 + $0x54] sm:$0xf]
      %v248 = vld [vmem:[%s225 + $0x58] sm:$0xf]
      %v249 = vld [vmem:[%s225 + $0x5c] sm:$0x1]
      %v250 = vld [vmem:[%s225 + $0x60] sm:$0xf]
      %v251 = vld [vmem:[%s225 + $0x64] sm:$0xf]
      %v252 = vld [vmem:[%s225 + $0x68] sm:$0x1]
      %v253 = vld [vmem:[%s225 + $0x6c] sm:$0xf]
      %v254 = vld [vmem:[%s225 + $0x70] sm:$0xf]
      %v255 = vld [vmem:[%s225 + $0x74] sm:$0x1]
      %v256 = vld [vmem:[%s225 + $0x78] sm:$0xf]
      %v257 = vld [vmem:[%s225 + $0x7c] sm:$0xf]
      %v258 = vld [vmem:[%s225 + $0x80] sm:$0x1]
      %v259 = vld [vmem:[%s225 + $0x84] sm:$0xf]
      %v260 = vld [vmem:[%s225 + $0x88] sm:$0xf]
      %v261 = vld [vmem:[%s225 + $0x8c] sm:$0x1]
      %v262 = vld [vmem:[%s225 + $0x90] sm:$0xf]
      %v263 = vld [vmem:[%s225 + $0x94] sm:$0xf]
      %v264 = vld [vmem:[%s225 + $0x98] sm:$0x1]
      %v265 = vld [vmem:[%s225 + $0x9c] sm:$0xf]
      %v266 = vld [vmem:[%s225 + $0xa0] sm:$0xf]
      %v267 = vld [vmem:[%s225 + $0xa4] sm:$0x1]
      %v268 = vld [vmem:[%s225 + $0xa8] sm:$0xf]
      %v269 = vld [vmem:[%s225 + $0xac] sm:$0xf]
      %v270 = vld [vmem:[%s225 + $0xb0] sm:$0x1]
      %v271 = vld [vmem:[%s225 + $0xb4] sm:$0xf]
      %v272 = vld [vmem:[%s225 + $0xb8] sm:$0xf]
      %v273 = vld [vmem:[%s225 + $0xbc] sm:$0x1]
      %v274 = vld [vmem:[%s1] sm:$0x3]
      %vm275 = vsmask.f32 3328
      %vm276 = vsmask.f32 7440
      %vm277 = vmor %vm275, %vm276
      %v279 = vshrl.u32 %v226, 16
      %v281 = vrot.slane %v279, 4
      %v282 = vshll.u32 %v226, 16
      %v284 = vrot.slane %v282, 5
      %v285 = vor.u32 %v281, %v284
      %v286 = vrot.slane %v285, 4
      %v288 = vshll.u32 %v227, 16
      %v290 = vrot.slane %v288, 5
      %v291 = vsel %vm277, %v286, %v290
      %v292 = vshrl.u32 %v227, 16
      %v294 = vrot.slane %v292, 4
      %v295 = vor.u32 %v294, %v290
      %v296 = vrot.slane %v295, 4
      %v298 = vshll.u32 %v228, 16
      %v300 = vrot.slane %v298, 5
      %v301 = vsel %vm277, %v296, %v300
      %v303 = vshrl.u32 %v229, 16
      %v305 = vrot.slane %v303, 4
      %v306 = vshll.u32 %v229, 16
      %v308 = vrot.slane %v306, 5
      %v309 = vor.u32 %v305, %v308
      %v310 = vrot.slane %v309, 4
      %v312 = vshll.u32 %v230, 16
      %v314 = vrot.slane %v312, 5
      %v315 = vsel %vm277, %v310, %v314
      %v316 = vshrl.u32 %v230, 16
      %v318 = vrot.slane %v316, 4
      %v319 = vor.u32 %v318, %v314
      %v320 = vrot.slane %v319, 4
      %v322 = vshll.u32 %v231, 16
      %v324 = vrot.slane %v322, 5
      %v325 = vsel %vm277, %v320, %v324
      %v327 = vshrl.u32 %v232, 16
      %v329 = vrot.slane %v327, 4
      %v330 = vshll.u32 %v232, 16
      %v332 = vrot.slane %v330, 5
      %v333 = vor.u32 %v329, %v332
      %v334 = vrot.slane %v333, 4
      %v336 = vshll.u32 %v233, 16
      %v338 = vrot.slane %v336, 5
      %v339 = vsel %vm277, %v334, %v338
      %v340 = vshrl.u32 %v233, 16
      %v342 = vrot.slane %v340, 4
      %v343 = vor.u32 %v342, %v338
      %v344 = vrot.slane %v343, 4
      %v346 = vshll.u32 %v234, 16
      %v348 = vrot.slane %v346, 5
      %v349 = vsel %vm277, %v344, %v348
      %v351 = vshrl.u32 %v235, 16
      %v353 = vrot.slane %v351, 4
      %v354 = vshll.u32 %v235, 16
      %v356 = vrot.slane %v354, 5
      %v357 = vor.u32 %v353, %v356
      %v358 = vrot.slane %v357, 4
      %v360 = vshll.u32 %v236, 16
      %v362 = vrot.slane %v360, 5
      %v363 = vsel %vm277, %v358, %v362
      %v364 = vshrl.u32 %v236, 16
      %v366 = vrot.slane %v364, 4
      %v367 = vor.u32 %v366, %v362
      %v368 = vrot.slane %v367, 4
      %v370 = vshll.u32 %v237, 16
      %v372 = vrot.slane %v370, 5
      %v373 = vsel %vm277, %v368, %v372
      %v375 = vshrl.u32 %v238, 16
      %v377 = vrot.slane %v375, 4
      %v378 = vshll.u32 %v238, 16
      %v380 = vrot.slane %v378, 5
      %v381 = vor.u32 %v377, %v380
      %v382 = vrot.slane %v381, 4
      %v384 = vshll.u32 %v239, 16
      %v386 = vrot.slane %v384, 5
      %v387 = vsel %vm277, %v382, %v386
      %v388 = vshrl.u32 %v239, 16
      %v390 = vrot.slane %v388, 4
      %v391 = vor.u32 %v390, %v386
      %v392 = vrot.slane %v391, 4
      %v394 = vshll.u32 %v240, 16
      %v396 = vrot.slane %v394, 5
      %v397 = vsel %vm277, %v392, %v396
      %v399 = vshrl.u32 %v241, 16
      %v401 = vrot.slane %v399, 4
      %v402 = vshll.u32 %v241, 16
      %v404 = vrot.slane %v402, 5
      %v405 = vor.u32 %v401, %v404
      %v406 = vrot.slane %v405, 4
      %v408 = vshll.u32 %v242, 16
      %v410 = vrot.slane %v408, 5
      %v411 = vsel %vm277, %v406, %v410
      %v412 = vshrl.u32 %v242, 16
      %v414 = vrot.slane %v412, 4
      %v415 = vor.u32 %v414, %v410
      %v416 = vrot.slane %v415, 4
      %v418 = vshll.u32 %v243, 16
      %v420 = vrot.slane %v418, 5
      %v421 = vsel %vm277, %v416, %v420
      %v423 = vshrl.u32 %v244, 16
      %v425 = vrot.slane %v423, 4
      %v426 = vshll.u32 %v244, 16
      %v428 = vrot.slane %v426, 5
      %v429 = vor.u32 %v425, %v428
      %v430 = vrot.slane %v429, 4
      %v432 = vshll.u32 %v245, 16
      %v434 = vrot.slane %v432, 5
      %v435 = vsel %vm277, %v430, %v434
      %v436 = vshrl.u32 %v245, 16
      %v438 = vrot.slane %v436, 4
      %v439 = vor.u32 %v438, %v434
      %v440 = vrot.slane %v439, 4
      %v442 = vshll.u32 %v246, 16
      %v444 = vrot.slane %v442, 5
      %v445 = vsel %vm277, %v440, %v444
      %v447 = vshrl.u32 %v247, 16
      %v449 = vrot.slane %v447, 4
      %v450 = vshll.u32 %v247, 16
      %v452 = vrot.slane %v450, 5
      %v453 = vor.u32 %v449, %v452
      %v454 = vrot.slane %v453, 4
      %v456 = vshll.u32 %v248, 16
      %v458 = vrot.slane %v456, 5
      %v459 = vsel %vm277, %v454, %v458
      %v460 = vshrl.u32 %v248, 16
      %v462 = vrot.slane %v460, 4
      %v463 = vor.u32 %v462, %v458
      %v464 = vrot.slane %v463, 4
      %v466 = vshll.u32 %v249, 16
      %v468 = vrot.slane %v466, 5
      %v469 = vsel %vm277, %v464, %v468
      %v471 = vshrl.u32 %v250, 16
      %v473 = vrot.slane %v471, 4
      %v474 = vshll.u32 %v250, 16
      %v476 = vrot.slane %v474, 5
      %v477 = vor.u32 %v473, %v476
      %v478 = vrot.slane %v477, 4
      %v480 = vshll.u32 %v251, 16
      %v482 = vrot.slane %v480, 5
      %v483 = vsel %vm277, %v478, %v482
      %v484 = vshrl.u32 %v251, 16
      %v486 = vrot.slane %v484, 4
      %v487 = vor.u32 %v486, %v482
      %v488 = vrot.slane %v487, 4
      %v490 = vshll.u32 %v252, 16
      %v492 = vrot.slane %v490, 5
      %v493 = vsel %vm277, %v488, %v492
      %v495 = vshrl.u32 %v253, 16
      %v497 = vrot.slane %v495, 4
      %v498 = vshll.u32 %v253, 16
      %v500 = vrot.slane %v498, 5
      %v501 = vor.u32 %v497, %v500
      %v502 = vrot.slane %v501, 4
      %v504 = vshll.u32 %v254, 16
      %v506 = vrot.slane %v504, 5
      %v507 = vsel %vm277, %v502, %v506
      %v508 = vshrl.u32 %v254, 16
      %v510 = vrot.slane %v508, 4
      %v511 = vor.u32 %v510, %v506
      %v512 = vrot.slane %v511, 4
      %v514 = vshll.u32 %v255, 16
      %v516 = vrot.slane %v514, 5
      %v517 = vsel %vm277, %v512, %v516
      %v519 = vshrl.u32 %v256, 16
      %v521 = vrot.slane %v519, 4
      %v522 = vshll.u32 %v256, 16
      %v524 = vrot.slane %v522, 5
      %v525 = vor.u32 %v521, %v524
      %v526 = vrot.slane %v525, 4
      %v528 = vshll.u32 %v257, 16
      %v530 = vrot.slane %v528, 5
      %v531 = vsel %vm277, %v526, %v530
      %v532 = vshrl.u32 %v257, 16
      %v534 = vrot.slane %v532, 4
      %v535 = vor.u32 %v534, %v530
      %v536 = vrot.slane %v535, 4
      %v538 = vshll.u32 %v258, 16
      %v540 = vrot.slane %v538, 5
      %v541 = vsel %vm277, %v536, %v540
      %v543 = vshrl.u32 %v259, 16
      %v545 = vrot.slane %v543, 4
      %v546 = vshll.u32 %v259, 16
      %v548 = vrot.slane %v546, 5
      %v549 = vor.u32 %v545, %v548
      %v550 = vrot.slane %v549, 4
      %v552 = vshll.u32 %v260, 16
      %v554 = vrot.slane %v552, 5
      %v555 = vsel %vm277, %v550, %v554
      %v556 = vshrl.u32 %v260, 16
      %v558 = vrot.slane %v556, 4
      %v559 = vor.u32 %v558, %v554
      %v560 = vrot.slane %v559, 4
      %v562 = vshll.u32 %v261, 16
      %v564 = vrot.slane %v562, 5
      %v565 = vsel %vm277, %v560, %v564
      %v567 = vshrl.u32 %v262, 16
      %v569 = vrot.slane %v567, 4
      %v570 = vshll.u32 %v262, 16
      %v572 = vrot.slane %v570, 5
      %v573 = vor.u32 %v569, %v572
      %v574 = vrot.slane %v573, 4
      %v576 = vshll.u32 %v263, 16
      %v578 = vrot.slane %v576, 5
      %v579 = vsel %vm277, %v574, %v578
      %v580 = vshrl.u32 %v263, 16
      %v582 = vrot.slane %v580, 4
      %v583 = vor.u32 %v582, %v578
      %v584 = vrot.slane %v583, 4
      %v586 = vshll.u32 %v264, 16
      %v588 = vrot.slane %v586, 5
      %v589 = vsel %vm277, %v584, %v588
      %v591 = vshrl.u32 %v265, 16
      %v593 = vrot.slane %v591, 4
      %v594 = vshll.u32 %v265, 16
      %v596 = vrot.slane %v594, 5
      %v597 = vor.u32 %v593, %v596
      %v598 = vrot.slane %v597, 4
      %v600 = vshll.u32 %v266, 16
      %v602 = vrot.slane %v600, 5
      %v603 = vsel %vm277, %v598, %v602
      %v604 = vshrl.u32 %v266, 16
      %v606 = vrot.slane %v604, 4
      %v607 = vor.u32 %v606, %v602
      %v608 = vrot.slane %v607, 4
      %v610 = vshll.u32 %v267, 16
      %v612 = vrot.slane %v610, 5
      %v613 = vsel %vm277, %v608, %v612
      %v615 = vshrl.u32 %v268, 16
      %v617 = vrot.slane %v615, 4
      %v618 = vshll.u32 %v268, 16
      %v620 = vrot.slane %v618, 5
      %v621 = vor.u32 %v617, %v620
      %v622 = vrot.slane %v621, 4
      %v624 = vshll.u32 %v269, 16
      %v626 = vrot.slane %v624, 5
      %v627 = vsel %vm277, %v622, %v626
      %v628 = vshrl.u32 %v269, 16
      %v630 = vrot.slane %v628, 4
      %v631 = vor.u32 %v630, %v626
      %v632 = vrot.slane %v631, 4
      %v634 = vshll.u32 %v270, 16
      %v636 = vrot.slane %v634, 5
      %v637 = vsel %vm277, %v632, %v636
      %v639 = vshrl.u32 %v271, 16
      %v641 = vrot.slane %v639, 4
      %v642 = vshll.u32 %v271, 16
      %v644 = vrot.slane %v642, 5
      %v645 = vor.u32 %v641, %v644
      %v646 = vrot.slane %v645, 4
      %v648 = vshll.u32 %v272, 16
      %v650 = vrot.slane %v648, 5
      %v651 = vsel %vm277, %v646, %v650
      %v652 = vshrl.u32 %v272, 16
      %v654 = vrot.slane %v652, 4
      %v655 = vor.u32 %v654, %v650
      %v656 = vrot.slane %v655, 4
      %v658 = vshll.u32 %v273, 16
      %v660 = vrot.slane %v658, 5
      %v661 = vsel %vm277, %v656, %v660
      %s662 = scalar_lea.vmem %s1, 2
      %v663 = vld [vmem:[%s662] sm:$0x3]
      %v664 = vunpack.c.l.b16 %v291
      %v665 = vunpack.c.l.b16 %v301
      %v666 = vunpack.c.l.b16 %v315
      %v667 = vunpack.c.l.b16 %v325
      %v668 = vunpack.c.l.b16 %v339
      %v669 = vunpack.c.l.b16 %v349
      %v670 = vunpack.c.l.b16 %v363
      %v671 = vunpack.c.l.b16 %v373
      %v672 = vunpack.c.l.b16 %v387
      %v673 = vunpack.c.l.b16 %v397
      %v674 = vunpack.c.l.b16 %v411
      %v675 = vunpack.c.l.b16 %v421
      %v676 = vunpack.c.l.b16 %v435
      %v677 = vunpack.c.l.b16 %v445
      %v678 = vunpack.c.l.b16 %v459
      %v679 = vunpack.c.l.b16 %v469
      %v680 = vunpack.c.l.b16 %v483
      %v681 = vunpack.c.l.b16 %v493
      %v682 = vunpack.c.l.b16 %v507
      %v683 = vunpack.c.l.b16 %v517
      %v684 = vunpack.c.l.b16 %v531
      %v685 = vunpack.c.l.b16 %v541
      %v686 = vunpack.c.l.b16 %v555
      %v687 = vunpack.c.l.b16 %v565
      %v688 = vunpack.c.l.b16 %v579
      %v689 = vunpack.c.l.b16 %v589
      %v690 = vunpack.c.l.b16 %v603
      %v691 = vunpack.c.l.b16 %v613
      %v692 = vunpack.c.l.b16 %v627
      %v693 = vunpack.c.l.b16 %v637
      %v694 = vunpack.c.l.b16 %v651
      %v695 = vunpack.c.l.b16 %v661
      %v696 = vpack.c.b16 %v665, %v664
      %v697 = vpack.c.b16 %v667, %v666
      %v698 = vpack.c.b16 %v669, %v668
      %v699 = vpack.c.b16 %v671, %v670
      %v700 = vpack.c.b16 %v673, %v672
      %v701 = vpack.c.b16 %v675, %v674
      %v702 = vpack.c.b16 %v677, %v676
      %v703 = vpack.c.b16 %v679, %v678
      %v704 = vpack.c.b16 %v681, %v680
      %v705 = vpack.c.b16 %v683, %v682
      %v706 = vpack.c.b16 %v685, %v684
      %v707 = vpack.c.b16 %v687, %v686
      %v708 = vpack.c.b16 %v689, %v688
      %v709 = vpack.c.b16 %v691, %v690
      %v710 = vpack.c.b16 %v693, %v692
      %v711 = vpack.c.b16 %v695, %v694
      %vm712 = vcmask 31744
      %v714 = vsel %vm712, %v696, 0
      %v717 = vsel %vm712, %v697, 0
      %v720 = vsel %vm712, %v698, 0
      %v723 = vsel %vm712, %v699, 0
      %v726 = vsel %vm712, %v700, 0
      %v729 = vsel %vm712, %v701, 0
      %v732 = vsel %vm712, %v702, 0
      %v735 = vsel %vm712, %v703, 0
      %v738 = vsel %vm712, %v704, 0
      %v741 = vsel %vm712, %v705, 0
      %v744 = vsel %vm712, %v706, 0
      %v747 = vsel %vm712, %v707, 0
      %v750 = vsel %vm712, %v708, 0
      %v753 = vsel %vm712, %v709, 0
      %v756 = vsel %vm712, %v710, 0
      %v759 = vsel %vm712, %v711, 0
      %vm761 = vcmask 1041408
      %v763 = vsel %vm761, %v663, 0
      %765 = vmatprep.subr.bf16.mxu0 0
      %766 = vmatpush1.bf16.msra.mxu0 0
      %767 = vmatprep.subr.bf16.mxu0 0
      %768 = vmatpush1.bf16.msra.mxu0 0
      %769 = vmatprep.subr.bf16.mxu0 0
      %770 = vmatpush1.bf16.msra.mxu0 0
      %771 = vmatprep.subr.bf16.mxu0 0
      %772 = vmatpush1.bf16.msra.mxu0 0
      %773 = vmatprep.subr.bf16.mxu0 0
      %774 = vmatpush1.bf16.msra.mxu0 0
      %775 = vmatprep.subr.bf16.mxu0 0
      %776 = vmatpush1.bf16.msra.mxu0 0
      %777 = vmatprep.subr.bf16.mxu0 0
      %778 = vmatpush1.bf16.msra.mxu0 0
      %779 = vmatprep.subr.bf16.mxu0 0
      %780 = vmatpush1.bf16.msra.mxu0 %v763
      %781 = vmatprep.subr.bf16.mxu0 0
      %782 = vmatpush2.bf16.msra.mxu0 0
      %783 = vmatprep.subr.bf16.mxu0 0
      %784 = vmatpush2.bf16.msra.mxu0 0
      %785 = vmatprep.subr.bf16.mxu0 0
      %786 = vmatpush2.bf16.msra.mxu0 0
      %787 = vmatprep.subr.bf16.mxu0 0
      %788 = vmatpush2.bf16.msra.mxu0 0
      %789 = vmatprep.subr.bf16.mxu0 0
      %790 = vmatpush2.bf16.msra.mxu0 0
      %791 = vmatprep.subr.bf16.mxu0 0
      %792 = vmatpush2.bf16.msra.mxu0 0
      %793 = vmatprep.subr.bf16.mxu0 0
      %794 = vmatpush2.bf16.msra.mxu0 0
      %795 = vmatprep.subr.bf16.mxu0 0
      %796 = vmatpush2.bf16.msra.mxu0 0
      %797 = vmatprep.mubr.bf16.mxu0 0
      %798 = vmatmul.mubr.bf16.gmra.mxu0 %v714
      %v799 = vpop.f32.mrf.mxu0
      %v800 = vadd.f32 0.0, %v799
      %v801 = vpop.f32.mrf.mxu0
      %v802 = vpop.f32.mrf.mxu0
      %v803 = vadd.f32 0.0, %v802
      %v804 = vpop.f32.mrf.mxu0
      %805 = vmatprep.mubr.bf16.mxu0 0
      %806 = vmatmul.mubr.bf16.gmra.mxu0 %v717
      %v807 = vpop.f32.mrf.mxu0
      %v808 = vadd.f32 0.0, %v807
      %v809 = vpop.f32.mrf.mxu0
      %v810 = vpop.f32.mrf.mxu0
      %v811 = vadd.f32 0.0, %v810
      %v812 = vpop.f32.mrf.mxu0
      %813 = vmatprep.mubr.bf16.mxu0 0
      %814 = vmatmul.mubr.bf16.gmra.mxu0 %v720
      %v815 = vpop.f32.mrf.mxu0
      %v816 = vadd.f32 0.0, %v815
      %v817 = vpop.f32.mrf.mxu0
      %v818 = vpop.f32.mrf.mxu0
      %v819 = vadd.f32 0.0, %v818
      %v820 = vpop.f32.mrf.mxu0
      %821 = vmatprep.mubr.bf16.mxu0 0
      %822 = vmatmul.mubr.bf16.gmra.mxu0 %v723
      %v823 = vpop.f32.mrf.mxu0
      %v824 = vadd.f32 0.0, %v823
      %v825 = vpop.f32.mrf.mxu0
      %v826 = vpop.f32.mrf.mxu0
      %v827 = vadd.f32 0.0, %v826
      %v828 = vpop.f32.mrf.mxu0
      %829 = vmatprep.mubr.bf16.mxu0 0
      %830 = vmatmul.mubr.bf16.gmra.mxu0 %v726
      %v831 = vpop.f32.mrf.mxu0
      %v832 = vadd.f32 0.0, %v831
      %v833 = vpop.f32.mrf.mxu0
      %v834 = vpop.f32.mrf.mxu0
      %v835 = vadd.f32 0.0, %v834
      %v836 = vpop.f32.mrf.mxu0
      %837 = vmatprep.mubr.bf16.mxu0 0
      %838 = vmatmul.mubr.bf16.gmra.mxu0 %v729
      %v839 = vpop.f32.mrf.mxu0
      %v840 = vadd.f32 0.0, %v839
      %v841 = vpop.f32.mrf.mxu0
      %v842 = vpop.f32.mrf.mxu0
      %v843 = vadd.f32 0.0, %v842
      %v844 = vpop.f32.mrf.mxu0
      %845 = vmatprep.mubr.bf16.mxu0 0
      %846 = vmatmul.mubr.bf16.gmra.mxu0 %v732
      %v847 = vpop.f32.mrf.mxu0
      %v848 = vadd.f32 0.0, %v847
      %v849 = vpop.f32.mrf.mxu0
      %v850 = vpop.f32.mrf.mxu0
      %v851 = vadd.f32 0.0, %v850
      %v852 = vpop.f32.mrf.mxu0
      %853 = vmatprep.mubr.bf16.mxu0 0
      %854 = vmatmul.mubr.bf16.gmra.mxu0 %v735
      %v855 = vpop.f32.mrf.mxu0
      %v856 = vadd.f32 0.0, %v855
      %v857 = vpop.f32.mrf.mxu0
      %v858 = vpop.f32.mrf.mxu0
      %v859 = vadd.f32 0.0, %v858
      %v860 = vpop.f32.mrf.mxu0
      %861 = vmatprep.mubr.bf16.mxu0 0
      %862 = vmatmul.mubr.bf16.gmra.mxu0 %v738
      %v863 = vpop.f32.mrf.mxu0
      %v864 = vadd.f32 0.0, %v863
      %v865 = vpop.f32.mrf.mxu0
      %v866 = vpop.f32.mrf.mxu0
      %v867 = vadd.f32 0.0, %v866
      %v868 = vpop.f32.mrf.mxu0
      %869 = vmatprep.mubr.bf16.mxu0 0
      %870 = vmatmul.mubr.bf16.gmra.mxu0 %v741
      %v871 = vpop.f32.mrf.mxu0
      %v872 = vadd.f32 0.0, %v871
      %v873 = vpop.f32.mrf.mxu0
      %v874 = vpop.f32.mrf.mxu0
      %v875 = vadd.f32 0.0, %v874
      %v876 = vpop.f32.mrf.mxu0
      %877 = vmatprep.mubr.bf16.mxu0 0
      %878 = vmatmul.mubr.bf16.gmra.mxu0 %v744
      %v879 = vpop.f32.mrf.mxu0
      %v880 = vadd.f32 0.0, %v879
      %v881 = vpop.f32.mrf.mxu0
      %v882 = vpop.f32.mrf.mxu0
      %v883 = vadd.f32 0.0, %v882
      %v884 = vpop.f32.mrf.mxu0
      %885 = vmatprep.mubr.bf16.mxu0 0
      %886 = vmatmul.mubr.bf16.gmra.mxu0 %v747
      %v887 = vpop.f32.mrf.mxu0
      %v888 = vadd.f32 0.0, %v887
      %v889 = vpop.f32.mrf.mxu0
      %v890 = vpop.f32.mrf.mxu0
      %v891 = vadd.f32 0.0, %v890
      %v892 = vpop.f32.mrf.mxu0
      %893 = vmatprep.mubr.bf16.mxu0 0
      %894 = vmatmul.mubr.bf16.gmra.mxu0 %v750
      %v895 = vpop.f32.mrf.mxu0
      %v896 = vadd.f32 0.0, %v895
      %v897 = vpop.f32.mrf.mxu0
      %v898 = vpop.f32.mrf.mxu0
      %v899 = vadd.f32 0.0, %v898
      %v900 = vpop.f32.mrf.mxu0
      %901 = vmatprep.mubr.bf16.mxu0 0
      %902 = vmatmul.mubr.bf16.gmra.mxu0 %v753
      %v903 = vpop.f32.mrf.mxu0
      %v904 = vadd.f32 0.0, %v903
      %v905 = vpop.f32.mrf.mxu0
      %v906 = vpop.f32.mrf.mxu0
      %v907 = vadd.f32 0.0, %v906
      %v908 = vpop.f32.mrf.mxu0
      %909 = vmatprep.mubr.bf16.mxu0 0
      %910 = vmatmul.mubr.bf16.gmra.mxu0 %v756
      %v911 = vpop.f32.mrf.mxu0
      %v912 = vadd.f32 0.0, %v911
      %v913 = vpop.f32.mrf.mxu0
      %v914 = vpop.f32.mrf.mxu0
      %v915 = vadd.f32 0.0, %v914
      %v916 = vpop.f32.mrf.mxu0
      %917 = vmatprep.mubr.bf16.mxu0 0
      %918 = vmatmul.mubr.bf16.gmra.mxu0 %v759
      %v919 = vpop.f32.mrf.mxu0
      %v920 = vadd.f32 0.0, %v919
      %v921 = vpop.f32.mrf.mxu0
      %v922 = vpop.f32.mrf.mxu0
      %v923 = vadd.f32 0.0, %v922
      %v924 = vpop.f32.mrf.mxu0
      %925 = vdwg.mxu0
      %v958 = vunpack.c.l.b16 %v226
      %v959 = vunpack.c.l.b16 %v227
      %v960 = vunpack.c.l.b16 %v229
      %v961 = vunpack.c.l.b16 %v230
      %v962 = vunpack.c.l.b16 %v232
      %v963 = vunpack.c.l.b16 %v233
      %v964 = vunpack.c.l.b16 %v235
      %v965 = vunpack.c.l.b16 %v236
      %v966 = vunpack.c.l.b16 %v238
      %v967 = vunpack.c.l.b16 %v239
      %v968 = vunpack.c.l.b16 %v241
      %v969 = vunpack.c.l.b16 %v242
      %v970 = vunpack.c.l.b16 %v244
      %v971 = vunpack.c.l.b16 %v245
      %v972 = vunpack.c.l.b16 %v247
      %v973 = vunpack.c.l.b16 %v248
      %v974 = vunpack.c.l.b16 %v250
      %v975 = vunpack.c.l.b16 %v251
      %v976 = vunpack.c.l.b16 %v253
      %v977 = vunpack.c.l.b16 %v254
      %v978 = vunpack.c.l.b16 %v256
      %v979 = vunpack.c.l.b16 %v257
      %v980 = vunpack.c.l.b16 %v259
      %v981 = vunpack.c.l.b16 %v260
      %v982 = vunpack.c.l.b16 %v262
      %v983 = vunpack.c.l.b16 %v263
      %v984 = vunpack.c.l.b16 %v265
      %v985 = vunpack.c.l.b16 %v266
      %v986 = vunpack.c.l.b16 %v268
      %v987 = vunpack.c.l.b16 %v269
      %v988 = vunpack.c.l.b16 %v271
      %v989 = vunpack.c.l.b16 %v272
      %v990 = vpack.c.b16 %v959, %v958
      %v991 = vpack.c.b16 %v961, %v960
      %v992 = vpack.c.b16 %v963, %v962
      %v993 = vpack.c.b16 %v965, %v964
      %v994 = vpack.c.b16 %v967, %v966
      %v995 = vpack.c.b16 %v969, %v968
      %v996 = vpack.c.b16 %v971, %v970
      %v997 = vpack.c.b16 %v973, %v972
      %v998 = vpack.c.b16 %v975, %v974
      %v999 = vpack.c.b16 %v977, %v976
      %v1000 = vpack.c.b16 %v979, %v978
      %v1001 = vpack.c.b16 %v981, %v980
      %v1002 = vpack.c.b16 %v983, %v982
      %v1003 = vpack.c.b16 %v985, %v984
      %v1004 = vpack.c.b16 %v987, %v986
      %v1005 = vpack.c.b16 %v989, %v988
      %v1007 = vsel %vm712, %v990, 0
      %v1010 = vsel %vm712, %v991, 0
      %v1013 = vsel %vm712, %v992, 0
      %v1016 = vsel %vm712, %v993, 0
      %v1019 = vsel %vm712, %v994, 0
      %v1022 = vsel %vm712, %v995, 0
      %v1025 = vsel %vm712, %v996, 0
      %v1028 = vsel %vm712, %v997, 0
      %v1031 = vsel %vm712, %v998, 0
      %v1034 = vsel %vm712, %v999, 0
      %v1037 = vsel %vm712, %v1000, 0
      %v1040 = vsel %vm712, %v1001, 0
      %v1043 = vsel %vm712, %v1002, 0
      %v1046 = vsel %vm712, %v1003, 0
      %v1049 = vsel %vm712, %v1004, 0
      %v1052 = vsel %vm712, %v1005, 0
      %v1055 = vsel %vm761, %v274, 0
      %1057 = vmatprep.subr.bf16.mxu0 0
      %1058 = vmatpush1.bf16.msra.mxu0 0
      %1059 = vmatprep.subr.bf16.mxu0 0
      %1060 = vmatpush1.bf16.msra.mxu0 0
      %1061 = vmatprep.subr.bf16.mxu0 0
      %1062 = vmatpush1.bf16.msra.mxu0 0
      %1063 = vmatprep.subr.bf16.mxu0 0
      %1064 = vmatpush1.bf16.msra.mxu0 0
      %1065 = vmatprep.subr.bf16.mxu0 0
      %1066 = vmatpush1.bf16.msra.mxu0 0
      %1067 = vmatprep.subr.bf16.mxu0 0
      %1068 = vmatpush1.bf16.msra.mxu0 0
      %1069 = vmatprep.subr.bf16.mxu0 0
      %1070 = vmatpush1.bf16.msra.mxu0 0
      %1071 = vmatprep.subr.bf16.mxu0 0
      %1072 = vmatpush1.bf16.msra.mxu0 %v1055
      %1073 = vmatprep.subr.bf16.mxu0 0
      %1074 = vmatpush2.bf16.msra.mxu0 0
      %1075 = vmatprep.subr.bf16.mxu0 0
      %1076 = vmatpush2.bf16.msra.mxu0 0
      %1077 = vmatprep.subr.bf16.mxu0 0
      %1078 = vmatpush2.bf16.msra.mxu0 0
      %1079 = vmatprep.subr.bf16.mxu0 0
      %1080 = vmatpush2.bf16.msra.mxu0 0
      %1081 = vmatprep.subr.bf16.mxu0 0
      %1082 = vmatpush2.bf16.msra.mxu0 0
      %1083 = vmatprep.subr.bf16.mxu0 0
      %1084 = vmatpush2.bf16.msra.mxu0 0
      %1085 = vmatprep.subr.bf16.mxu0 0
      %1086 = vmatpush2.bf16.msra.mxu0 0
      %1087 = vmatprep.subr.bf16.mxu0 0
      %1088 = vmatpush2.bf16.msra.mxu0 0
      %1089 = vmatprep.mubr.bf16.mxu0 0
      %1090 = vmatmul.mubr.bf16.gmra.mxu0 %v1007
      %v1091 = vpop.f32.mrf.mxu0
      %v1092 = vadd.f32 %v800, %v1091
      %v1093 = vpop.f32.mrf.mxu0
      %v1094 = vpop.f32.mrf.mxu0
      %v1095 = vadd.f32 %v803, %v1094
      %v1096 = vpop.f32.mrf.mxu0
      %1097 = vmatprep.mubr.bf16.mxu0 0
      %1098 = vmatmul.mubr.bf16.gmra.mxu0 %v1010
      %v1099 = vpop.f32.mrf.mxu0
      %v1100 = vadd.f32 %v808, %v1099
      %v1101 = vpop.f32.mrf.mxu0
      %v1102 = vpop.f32.mrf.mxu0
      %v1103 = vadd.f32 %v811, %v1102
      %v1104 = vpop.f32.mrf.mxu0
      %1105 = vmatprep.mubr.bf16.mxu0 0
      %1106 = vmatmul.mubr.bf16.gmra.mxu0 %v1013
      %v1107 = vpop.f32.mrf.mxu0
      %v1108 = vadd.f32 %v816, %v1107
      %v1109 = vpop.f32.mrf.mxu0
      %v1110 = vpop.f32.mrf.mxu0
      %v1111 = vadd.f32 %v819, %v1110
      %v1112 = vpop.f32.mrf.mxu0
      %1113 = vmatprep.mubr.bf16.mxu0 0
      %1114 = vmatmul.mubr.bf16.gmra.mxu0 %v1016
      %v1115 = vpop.f32.mrf.mxu0
      %v1116 = vadd.f32 %v824, %v1115
      %v1117 = vpop.f32.mrf.mxu0
      %v1118 = vpop.f32.mrf.mxu0
      %v1119 = vadd.f32 %v827, %v1118
      %v1120 = vpop.f32.mrf.mxu0
      %1121 = vmatprep.mubr.bf16.mxu0 0
      %1122 = vmatmul.mubr.bf16.gmra.mxu0 %v1019
      %v1123 = vpop.f32.mrf.mxu0
      %v1124 = vadd.f32 %v832, %v1123
      %v1125 = vpop.f32.mrf.mxu0
      %v1126 = vpop.f32.mrf.mxu0
      %v1127 = vadd.f32 %v835, %v1126
      %v1128 = vpop.f32.mrf.mxu0
      %1129 = vmatprep.mubr.bf16.mxu0 0
      %1130 = vmatmul.mubr.bf16.gmra.mxu0 %v1022
      %v1131 = vpop.f32.mrf.mxu0
      %v1132 = vadd.f32 %v840, %v1131
      %v1133 = vpop.f32.mrf.mxu0
      %v1134 = vpop.f32.mrf.mxu0
      %v1135 = vadd.f32 %v843, %v1134
      %v1136 = vpop.f32.mrf.mxu0
      %1137 = vmatprep.mubr.bf16.mxu0 0
      %1138 = vmatmul.mubr.bf16.gmra.mxu0 %v1025
      %v1139 = vpop.f32.mrf.mxu0
      %v1140 = vadd.f32 %v848, %v1139
      %v1141 = vpop.f32.mrf.mxu0
      %v1142 = vpop.f32.mrf.mxu0
      %v1143 = vadd.f32 %v851, %v1142
      %v1144 = vpop.f32.mrf.mxu0
      %1145 = vmatprep.mubr.bf16.mxu0 0
      %1146 = vmatmul.mubr.bf16.gmra.mxu0 %v1028
      %v1147 = vpop.f32.mrf.mxu0
      %v1148 = vadd.f32 %v856, %v1147
      %v1149 = vpop.f32.mrf.mxu0
      %v1150 = vpop.f32.mrf.mxu0
      %v1151 = vadd.f32 %v859, %v1150
      %v1152 = vpop.f32.mrf.mxu0
      %1153 = vmatprep.mubr.bf16.mxu0 0
      %1154 = vmatmul.mubr.bf16.gmra.mxu0 %v1031
      %v1155 = vpop.f32.mrf.mxu0
      %v1156 = vadd.f32 %v864, %v1155
      %v1157 = vpop.f32.mrf.mxu0
      %v1158 = vpop.f32.mrf.mxu0
      %v1159 = vadd.f32 %v867, %v1158
      %v1160 = vpop.f32.mrf.mxu0
      %1161 = vmatprep.mubr.bf16.mxu0 0
      %1162 = vmatmul.mubr.bf16.gmra.mxu0 %v1034
      %v1163 = vpop.f32.mrf.mxu0
      %v1164 = vadd.f32 %v872, %v1163
      %v1165 = vpop.f32.mrf.mxu0
      %v1166 = vpop.f32.mrf.mxu0
      %v1167 = vadd.f32 %v875, %v1166
      %v1168 = vpop.f32.mrf.mxu0
      %1169 = vmatprep.mubr.bf16.mxu0 0
      %1170 = vmatmul.mubr.bf16.gmra.mxu0 %v1037
      %v1171 = vpop.f32.mrf.mxu0
      %v1172 = vadd.f32 %v880, %v1171
      %v1173 = vpop.f32.mrf.mxu0
      %v1174 = vpop.f32.mrf.mxu0
      %v1175 = vadd.f32 %v883, %v1174
      %v1176 = vpop.f32.mrf.mxu0
      %1177 = vmatprep.mubr.bf16.mxu0 0
      %1178 = vmatmul.mubr.bf16.gmra.mxu0 %v1040
      %v1179 = vpop.f32.mrf.mxu0
      %v1180 = vadd.f32 %v888, %v1179
      %v1181 = vpop.f32.mrf.mxu0
      %v1182 = vpop.f32.mrf.mxu0
      %v1183 = vadd.f32 %v891, %v1182
      %v1184 = vpop.f32.mrf.mxu0
      %1185 = vmatprep.mubr.bf16.mxu0 0
      %1186 = vmatmul.mubr.bf16.gmra.mxu0 %v1043
      %v1187 = vpop.f32.mrf.mxu0
      %v1188 = vadd.f32 %v896, %v1187
      %v1189 = vpop.f32.mrf.mxu0
      %v1190 = vpop.f32.mrf.mxu0
      %v1191 = vadd.f32 %v899, %v1190
      %v1192 = vpop.f32.mrf.mxu0
      %1193 = vmatprep.mubr.bf16.mxu0 0
      %1194 = vmatmul.mubr.bf16.gmra.mxu0 %v1046
      %v1195 = vpop.f32.mrf.mxu0
      %v1196 = vadd.f32 %v904, %v1195
      %v1197 = vpop.f32.mrf.mxu0
      %v1198 = vpop.f32.mrf.mxu0
      %v1199 = vadd.f32 %v907, %v1198
      %v1200 = vpop.f32.mrf.mxu0
      %1201 = vmatprep.mubr.bf16.mxu0 0
      %1202 = vmatmul.mubr.bf16.gmra.mxu0 %v1049
      %v1203 = vpop.f32.mrf.mxu0
      %v1204 = vadd.f32 %v912, %v1203
      %v1205 = vpop.f32.mrf.mxu0
      %v1206 = vpop.f32.mrf.mxu0
      %v1207 = vadd.f32 %v915, %v1206
      %v1208 = vpop.f32.mrf.mxu0
      %1209 = vmatprep.mubr.bf16.mxu0 0
      %1210 = vmatmul.mubr.bf16.gmra.mxu0 %v1052
      %v1211 = vpop.f32.mrf.mxu0
      %v1212 = vadd.f32 %v920, %v1211
      %v1213 = vpop.f32.mrf.mxu0
      %v1214 = vpop.f32.mrf.mxu0
      %v1215 = vadd.f32 %v923, %v1214
      %v1216 = vpop.f32.mrf.mxu0
      %1217 = vdwg.mxu0
      %vm1234 = vcmask 1042432
      %vm1235 = vcmask 1046532
      %vm1236 = vmor %vm1234, %vm1235
      %v1237 = vrot.slane %v226, 5
      %v1238 = vrot.slane %v1237, 4
      %v1239 = vrot.slane %v227, 5
      %v1240 = vsel %vm1236, %v1238, %v1239
      %v1241 = vrot.slane %v1239, 4
      %v1242 = vrot.slane %v228, 5
      %v1243 = vsel %vm1236, %v1241, %v1242
      %v1244 = vrot.slane %v229, 5
      %v1245 = vrot.slane %v1244, 4
      %v1246 = vrot.slane %v230, 5
      %v1247 = vsel %vm1236, %v1245, %v1246
      %v1248 = vrot.slane %v1246, 4
      %v1249 = vrot.slane %v231, 5
      %v1250 = vsel %vm1236, %v1248, %v1249
      %v1251 = vrot.slane %v232, 5
      %v1252 = vrot.slane %v1251, 4
      %v1253 = vrot.slane %v233, 5
      %v1254 = vsel %vm1236, %v1252, %v1253
      %v1255 = vrot.slane %v1253, 4
      %v1256 = vrot.slane %v234, 5
      %v1257 = vsel %vm1236, %v1255, %v1256
      %v1258 = vrot.slane %v235, 5
      %v1259 = vrot.slane %v1258, 4
      %v1260 = vrot.slane %v236, 5
      %v1261 = vsel %vm1236, %v1259, %v1260
      %v1262 = vrot.slane %v1260, 4
      %v1263 = vrot.slane %v237, 5
      %v1264 = vsel %vm1236, %v1262, %v1263
      %v1265 = vrot.slane %v238, 5
      %v1266 = vrot.slane %v1265, 4
      %v1267 = vrot.slane %v239, 5
      %v1268 = vsel %vm1236, %v1266, %v1267
      %v1269 = vrot.slane %v1267, 4
      %v1270 = vrot.slane %v240, 5
      %v1271 = vsel %vm1236, %v1269, %v1270
      %v1272 = vrot.slane %v241, 5
      %v1273 = vrot.slane %v1272, 4
      %v1274 = vrot.slane %v242, 5
      %v1275 = vsel %vm1236, %v1273, %v1274
      %v1276 = vrot.slane %v1274, 4
      %v1277 = vrot.slane %v243, 5
      %v1278 = vsel %vm1236, %v1276, %v1277
      %v1279 = vrot.slane %v244, 5
      %v1280 = vrot.slane %v1279, 4
      %v1281 = vrot.slane %v245, 5
      %v1282 = vsel %vm1236, %v1280, %v1281
      %v1283 = vrot.slane %v1281, 4
      %v1284 = vrot.slane %v246, 5
      %v1285 = vsel %vm1236, %v1283, %v1284
      %v1286 = vrot.slane %v247, 5
      %v1287 = vrot.slane %v1286, 4
      %v1288 = vrot.slane %v248, 5
      %v1289 = vsel %vm1236, %v1287, %v1288
      %v1290 = vrot.slane %v1288, 4
      %v1291 = vrot.slane %v249, 5
      %v1292 = vsel %vm1236, %v1290, %v1291
      %v1293 = vrot.slane %v250, 5
      %v1294 = vrot.slane %v1293, 4
      %v1295 = vrot.slane %v251, 5
      %v1296 = vsel %vm1236, %v1294, %v1295
      %v1297 = vrot.slane %v1295, 4
      %v1298 = vrot.slane %v252, 5
      %v1299 = vsel %vm1236, %v1297, %v1298
      %v1300 = vrot.slane %v253, 5
      %v1301 = vrot.slane %v1300, 4
      %v1302 = vrot.slane %v254, 5
      %v1303 = vsel %vm1236, %v1301, %v1302
      %v1304 = vrot.slane %v1302, 4
      %v1305 = vrot.slane %v255, 5
      %v1306 = vsel %vm1236, %v1304, %v1305
      %v1307 = vrot.slane %v256, 5
      %v1308 = vrot.slane %v1307, 4
      %v1309 = vrot.slane %v257, 5
      %v1310 = vsel %vm1236, %v1308, %v1309
      %v1311 = vrot.slane %v1309, 4
      %v1312 = vrot.slane %v258, 5
      %v1313 = vsel %vm1236, %v1311, %v1312
      %v1314 = vrot.slane %v259, 5
      %v1315 = vrot.slane %v1314, 4
      %v1316 = vrot.slane %v260, 5
      %v1317 = vsel %vm1236, %v1315, %v1316
      %v1318 = vrot.slane %v1316, 4
      %v1319 = vrot.slane %v261, 5
      %v1320 = vsel %vm1236, %v1318, %v1319
      %v1321 = vrot.slane %v262, 5
      %v1322 = vrot.slane %v1321, 4
      %v1323 = vrot.slane %v263, 5
      %v1324 = vsel %vm1236, %v1322, %v1323
      %v1325 = vrot.slane %v1323, 4
      %v1326 = vrot.slane %v264, 5
      %v1327 = vsel %vm1236, %v1325, %v1326
      %v1328 = vrot.slane %v265, 5
      %v1329 = vrot.slane %v1328, 4
      %v1330 = vrot.slane %v266, 5
      %v1331 = vsel %vm1236, %v1329, %v1330
      %v1332 = vrot.slane %v1330, 4
      %v1333 = vrot.slane %v267, 5
      %v1334 = vsel %vm1236, %v1332, %v1333
      %v1335 = vrot.slane %v268, 5
      %v1336 = vrot.slane %v1335, 4
      %v1337 = vrot.slane %v269, 5
      %v1338 = vsel %vm1236, %v1336, %v1337
      %v1339 = vrot.slane %v1337, 4
      %v1340 = vrot.slane %v270, 5
      %v1341 = vsel %vm1236, %v1339, %v1340
      %v1342 = vrot.slane %v271, 5
      %v1343 = vrot.slane %v1342, 4
      %v1344 = vrot.slane %v272, 5
      %v1345 = vsel %vm1236, %v1343, %v1344
      %v1346 = vrot.slane %v1344, 4
      %v1347 = vrot.slane %v273, 5
      %v1348 = vsel %vm1236, %v1346, %v1347
      %s1349 = scalar_lea.vmem %s1, 4
      %v1350 = vld [vmem:[%s1349] sm:$0x3]
      %v1351 = vunpack.c.l.b16 %v1240
      %v1352 = vunpack.c.l.b16 %v1243
      %v1353 = vunpack.c.l.b16 %v1247
      %v1354 = vunpack.c.l.b16 %v1250
      %v1355 = vunpack.c.l.b16 %v1254
      %v1356 = vunpack.c.l.b16 %v1257
      %v1357 = vunpack.c.l.b16 %v1261
      %v1358 = vunpack.c.l.b16 %v1264
      %v1359 = vunpack.c.l.b16 %v1268
      %v1360 = vunpack.c.l.b16 %v1271
      %v1361 = vunpack.c.l.b16 %v1275
      %v1362 = vunpack.c.l.b16 %v1278
      %v1363 = vunpack.c.l.b16 %v1282
      %v1364 = vunpack.c.l.b16 %v1285
      %v1365 = vunpack.c.l.b16 %v1289
      %v1366 = vunpack.c.l.b16 %v1292
      %v1367 = vunpack.c.l.b16 %v1296
      %v1368 = vunpack.c.l.b16 %v1299
      %v1369 = vunpack.c.l.b16 %v1303
      %v1370 = vunpack.c.l.b16 %v1306
      %v1371 = vunpack.c.l.b16 %v1310
      %v1372 = vunpack.c.l.b16 %v1313
      %v1373 = vunpack.c.l.b16 %v1317
      %v1374 = vunpack.c.l.b16 %v1320
      %v1375 = vunpack.c.l.b16 %v1324
      %v1376 = vunpack.c.l.b16 %v1327
      %v1377 = vunpack.c.l.b16 %v1331
      %v1378 = vunpack.c.l.b16 %v1334
      %v1379 = vunpack.c.l.b16 %v1338
      %v1380 = vunpack.c.l.b16 %v1341
      %v1381 = vunpack.c.l.b16 %v1345
      %v1382 = vunpack.c.l.b16 %v1348
      %v1383 = vpack.c.b16 %v1352, %v1351
      %v1384 = vpack.c.b16 %v1354, %v1353
      %v1385 = vpack.c.b16 %v1356, %v1355
      %v1386 = vpack.c.b16 %v1358, %v1357
      %v1387 = vpack.c.b16 %v1360, %v1359
      %v1388 = vpack.c.b16 %v1362, %v1361
      %v1389 = vpack.c.b16 %v1364, %v1363
      %v1390 = vpack.c.b16 %v1366, %v1365
      %v1391 = vpack.c.b16 %v1368, %v1367
      %v1392 = vpack.c.b16 %v1370, %v1369
      %v1393 = vpack.c.b16 %v1372, %v1371
      %v1394 = vpack.c.b16 %v1374, %v1373
      %v1395 = vpack.c.b16 %v1376, %v1375
      %v1396 = vpack.c.b16 %v1378, %v1377
      %v1397 = vpack.c.b16 %v1380, %v1379
      %v1398 = vpack.c.b16 %v1382, %v1381
      %v1400 = vsel %vm712, %v1383, 0
      %v1403 = vsel %vm712, %v1384, 0
      %v1406 = vsel %vm712, %v1385, 0
      %v1409 = vsel %vm712, %v1386, 0
      %v1412 = vsel %vm712, %v1387, 0
      %v1415 = vsel %vm712, %v1388, 0
      %v1418 = vsel %vm712, %v1389, 0
      %v1421 = vsel %vm712, %v1390, 0
      %v1424 = vsel %vm712, %v1391, 0
      %v1427 = vsel %vm712, %v1392, 0
      %v1430 = vsel %vm712, %v1393, 0
      %v1433 = vsel %vm712, %v1394, 0
      %v1436 = vsel %vm712, %v1395, 0
      %v1439 = vsel %vm712, %v1396, 0
      %v1442 = vsel %vm712, %v1397, 0
      %v1445 = vsel %vm712, %v1398, 0
      %v1448 = vsel %vm761, %v1350, 0
      %1450 = vmatprep.subr.bf16.mxu0 0
      %1451 = vmatpush1.bf16.msra.mxu0 0
      %1452 = vmatprep.subr.bf16.mxu0 0
      %1453 = vmatpush1.bf16.msra.mxu0 0
      %1454 = vmatprep.subr.bf16.mxu0 0
      %1455 = vmatpush1.bf16.msra.mxu0 0
      %1456 = vmatprep.subr.bf16.mxu0 0
      %1457 = vmatpush1.bf16.msra.mxu0 0
      %1458 = vmatprep.subr.bf16.mxu0 0
      %1459 = vmatpush1.bf16.msra.mxu0 0
      %1460 = vmatprep.subr.bf16.mxu0 0
      %1461 = vmatpush1.bf16.msra.mxu0 0
      %1462 = vmatprep.subr.bf16.mxu0 0
      %1463 = vmatpush1.bf16.msra.mxu0 0
      %1464 = vmatprep.subr.bf16.mxu0 0
      %1465 = vmatpush1.bf16.msra.mxu0 %v1448
      %1466 = vmatprep.subr.bf16.mxu0 0
      %1467 = vmatpush2.bf16.msra.mxu0 0
      %1468 = vmatprep.subr.bf16.mxu0 0
      %1469 = vmatpush2.bf16.msra.mxu0 0
      %1470 = vmatprep.subr.bf16.mxu0 0
      %1471 = vmatpush2.bf16.msra.mxu0 0
      %1472 = vmatprep.subr.bf16.mxu0 0
      %1473 = vmatpush2.bf16.msra.mxu0 0
      %1474 = vmatprep.subr.bf16.mxu0 0
      %1475 = vmatpush2.bf16.msra.mxu0 0
      %1476 = vmatprep.subr.bf16.mxu0 0
      %1477 = vmatpush2.bf16.msra.mxu0 0
      %1478 = vmatprep.subr.bf16.mxu0 0
      %1479 = vmatpush2.bf16.msra.mxu0 0
      %1480 = vmatprep.subr.bf16.mxu0 0
      %1481 = vmatpush2.bf16.msra.mxu0 0
      %1482 = vmatprep.mubr.bf16.mxu0 0
      %1483 = vmatmul.mubr.bf16.gmra.mxu0 %v1400
      %v1484 = vpop.f32.mrf.mxu0
      %v1485 = vadd.f32 0.0, %v1484
      %v1486 = vpop.f32.mrf.mxu0
      %v1487 = vpop.f32.mrf.mxu0
      %v1488 = vadd.f32 0.0, %v1487
      %v1489 = vpop.f32.mrf.mxu0
      %1490 = vmatprep.mubr.bf16.mxu0 0
      %1491 = vmatmul.mubr.bf16.gmra.mxu0 %v1403
      %v1492 = vpop.f32.mrf.mxu0
      %v1493 = vadd.f32 0.0, %v1492
      %v1494 = vpop.f32.mrf.mxu0
      %v1495 = vpop.f32.mrf.mxu0
      %v1496 = vadd.f32 0.0, %v1495
      %v1497 = vpop.f32.mrf.mxu0
      %1498 = vmatprep.mubr.bf16.mxu0 0
      %1499 = vmatmul.mubr.bf16.gmra.mxu0 %v1406
      %v1500 = vpop.f32.mrf.mxu0
      %v1501 = vadd.f32 0.0, %v1500
      %v1502 = vpop.f32.mrf.mxu0
      %v1503 = vpop.f32.mrf.mxu0
      %v1504 = vadd.f32 0.0, %v1503
      %v1505 = vpop.f32.mrf.mxu0
      %1506 = vmatprep.mubr.bf16.mxu0 0
      %1507 = vmatmul.mubr.bf16.gmra.mxu0 %v1409
      %v1508 = vpop.f32.mrf.mxu0
      %v1509 = vadd.f32 0.0, %v1508
      %v1510 = vpop.f32.mrf.mxu0
      %v1511 = vpop.f32.mrf.mxu0
      %v1512 = vadd.f32 0.0, %v1511
      %v1513 = vpop.f32.mrf.mxu0
      %1514 = vmatprep.mubr.bf16.mxu0 0
      %1515 = vmatmul.mubr.bf16.gmra.mxu0 %v1412
      %v1516 = vpop.f32.mrf.mxu0
      %v1517 = vadd.f32 0.0, %v1516
      %v1518 = vpop.f32.mrf.mxu0
      %v1519 = vpop.f32.mrf.mxu0
      %v1520 = vadd.f32 0.0, %v1519
      %v1521 = vpop.f32.mrf.mxu0
      %1522 = vmatprep.mubr.bf16.mxu0 0
      %1523 = vmatmul.mubr.bf16.gmra.mxu0 %v1415
      %v1524 = vpop.f32.mrf.mxu0
      %v1525 = vadd.f32 0.0, %v1524
      %v1526 = vpop.f32.mrf.mxu0
      %v1527 = vpop.f32.mrf.mxu0
      %v1528 = vadd.f32 0.0, %v1527
      %v1529 = vpop.f32.mrf.mxu0
      %1530 = vmatprep.mubr.bf16.mxu0 0
      %1531 = vmatmul.mubr.bf16.gmra.mxu0 %v1418
      %v1532 = vpop.f32.mrf.mxu0
      %v1533 = vadd.f32 0.0, %v1532
      %v1534 = vpop.f32.mrf.mxu0
      %v1535 = vpop.f32.mrf.mxu0
      %v1536 = vadd.f32 0.0, %v1535
      %v1537 = vpop.f32.mrf.mxu0
      %1538 = vmatprep.mubr.bf16.mxu0 0
      %1539 = vmatmul.mubr.bf16.gmra.mxu0 %v1421
      %v1540 = vpop.f32.mrf.mxu0
      %v1541 = vadd.f32 0.0, %v1540
      %v1542 = vpop.f32.mrf.mxu0
      %v1543 = vpop.f32.mrf.mxu0
      %v1544 = vadd.f32 0.0, %v1543
      %v1545 = vpop.f32.mrf.mxu0
      %1546 = vmatprep.mubr.bf16.mxu0 0
      %1547 = vmatmul.mubr.bf16.gmra.mxu0 %v1424
      %v1548 = vpop.f32.mrf.mxu0
      %v1549 = vadd.f32 0.0, %v1548
      %v1550 = vpop.f32.mrf.mxu0
      %v1551 = vpop.f32.mrf.mxu0
      %v1552 = vadd.f32 0.0, %v1551
      %v1553 = vpop.f32.mrf.mxu0
      %1554 = vmatprep.mubr.bf16.mxu0 0
      %1555 = vmatmul.mubr.bf16.gmra.mxu0 %v1427
      %v1556 = vpop.f32.mrf.mxu0
      %v1557 = vadd.f32 0.0, %v1556
      %v1558 = vpop.f32.mrf.mxu0
      %v1559 = vpop.f32.mrf.mxu0
      %v1560 = vadd.f32 0.0, %v1559
      %v1561 = vpop.f32.mrf.mxu0
      %1562 = vmatprep.mubr.bf16.mxu0 0
      %1563 = vmatmul.mubr.bf16.gmra.mxu0 %v1430
      %v1564 = vpop.f32.mrf.mxu0
      %v1565 = vadd.f32 0.0, %v1564
      %v1566 = vpop.f32.mrf.mxu0
      %v1567 = vpop.f32.mrf.mxu0
      %v1568 = vadd.f32 0.0, %v1567
      %v1569 = vpop.f32.mrf.mxu0
      %1570 = vmatprep.mubr.bf16.mxu0 0
      %1571 = vmatmul.mubr.bf16.gmra.mxu0 %v1433
      %v1572 = vpop.f32.mrf.mxu0
      %v1573 = vadd.f32 0.0, %v1572
      %v1574 = vpop.f32.mrf.mxu0
      %v1575 = vpop.f32.mrf.mxu0
      %v1576 = vadd.f32 0.0, %v1575
      %v1577 = vpop.f32.mrf.mxu0
      %1578 = vmatprep.mubr.bf16.mxu0 0
      %1579 = vmatmul.mubr.bf16.gmra.mxu0 %v1436
      %v1580 = vpop.f32.mrf.mxu0
      %v1581 = vadd.f32 0.0, %v1580
      %v1582 = vpop.f32.mrf.mxu0
      %v1583 = vpop.f32.mrf.mxu0
      %v1584 = vadd.f32 0.0, %v1583
      %v1585 = vpop.f32.mrf.mxu0
      %1586 = vmatprep.mubr.bf16.mxu0 0
      %1587 = vmatmul.mubr.bf16.gmra.mxu0 %v1439
      %v1588 = vpop.f32.mrf.mxu0
      %v1589 = vadd.f32 0.0, %v1588
      %v1590 = vpop.f32.mrf.mxu0
      %v1591 = vpop.f32.mrf.mxu0
      %v1592 = vadd.f32 0.0, %v1591
      %v1593 = vpop.f32.mrf.mxu0
      %1594 = vmatprep.mubr.bf16.mxu0 0
      %1595 = vmatmul.mubr.bf16.gmra.mxu0 %v1442
      %v1596 = vpop.f32.mrf.mxu0
      %v1597 = vadd.f32 0.0, %v1596
      %v1598 = vpop.f32.mrf.mxu0
      %v1599 = vpop.f32.mrf.mxu0
      %v1600 = vadd.f32 0.0, %v1599
      %v1601 = vpop.f32.mrf.mxu0
      %1602 = vmatprep.mubr.bf16.mxu0 0
      %1603 = vmatmul.mubr.bf16.gmra.mxu0 %v1445
      %v1604 = vpop.f32.mrf.mxu0
      %v1605 = vadd.f32 0.0, %v1604
      %v1606 = vpop.f32.mrf.mxu0
      %v1607 = vpop.f32.mrf.mxu0
      %v1608 = vadd.f32 0.0, %v1607
      %v1609 = vpop.f32.mrf.mxu0
      %1610 = vdwg.mxu0
      %v1611 = vadd.f32 %v1092, %v1485
      %v1612 = vadd.f32 %v1095, %v1488
      %v1613 = vadd.f32 %v1100, %v1493
      %v1614 = vadd.f32 %v1103, %v1496
      %v1615 = vadd.f32 %v1108, %v1501
      %v1616 = vadd.f32 %v1111, %v1504
      %v1617 = vadd.f32 %v1116, %v1509
      %v1618 = vadd.f32 %v1119, %v1512
      %v1619 = vadd.f32 %v1124, %v1517
      %v1620 = vadd.f32 %v1127, %v1520
      %v1621 = vadd.f32 %v1132, %v1525
      %v1622 = vadd.f32 %v1135, %v1528
      %v1623 = vadd.f32 %v1140, %v1533
      %v1624 = vadd.f32 %v1143, %v1536
      %v1625 = vadd.f32 %v1148, %v1541
      %v1626 = vadd.f32 %v1151, %v1544
      %v1627 = vadd.f32 %v1156, %v1549
      %v1628 = vadd.f32 %v1159, %v1552
      %v1629 = vadd.f32 %v1164, %v1557
      %v1630 = vadd.f32 %v1167, %v1560
      %v1631 = vadd.f32 %v1172, %v1565
      %v1632 = vadd.f32 %v1175, %v1568
      %v1633 = vadd.f32 %v1180, %v1573
      %v1634 = vadd.f32 %v1183, %v1576
      %v1635 = vadd.f32 %v1188, %v1581
      %v1636 = vadd.f32 %v1191, %v1584
      %v1637 = vadd.f32 %v1196, %v1589
      %v1638 = vadd.f32 %v1199, %v1592
      %v1639 = vadd.f32 %v1204, %v1597
      %v1640 = vadd.f32 %v1207, %v1600
      %v1641 = vadd.f32 %v1212, %v1605
      %v1642 = vadd.f32 %v1215, %v1608
      %s1643 = sadd.s32 %s222, 1
      %s1644 = smul.u32 %s1643, 3
      %s1645 = smul.addr %s1644, 4
      %s1646 = scalar_lea.vmem %s211, %s1645
      %v1647 = vld [vmem:[%s1646] sm:$0xf]
      %v1648 = vld [vmem:[%s1646 + $0x4] sm:$0xf]
      %v1649 = vld [vmem:[%s1646 + $0x8] sm:$0x1]
      %v1650 = vld [vmem:[%s1646 + $0xc] sm:$0xf]
      %v1651 = vld [vmem:[%s1646 + $0x10] sm:$0xf]
      %v1652 = vld [vmem:[%s1646 + $0x14] sm:$0x1]
      %v1653 = vld [vmem:[%s1646 + $0x18] sm:$0xf]
      %v1654 = vld [vmem:[%s1646 + $0x1c] sm:$0xf]
      %v1655 = vld [vmem:[%s1646 + $0x20] sm:$0x1]
      %v1656 = vld [vmem:[%s1646 + $0x24] sm:$0xf]
      %v1657 = vld [vmem:[%s1646 + $0x28] sm:$0xf]
      %v1658 = vld [vmem:[%s1646 + $0x2c] sm:$0x1]
      %v1659 = vld [vmem:[%s1646 + $0x30] sm:$0xf]
      %v1660 = vld [vmem:[%s1646 + $0x34] sm:$0xf]
      %v1661 = vld [vmem:[%s1646 + $0x38] sm:$0x1]
      %v1662 = vld [vmem:[%s1646 + $0x3c] sm:$0xf]
      %v1663 = vld [vmem:[%s1646 + $0x40] sm:$0xf]
      %v1664 = vld [vmem:[%s1646 + $0x44] sm:$0x1]
      %v1665 = vld [vmem:[%s1646 + $0x48] sm:$0xf]
      %v1666 = vld [vmem:[%s1646 + $0x4c] sm:$0xf]
      %v1667 = vld [vmem:[%s1646 + $0x50] sm:$0x1]
      %v1668 = vld [vmem:[%s1646 + $0x54] sm:$0xf]
      %v1669 = vld [vmem:[%s1646 + $0x58] sm:$0xf]
      %v1670 = vld [vmem:[%s1646 + $0x5c] sm:$0x1]
      %v1671 = vld [vmem:[%s1646 + $0x60] sm:$0xf]
      %v1672 = vld [vmem:[%s1646 + $0x64] sm:$0xf]
      %v1673 = vld [vmem:[%s1646 + $0x68] sm:$0x1]
      %v1674 = vld [vmem:[%s1646 + $0x6c] sm:$0xf]
      %v1675 = vld [vmem:[%s1646 + $0x70] sm:$0xf]
      %v1676 = vld [vmem:[%s1646 + $0x74] sm:$0x1]
      %v1677 = vld [vmem:[%s1646 + $0x78] sm:$0xf]
      %v1678 = vld [vmem:[%s1646 + $0x7c] sm:$0xf]
      %v1679 = vld [vmem:[%s1646 + $0x80] sm:$0x1]
      %v1680 = vld [vmem:[%s1646 + $0x84] sm:$0xf]
      %v1681 = vld [vmem:[%s1646 + $0x88] sm:$0xf]
      %v1682 = vld [vmem:[%s1646 + $0x8c] sm:$0x1]
      %v1683 = vld [vmem:[%s1646 + $0x90] sm:$0xf]
      %v1684 = vld [vmem:[%s1646 + $0x94] sm:$0xf]
      %v1685 = vld [vmem:[%s1646 + $0x98] sm:$0x1]
      %v1686 = vld [vmem:[%s1646 + $0x9c] sm:$0xf]
      %v1687 = vld [vmem:[%s1646 + $0xa0] sm:$0xf]
      %v1688 = vld [vmem:[%s1646 + $0xa4] sm:$0x1]
      %v1689 = vld [vmem:[%s1646 + $0xa8] sm:$0xf]
      %v1690 = vld [vmem:[%s1646 + $0xac] sm:$0xf]
      %v1691 = vld [vmem:[%s1646 + $0xb0] sm:$0x1]
      %v1692 = vld [vmem:[%s1646 + $0xb4] sm:$0xf]
      %v1693 = vld [vmem:[%s1646 + $0xb8] sm:$0xf]
      %v1694 = vld [vmem:[%s1646 + $0xbc] sm:$0x1]
      %s1695 = scalar_lea.vmem %s1, 6
      %v1696 = vld [vmem:[%s1695] sm:$0x3]
      %v1729 = vunpack.c.l.b16 %v1647
      %v1730 = vunpack.c.l.b16 %v1648
      %v1731 = vunpack.c.l.b16 %v1650
      %v1732 = vunpack.c.l.b16 %v1651
      %v1733 = vunpack.c.l.b16 %v1653
      %v1734 = vunpack.c.l.b16 %v1654
      %v1735 = vunpack.c.l.b16 %v1656
      %v1736 = vunpack.c.l.b16 %v1657
      %v1737 = vunpack.c.l.b16 %v1659
      %v1738 = vunpack.c.l.b16 %v1660
      %v1739 = vunpack.c.l.b16 %v1662
      %v1740 = vunpack.c.l.b16 %v1663
      %v1741 = vunpack.c.l.b16 %v1665
      %v1742 = vunpack.c.l.b16 %v1666
      %v1743 = vunpack.c.l.b16 %v1668
      %v1744 = vunpack.c.l.b16 %v1669
      %v1745 = vunpack.c.l.b16 %v1671
      %v1746 = vunpack.c.l.b16 %v1672
      %v1747 = vunpack.c.l.b16 %v1674
      %v1748 = vunpack.c.l.b16 %v1675
      %v1749 = vunpack.c.l.b16 %v1677
      %v1750 = vunpack.c.l.b16 %v1678
      %v1751 = vunpack.c.l.b16 %v1680
      %v1752 = vunpack.c.l.b16 %v1681
      %v1753 = vunpack.c.l.b16 %v1683
      %v1754 = vunpack.c.l.b16 %v1684
      %v1755 = vunpack.c.l.b16 %v1686
      %v1756 = vunpack.c.l.b16 %v1687
      %v1757 = vunpack.c.l.b16 %v1689
      %v1758 = vunpack.c.l.b16 %v1690
      %v1759 = vunpack.c.l.b16 %v1692
      %v1760 = vunpack.c.l.b16 %v1693
      %v1761 = vpack.c.b16 %v1730, %v1729
      %v1762 = vpack.c.b16 %v1732, %v1731
      %v1763 = vpack.c.b16 %v1734, %v1733
      %v1764 = vpack.c.b16 %v1736, %v1735
      %v1765 = vpack.c.b16 %v1738, %v1737
      %v1766 = vpack.c.b16 %v1740, %v1739
      %v1767 = vpack.c.b16 %v1742, %v1741
      %v1768 = vpack.c.b16 %v1744, %v1743
      %v1769 = vpack.c.b16 %v1746, %v1745
      %v1770 = vpack.c.b16 %v1748, %v1747
      %v1771 = vpack.c.b16 %v1750, %v1749
      %v1772 = vpack.c.b16 %v1752, %v1751
      %v1773 = vpack.c.b16 %v1754, %v1753
      %v1774 = vpack.c.b16 %v1756, %v1755
      %v1775 = vpack.c.b16 %v1758, %v1757
      %v1776 = vpack.c.b16 %v1760, %v1759
      %v1778 = vsel %vm712, %v1761, 0
      %v1781 = vsel %vm712, %v1762, 0
      %v1784 = vsel %vm712, %v1763, 0
      %v1787 = vsel %vm712, %v1764, 0
      %v1790 = vsel %vm712, %v1765, 0
      %v1793 = vsel %vm712, %v1766, 0
      %v1796 = vsel %vm712, %v1767, 0
      %v1799 = vsel %vm712, %v1768, 0
      %v1802 = vsel %vm712, %v1769, 0
      %v1805 = vsel %vm712, %v1770, 0
      %v1808 = vsel %vm712, %v1771, 0
      %v1811 = vsel %vm712, %v1772, 0
      %v1814 = vsel %vm712, %v1773, 0
      %v1817 = vsel %vm712, %v1774, 0
      %v1820 = vsel %vm712, %v1775, 0
      %v1823 = vsel %vm712, %v1776, 0
      %v1826 = vsel %vm761, %v1696, 0
      %1828 = vmatprep.subr.bf16.mxu0 0
      %1829 = vmatpush1.bf16.msra.mxu0 0
      %1830 = vmatprep.subr.bf16.mxu0 0
      %1831 = vmatpush1.bf16.msra.mxu0 0
      %1832 = vmatprep.subr.bf16.mxu0 0
      %1833 = vmatpush1.bf16.msra.mxu0 0
      %1834 = vmatprep.subr.bf16.mxu0 0
      %1835 = vmatpush1.bf16.msra.mxu0 0
      %1836 = vmatprep.subr.bf16.mxu0 0
      %1837 = vmatpush1.bf16.msra.mxu0 0
      %1838 = vmatprep.subr.bf16.mxu0 0
      %1839 = vmatpush1.bf16.msra.mxu0 0
      %1840 = vmatprep.subr.bf16.mxu0 0
      %1841 = vmatpush1.bf16.msra.mxu0 0
      %1842 = vmatprep.subr.bf16.mxu0 0
      %1843 = vmatpush1.bf16.msra.mxu0 %v1826
      %1844 = vmatprep.subr.bf16.mxu0 0
      %1845 = vmatpush2.bf16.msra.mxu0 0
      %1846 = vmatprep.subr.bf16.mxu0 0
      %1847 = vmatpush2.bf16.msra.mxu0 0
      %1848 = vmatprep.subr.bf16.mxu0 0
      %1849 = vmatpush2.bf16.msra.mxu0 0
      %1850 = vmatprep.subr.bf16.mxu0 0
      %1851 = vmatpush2.bf16.msra.mxu0 0
      %1852 = vmatprep.subr.bf16.mxu0 0
      %1853 = vmatpush2.bf16.msra.mxu0 0
      %1854 = vmatprep.subr.bf16.mxu0 0
      %1855 = vmatpush2.bf16.msra.mxu0 0
      %1856 = vmatprep.subr.bf16.mxu0 0
      %1857 = vmatpush2.bf16.msra.mxu0 0
      %1858 = vmatprep.subr.bf16.mxu0 0
      %1859 = vmatpush2.bf16.msra.mxu0 0
      %1860 = vmatprep.mubr.bf16.mxu0 0
      %1861 = vmatmul.mubr.bf16.gmra.mxu0 %v1778
      %v1862 = vpop.f32.mrf.mxu0
      %v1863 = vadd.f32 0.0, %v1862
      %v1864 = vpop.f32.mrf.mxu0
      %v1865 = vpop.f32.mrf.mxu0
      %v1866 = vadd.f32 0.0, %v1865
      %v1867 = vpop.f32.mrf.mxu0
      %1868 = vmatprep.mubr.bf16.mxu0 0
      %1869 = vmatmul.mubr.bf16.gmra.mxu0 %v1781
      %v1870 = vpop.f32.mrf.mxu0
      %v1871 = vadd.f32 0.0, %v1870
      %v1872 = vpop.f32.mrf.mxu0
      %v1873 = vpop.f32.mrf.mxu0
      %v1874 = vadd.f32 0.0, %v1873
      %v1875 = vpop.f32.mrf.mxu0
      %1876 = vmatprep.mubr.bf16.mxu0 0
      %1877 = vmatmul.mubr.bf16.gmra.mxu0 %v1784
      %v1878 = vpop.f32.mrf.mxu0
      %v1879 = vadd.f32 0.0, %v1878
      %v1880 = vpop.f32.mrf.mxu0
      %v1881 = vpop.f32.mrf.mxu0
      %v1882 = vadd.f32 0.0, %v1881
      %v1883 = vpop.f32.mrf.mxu0
      %1884 = vmatprep.mubr.bf16.mxu0 0
      %1885 = vmatmul.mubr.bf16.gmra.mxu0 %v1787
      %v1886 = vpop.f32.mrf.mxu0
      %v1887 = vadd.f32 0.0, %v1886
      %v1888 = vpop.f32.mrf.mxu0
      %v1889 = vpop.f32.mrf.mxu0
      %v1890 = vadd.f32 0.0, %v1889
      %v1891 = vpop.f32.mrf.mxu0
      %1892 = vmatprep.mubr.bf16.mxu0 0
      %1893 = vmatmul.mubr.bf16.gmra.mxu0 %v1790
      %v1894 = vpop.f32.mrf.mxu0
      %v1895 = vadd.f32 0.0, %v1894
      %v1896 = vpop.f32.mrf.mxu0
      %v1897 = vpop.f32.mrf.mxu0
      %v1898 = vadd.f32 0.0, %v1897
      %v1899 = vpop.f32.mrf.mxu0
      %1900 = vmatprep.mubr.bf16.mxu0 0
      %1901 = vmatmul.mubr.bf16.gmra.mxu0 %v1793
      %v1902 = vpop.f32.mrf.mxu0
      %v1903 = vadd.f32 0.0, %v1902
      %v1904 = vpop.f32.mrf.mxu0
      %v1905 = vpop.f32.mrf.mxu0
      %v1906 = vadd.f32 0.0, %v1905
      %v1907 = vpop.f32.mrf.mxu0
      %1908 = vmatprep.mubr.bf16.mxu0 0
      %1909 = vmatmul.mubr.bf16.gmra.mxu0 %v1796
      %v1910 = vpop.f32.mrf.mxu0
      %v1911 = vadd.f32 0.0, %v1910
      %v1912 = vpop.f32.mrf.mxu0
      %v1913 = vpop.f32.mrf.mxu0
      %v1914 = vadd.f32 0.0, %v1913
      %v1915 = vpop.f32.mrf.mxu0
      %1916 = vmatprep.mubr.bf16.mxu0 0
      %1917 = vmatmul.mubr.bf16.gmra.mxu0 %v1799
      %v1918 = vpop.f32.mrf.mxu0
      %v1919 = vadd.f32 0.0, %v1918
      %v1920 = vpop.f32.mrf.mxu0
      %v1921 = vpop.f32.mrf.mxu0
      %v1922 = vadd.f32 0.0, %v1921
      %v1923 = vpop.f32.mrf.mxu0
      %1924 = vmatprep.mubr.bf16.mxu0 0
      %1925 = vmatmul.mubr.bf16.gmra.mxu0 %v1802
      %v1926 = vpop.f32.mrf.mxu0
      %v1927 = vadd.f32 0.0, %v1926
      %v1928 = vpop.f32.mrf.mxu0
      %v1929 = vpop.f32.mrf.mxu0
      %v1930 = vadd.f32 0.0, %v1929
      %v1931 = vpop.f32.mrf.mxu0
      %1932 = vmatprep.mubr.bf16.mxu0 0
      %1933 = vmatmul.mubr.bf16.gmra.mxu0 %v1805
      %v1934 = vpop.f32.mrf.mxu0
      %v1935 = vadd.f32 0.0, %v1934
      %v1936 = vpop.f32.mrf.mxu0
      %v1937 = vpop.f32.mrf.mxu0
      %v1938 = vadd.f32 0.0, %v1937
      %v1939 = vpop.f32.mrf.mxu0
      %1940 = vmatprep.mubr.bf16.mxu0 0
      %1941 = vmatmul.mubr.bf16.gmra.mxu0 %v1808
      %v1942 = vpop.f32.mrf.mxu0
      %v1943 = vadd.f32 0.0, %v1942
      %v1944 = vpop.f32.mrf.mxu0
      %v1945 = vpop.f32.mrf.mxu0
      %v1946 = vadd.f32 0.0, %v1945
      %v1947 = vpop.f32.mrf.mxu0
      %1948 = vmatprep.mubr.bf16.mxu0 0
      %1949 = vmatmul.mubr.bf16.gmra.mxu0 %v1811
      %v1950 = vpop.f32.mrf.mxu0
      %v1951 = vadd.f32 0.0, %v1950
      %v1952 = vpop.f32.mrf.mxu0
      %v1953 = vpop.f32.mrf.mxu0
      %v1954 = vadd.f32 0.0, %v1953
      %v1955 = vpop.f32.mrf.mxu0
      %1956 = vmatprep.mubr.bf16.mxu0 0
      %1957 = vmatmul.mubr.bf16.gmra.mxu0 %v1814
      %v1958 = vpop.f32.mrf.mxu0
      %v1959 = vadd.f32 0.0, %v1958
      %v1960 = vpop.f32.mrf.mxu0
      %v1961 = vpop.f32.mrf.mxu0
      %v1962 = vadd.f32 0.0, %v1961
      %v1963 = vpop.f32.mrf.mxu0
      %1964 = vmatprep.mubr.bf16.mxu0 0
      %1965 = vmatmul.mubr.bf16.gmra.mxu0 %v1817
      %v1966 = vpop.f32.mrf.mxu0
      %v1967 = vadd.f32 0.0, %v1966
      %v1968 = vpop.f32.mrf.mxu0
      %v1969 = vpop.f32.mrf.mxu0
      %v1970 = vadd.f32 0.0, %v1969
      %v1971 = vpop.f32.mrf.mxu0
      %1972 = vmatprep.mubr.bf16.mxu0 0
      %1973 = vmatmul.mubr.bf16.gmra.mxu0 %v1820
      %v1974 = vpop.f32.mrf.mxu0
      %v1975 = vadd.f32 0.0, %v1974
      %v1976 = vpop.f32.mrf.mxu0
      %v1977 = vpop.f32.mrf.mxu0
      %v1978 = vadd.f32 0.0, %v1977
      %v1979 = vpop.f32.mrf.mxu0
      %1980 = vmatprep.mubr.bf16.mxu0 0
      %1981 = vmatmul.mubr.bf16.gmra.mxu0 %v1823
      %v1982 = vpop.f32.mrf.mxu0
      %v1983 = vadd.f32 0.0, %v1982
      %v1984 = vpop.f32.mrf.mxu0
      %v1985 = vpop.f32.mrf.mxu0
      %v1986 = vadd.f32 0.0, %v1985
      %v1987 = vpop.f32.mrf.mxu0
      %1988 = vdwg.mxu0
      %v1989 = vadd.f32 %v1611, %v1863
      %v1990 = vadd.f32 %v1612, %v1866
      %v1991 = vadd.f32 %v1613, %v1871
      %v1992 = vadd.f32 %v1614, %v1874
      %v1993 = vadd.f32 %v1615, %v1879
      %v1994 = vadd.f32 %v1616, %v1882
      %v1995 = vadd.f32 %v1617, %v1887
      %v1996 = vadd.f32 %v1618, %v1890
      %v1997 = vadd.f32 %v1619, %v1895
      %v1998 = vadd.f32 %v1620, %v1898
      %v1999 = vadd.f32 %v1621, %v1903
      %v2000 = vadd.f32 %v1622, %v1906
      %v2001 = vadd.f32 %v1623, %v1911
      %v2002 = vadd.f32 %v1624, %v1914
      %v2003 = vadd.f32 %v1625, %v1919
      %v2004 = vadd.f32 %v1626, %v1922
      %v2005 = vadd.f32 %v1627, %v1927
      %v2006 = vadd.f32 %v1628, %v1930
      %v2007 = vadd.f32 %v1629, %v1935
      %v2008 = vadd.f32 %v1630, %v1938
      %v2009 = vadd.f32 %v1631, %v1943
      %v2010 = vadd.f32 %v1632, %v1946
      %v2011 = vadd.f32 %v1633, %v1951
      %v2012 = vadd.f32 %v1634, %v1954
      %v2013 = vadd.f32 %v1635, %v1959
      %v2014 = vadd.f32 %v1636, %v1962
      %v2015 = vadd.f32 %v1637, %v1967
      %v2016 = vadd.f32 %v1638, %v1970
      %v2017 = vadd.f32 %v1639, %v1975
      %v2018 = vadd.f32 %v1640, %v1978
      %v2019 = vadd.f32 %v1641, %v1983
      %v2020 = vadd.f32 %v1642, %v1986
      %v2022 = vshrl.u32 %v1647, 16
      %v2024 = vrot.slane %v2022, 4
      %v2025 = vshll.u32 %v1647, 16
      %v2027 = vrot.slane %v2025, 5
      %v2028 = vor.u32 %v2024, %v2027
      %v2029 = vrot.slane %v2028, 4
      %v2031 = vshll.u32 %v1648, 16
      %v2033 = vrot.slane %v2031, 5
      %v2034 = vsel %vm277, %v2029, %v2033
      %v2035 = vshrl.u32 %v1648, 16
      %v2037 = vrot.slane %v2035, 4
      %v2038 = vor.u32 %v2037, %v2033
      %v2039 = vrot.slane %v2038, 4
      %v2041 = vshll.u32 %v1649, 16
      %v2043 = vrot.slane %v2041, 5
      %v2044 = vsel %vm277, %v2039, %v2043
      %v2046 = vshrl.u32 %v1650, 16
      %v2048 = vrot.slane %v2046, 4
      %v2049 = vshll.u32 %v1650, 16
      %v2051 = vrot.slane %v2049, 5
      %v2052 = vor.u32 %v2048, %v2051
      %v2053 = vrot.slane %v2052, 4
      %v2055 = vshll.u32 %v1651, 16
      %v2057 = vrot.slane %v2055, 5
      %v2058 = vsel %vm277, %v2053, %v2057
      %v2059 = vshrl.u32 %v1651, 16
      %v2061 = vrot.slane %v2059, 4
      %v2062 = vor.u32 %v2061, %v2057
      %v2063 = vrot.slane %v2062, 4
      %v2065 = vshll.u32 %v1652, 16
      %v2067 = vrot.slane %v2065, 5
      %v2068 = vsel %vm277, %v2063, %v2067
      %v2070 = vshrl.u32 %v1653, 16
      %v2072 = vrot.slane %v2070, 4
      %v2073 = vshll.u32 %v1653, 16
      %v2075 = vrot.slane %v2073, 5
      %v2076 = vor.u32 %v2072, %v2075
      %v2077 = vrot.slane %v2076, 4
      %v2079 = vshll.u32 %v1654, 16
      %v2081 = vrot.slane %v2079, 5
      %v2082 = vsel %vm277, %v2077, %v2081
      %v2083 = vshrl.u32 %v1654, 16
      %v2085 = vrot.slane %v2083, 4
      %v2086 = vor.u32 %v2085, %v2081
      %v2087 = vrot.slane %v2086, 4
      %v2089 = vshll.u32 %v1655, 16
      %v2091 = vrot.slane %v2089, 5
      %v2092 = vsel %vm277, %v2087, %v2091
      %v2094 = vshrl.u32 %v1656, 16
      %v2096 = vrot.slane %v2094, 4
      %v2097 = vshll.u32 %v1656, 16
      %v2099 = vrot.slane %v2097, 5
      %v2100 = vor.u32 %v2096, %v2099
      %v2101 = vrot.slane %v2100, 4
      %v2103 = vshll.u32 %v1657, 16
      %v2105 = vrot.slane %v2103, 5
      %v2106 = vsel %vm277, %v2101, %v2105
      %v2107 = vshrl.u32 %v1657, 16
      %v2109 = vrot.slane %v2107, 4
      %v2110 = vor.u32 %v2109, %v2105
      %v2111 = vrot.slane %v2110, 4
      %v2113 = vshll.u32 %v1658, 16
      %v2115 = vrot.slane %v2113, 5
      %v2116 = vsel %vm277, %v2111, %v2115
      %v2118 = vshrl.u32 %v1659, 16
      %v2120 = vrot.slane %v2118, 4
      %v2121 = vshll.u32 %v1659, 16
      %v2123 = vrot.slane %v2121, 5
      %v2124 = vor.u32 %v2120, %v2123
      %v2125 = vrot.slane %v2124, 4
      %v2127 = vshll.u32 %v1660, 16
      %v2129 = vrot.slane %v2127, 5
      %v2130 = vsel %vm277, %v2125, %v2129
      %v2131 = vshrl.u32 %v1660, 16
      %v2133 = vrot.slane %v2131, 4
      %v2134 = vor.u32 %v2133, %v2129
      %v2135 = vrot.slane %v2134, 4
      %v2137 = vshll.u32 %v1661, 16
      %v2139 = vrot.slane %v2137, 5
      %v2140 = vsel %vm277, %v2135, %v2139
      %v2142 = vshrl.u32 %v1662, 16
      %v2144 = vrot.slane %v2142, 4
      %v2145 = vshll.u32 %v1662, 16
      %v2147 = vrot.slane %v2145, 5
      %v2148 = vor.u32 %v2144, %v2147
      %v2149 = vrot.slane %v2148, 4
      %v2151 = vshll.u32 %v1663, 16
      %v2153 = vrot.slane %v2151, 5
      %v2154 = vsel %vm277, %v2149, %v2153
      %v2155 = vshrl.u32 %v1663, 16
      %v2157 = vrot.slane %v2155, 4
      %v2158 = vor.u32 %v2157, %v2153
      %v2159 = vrot.slane %v2158, 4
      %v2161 = vshll.u32 %v1664, 16
      %v2163 = vrot.slane %v2161, 5
      %v2164 = vsel %vm277, %v2159, %v2163
      %v2166 = vshrl.u32 %v1665, 16
      %v2168 = vrot.slane %v2166, 4
      %v2169 = vshll.u32 %v1665, 16
      %v2171 = vrot.slane %v2169, 5
      %v2172 = vor.u32 %v2168, %v2171
      %v2173 = vrot.slane %v2172, 4
      %v2175 = vshll.u32 %v1666, 16
      %v2177 = vrot.slane %v2175, 5
      %v2178 = vsel %vm277, %v2173, %v2177
      %v2179 = vshrl.u32 %v1666, 16
      %v2181 = vrot.slane %v2179, 4
      %v2182 = vor.u32 %v2181, %v2177
      %v2183 = vrot.slane %v2182, 4
      %v2185 = vshll.u32 %v1667, 16
      %v2187 = vrot.slane %v2185, 5
      %v2188 = vsel %vm277, %v2183, %v2187
      %v2190 = vshrl.u32 %v1668, 16
      %v2192 = vrot.slane %v2190, 4
      %v2193 = vshll.u32 %v1668, 16
      %v2195 = vrot.slane %v2193, 5
      %v2196 = vor.u32 %v2192, %v2195
      %v2197 = vrot.slane %v2196, 4
      %v2199 = vshll.u32 %v1669, 16
      %v2201 = vrot.slane %v2199, 5
      %v2202 = vsel %vm277, %v2197, %v2201
      %v2203 = vshrl.u32 %v1669, 16
      %v2205 = vrot.slane %v2203, 4
      %v2206 = vor.u32 %v2205, %v2201
      %v2207 = vrot.slane %v2206, 4
      %v2209 = vshll.u32 %v1670, 16
      %v2211 = vrot.slane %v2209, 5
      %v2212 = vsel %vm277, %v2207, %v2211
      %v2214 = vshrl.u32 %v1671, 16
      %v2216 = vrot.slane %v2214, 4
      %v2217 = vshll.u32 %v1671, 16
      %v2219 = vrot.slane %v2217, 5
      %v2220 = vor.u32 %v2216, %v2219
      %v2221 = vrot.slane %v2220, 4
      %v2223 = vshll.u32 %v1672, 16
      %v2225 = vrot.slane %v2223, 5
      %v2226 = vsel %vm277, %v2221, %v2225
      %v2227 = vshrl.u32 %v1672, 16
      %v2229 = vrot.slane %v2227, 4
      %v2230 = vor.u32 %v2229, %v2225
      %v2231 = vrot.slane %v2230, 4
      %v2233 = vshll.u32 %v1673, 16
      %v2235 = vrot.slane %v2233, 5
      %v2236 = vsel %vm277, %v2231, %v2235
      %v2238 = vshrl.u32 %v1674, 16
      %v2240 = vrot.slane %v2238, 4
      %v2241 = vshll.u32 %v1674, 16
      %v2243 = vrot.slane %v2241, 5
      %v2244 = vor.u32 %v2240, %v2243
      %v2245 = vrot.slane %v2244, 4
      %v2247 = vshll.u32 %v1675, 16
      %v2249 = vrot.slane %v2247, 5
      %v2250 = vsel %vm277, %v2245, %v2249
      %v2251 = vshrl.u32 %v1675, 16
      %v2253 = vrot.slane %v2251, 4
      %v2254 = vor.u32 %v2253, %v2249
      %v2255 = vrot.slane %v2254, 4
      %v2257 = vshll.u32 %v1676, 16
      %v2259 = vrot.slane %v2257, 5
      %v2260 = vsel %vm277, %v2255, %v2259
      %v2262 = vshrl.u32 %v1677, 16
      %v2264 = vrot.slane %v2262, 4
      %v2265 = vshll.u32 %v1677, 16
      %v2267 = vrot.slane %v2265, 5
      %v2268 = vor.u32 %v2264, %v2267
      %v2269 = vrot.slane %v2268, 4
      %v2271 = vshll.u32 %v1678, 16
      %v2273 = vrot.slane %v2271, 5
      %v2274 = vsel %vm277, %v2269, %v2273
      %v2275 = vshrl.u32 %v1678, 16
      %v2277 = vrot.slane %v2275, 4
      %v2278 = vor.u32 %v2277, %v2273
      %v2279 = vrot.slane %v2278, 4
      %v2281 = vshll.u32 %v1679, 16
      %v2283 = vrot.slane %v2281, 5
      %v2284 = vsel %vm277, %v2279, %v2283
      %v2286 = vshrl.u32 %v1680, 16
      %v2288 = vrot.slane %v2286, 4
      %v2289 = vshll.u32 %v1680, 16
      %v2291 = vrot.slane %v2289, 5
      %v2292 = vor.u32 %v2288, %v2291
      %v2293 = vrot.slane %v2292, 4
      %v2295 = vshll.u32 %v1681, 16
      %v2297 = vrot.slane %v2295, 5
      %v2298 = vsel %vm277, %v2293, %v2297
      %v2299 = vshrl.u32 %v1681, 16
      %v2301 = vrot.slane %v2299, 4
      %v2302 = vor.u32 %v2301, %v2297
      %v2303 = vrot.slane %v2302, 4
      %v2305 = vshll.u32 %v1682, 16
      %v2307 = vrot.slane %v2305, 5
      %v2308 = vsel %vm277, %v2303, %v2307
      %v2310 = vshrl.u32 %v1683, 16
      %v2312 = vrot.slane %v2310, 4
      %v2313 = vshll.u32 %v1683, 16
      %v2315 = vrot.slane %v2313, 5
      %v2316 = vor.u32 %v2312, %v2315
      %v2317 = vrot.slane %v2316, 4
      %v2319 = vshll.u32 %v1684, 16
      %v2321 = vrot.slane %v2319, 5
      %v2322 = vsel %vm277, %v2317, %v2321
      %v2323 = vshrl.u32 %v1684, 16
      %v2325 = vrot.slane %v2323, 4
      %v2326 = vor.u32 %v2325, %v2321
      %v2327 = vrot.slane %v2326, 4
      %v2329 = vshll.u32 %v1685, 16
      %v2331 = vrot.slane %v2329, 5
      %v2332 = vsel %vm277, %v2327, %v2331
      %v2334 = vshrl.u32 %v1686, 16
      %v2336 = vrot.slane %v2334, 4
      %v2337 = vshll.u32 %v1686, 16
      %v2339 = vrot.slane %v2337, 5
      %v2340 = vor.u32 %v2336, %v2339
      %v2341 = vrot.slane %v2340, 4
      %v2343 = vshll.u32 %v1687, 16
      %v2345 = vrot.slane %v2343, 5
      %v2346 = vsel %vm277, %v2341, %v2345
      %v2347 = vshrl.u32 %v1687, 16
      %v2349 = vrot.slane %v2347, 4
      %v2350 = vor.u32 %v2349, %v2345
      %v2351 = vrot.slane %v2350, 4
      %v2353 = vshll.u32 %v1688, 16
      %v2355 = vrot.slane %v2353, 5
      %v2356 = vsel %vm277, %v2351, %v2355
      %v2358 = vshrl.u32 %v1689, 16
      %v2360 = vrot.slane %v2358, 4
      %v2361 = vshll.u32 %v1689, 16
      %v2363 = vrot.slane %v2361, 5
      %v2364 = vor.u32 %v2360, %v2363
      %v2365 = vrot.slane %v2364, 4
      %v2367 = vshll.u32 %v1690, 16
      %v2369 = vrot.slane %v2367, 5
      %v2370 = vsel %vm277, %v2365, %v2369
      %v2371 = vshrl.u32 %v1690, 16
      %v2373 = vrot.slane %v2371, 4
      %v2374 = vor.u32 %v2373, %v2369
      %v2375 = vrot.slane %v2374, 4
      %v2377 = vshll.u32 %v1691, 16
      %v2379 = vrot.slane %v2377, 5
      %v2380 = vsel %vm277, %v2375, %v2379
      %v2382 = vshrl.u32 %v1692, 16
      %v2384 = vrot.slane %v2382, 4
      %v2385 = vshll.u32 %v1692, 16
      %v2387 = vrot.slane %v2385, 5
      %v2388 = vor.u32 %v2384, %v2387
      %v2389 = vrot.slane %v2388, 4
      %v2391 = vshll.u32 %v1693, 16
      %v2393 = vrot.slane %v2391, 5
      %v2394 = vsel %vm277, %v2389, %v2393
      %v2395 = vshrl.u32 %v1693, 16
      %v2397 = vrot.slane %v2395, 4
      %v2398 = vor.u32 %v2397, %v2393
      %v2399 = vrot.slane %v2398, 4
      %v2401 = vshll.u32 %v1694, 16
      %v2403 = vrot.slane %v2401, 5
      %v2404 = vsel %vm277, %v2399, %v2403
      %s2405 = scalar_lea.vmem %s1, 8
      %v2406 = vld [vmem:[%s2405] sm:$0x3]
      %v2407 = vunpack.c.l.b16 %v2034
      %v2408 = vunpack.c.l.b16 %v2044
      %v2409 = vunpack.c.l.b16 %v2058
      %v2410 = vunpack.c.l.b16 %v2068
      %v2411 = vunpack.c.l.b16 %v2082
      %v2412 = vunpack.c.l.b16 %v2092
      %v2413 = vunpack.c.l.b16 %v2106
      %v2414 = vunpack.c.l.b16 %v2116
      %v2415 = vunpack.c.l.b16 %v2130
      %v2416 = vunpack.c.l.b16 %v2140
      %v2417 = vunpack.c.l.b16 %v2154
      %v2418 = vunpack.c.l.b16 %v2164
      %v2419 = vunpack.c.l.b16 %v2178
      %v2420 = vunpack.c.l.b16 %v2188
      %v2421 = vunpack.c.l.b16 %v2202
      %v2422 = vunpack.c.l.b16 %v2212
      %v2423 = vunpack.c.l.b16 %v2226
      %v2424 = vunpack.c.l.b16 %v2236
      %v2425 = vunpack.c.l.b16 %v2250
      %v2426 = vunpack.c.l.b16 %v2260
      %v2427 = vunpack.c.l.b16 %v2274
      %v2428 = vunpack.c.l.b16 %v2284
      %v2429 = vunpack.c.l.b16 %v2298
      %v2430 = vunpack.c.l.b16 %v2308
      %v2431 = vunpack.c.l.b16 %v2322
      %v2432 = vunpack.c.l.b16 %v2332
      %v2433 = vunpack.c.l.b16 %v2346
      %v2434 = vunpack.c.l.b16 %v2356
      %v2435 = vunpack.c.l.b16 %v2370
      %v2436 = vunpack.c.l.b16 %v2380
      %v2437 = vunpack.c.l.b16 %v2394
      %v2438 = vunpack.c.l.b16 %v2404
      %v2439 = vpack.c.b16 %v2408, %v2407
      %v2440 = vpack.c.b16 %v2410, %v2409
      %v2441 = vpack.c.b16 %v2412, %v2411
      %v2442 = vpack.c.b16 %v2414, %v2413
      %v2443 = vpack.c.b16 %v2416, %v2415
      %v2444 = vpack.c.b16 %v2418, %v2417
      %v2445 = vpack.c.b16 %v2420, %v2419
      %v2446 = vpack.c.b16 %v2422, %v2421
      %v2447 = vpack.c.b16 %v2424, %v2423
      %v2448 = vpack.c.b16 %v2426, %v2425
      %v2449 = vpack.c.b16 %v2428, %v2427
      %v2450 = vpack.c.b16 %v2430, %v2429
      %v2451 = vpack.c.b16 %v2432, %v2431
      %v2452 = vpack.c.b16 %v2434, %v2433
      %v2453 = vpack.c.b16 %v2436, %v2435
      %v2454 = vpack.c.b16 %v2438, %v2437
      %v2456 = vsel %vm712, %v2439, 0
      %v2459 = vsel %vm712, %v2440, 0
      %v2462 = vsel %vm712, %v2441, 0
      %v2465 = vsel %vm712, %v2442, 0
      %v2468 = vsel %vm712, %v2443, 0
      %v2471 = vsel %vm712, %v2444, 0
      %v2474 = vsel %vm712, %v2445, 0
      %v2477 = vsel %vm712, %v2446, 0
      %v2480 = vsel %vm712, %v2447, 0
      %v2483 = vsel %vm712, %v2448, 0
      %v2486 = vsel %vm712, %v2449, 0
      %v2489 = vsel %vm712, %v2450, 0
      %v2492 = vsel %vm712, %v2451, 0
      %v2495 = vsel %vm712, %v2452, 0
      %v2498 = vsel %vm712, %v2453, 0
      %v2501 = vsel %vm712, %v2454, 0
      %v2504 = vsel %vm761, %v2406, 0
      %2506 = vmatprep.subr.bf16.mxu0 0
      %2507 = vmatpush1.bf16.msra.mxu0 0
      %2508 = vmatprep.subr.bf16.mxu0 0
      %2509 = vmatpush1.bf16.msra.mxu0 0
      %2510 = vmatprep.subr.bf16.mxu0 0
      %2511 = vmatpush1.bf16.msra.mxu0 0
      %2512 = vmatprep.subr.bf16.mxu0 0
      %2513 = vmatpush1.bf16.msra.mxu0 0
      %2514 = vmatprep.subr.bf16.mxu0 0
      %2515 = vmatpush1.bf16.msra.mxu0 0
      %2516 = vmatprep.subr.bf16.mxu0 0
      %2517 = vmatpush1.bf16.msra.mxu0 0
      %2518 = vmatprep.subr.bf16.mxu0 0
      %2519 = vmatpush1.bf16.msra.mxu0 0
      %2520 = vmatprep.subr.bf16.mxu0 0
      %2521 = vmatpush1.bf16.msra.mxu0 %v2504
      %2522 = vmatprep.subr.bf16.mxu0 0
      %2523 = vmatpush2.bf16.msra.mxu0 0
      %2524 = vmatprep.subr.bf16.mxu0 0
      %2525 = vmatpush2.bf16.msra.mxu0 0
      %2526 = vmatprep.subr.bf16.mxu0 0
      %2527 = vmatpush2.bf16.msra.mxu0 0
      %2528 = vmatprep.subr.bf16.mxu0 0
      %2529 = vmatpush2.bf16.msra.mxu0 0
      %2530 = vmatprep.subr.bf16.mxu0 0
      %2531 = vmatpush2.bf16.msra.mxu0 0
      %2532 = vmatprep.subr.bf16.mxu0 0
      %2533 = vmatpush2.bf16.msra.mxu0 0
      %2534 = vmatprep.subr.bf16.mxu0 0
      %2535 = vmatpush2.bf16.msra.mxu0 0
      %2536 = vmatprep.subr.bf16.mxu0 0
      %2537 = vmatpush2.bf16.msra.mxu0 0
      %2538 = vmatprep.mubr.bf16.mxu0 0
      %2539 = vmatmul.mubr.bf16.gmra.mxu0 %v2456
      %v2540 = vpop.f32.mrf.mxu0
      %v2541 = vadd.f32 0.0, %v2540
      %v2542 = vpop.f32.mrf.mxu0
      %v2543 = vpop.f32.mrf.mxu0
      %v2544 = vadd.f32 0.0, %v2543
      %v2545 = vpop.f32.mrf.mxu0
      %2546 = vmatprep.mubr.bf16.mxu0 0
      %2547 = vmatmul.mubr.bf16.gmra.mxu0 %v2459
      %v2548 = vpop.f32.mrf.mxu0
      %v2549 = vadd.f32 0.0, %v2548
      %v2550 = vpop.f32.mrf.mxu0
      %v2551 = vpop.f32.mrf.mxu0
      %v2552 = vadd.f32 0.0, %v2551
      %v2553 = vpop.f32.mrf.mxu0
      %2554 = vmatprep.mubr.bf16.mxu0 0
      %2555 = vmatmul.mubr.bf16.gmra.mxu0 %v2462
      %v2556 = vpop.f32.mrf.mxu0
      %v2557 = vadd.f32 0.0, %v2556
      %v2558 = vpop.f32.mrf.mxu0
      %v2559 = vpop.f32.mrf.mxu0
      %v2560 = vadd.f32 0.0, %v2559
      %v2561 = vpop.f32.mrf.mxu0
      %2562 = vmatprep.mubr.bf16.mxu0 0
      %2563 = vmatmul.mubr.bf16.gmra.mxu0 %v2465
      %v2564 = vpop.f32.mrf.mxu0
      %v2565 = vadd.f32 0.0, %v2564
      %v2566 = vpop.f32.mrf.mxu0
      %v2567 = vpop.f32.mrf.mxu0
      %v2568 = vadd.f32 0.0, %v2567
      %v2569 = vpop.f32.mrf.mxu0
      %2570 = vmatprep.mubr.bf16.mxu0 0
      %2571 = vmatmul.mubr.bf16.gmra.mxu0 %v2468
      %v2572 = vpop.f32.mrf.mxu0
      %v2573 = vadd.f32 0.0, %v2572
      %v2574 = vpop.f32.mrf.mxu0
      %v2575 = vpop.f32.mrf.mxu0
      %v2576 = vadd.f32 0.0, %v2575
      %v2577 = vpop.f32.mrf.mxu0
      %2578 = vmatprep.mubr.bf16.mxu0 0
      %2579 = vmatmul.mubr.bf16.gmra.mxu0 %v2471
      %v2580 = vpop.f32.mrf.mxu0
      %v2581 = vadd.f32 0.0, %v2580
      %v2582 = vpop.f32.mrf.mxu0
      %v2583 = vpop.f32.mrf.mxu0
      %v2584 = vadd.f32 0.0, %v2583
      %v2585 = vpop.f32.mrf.mxu0
      %2586 = vmatprep.mubr.bf16.mxu0 0
      %2587 = vmatmul.mubr.bf16.gmra.mxu0 %v2474
      %v2588 = vpop.f32.mrf.mxu0
      %v2589 = vadd.f32 0.0, %v2588
      %v2590 = vpop.f32.mrf.mxu0
      %v2591 = vpop.f32.mrf.mxu0
      %v2592 = vadd.f32 0.0, %v2591
      %v2593 = vpop.f32.mrf.mxu0
      %2594 = vmatprep.mubr.bf16.mxu0 0
      %2595 = vmatmul.mubr.bf16.gmra.mxu0 %v2477
      %v2596 = vpop.f32.mrf.mxu0
      %v2597 = vadd.f32 0.0, %v2596
      %v2598 = vpop.f32.mrf.mxu0
      %v2599 = vpop.f32.mrf.mxu0
      %v2600 = vadd.f32 0.0, %v2599
      %v2601 = vpop.f32.mrf.mxu0
      %2602 = vmatprep.mubr.bf16.mxu0 0
      %2603 = vmatmul.mubr.bf16.gmra.mxu0 %v2480
      %v2604 = vpop.f32.mrf.mxu0
      %v2605 = vadd.f32 0.0, %v2604
      %v2606 = vpop.f32.mrf.mxu0
      %v2607 = vpop.f32.mrf.mxu0
      %v2608 = vadd.f32 0.0, %v2607
      %v2609 = vpop.f32.mrf.mxu0
      %2610 = vmatprep.mubr.bf16.mxu0 0
      %2611 = vmatmul.mubr.bf16.gmra.mxu0 %v2483
      %v2612 = vpop.f32.mrf.mxu0
      %v2613 = vadd.f32 0.0, %v2612
      %v2614 = vpop.f32.mrf.mxu0
      %v2615 = vpop.f32.mrf.mxu0
      %v2616 = vadd.f32 0.0, %v2615
      %v2617 = vpop.f32.mrf.mxu0
      %2618 = vmatprep.mubr.bf16.mxu0 0
      %2619 = vmatmul.mubr.bf16.gmra.mxu0 %v2486
      %v2620 = vpop.f32.mrf.mxu0
      %v2621 = vadd.f32 0.0, %v2620
      %v2622 = vpop.f32.mrf.mxu0
      %v2623 = vpop.f32.mrf.mxu0
      %v2624 = vadd.f32 0.0, %v2623
      %v2625 = vpop.f32.mrf.mxu0
      %2626 = vmatprep.mubr.bf16.mxu0 0
      %2627 = vmatmul.mubr.bf16.gmra.mxu0 %v2489
      %v2628 = vpop.f32.mrf.mxu0
      %v2629 = vadd.f32 0.0, %v2628
      %v2630 = vpop.f32.mrf.mxu0
      %v2631 = vpop.f32.mrf.mxu0
      %v2632 = vadd.f32 0.0, %v2631
      %v2633 = vpop.f32.mrf.mxu0
      %2634 = vmatprep.mubr.bf16.mxu0 0
      %2635 = vmatmul.mubr.bf16.gmra.mxu0 %v2492
      %v2636 = vpop.f32.mrf.mxu0
      %v2637 = vadd.f32 0.0, %v2636
      %v2638 = vpop.f32.mrf.mxu0
      %v2639 = vpop.f32.mrf.mxu0
      %v2640 = vadd.f32 0.0, %v2639
      %v2641 = vpop.f32.mrf.mxu0
      %2642 = vmatprep.mubr.bf16.mxu0 0
      %2643 = vmatmul.mubr.bf16.gmra.mxu0 %v2495
      %v2644 = vpop.f32.mrf.mxu0
      %v2645 = vadd.f32 0.0, %v2644
      %v2646 = vpop.f32.mrf.mxu0
      %v2647 = vpop.f32.mrf.mxu0
      %v2648 = vadd.f32 0.0, %v2647
      %v2649 = vpop.f32.mrf.mxu0
      %2650 = vmatprep.mubr.bf16.mxu0 0
      %2651 = vmatmul.mubr.bf16.gmra.mxu0 %v2498
      %v2652 = vpop.f32.mrf.mxu0
      %v2653 = vadd.f32 0.0, %v2652
      %v2654 = vpop.f32.mrf.mxu0
      %v2655 = vpop.f32.mrf.mxu0
      %v2656 = vadd.f32 0.0, %v2655
      %v2657 = vpop.f32.mrf.mxu0
      %2658 = vmatprep.mubr.bf16.mxu0 0
      %2659 = vmatmul.mubr.bf16.gmra.mxu0 %v2501
      %v2660 = vpop.f32.mrf.mxu0
      %v2661 = vadd.f32 0.0, %v2660
      %v2662 = vpop.f32.mrf.mxu0
      %v2663 = vpop.f32.mrf.mxu0
      %v2664 = vadd.f32 0.0, %v2663
      %v2665 = vpop.f32.mrf.mxu0
      %2666 = vdwg.mxu0
      %v2667 = vadd.f32 %v1989, %v2541
      %v2668 = vadd.f32 %v1990, %v2544
      %v2669 = vadd.f32 %v1991, %v2549
      %v2670 = vadd.f32 %v1992, %v2552
      %v2671 = vadd.f32 %v1993, %v2557
      %v2672 = vadd.f32 %v1994, %v2560
      %v2673 = vadd.f32 %v1995, %v2565
      %v2674 = vadd.f32 %v1996, %v2568
      %v2675 = vadd.f32 %v1997, %v2573
      %v2676 = vadd.f32 %v1998, %v2576
      %v2677 = vadd.f32 %v1999, %v2581
      %v2678 = vadd.f32 %v2000, %v2584
      %v2679 = vadd.f32 %v2001, %v2589
      %v2680 = vadd.f32 %v2002, %v2592
      %v2681 = vadd.f32 %v2003, %v2597
      %v2682 = vadd.f32 %v2004, %v2600
      %v2683 = vadd.f32 %v2005, %v2605
      %v2684 = vadd.f32 %v2006, %v2608
      %v2685 = vadd.f32 %v2007, %v2613
      %v2686 = vadd.f32 %v2008, %v2616
      %v2687 = vadd.f32 %v2009, %v2621
      %v2688 = vadd.f32 %v2010, %v2624
      %v2689 = vadd.f32 %v2011, %v2629
      %v2690 = vadd.f32 %v2012, %v2632
      %v2691 = vadd.f32 %v2013, %v2637
      %v2692 = vadd.f32 %v2014, %v2640
      %v2693 = vadd.f32 %v2015, %v2645
      %v2694 = vadd.f32 %v2016, %v2648
      %v2695 = vadd.f32 %v2017, %v2653
      %v2696 = vadd.f32 %v2018, %v2656
      %v2697 = vadd.f32 %v2019, %v2661
      %v2698 = vadd.f32 %v2020, %v2664
      %v2715 = vrot.slane %v1647, 5
      %v2716 = vrot.slane %v2715, 4
      %v2717 = vrot.slane %v1648, 5
      %v2718 = vsel %vm1236, %v2716, %v2717
      %v2719 = vrot.slane %v2717, 4
      %v2720 = vrot.slane %v1649, 5
      %v2721 = vsel %vm1236, %v2719, %v2720
      %v2722 = vrot.slane %v1650, 5
      %v2723 = vrot.slane %v2722, 4
      %v2724 = vrot.slane %v1651, 5
      %v2725 = vsel %vm1236, %v2723, %v2724
      %v2726 = vrot.slane %v2724, 4
      %v2727 = vrot.slane %v1652, 5
      %v2728 = vsel %vm1236, %v2726, %v2727
      %v2729 = vrot.slane %v1653, 5
      %v2730 = vrot.slane %v2729, 4
      %v2731 = vrot.slane %v1654, 5
      %v2732 = vsel %vm1236, %v2730, %v2731
      %v2733 = vrot.slane %v2731, 4
      %v2734 = vrot.slane %v1655, 5
      %v2735 = vsel %vm1236, %v2733, %v2734
      %v2736 = vrot.slane %v1656, 5
      %v2737 = vrot.slane %v2736, 4
      %v2738 = vrot.slane %v1657, 5
      %v2739 = vsel %vm1236, %v2737, %v2738
      %v2740 = vrot.slane %v2738, 4
      %v2741 = vrot.slane %v1658, 5
      %v2742 = vsel %vm1236, %v2740, %v2741
      %v2743 = vrot.slane %v1659, 5
      %v2744 = vrot.slane %v2743, 4
      %v2745 = vrot.slane %v1660, 5
      %v2746 = vsel %vm1236, %v2744, %v2745
      %v2747 = vrot.slane %v2745, 4
      %v2748 = vrot.slane %v1661, 5
      %v2749 = vsel %vm1236, %v2747, %v2748
      %v2750 = vrot.slane %v1662, 5
      %v2751 = vrot.slane %v2750, 4
      %v2752 = vrot.slane %v1663, 5
      %v2753 = vsel %vm1236, %v2751, %v2752
      %v2754 = vrot.slane %v2752, 4
      %v2755 = vrot.slane %v1664, 5
      %v2756 = vsel %vm1236, %v2754, %v2755
      %v2757 = vrot.slane %v1665, 5
      %v2758 = vrot.slane %v2757, 4
      %v2759 = vrot.slane %v1666, 5
      %v2760 = vsel %vm1236, %v2758, %v2759
      %v2761 = vrot.slane %v2759, 4
      %v2762 = vrot.slane %v1667, 5
      %v2763 = vsel %vm1236, %v2761, %v2762
      %v2764 = vrot.slane %v1668, 5
      %v2765 = vrot.slane %v2764, 4
      %v2766 = vrot.slane %v1669, 5
      %v2767 = vsel %vm1236, %v2765, %v2766
      %v2768 = vrot.slane %v2766, 4
      %v2769 = vrot.slane %v1670, 5
      %v2770 = vsel %vm1236, %v2768, %v2769
      %v2771 = vrot.slane %v1671, 5
      %v2772 = vrot.slane %v2771, 4
      %v2773 = vrot.slane %v1672, 5
      %v2774 = vsel %vm1236, %v2772, %v2773
      %v2775 = vrot.slane %v2773, 4
      %v2776 = vrot.slane %v1673, 5
      %v2777 = vsel %vm1236, %v2775, %v2776
      %v2778 = vrot.slane %v1674, 5
      %v2779 = vrot.slane %v2778, 4
      %v2780 = vrot.slane %v1675, 5
      %v2781 = vsel %vm1236, %v2779, %v2780
      %v2782 = vrot.slane %v2780, 4
      %v2783 = vrot.slane %v1676, 5
      %v2784 = vsel %vm1236, %v2782, %v2783
      %v2785 = vrot.slane %v1677, 5
      %v2786 = vrot.slane %v2785, 4
      %v2787 = vrot.slane %v1678, 5
      %v2788 = vsel %vm1236, %v2786, %v2787
      %v2789 = vrot.slane %v2787, 4
      %v2790 = vrot.slane %v1679, 5
      %v2791 = vsel %vm1236, %v2789, %v2790
      %v2792 = vrot.slane %v1680, 5
      %v2793 = vrot.slane %v2792, 4
      %v2794 = vrot.slane %v1681, 5
      %v2795 = vsel %vm1236, %v2793, %v2794
      %v2796 = vrot.slane %v2794, 4
      %v2797 = vrot.slane %v1682, 5
      %v2798 = vsel %vm1236, %v2796, %v2797
      %v2799 = vrot.slane %v1683, 5
      %v2800 = vrot.slane %v2799, 4
      %v2801 = vrot.slane %v1684, 5
      %v2802 = vsel %vm1236, %v2800, %v2801
      %v2803 = vrot.slane %v2801, 4
      %v2804 = vrot.slane %v1685, 5
      %v2805 = vsel %vm1236, %v2803, %v2804
      %v2806 = vrot.slane %v1686, 5
      %v2807 = vrot.slane %v2806, 4
      %v2808 = vrot.slane %v1687, 5
      %v2809 = vsel %vm1236, %v2807, %v2808
      %v2810 = vrot.slane %v2808, 4
      %v2811 = vrot.slane %v1688, 5
      %v2812 = vsel %vm1236, %v2810, %v2811
      %v2813 = vrot.slane %v1689, 5
      %v2814 = vrot.slane %v2813, 4
      %v2815 = vrot.slane %v1690, 5
      %v2816 = vsel %vm1236, %v2814, %v2815
      %v2817 = vrot.slane %v2815, 4
      %v2818 = vrot.slane %v1691, 5
      %v2819 = vsel %vm1236, %v2817, %v2818
      %v2820 = vrot.slane %v1692, 5
      %v2821 = vrot.slane %v2820, 4
      %v2822 = vrot.slane %v1693, 5
      %v2823 = vsel %vm1236, %v2821, %v2822
      %v2824 = vrot.slane %v2822, 4
      %v2825 = vrot.slane %v1694, 5
      %v2826 = vsel %vm1236, %v2824, %v2825
      %s2827 = scalar_lea.vmem %s1, 10
      %v2828 = vld [vmem:[%s2827] sm:$0x3]
      %v2829 = vunpack.c.l.b16 %v2718
      %v2830 = vunpack.c.l.b16 %v2721
      %v2831 = vunpack.c.l.b16 %v2725
      %v2832 = vunpack.c.l.b16 %v2728
      %v2833 = vunpack.c.l.b16 %v2732
      %v2834 = vunpack.c.l.b16 %v2735
      %v2835 = vunpack.c.l.b16 %v2739
      %v2836 = vunpack.c.l.b16 %v2742
      %v2837 = vunpack.c.l.b16 %v2746
      %v2838 = vunpack.c.l.b16 %v2749
      %v2839 = vunpack.c.l.b16 %v2753
      %v2840 = vunpack.c.l.b16 %v2756
      %v2841 = vunpack.c.l.b16 %v2760
      %v2842 = vunpack.c.l.b16 %v2763
      %v2843 = vunpack.c.l.b16 %v2767
      %v2844 = vunpack.c.l.b16 %v2770
      %v2845 = vunpack.c.l.b16 %v2774
      %v2846 = vunpack.c.l.b16 %v2777
      %v2847 = vunpack.c.l.b16 %v2781
      %v2848 = vunpack.c.l.b16 %v2784
      %v2849 = vunpack.c.l.b16 %v2788
      %v2850 = vunpack.c.l.b16 %v2791
      %v2851 = vunpack.c.l.b16 %v2795
      %v2852 = vunpack.c.l.b16 %v2798
      %v2853 = vunpack.c.l.b16 %v2802
      %v2854 = vunpack.c.l.b16 %v2805
      %v2855 = vunpack.c.l.b16 %v2809
      %v2856 = vunpack.c.l.b16 %v2812
      %v2857 = vunpack.c.l.b16 %v2816
      %v2858 = vunpack.c.l.b16 %v2819
      %v2859 = vunpack.c.l.b16 %v2823
      %v2860 = vunpack.c.l.b16 %v2826
      %v2861 = vpack.c.b16 %v2830, %v2829
      %v2862 = vpack.c.b16 %v2832, %v2831
      %v2863 = vpack.c.b16 %v2834, %v2833
      %v2864 = vpack.c.b16 %v2836, %v2835
      %v2865 = vpack.c.b16 %v2838, %v2837
      %v2866 = vpack.c.b16 %v2840, %v2839
      %v2867 = vpack.c.b16 %v2842, %v2841
      %v2868 = vpack.c.b16 %v2844, %v2843
      %v2869 = vpack.c.b16 %v2846, %v2845
      %v2870 = vpack.c.b16 %v2848, %v2847
      %v2871 = vpack.c.b16 %v2850, %v2849
      %v2872 = vpack.c.b16 %v2852, %v2851
      %v2873 = vpack.c.b16 %v2854, %v2853
      %v2874 = vpack.c.b16 %v2856, %v2855
      %v2875 = vpack.c.b16 %v2858, %v2857
      %v2876 = vpack.c.b16 %v2860, %v2859
      %v2878 = vsel %vm712, %v2861, 0
      %v2881 = vsel %vm712, %v2862, 0
      %v2884 = vsel %vm712, %v2863, 0
      %v2887 = vsel %vm712, %v2864, 0
      %v2890 = vsel %vm712, %v2865, 0
      %v2893 = vsel %vm712, %v2866, 0
      %v2896 = vsel %vm712, %v2867, 0
      %v2899 = vsel %vm712, %v2868, 0
      %v2902 = vsel %vm712, %v2869, 0
      %v2905 = vsel %vm712, %v2870, 0
      %v2908 = vsel %vm712, %v2871, 0
      %v2911 = vsel %vm712, %v2872, 0
      %v2914 = vsel %vm712, %v2873, 0
      %v2917 = vsel %vm712, %v2874, 0
      %v2920 = vsel %vm712, %v2875, 0
      %v2923 = vsel %vm712, %v2876, 0
      %v2926 = vsel %vm761, %v2828, 0
      %2928 = vmatprep.subr.bf16.mxu0 0
      %2929 = vmatpush1.bf16.msra.mxu0 0
      %2930 = vmatprep.subr.bf16.mxu0 0
      %2931 = vmatpush1.bf16.msra.mxu0 0
      %2932 = vmatprep.subr.bf16.mxu0 0
      %2933 = vmatpush1.bf16.msra.mxu0 0
      %2934 = vmatprep.subr.bf16.mxu0 0
      %2935 = vmatpush1.bf16.msra.mxu0 0
      %2936 = vmatprep.subr.bf16.mxu0 0
      %2937 = vmatpush1.bf16.msra.mxu0 0
      %2938 = vmatprep.subr.bf16.mxu0 0
      %2939 = vmatpush1.bf16.msra.mxu0 0
      %2940 = vmatprep.subr.bf16.mxu0 0
      %2941 = vmatpush1.bf16.msra.mxu0 0
      %2942 = vmatprep.subr.bf16.mxu0 0
      %2943 = vmatpush1.bf16.msra.mxu0 %v2926
      %2944 = vmatprep.subr.bf16.mxu0 0
      %2945 = vmatpush2.bf16.msra.mxu0 0
      %2946 = vmatprep.subr.bf16.mxu0 0
      %2947 = vmatpush2.bf16.msra.mxu0 0
      %2948 = vmatprep.subr.bf16.mxu0 0
      %2949 = vmatpush2.bf16.msra.mxu0 0
      %2950 = vmatprep.subr.bf16.mxu0 0
      %2951 = vmatpush2.bf16.msra.mxu0 0
      %2952 = vmatprep.subr.bf16.mxu0 0
      %2953 = vmatpush2.bf16.msra.mxu0 0
      %2954 = vmatprep.subr.bf16.mxu0 0
      %2955 = vmatpush2.bf16.msra.mxu0 0
      %2956 = vmatprep.subr.bf16.mxu0 0
      %2957 = vmatpush2.bf16.msra.mxu0 0
      %2958 = vmatprep.subr.bf16.mxu0 0
      %2959 = vmatpush2.bf16.msra.mxu0 0
      %2960 = vmatprep.mubr.bf16.mxu0 0
      %2961 = vmatmul.mubr.bf16.gmra.mxu0 %v2878
      %v2962 = vpop.f32.mrf.mxu0
      %v2963 = vadd.f32 0.0, %v2962
      %v2964 = vpop.f32.mrf.mxu0
      %v2965 = vpop.f32.mrf.mxu0
      %v2966 = vadd.f32 0.0, %v2965
      %v2967 = vpop.f32.mrf.mxu0
      %2968 = vmatprep.mubr.bf16.mxu0 0
      %2969 = vmatmul.mubr.bf16.gmra.mxu0 %v2881
      %v2970 = vpop.f32.mrf.mxu0
      %v2971 = vadd.f32 0.0, %v2970
      %v2972 = vpop.f32.mrf.mxu0
      %v2973 = vpop.f32.mrf.mxu0
      %v2974 = vadd.f32 0.0, %v2973
      %v2975 = vpop.f32.mrf.mxu0
      %2976 = vmatprep.mubr.bf16.mxu0 0
      %2977 = vmatmul.mubr.bf16.gmra.mxu0 %v2884
      %v2978 = vpop.f32.mrf.mxu0
      %v2979 = vadd.f32 0.0, %v2978
      %v2980 = vpop.f32.mrf.mxu0
      %v2981 = vpop.f32.mrf.mxu0
      %v2982 = vadd.f32 0.0, %v2981
      %v2983 = vpop.f32.mrf.mxu0
      %2984 = vmatprep.mubr.bf16.mxu0 0
      %2985 = vmatmul.mubr.bf16.gmra.mxu0 %v2887
      %v2986 = vpop.f32.mrf.mxu0
      %v2987 = vadd.f32 0.0, %v2986
      %v2988 = vpop.f32.mrf.mxu0
      %v2989 = vpop.f32.mrf.mxu0
      %v2990 = vadd.f32 0.0, %v2989
      %v2991 = vpop.f32.mrf.mxu0
      %2992 = vmatprep.mubr.bf16.mxu0 0
      %2993 = vmatmul.mubr.bf16.gmra.mxu0 %v2890
      %v2994 = vpop.f32.mrf.mxu0
      %v2995 = vadd.f32 0.0, %v2994
      %v2996 = vpop.f32.mrf.mxu0
      %v2997 = vpop.f32.mrf.mxu0
      %v2998 = vadd.f32 0.0, %v2997
      %v2999 = vpop.f32.mrf.mxu0
      %3000 = vmatprep.mubr.bf16.mxu0 0
      %3001 = vmatmul.mubr.bf16.gmra.mxu0 %v2893
      %v3002 = vpop.f32.mrf.mxu0
      %v3003 = vadd.f32 0.0, %v3002
      %v3004 = vpop.f32.mrf.mxu0
      %v3005 = vpop.f32.mrf.mxu0
      %v3006 = vadd.f32 0.0, %v3005
      %v3007 = vpop.f32.mrf.mxu0
      %3008 = vmatprep.mubr.bf16.mxu0 0
      %3009 = vmatmul.mubr.bf16.gmra.mxu0 %v2896
      %v3010 = vpop.f32.mrf.mxu0
      %v3011 = vadd.f32 0.0, %v3010
      %v3012 = vpop.f32.mrf.mxu0
      %v3013 = vpop.f32.mrf.mxu0
      %v3014 = vadd.f32 0.0, %v3013
      %v3015 = vpop.f32.mrf.mxu0
      %3016 = vmatprep.mubr.bf16.mxu0 0
      %3017 = vmatmul.mubr.bf16.gmra.mxu0 %v2899
      %v3018 = vpop.f32.mrf.mxu0
      %v3019 = vadd.f32 0.0, %v3018
      %v3020 = vpop.f32.mrf.mxu0
      %v3021 = vpop.f32.mrf.mxu0
      %v3022 = vadd.f32 0.0, %v3021
      %v3023 = vpop.f32.mrf.mxu0
      %3024 = vmatprep.mubr.bf16.mxu0 0
      %3025 = vmatmul.mubr.bf16.gmra.mxu0 %v2902
      %v3026 = vpop.f32.mrf.mxu0
      %v3027 = vadd.f32 0.0, %v3026
      %v3028 = vpop.f32.mrf.mxu0
      %v3029 = vpop.f32.mrf.mxu0
      %v3030 = vadd.f32 0.0, %v3029
      %v3031 = vpop.f32.mrf.mxu0
      %3032 = vmatprep.mubr.bf16.mxu0 0
      %3033 = vmatmul.mubr.bf16.gmra.mxu0 %v2905
      %v3034 = vpop.f32.mrf.mxu0
      %v3035 = vadd.f32 0.0, %v3034
      %v3036 = vpop.f32.mrf.mxu0
      %v3037 = vpop.f32.mrf.mxu0
      %v3038 = vadd.f32 0.0, %v3037
      %v3039 = vpop.f32.mrf.mxu0
      %3040 = vmatprep.mubr.bf16.mxu0 0
      %3041 = vmatmul.mubr.bf16.gmra.mxu0 %v2908
      %v3042 = vpop.f32.mrf.mxu0
      %v3043 = vadd.f32 0.0, %v3042
      %v3044 = vpop.f32.mrf.mxu0
      %v3045 = vpop.f32.mrf.mxu0
      %v3046 = vadd.f32 0.0, %v3045
      %v3047 = vpop.f32.mrf.mxu0
      %3048 = vmatprep.mubr.bf16.mxu0 0
      %3049 = vmatmul.mubr.bf16.gmra.mxu0 %v2911
      %v3050 = vpop.f32.mrf.mxu0
      %v3051 = vadd.f32 0.0, %v3050
      %v3052 = vpop.f32.mrf.mxu0
      %v3053 = vpop.f32.mrf.mxu0
      %v3054 = vadd.f32 0.0, %v3053
      %v3055 = vpop.f32.mrf.mxu0
      %3056 = vmatprep.mubr.bf16.mxu0 0
      %3057 = vmatmul.mubr.bf16.gmra.mxu0 %v2914
      %v3058 = vpop.f32.mrf.mxu0
      %v3059 = vadd.f32 0.0, %v3058
      %v3060 = vpop.f32.mrf.mxu0
      %v3061 = vpop.f32.mrf.mxu0
      %v3062 = vadd.f32 0.0, %v3061
      %v3063 = vpop.f32.mrf.mxu0
      %3064 = vmatprep.mubr.bf16.mxu0 0
      %3065 = vmatmul.mubr.bf16.gmra.mxu0 %v2917
      %v3066 = vpop.f32.mrf.mxu0
      %v3067 = vadd.f32 0.0, %v3066
      %v3068 = vpop.f32.mrf.mxu0
      %v3069 = vpop.f32.mrf.mxu0
      %v3070 = vadd.f32 0.0, %v3069
      %v3071 = vpop.f32.mrf.mxu0
      %3072 = vmatprep.mubr.bf16.mxu0 0
      %3073 = vmatmul.mubr.bf16.gmra.mxu0 %v2920
      %v3074 = vpop.f32.mrf.mxu0
      %v3075 = vadd.f32 0.0, %v3074
      %v3076 = vpop.f32.mrf.mxu0
      %v3077 = vpop.f32.mrf.mxu0
      %v3078 = vadd.f32 0.0, %v3077
      %v3079 = vpop.f32.mrf.mxu0
      %3080 = vmatprep.mubr.bf16.mxu0 0
      %3081 = vmatmul.mubr.bf16.gmra.mxu0 %v2923
      %v3082 = vpop.f32.mrf.mxu0
      %v3083 = vadd.f32 0.0, %v3082
      %v3084 = vpop.f32.mrf.mxu0
      %v3085 = vpop.f32.mrf.mxu0
      %v3086 = vadd.f32 0.0, %v3085
      %v3087 = vpop.f32.mrf.mxu0
      %3088 = vdwg.mxu0
      %v3089 = vadd.f32 %v2667, %v2963
      %v3090 = vadd.f32 %v2668, %v2966
      %v3091 = vadd.f32 %v2669, %v2971
      %v3092 = vadd.f32 %v2670, %v2974
      %v3093 = vadd.f32 %v2671, %v2979
      %v3094 = vadd.f32 %v2672, %v2982
      %v3095 = vadd.f32 %v2673, %v2987
      %v3096 = vadd.f32 %v2674, %v2990
      %v3097 = vadd.f32 %v2675, %v2995
      %v3098 = vadd.f32 %v2676, %v2998
      %v3099 = vadd.f32 %v2677, %v3003
      %v3100 = vadd.f32 %v2678, %v3006
      %v3101 = vadd.f32 %v2679, %v3011
      %v3102 = vadd.f32 %v2680, %v3014
      %v3103 = vadd.f32 %v2681, %v3019
      %v3104 = vadd.f32 %v2682, %v3022
      %v3105 = vadd.f32 %v2683, %v3027
      %v3106 = vadd.f32 %v2684, %v3030
      %v3107 = vadd.f32 %v2685, %v3035
      %v3108 = vadd.f32 %v2686, %v3038
      %v3109 = vadd.f32 %v2687, %v3043
      %v3110 = vadd.f32 %v2688, %v3046
      %v3111 = vadd.f32 %v2689, %v3051
      %v3112 = vadd.f32 %v2690, %v3054
      %v3113 = vadd.f32 %v2691, %v3059
      %v3114 = vadd.f32 %v2692, %v3062
      %v3115 = vadd.f32 %v2693, %v3067
      %v3116 = vadd.f32 %v2694, %v3070
      %v3117 = vadd.f32 %v2695, %v3075
      %v3118 = vadd.f32 %v2696, %v3078
      %v3119 = vadd.f32 %v2697, %v3083
      %v3120 = vadd.f32 %v2698, %v3086
      %s3121 = sadd.s32 %s222, 2
      %s3122 = smul.u32 %s3121, 3
      %s3123 = smul.addr %s3122, 4
      %s3124 = scalar_lea.vmem %s211, %s3123
      %v3125 = vld [vmem:[%s3124] sm:$0xf]
      %v3126 = vld [vmem:[%s3124 + $0x4] sm:$0xf]
      %v3127 = vld [vmem:[%s3124 + $0x8] sm:$0x1]
      %v3128 = vld [vmem:[%s3124 + $0xc] sm:$0xf]
      %v3129 = vld [vmem:[%s3124 + $0x10] sm:$0xf]
      %v3130 = vld [vmem:[%s3124 + $0x14] sm:$0x1]
      %v3131 = vld [vmem:[%s3124 + $0x18] sm:$0xf]
      %v3132 = vld [vmem:[%s3124 + $0x1c] sm:$0xf]
      %v3133 = vld [vmem:[%s3124 + $0x20] sm:$0x1]
      %v3134 = vld [vmem:[%s3124 + $0x24] sm:$0xf]
      %v3135 = vld [vmem:[%s3124 + $0x28] sm:$0xf]
      %v3136 = vld [vmem:[%s3124 + $0x2c] sm:$0x1]
      %v3137 = vld [vmem:[%s3124 + $0x30] sm:$0xf]
      %v3138 = vld [vmem:[%s3124 + $0x34] sm:$0xf]
      %v3139 = vld [vmem:[%s3124 + $0x38] sm:$0x1]
      %v3140 = vld [vmem:[%s3124 + $0x3c] sm:$0xf]
      %v3141 = vld [vmem:[%s3124 + $0x40] sm:$0xf]
      %v3142 = vld [vmem:[%s3124 + $0x44] sm:$0x1]
      %v3143 = vld [vmem:[%s3124 + $0x48] sm:$0xf]
      %v3144 = vld [vmem:[%s3124 + $0x4c] sm:$0xf]
      %v3145 = vld [vmem:[%s3124 + $0x50] sm:$0x1]
      %v3146 = vld [vmem:[%s3124 + $0x54] sm:$0xf]
      %v3147 = vld [vmem:[%s3124 + $0x58] sm:$0xf]
      %v3148 = vld [vmem:[%s3124 + $0x5c] sm:$0x1]
      %v3149 = vld [vmem:[%s3124 + $0x60] sm:$0xf]
      %v3150 = vld [vmem:[%s3124 + $0x64] sm:$0xf]
      %v3151 = vld [vmem:[%s3124 + $0x68] sm:$0x1]
      %v3152 = vld [vmem:[%s3124 + $0x6c] sm:$0xf]
      %v3153 = vld [vmem:[%s3124 + $0x70] sm:$0xf]
      %v3154 = vld [vmem:[%s3124 + $0x74] sm:$0x1]
      %v3155 = vld [vmem:[%s3124 + $0x78] sm:$0xf]
      %v3156 = vld [vmem:[%s3124 + $0x7c] sm:$0xf]
      %v3157 = vld [vmem:[%s3124 + $0x80] sm:$0x1]
      %v3158 = vld [vmem:[%s3124 + $0x84] sm:$0xf]
      %v3159 = vld [vmem:[%s3124 + $0x88] sm:$0xf]
      %v3160 = vld [vmem:[%s3124 + $0x8c] sm:$0x1]
      %v3161 = vld [vmem:[%s3124 + $0x90] sm:$0xf]
      %v3162 = vld [vmem:[%s3124 + $0x94] sm:$0xf]
      %v3163 = vld [vmem:[%s3124 + $0x98] sm:$0x1]
      %v3164 = vld [vmem:[%s3124 + $0x9c] sm:$0xf]
      %v3165 = vld [vmem:[%s3124 + $0xa0] sm:$0xf]
      %v3166 = vld [vmem:[%s3124 + $0xa4] sm:$0x1]
      %v3167 = vld [vmem:[%s3124 + $0xa8] sm:$0xf]
      %v3168 = vld [vmem:[%s3124 + $0xac] sm:$0xf]
      %v3169 = vld [vmem:[%s3124 + $0xb0] sm:$0x1]
      %v3170 = vld [vmem:[%s3124 + $0xb4] sm:$0xf]
      %v3171 = vld [vmem:[%s3124 + $0xb8] sm:$0xf]
      %v3172 = vld [vmem:[%s3124 + $0xbc] sm:$0x1]
      %s3173 = scalar_lea.vmem %s1, 12
      %v3174 = vld [vmem:[%s3173] sm:$0x3]
      %v3207 = vunpack.c.l.b16 %v3125
      %v3208 = vunpack.c.l.b16 %v3126
      %v3209 = vunpack.c.l.b16 %v3128
      %v3210 = vunpack.c.l.b16 %v3129
      %v3211 = vunpack.c.l.b16 %v3131
      %v3212 = vunpack.c.l.b16 %v3132
      %v3213 = vunpack.c.l.b16 %v3134
      %v3214 = vunpack.c.l.b16 %v3135
      %v3215 = vunpack.c.l.b16 %v3137
      %v3216 = vunpack.c.l.b16 %v3138
      %v3217 = vunpack.c.l.b16 %v3140
      %v3218 = vunpack.c.l.b16 %v3141
      %v3219 = vunpack.c.l.b16 %v3143
      %v3220 = vunpack.c.l.b16 %v3144
      %v3221 = vunpack.c.l.b16 %v3146
      %v3222 = vunpack.c.l.b16 %v3147
      %v3223 = vunpack.c.l.b16 %v3149
      %v3224 = vunpack.c.l.b16 %v3150
      %v3225 = vunpack.c.l.b16 %v3152
      %v3226 = vunpack.c.l.b16 %v3153
      %v3227 = vunpack.c.l.b16 %v3155
      %v3228 = vunpack.c.l.b16 %v3156
      %v3229 = vunpack.c.l.b16 %v3158
      %v3230 = vunpack.c.l.b16 %v3159
      %v3231 = vunpack.c.l.b16 %v3161
      %v3232 = vunpack.c.l.b16 %v3162
      %v3233 = vunpack.c.l.b16 %v3164
      %v3234 = vunpack.c.l.b16 %v3165
      %v3235 = vunpack.c.l.b16 %v3167
      %v3236 = vunpack.c.l.b16 %v3168
      %v3237 = vunpack.c.l.b16 %v3170
      %v3238 = vunpack.c.l.b16 %v3171
      %v3239 = vpack.c.b16 %v3208, %v3207
      %v3240 = vpack.c.b16 %v3210, %v3209
      %v3241 = vpack.c.b16 %v3212, %v3211
      %v3242 = vpack.c.b16 %v3214, %v3213
      %v3243 = vpack.c.b16 %v3216, %v3215
      %v3244 = vpack.c.b16 %v3218, %v3217
      %v3245 = vpack.c.b16 %v3220, %v3219
      %v3246 = vpack.c.b16 %v3222, %v3221
      %v3247 = vpack.c.b16 %v3224, %v3223
      %v3248 = vpack.c.b16 %v3226, %v3225
      %v3249 = vpack.c.b16 %v3228, %v3227
      %v3250 = vpack.c.b16 %v3230, %v3229
      %v3251 = vpack.c.b16 %v3232, %v3231
      %v3252 = vpack.c.b16 %v3234, %v3233
      %v3253 = vpack.c.b16 %v3236, %v3235
      %v3254 = vpack.c.b16 %v3238, %v3237
      %v3256 = vsel %vm712, %v3239, 0
      %v3259 = vsel %vm712, %v3240, 0
      %v3262 = vsel %vm712, %v3241, 0
      %v3265 = vsel %vm712, %v3242, 0
      %v3268 = vsel %vm712, %v3243, 0
      %v3271 = vsel %vm712, %v3244, 0
      %v3274 = vsel %vm712, %v3245, 0
      %v3277 = vsel %vm712, %v3246, 0
      %v3280 = vsel %vm712, %v3247, 0
      %v3283 = vsel %vm712, %v3248, 0
      %v3286 = vsel %vm712, %v3249, 0
      %v3289 = vsel %vm712, %v3250, 0
      %v3292 = vsel %vm712, %v3251, 0
      %v3295 = vsel %vm712, %v3252, 0
      %v3298 = vsel %vm712, %v3253, 0
      %v3301 = vsel %vm712, %v3254, 0
      %v3304 = vsel %vm761, %v3174, 0
      %3306 = vmatprep.subr.bf16.mxu0 0
      %3307 = vmatpush1.bf16.msra.mxu0 0
      %3308 = vmatprep.subr.bf16.mxu0 0
      %3309 = vmatpush1.bf16.msra.mxu0 0
      %3310 = vmatprep.subr.bf16.mxu0 0
      %3311 = vmatpush1.bf16.msra.mxu0 0
      %3312 = vmatprep.subr.bf16.mxu0 0
      %3313 = vmatpush1.bf16.msra.mxu0 0
      %3314 = vmatprep.subr.bf16.mxu0 0
      %3315 = vmatpush1.bf16.msra.mxu0 0
      %3316 = vmatprep.subr.bf16.mxu0 0
      %3317 = vmatpush1.bf16.msra.mxu0 0
      %3318 = vmatprep.subr.bf16.mxu0 0
      %3319 = vmatpush1.bf16.msra.mxu0 0
      %3320 = vmatprep.subr.bf16.mxu0 0
      %3321 = vmatpush1.bf16.msra.mxu0 %v3304
      %3322 = vmatprep.subr.bf16.mxu0 0
      %3323 = vmatpush2.bf16.msra.mxu0 0
      %3324 = vmatprep.subr.bf16.mxu0 0
      %3325 = vmatpush2.bf16.msra.mxu0 0
      %3326 = vmatprep.subr.bf16.mxu0 0
      %3327 = vmatpush2.bf16.msra.mxu0 0
      %3328 = vmatprep.subr.bf16.mxu0 0
      %3329 = vmatpush2.bf16.msra.mxu0 0
      %3330 = vmatprep.subr.bf16.mxu0 0
      %3331 = vmatpush2.bf16.msra.mxu0 0
      %3332 = vmatprep.subr.bf16.mxu0 0
      %3333 = vmatpush2.bf16.msra.mxu0 0
      %3334 = vmatprep.subr.bf16.mxu0 0
      %3335 = vmatpush2.bf16.msra.mxu0 0
      %3336 = vmatprep.subr.bf16.mxu0 0
      %3337 = vmatpush2.bf16.msra.mxu0 0
      %3338 = vmatprep.mubr.bf16.mxu0 0
      %3339 = vmatmul.mubr.bf16.gmra.mxu0 %v3256
      %v3340 = vpop.f32.mrf.mxu0
      %v3341 = vadd.f32 0.0, %v3340
      %v3342 = vpop.f32.mrf.mxu0
      %v3343 = vpop.f32.mrf.mxu0
      %v3344 = vadd.f32 0.0, %v3343
      %v3345 = vpop.f32.mrf.mxu0
      %3346 = vmatprep.mubr.bf16.mxu0 0
      %3347 = vmatmul.mubr.bf16.gmra.mxu0 %v3259
      %v3348 = vpop.f32.mrf.mxu0
      %v3349 = vadd.f32 0.0, %v3348
      %v3350 = vpop.f32.mrf.mxu0
      %v3351 = vpop.f32.mrf.mxu0
      %v3352 = vadd.f32 0.0, %v3351
      %v3353 = vpop.f32.mrf.mxu0
      %3354 = vmatprep.mubr.bf16.mxu0 0
      %3355 = vmatmul.mubr.bf16.gmra.mxu0 %v3262
      %v3356 = vpop.f32.mrf.mxu0
      %v3357 = vadd.f32 0.0, %v3356
      %v3358 = vpop.f32.mrf.mxu0
      %v3359 = vpop.f32.mrf.mxu0
      %v3360 = vadd.f32 0.0, %v3359
      %v3361 = vpop.f32.mrf.mxu0
      %3362 = vmatprep.mubr.bf16.mxu0 0
      %3363 = vmatmul.mubr.bf16.gmra.mxu0 %v3265
      %v3364 = vpop.f32.mrf.mxu0
      %v3365 = vadd.f32 0.0, %v3364
      %v3366 = vpop.f32.mrf.mxu0
      %v3367 = vpop.f32.mrf.mxu0
      %v3368 = vadd.f32 0.0, %v3367
      %v3369 = vpop.f32.mrf.mxu0
      %3370 = vmatprep.mubr.bf16.mxu0 0
      %3371 = vmatmul.mubr.bf16.gmra.mxu0 %v3268
      %v3372 = vpop.f32.mrf.mxu0
      %v3373 = vadd.f32 0.0, %v3372
      %v3374 = vpop.f32.mrf.mxu0
      %v3375 = vpop.f32.mrf.mxu0
      %v3376 = vadd.f32 0.0, %v3375
      %v3377 = vpop.f32.mrf.mxu0
      %3378 = vmatprep.mubr.bf16.mxu0 0
      %3379 = vmatmul.mubr.bf16.gmra.mxu0 %v3271
      %v3380 = vpop.f32.mrf.mxu0
      %v3381 = vadd.f32 0.0, %v3380
      %v3382 = vpop.f32.mrf.mxu0
      %v3383 = vpop.f32.mrf.mxu0
      %v3384 = vadd.f32 0.0, %v3383
      %v3385 = vpop.f32.mrf.mxu0
      %3386 = vmatprep.mubr.bf16.mxu0 0
      %3387 = vmatmul.mubr.bf16.gmra.mxu0 %v3274
      %v3388 = vpop.f32.mrf.mxu0
      %v3389 = vadd.f32 0.0, %v3388
      %v3390 = vpop.f32.mrf.mxu0
      %v3391 = vpop.f32.mrf.mxu0
      %v3392 = vadd.f32 0.0, %v3391
      %v3393 = vpop.f32.mrf.mxu0
      %3394 = vmatprep.mubr.bf16.mxu0 0
      %3395 = vmatmul.mubr.bf16.gmra.mxu0 %v3277
      %v3396 = vpop.f32.mrf.mxu0
      %v3397 = vadd.f32 0.0, %v3396
      %v3398 = vpop.f32.mrf.mxu0
      %v3399 = vpop.f32.mrf.mxu0
      %v3400 = vadd.f32 0.0, %v3399
      %v3401 = vpop.f32.mrf.mxu0
      %3402 = vmatprep.mubr.bf16.mxu0 0
      %3403 = vmatmul.mubr.bf16.gmra.mxu0 %v3280
      %v3404 = vpop.f32.mrf.mxu0
      %v3405 = vadd.f32 0.0, %v3404
      %v3406 = vpop.f32.mrf.mxu0
      %v3407 = vpop.f32.mrf.mxu0
      %v3408 = vadd.f32 0.0, %v3407
      %v3409 = vpop.f32.mrf.mxu0
      %3410 = vmatprep.mubr.bf16.mxu0 0
      %3411 = vmatmul.mubr.bf16.gmra.mxu0 %v3283
      %v3412 = vpop.f32.mrf.mxu0
      %v3413 = vadd.f32 0.0, %v3412
      %v3414 = vpop.f32.mrf.mxu0
      %v3415 = vpop.f32.mrf.mxu0
      %v3416 = vadd.f32 0.0, %v3415
      %v3417 = vpop.f32.mrf.mxu0
      %3418 = vmatprep.mubr.bf16.mxu0 0
      %3419 = vmatmul.mubr.bf16.gmra.mxu0 %v3286
      %v3420 = vpop.f32.mrf.mxu0
      %v3421 = vadd.f32 0.0, %v3420
      %v3422 = vpop.f32.mrf.mxu0
      %v3423 = vpop.f32.mrf.mxu0
      %v3424 = vadd.f32 0.0, %v3423
      %v3425 = vpop.f32.mrf.mxu0
      %3426 = vmatprep.mubr.bf16.mxu0 0
      %3427 = vmatmul.mubr.bf16.gmra.mxu0 %v3289
      %v3428 = vpop.f32.mrf.mxu0
      %v3429 = vadd.f32 0.0, %v3428
      %v3430 = vpop.f32.mrf.mxu0
      %v3431 = vpop.f32.mrf.mxu0
      %v3432 = vadd.f32 0.0, %v3431
      %v3433 = vpop.f32.mrf.mxu0
      %3434 = vmatprep.mubr.bf16.mxu0 0
      %3435 = vmatmul.mubr.bf16.gmra.mxu0 %v3292
      %v3436 = vpop.f32.mrf.mxu0
      %v3437 = vadd.f32 0.0, %v3436
      %v3438 = vpop.f32.mrf.mxu0
      %v3439 = vpop.f32.mrf.mxu0
      %v3440 = vadd.f32 0.0, %v3439
      %v3441 = vpop.f32.mrf.mxu0
      %3442 = vmatprep.mubr.bf16.mxu0 0
      %3443 = vmatmul.mubr.bf16.gmra.mxu0 %v3295
      %v3444 = vpop.f32.mrf.mxu0
      %v3445 = vadd.f32 0.0, %v3444
      %v3446 = vpop.f32.mrf.mxu0
      %v3447 = vpop.f32.mrf.mxu0
      %v3448 = vadd.f32 0.0, %v3447
      %v3449 = vpop.f32.mrf.mxu0
      %3450 = vmatprep.mubr.bf16.mxu0 0
      %3451 = vmatmul.mubr.bf16.gmra.mxu0 %v3298
      %v3452 = vpop.f32.mrf.mxu0
      %v3453 = vadd.f32 0.0, %v3452
      %v3454 = vpop.f32.mrf.mxu0
      %v3455 = vpop.f32.mrf.mxu0
      %v3456 = vadd.f32 0.0, %v3455
      %v3457 = vpop.f32.mrf.mxu0
      %3458 = vmatprep.mubr.bf16.mxu0 0
      %3459 = vmatmul.mubr.bf16.gmra.mxu0 %v3301
      %v3460 = vpop.f32.mrf.mxu0
      %v3461 = vadd.f32 0.0, %v3460
      %v3462 = vpop.f32.mrf.mxu0
      %v3463 = vpop.f32.mrf.mxu0
      %v3464 = vadd.f32 0.0, %v3463
      %v3465 = vpop.f32.mrf.mxu0
      %3466 = vdwg.mxu0
      %v3467 = vadd.f32 %v3089, %v3341
      %v3468 = vadd.f32 %v3090, %v3344
      %v3469 = vadd.f32 %v3091, %v3349
      %v3470 = vadd.f32 %v3092, %v3352
      %v3471 = vadd.f32 %v3093, %v3357
      %v3472 = vadd.f32 %v3094, %v3360
      %v3473 = vadd.f32 %v3095, %v3365
      %v3474 = vadd.f32 %v3096, %v3368
      %v3475 = vadd.f32 %v3097, %v3373
      %v3476 = vadd.f32 %v3098, %v3376
      %v3477 = vadd.f32 %v3099, %v3381
      %v3478 = vadd.f32 %v3100, %v3384
      %v3479 = vadd.f32 %v3101, %v3389
      %v3480 = vadd.f32 %v3102, %v3392
      %v3481 = vadd.f32 %v3103, %v3397
      %v3482 = vadd.f32 %v3104, %v3400
      %v3483 = vadd.f32 %v3105, %v3405
      %v3484 = vadd.f32 %v3106, %v3408
      %v3485 = vadd.f32 %v3107, %v3413
      %v3486 = vadd.f32 %v3108, %v3416
      %v3487 = vadd.f32 %v3109, %v3421
      %v3488 = vadd.f32 %v3110, %v3424
      %v3489 = vadd.f32 %v3111, %v3429
      %v3490 = vadd.f32 %v3112, %v3432
      %v3491 = vadd.f32 %v3113, %v3437
      %v3492 = vadd.f32 %v3114, %v3440
      %v3493 = vadd.f32 %v3115, %v3445
      %v3494 = vadd.f32 %v3116, %v3448
      %v3495 = vadd.f32 %v3117, %v3453
      %v3496 = vadd.f32 %v3118, %v3456
      %v3497 = vadd.f32 %v3119, %v3461
      %v3498 = vadd.f32 %v3120, %v3464
      %v3500 = vshrl.u32 %v3125, 16
      %v3502 = vrot.slane %v3500, 4
      %v3503 = vshll.u32 %v3125, 16
      %v3505 = vrot.slane %v3503, 5
      %v3506 = vor.u32 %v3502, %v3505
      %v3507 = vrot.slane %v3506, 4
      %v3509 = vshll.u32 %v3126, 16
      %v3511 = vrot.slane %v3509, 5
      %v3512 = vsel %vm277, %v3507, %v3511
      %v3513 = vshrl.u32 %v3126, 16
      %v3515 = vrot.slane %v3513, 4
      %v3516 = vor.u32 %v3515, %v3511
      %v3517 = vrot.slane %v3516, 4
      %v3519 = vshll.u32 %v3127, 16
      %v3521 = vrot.slane %v3519, 5
      %v3522 = vsel %vm277, %v3517, %v3521
      %v3524 = vshrl.u32 %v3128, 16
      %v3526 = vrot.slane %v3524, 4
      %v3527 = vshll.u32 %v3128, 16
      %v3529 = vrot.slane %v3527, 5
      %v3530 = vor.u32 %v3526, %v3529
      %v3531 = vrot.slane %v3530, 4
      %v3533 = vshll.u32 %v3129, 16
      %v3535 = vrot.slane %v3533, 5
      %v3536 = vsel %vm277, %v3531, %v3535
      %v3537 = vshrl.u32 %v3129, 16
      %v3539 = vrot.slane %v3537, 4
      %v3540 = vor.u32 %v3539, %v3535
      %v3541 = vrot.slane %v3540, 4
      %v3543 = vshll.u32 %v3130, 16
      %v3545 = vrot.slane %v3543, 5
      %v3546 = vsel %vm277, %v3541, %v3545
      %v3548 = vshrl.u32 %v3131, 16
      %v3550 = vrot.slane %v3548, 4
      %v3551 = vshll.u32 %v3131, 16
      %v3553 = vrot.slane %v3551, 5
      %v3554 = vor.u32 %v3550, %v3553
      %v3555 = vrot.slane %v3554, 4
      %v3557 = vshll.u32 %v3132, 16
      %v3559 = vrot.slane %v3557, 5
      %v3560 = vsel %vm277, %v3555, %v3559
      %v3561 = vshrl.u32 %v3132, 16
      %v3563 = vrot.slane %v3561, 4
      %v3564 = vor.u32 %v3563, %v3559
      %v3565 = vrot.slane %v3564, 4
      %v3567 = vshll.u32 %v3133, 16
      %v3569 = vrot.slane %v3567, 5
      %v3570 = vsel %vm277, %v3565, %v3569
      %v3572 = vshrl.u32 %v3134, 16
      %v3574 = vrot.slane %v3572, 4
      %v3575 = vshll.u32 %v3134, 16
      %v3577 = vrot.slane %v3575, 5
      %v3578 = vor.u32 %v3574, %v3577
      %v3579 = vrot.slane %v3578, 4
      %v3581 = vshll.u32 %v3135, 16
      %v3583 = vrot.slane %v3581, 5
      %v3584 = vsel %vm277, %v3579, %v3583
      %v3585 = vshrl.u32 %v3135, 16
      %v3587 = vrot.slane %v3585, 4
      %v3588 = vor.u32 %v3587, %v3583
      %v3589 = vrot.slane %v3588, 4
      %v3591 = vshll.u32 %v3136, 16
      %v3593 = vrot.slane %v3591, 5
      %v3594 = vsel %vm277, %v3589, %v3593
      %v3596 = vshrl.u32 %v3137, 16
      %v3598 = vrot.slane %v3596, 4
      %v3599 = vshll.u32 %v3137, 16
      %v3601 = vrot.slane %v3599, 5
      %v3602 = vor.u32 %v3598, %v3601
      %v3603 = vrot.slane %v3602, 4
      %v3605 = vshll.u32 %v3138, 16
      %v3607 = vrot.slane %v3605, 5
      %v3608 = vsel %vm277, %v3603, %v3607
      %v3609 = vshrl.u32 %v3138, 16
      %v3611 = vrot.slane %v3609, 4
      %v3612 = vor.u32 %v3611, %v3607
      %v3613 = vrot.slane %v3612, 4
      %v3615 = vshll.u32 %v3139, 16
      %v3617 = vrot.slane %v3615, 5
      %v3618 = vsel %vm277, %v3613, %v3617
      %v3620 = vshrl.u32 %v3140, 16
      %v3622 = vrot.slane %v3620, 4
      %v3623 = vshll.u32 %v3140, 16
      %v3625 = vrot.slane %v3623, 5
      %v3626 = vor.u32 %v3622, %v3625
      %v3627 = vrot.slane %v3626, 4
      %v3629 = vshll.u32 %v3141, 16
      %v3631 = vrot.slane %v3629, 5
      %v3632 = vsel %vm277, %v3627, %v3631
      %v3633 = vshrl.u32 %v3141, 16
      %v3635 = vrot.slane %v3633, 4
      %v3636 = vor.u32 %v3635, %v3631
      %v3637 = vrot.slane %v3636, 4
      %v3639 = vshll.u32 %v3142, 16
      %v3641 = vrot.slane %v3639, 5
      %v3642 = vsel %vm277, %v3637, %v3641
      %v3644 = vshrl.u32 %v3143, 16
      %v3646 = vrot.slane %v3644, 4
      %v3647 = vshll.u32 %v3143, 16
      %v3649 = vrot.slane %v3647, 5
      %v3650 = vor.u32 %v3646, %v3649
      %v3651 = vrot.slane %v3650, 4
      %v3653 = vshll.u32 %v3144, 16
      %v3655 = vrot.slane %v3653, 5
      %v3656 = vsel %vm277, %v3651, %v3655
      %v3657 = vshrl.u32 %v3144, 16
      %v3659 = vrot.slane %v3657, 4
      %v3660 = vor.u32 %v3659, %v3655
      %v3661 = vrot.slane %v3660, 4
      %v3663 = vshll.u32 %v3145, 16
      %v3665 = vrot.slane %v3663, 5
      %v3666 = vsel %vm277, %v3661, %v3665
      %v3668 = vshrl.u32 %v3146, 16
      %v3670 = vrot.slane %v3668, 4
      %v3671 = vshll.u32 %v3146, 16
      %v3673 = vrot.slane %v3671, 5
      %v3674 = vor.u32 %v3670, %v3673
      %v3675 = vrot.slane %v3674, 4
      %v3677 = vshll.u32 %v3147, 16
      %v3679 = vrot.slane %v3677, 5
      %v3680 = vsel %vm277, %v3675, %v3679
      %v3681 = vshrl.u32 %v3147, 16
      %v3683 = vrot.slane %v3681, 4
      %v3684 = vor.u32 %v3683, %v3679
      %v3685 = vrot.slane %v3684, 4
      %v3687 = vshll.u32 %v3148, 16
      %v3689 = vrot.slane %v3687, 5
      %v3690 = vsel %vm277, %v3685, %v3689
      %v3692 = vshrl.u32 %v3149, 16
      %v3694 = vrot.slane %v3692, 4
      %v3695 = vshll.u32 %v3149, 16
      %v3697 = vrot.slane %v3695, 5
      %v3698 = vor.u32 %v3694, %v3697
      %v3699 = vrot.slane %v3698, 4
      %v3701 = vshll.u32 %v3150, 16
      %v3703 = vrot.slane %v3701, 5
      %v3704 = vsel %vm277, %v3699, %v3703
      %v3705 = vshrl.u32 %v3150, 16
      %v3707 = vrot.slane %v3705, 4
      %v3708 = vor.u32 %v3707, %v3703
      %v3709 = vrot.slane %v3708, 4
      %v3711 = vshll.u32 %v3151, 16
      %v3713 = vrot.slane %v3711, 5
      %v3714 = vsel %vm277, %v3709, %v3713
      %v3716 = vshrl.u32 %v3152, 16
      %v3718 = vrot.slane %v3716, 4
      %v3719 = vshll.u32 %v3152, 16
      %v3721 = vrot.slane %v3719, 5
      %v3722 = vor.u32 %v3718, %v3721
      %v3723 = vrot.slane %v3722, 4
      %v3725 = vshll.u32 %v3153, 16
      %v3727 = vrot.slane %v3725, 5
      %v3728 = vsel %vm277, %v3723, %v3727
      %v3729 = vshrl.u32 %v3153, 16
      %v3731 = vrot.slane %v3729, 4
      %v3732 = vor.u32 %v3731, %v3727
      %v3733 = vrot.slane %v3732, 4
      %v3735 = vshll.u32 %v3154, 16
      %v3737 = vrot.slane %v3735, 5
      %v3738 = vsel %vm277, %v3733, %v3737
      %v3740 = vshrl.u32 %v3155, 16
      %v3742 = vrot.slane %v3740, 4
      %v3743 = vshll.u32 %v3155, 16
      %v3745 = vrot.slane %v3743, 5
      %v3746 = vor.u32 %v3742, %v3745
      %v3747 = vrot.slane %v3746, 4
      %v3749 = vshll.u32 %v3156, 16
      %v3751 = vrot.slane %v3749, 5
      %v3752 = vsel %vm277, %v3747, %v3751
      %v3753 = vshrl.u32 %v3156, 16
      %v3755 = vrot.slane %v3753, 4
      %v3756 = vor.u32 %v3755, %v3751
      %v3757 = vrot.slane %v3756, 4
      %v3759 = vshll.u32 %v3157, 16
      %v3761 = vrot.slane %v3759, 5
      %v3762 = vsel %vm277, %v3757, %v3761
      %v3764 = vshrl.u32 %v3158, 16
      %v3766 = vrot.slane %v3764, 4
      %v3767 = vshll.u32 %v3158, 16
      %v3769 = vrot.slane %v3767, 5
      %v3770 = vor.u32 %v3766, %v3769
      %v3771 = vrot.slane %v3770, 4
      %v3773 = vshll.u32 %v3159, 16
      %v3775 = vrot.slane %v3773, 5
      %v3776 = vsel %vm277, %v3771, %v3775
      %v3777 = vshrl.u32 %v3159, 16
      %v3779 = vrot.slane %v3777, 4
      %v3780 = vor.u32 %v3779, %v3775
      %v3781 = vrot.slane %v3780, 4
      %v3783 = vshll.u32 %v3160, 16
      %v3785 = vrot.slane %v3783, 5
      %v3786 = vsel %vm277, %v3781, %v3785
      %v3788 = vshrl.u32 %v3161, 16
      %v3790 = vrot.slane %v3788, 4
      %v3791 = vshll.u32 %v3161, 16
      %v3793 = vrot.slane %v3791, 5
      %v3794 = vor.u32 %v3790, %v3793
      %v3795 = vrot.slane %v3794, 4
      %v3797 = vshll.u32 %v3162, 16
      %v3799 = vrot.slane %v3797, 5
      %v3800 = vsel %vm277, %v3795, %v3799
      %v3801 = vshrl.u32 %v3162, 16
      %v3803 = vrot.slane %v3801, 4
      %v3804 = vor.u32 %v3803, %v3799
      %v3805 = vrot.slane %v3804, 4
      %v3807 = vshll.u32 %v3163, 16
      %v3809 = vrot.slane %v3807, 5
      %v3810 = vsel %vm277, %v3805, %v3809
      %v3812 = vshrl.u32 %v3164, 16
      %v3814 = vrot.slane %v3812, 4
      %v3815 = vshll.u32 %v3164, 16
      %v3817 = vrot.slane %v3815, 5
      %v3818 = vor.u32 %v3814, %v3817
      %v3819 = vrot.slane %v3818, 4
      %v3821 = vshll.u32 %v3165, 16
      %v3823 = vrot.slane %v3821, 5
      %v3824 = vsel %vm277, %v3819, %v3823
      %v3825 = vshrl.u32 %v3165, 16
      %v3827 = vrot.slane %v3825, 4
      %v3828 = vor.u32 %v3827, %v3823
      %v3829 = vrot.slane %v3828, 4
      %v3831 = vshll.u32 %v3166, 16
      %v3833 = vrot.slane %v3831, 5
      %v3834 = vsel %vm277, %v3829, %v3833
      %v3836 = vshrl.u32 %v3167, 16
      %v3838 = vrot.slane %v3836, 4
      %v3839 = vshll.u32 %v3167, 16
      %v3841 = vrot.slane %v3839, 5
      %v3842 = vor.u32 %v3838, %v3841
      %v3843 = vrot.slane %v3842, 4
      %v3845 = vshll.u32 %v3168, 16
      %v3847 = vrot.slane %v3845, 5
      %v3848 = vsel %vm277, %v3843, %v3847
      %v3849 = vshrl.u32 %v3168, 16
      %v3851 = vrot.slane %v3849, 4
      %v3852 = vor.u32 %v3851, %v3847
      %v3853 = vrot.slane %v3852, 4
      %v3855 = vshll.u32 %v3169, 16
      %v3857 = vrot.slane %v3855, 5
      %v3858 = vsel %vm277, %v3853, %v3857
      %v3860 = vshrl.u32 %v3170, 16
      %v3862 = vrot.slane %v3860, 4
      %v3863 = vshll.u32 %v3170, 16
      %v3865 = vrot.slane %v3863, 5
      %v3866 = vor.u32 %v3862, %v3865
      %v3867 = vrot.slane %v3866, 4
      %v3869 = vshll.u32 %v3171, 16
      %v3871 = vrot.slane %v3869, 5
      %v3872 = vsel %vm277, %v3867, %v3871
      %v3873 = vshrl.u32 %v3171, 16
      %v3875 = vrot.slane %v3873, 4
      %v3876 = vor.u32 %v3875, %v3871
      %v3877 = vrot.slane %v3876, 4
      %v3879 = vshll.u32 %v3172, 16
      %v3881 = vrot.slane %v3879, 5
      %v3882 = vsel %vm277, %v3877, %v3881
      %s3883 = scalar_lea.vmem %s1, 14
      %v3884 = vld [vmem:[%s3883] sm:$0x3]
      %v3885 = vunpack.c.l.b16 %v3512
      %v3886 = vunpack.c.l.b16 %v3522
      %v3887 = vunpack.c.l.b16 %v3536
      %v3888 = vunpack.c.l.b16 %v3546
      %v3889 = vunpack.c.l.b16 %v3560
      %v3890 = vunpack.c.l.b16 %v3570
      %v3891 = vunpack.c.l.b16 %v3584
      %v3892 = vunpack.c.l.b16 %v3594
      %v3893 = vunpack.c.l.b16 %v3608
      %v3894 = vunpack.c.l.b16 %v3618
      %v3895 = vunpack.c.l.b16 %v3632
      %v3896 = vunpack.c.l.b16 %v3642
      %v3897 = vunpack.c.l.b16 %v3656
      %v3898 = vunpack.c.l.b16 %v3666
      %v3899 = vunpack.c.l.b16 %v3680
      %v3900 = vunpack.c.l.b16 %v3690
      %v3901 = vunpack.c.l.b16 %v3704
      %v3902 = vunpack.c.l.b16 %v3714
      %v3903 = vunpack.c.l.b16 %v3728
      %v3904 = vunpack.c.l.b16 %v3738
      %v3905 = vunpack.c.l.b16 %v3752
      %v3906 = vunpack.c.l.b16 %v3762
      %v3907 = vunpack.c.l.b16 %v3776
      %v3908 = vunpack.c.l.b16 %v3786
      %v3909 = vunpack.c.l.b16 %v3800
      %v3910 = vunpack.c.l.b16 %v3810
      %v3911 = vunpack.c.l.b16 %v3824
      %v3912 = vunpack.c.l.b16 %v3834
      %v3913 = vunpack.c.l.b16 %v3848
      %v3914 = vunpack.c.l.b16 %v3858
      %v3915 = vunpack.c.l.b16 %v3872
      %v3916 = vunpack.c.l.b16 %v3882
      %v3917 = vpack.c.b16 %v3886, %v3885
      %v3918 = vpack.c.b16 %v3888, %v3887
      %v3919 = vpack.c.b16 %v3890, %v3889
      %v3920 = vpack.c.b16 %v3892, %v3891
      %v3921 = vpack.c.b16 %v3894, %v3893
      %v3922 = vpack.c.b16 %v3896, %v3895
      %v3923 = vpack.c.b16 %v3898, %v3897
      %v3924 = vpack.c.b16 %v3900, %v3899
      %v3925 = vpack.c.b16 %v3902, %v3901
      %v3926 = vpack.c.b16 %v3904, %v3903
      %v3927 = vpack.c.b16 %v3906, %v3905
      %v3928 = vpack.c.b16 %v3908, %v3907
      %v3929 = vpack.c.b16 %v3910, %v3909
      %v3930 = vpack.c.b16 %v3912, %v3911
      %v3931 = vpack.c.b16 %v3914, %v3913
      %v3932 = vpack.c.b16 %v3916, %v3915
      %v3934 = vsel %vm712, %v3917, 0
      %v3937 = vsel %vm712, %v3918, 0
      %v3940 = vsel %vm712, %v3919, 0
      %v3943 = vsel %vm712, %v3920, 0
      %v3946 = vsel %vm712, %v3921, 0
      %v3949 = vsel %vm712, %v3922, 0
      %v3952 = vsel %vm712, %v3923, 0
      %v3955 = vsel %vm712, %v3924, 0
      %v3958 = vsel %vm712, %v3925, 0
      %v3961 = vsel %vm712, %v3926, 0
      %v3964 = vsel %vm712, %v3927, 0
      %v3967 = vsel %vm712, %v3928, 0
      %v3970 = vsel %vm712, %v3929, 0
      %v3973 = vsel %vm712, %v3930, 0
      %v3976 = vsel %vm712, %v3931, 0
      %v3979 = vsel %vm712, %v3932, 0
      %v3982 = vsel %vm761, %v3884, 0
      %3984 = vmatprep.subr.bf16.mxu0 0
      %3985 = vmatpush1.bf16.msra.mxu0 0
      %3986 = vmatprep.subr.bf16.mxu0 0
      %3987 = vmatpush1.bf16.msra.mxu0 0
      %3988 = vmatprep.subr.bf16.mxu0 0
      %3989 = vmatpush1.bf16.msra.mxu0 0
      %3990 = vmatprep.subr.bf16.mxu0 0
      %3991 = vmatpush1.bf16.msra.mxu0 0
      %3992 = vmatprep.subr.bf16.mxu0 0
      %3993 = vmatpush1.bf16.msra.mxu0 0
      %3994 = vmatprep.subr.bf16.mxu0 0
      %3995 = vmatpush1.bf16.msra.mxu0 0
      %3996 = vmatprep.subr.bf16.mxu0 0
      %3997 = vmatpush1.bf16.msra.mxu0 0
      %3998 = vmatprep.subr.bf16.mxu0 0
      %3999 = vmatpush1.bf16.msra.mxu0 %v3982
      %4000 = vmatprep.subr.bf16.mxu0 0
      %4001 = vmatpush2.bf16.msra.mxu0 0
      %4002 = vmatprep.subr.bf16.mxu0 0
      %4003 = vmatpush2.bf16.msra.mxu0 0
      %4004 = vmatprep.subr.bf16.mxu0 0
      %4005 = vmatpush2.bf16.msra.mxu0 0
      %4006 = vmatprep.subr.bf16.mxu0 0
      %4007 = vmatpush2.bf16.msra.mxu0 0
      %4008 = vmatprep.subr.bf16.mxu0 0
      %4009 = vmatpush2.bf16.msra.mxu0 0
      %4010 = vmatprep.subr.bf16.mxu0 0
      %4011 = vmatpush2.bf16.msra.mxu0 0
      %4012 = vmatprep.subr.bf16.mxu0 0
      %4013 = vmatpush2.bf16.msra.mxu0 0
      %4014 = vmatprep.subr.bf16.mxu0 0
      %4015 = vmatpush2.bf16.msra.mxu0 0
      %4016 = vmatprep.mubr.bf16.mxu0 0
      %4017 = vmatmul.mubr.bf16.gmra.mxu0 %v3934
      %v4018 = vpop.f32.mrf.mxu0
      %v4019 = vadd.f32 0.0, %v4018
      %v4020 = vpop.f32.mrf.mxu0
      %v4021 = vpop.f32.mrf.mxu0
      %v4022 = vadd.f32 0.0, %v4021
      %v4023 = vpop.f32.mrf.mxu0
      %4024 = vmatprep.mubr.bf16.mxu0 0
      %4025 = vmatmul.mubr.bf16.gmra.mxu0 %v3937
      %v4026 = vpop.f32.mrf.mxu0
      %v4027 = vadd.f32 0.0, %v4026
      %v4028 = vpop.f32.mrf.mxu0
      %v4029 = vpop.f32.mrf.mxu0
      %v4030 = vadd.f32 0.0, %v4029
      %v4031 = vpop.f32.mrf.mxu0
      %4032 = vmatprep.mubr.bf16.mxu0 0
      %4033 = vmatmul.mubr.bf16.gmra.mxu0 %v3940
      %v4034 = vpop.f32.mrf.mxu0
      %v4035 = vadd.f32 0.0, %v4034
      %v4036 = vpop.f32.mrf.mxu0
      %v4037 = vpop.f32.mrf.mxu0
      %v4038 = vadd.f32 0.0, %v4037
      %v4039 = vpop.f32.mrf.mxu0
      %4040 = vmatprep.mubr.bf16.mxu0 0
      %4041 = vmatmul.mubr.bf16.gmra.mxu0 %v3943
      %v4042 = vpop.f32.mrf.mxu0
      %v4043 = vadd.f32 0.0, %v4042
      %v4044 = vpop.f32.mrf.mxu0
      %v4045 = vpop.f32.mrf.mxu0
      %v4046 = vadd.f32 0.0, %v4045
      %v4047 = vpop.f32.mrf.mxu0
      %4048 = vmatprep.mubr.bf16.mxu0 0
      %4049 = vmatmul.mubr.bf16.gmra.mxu0 %v3946
      %v4050 = vpop.f32.mrf.mxu0
      %v4051 = vadd.f32 0.0, %v4050
      %v4052 = vpop.f32.mrf.mxu0
      %v4053 = vpop.f32.mrf.mxu0
      %v4054 = vadd.f32 0.0, %v4053
      %v4055 = vpop.f32.mrf.mxu0
      %4056 = vmatprep.mubr.bf16.mxu0 0
      %4057 = vmatmul.mubr.bf16.gmra.mxu0 %v3949
      %v4058 = vpop.f32.mrf.mxu0
      %v4059 = vadd.f32 0.0, %v4058
      %v4060 = vpop.f32.mrf.mxu0
      %v4061 = vpop.f32.mrf.mxu0
      %v4062 = vadd.f32 0.0, %v4061
      %v4063 = vpop.f32.mrf.mxu0
      %4064 = vmatprep.mubr.bf16.mxu0 0
      %4065 = vmatmul.mubr.bf16.gmra.mxu0 %v3952
      %v4066 = vpop.f32.mrf.mxu0
      %v4067 = vadd.f32 0.0, %v4066
      %v4068 = vpop.f32.mrf.mxu0
      %v4069 = vpop.f32.mrf.mxu0
      %v4070 = vadd.f32 0.0, %v4069
      %v4071 = vpop.f32.mrf.mxu0
      %4072 = vmatprep.mubr.bf16.mxu0 0
      %4073 = vmatmul.mubr.bf16.gmra.mxu0 %v3955
      %v4074 = vpop.f32.mrf.mxu0
      %v4075 = vadd.f32 0.0, %v4074
      %v4076 = vpop.f32.mrf.mxu0
      %v4077 = vpop.f32.mrf.mxu0
      %v4078 = vadd.f32 0.0, %v4077
      %v4079 = vpop.f32.mrf.mxu0
      %4080 = vmatprep.mubr.bf16.mxu0 0
      %4081 = vmatmul.mubr.bf16.gmra.mxu0 %v3958
      %v4082 = vpop.f32.mrf.mxu0
      %v4083 = vadd.f32 0.0, %v4082
      %v4084 = vpop.f32.mrf.mxu0
      %v4085 = vpop.f32.mrf.mxu0
      %v4086 = vadd.f32 0.0, %v4085
      %v4087 = vpop.f32.mrf.mxu0
      %4088 = vmatprep.mubr.bf16.mxu0 0
      %4089 = vmatmul.mubr.bf16.gmra.mxu0 %v3961
      %v4090 = vpop.f32.mrf.mxu0
      %v4091 = vadd.f32 0.0, %v4090
      %v4092 = vpop.f32.mrf.mxu0
      %v4093 = vpop.f32.mrf.mxu0
      %v4094 = vadd.f32 0.0, %v4093
      %v4095 = vpop.f32.mrf.mxu0
      %4096 = vmatprep.mubr.bf16.mxu0 0
      %4097 = vmatmul.mubr.bf16.gmra.mxu0 %v3964
      %v4098 = vpop.f32.mrf.mxu0
      %v4099 = vadd.f32 0.0, %v4098
      %v4100 = vpop.f32.mrf.mxu0
      %v4101 = vpop.f32.mrf.mxu0
      %v4102 = vadd.f32 0.0, %v4101
      %v4103 = vpop.f32.mrf.mxu0
      %4104 = vmatprep.mubr.bf16.mxu0 0
      %4105 = vmatmul.mubr.bf16.gmra.mxu0 %v3967
      %v4106 = vpop.f32.mrf.mxu0
      %v4107 = vadd.f32 0.0, %v4106
      %v4108 = vpop.f32.mrf.mxu0
      %v4109 = vpop.f32.mrf.mxu0
      %v4110 = vadd.f32 0.0, %v4109
      %v4111 = vpop.f32.mrf.mxu0
      %4112 = vmatprep.mubr.bf16.mxu0 0
      %4113 = vmatmul.mubr.bf16.gmra.mxu0 %v3970
      %v4114 = vpop.f32.mrf.mxu0
      %v4115 = vadd.f32 0.0, %v4114
      %v4116 = vpop.f32.mrf.mxu0
      %v4117 = vpop.f32.mrf.mxu0
      %v4118 = vadd.f32 0.0, %v4117
      %v4119 = vpop.f32.mrf.mxu0
      %4120 = vmatprep.mubr.bf16.mxu0 0
      %4121 = vmatmul.mubr.bf16.gmra.mxu0 %v3973
      %v4122 = vpop.f32.mrf.mxu0
      %v4123 = vadd.f32 0.0, %v4122
      %v4124 = vpop.f32.mrf.mxu0
      %v4125 = vpop.f32.mrf.mxu0
      %v4126 = vadd.f32 0.0, %v4125
      %v4127 = vpop.f32.mrf.mxu0
      %4128 = vmatprep.mubr.bf16.mxu0 0
      %4129 = vmatmul.mubr.bf16.gmra.mxu0 %v3976
      %v4130 = vpop.f32.mrf.mxu0
      %v4131 = vadd.f32 0.0, %v4130
      %v4132 = vpop.f32.mrf.mxu0
      %v4133 = vpop.f32.mrf.mxu0
      %v4134 = vadd.f32 0.0, %v4133
      %v4135 = vpop.f32.mrf.mxu0
      %4136 = vmatprep.mubr.bf16.mxu0 0
      %4137 = vmatmul.mubr.bf16.gmra.mxu0 %v3979
      %v4138 = vpop.f32.mrf.mxu0
      %v4139 = vadd.f32 0.0, %v4138
      %v4140 = vpop.f32.mrf.mxu0
      %v4141 = vpop.f32.mrf.mxu0
      %v4142 = vadd.f32 0.0, %v4141
      %v4143 = vpop.f32.mrf.mxu0
      %4144 = vdwg.mxu0
      %v4145 = vadd.f32 %v3467, %v4019
      %v4146 = vadd.f32 %v3468, %v4022
      %v4147 = vadd.f32 %v3469, %v4027
      %v4148 = vadd.f32 %v3470, %v4030
      %v4149 = vadd.f32 %v3471, %v4035
      %v4150 = vadd.f32 %v3472, %v4038
      %v4151 = vadd.f32 %v3473, %v4043
      %v4152 = vadd.f32 %v3474, %v4046
      %v4153 = vadd.f32 %v3475, %v4051
      %v4154 = vadd.f32 %v3476, %v4054
      %v4155 = vadd.f32 %v3477, %v4059
      %v4156 = vadd.f32 %v3478, %v4062
      %v4157 = vadd.f32 %v3479, %v4067
      %v4158 = vadd.f32 %v3480, %v4070
      %v4159 = vadd.f32 %v3481, %v4075
      %v4160 = vadd.f32 %v3482, %v4078
      %v4161 = vadd.f32 %v3483, %v4083
      %v4162 = vadd.f32 %v3484, %v4086
      %v4163 = vadd.f32 %v3485, %v4091
      %v4164 = vadd.f32 %v3486, %v4094
      %v4165 = vadd.f32 %v3487, %v4099
      %v4166 = vadd.f32 %v3488, %v4102
      %v4167 = vadd.f32 %v3489, %v4107
      %v4168 = vadd.f32 %v3490, %v4110
      %v4169 = vadd.f32 %v3491, %v4115
      %v4170 = vadd.f32 %v3492, %v4118
      %v4171 = vadd.f32 %v3493, %v4123
      %v4172 = vadd.f32 %v3494, %v4126
      %v4173 = vadd.f32 %v3495, %v4131
      %v4174 = vadd.f32 %v3496, %v4134
      %v4175 = vadd.f32 %v3497, %v4139
      %v4176 = vadd.f32 %v3498, %v4142
      %v4193 = vrot.slane %v3125, 5
      %v4194 = vrot.slane %v4193, 4
      %v4195 = vrot.slane %v3126, 5
      %v4196 = vsel %vm1236, %v4194, %v4195
      %v4197 = vrot.slane %v4195, 4
      %v4198 = vrot.slane %v3127, 5
      %v4199 = vsel %vm1236, %v4197, %v4198
      %v4200 = vrot.slane %v3128, 5
      %v4201 = vrot.slane %v4200, 4
      %v4202 = vrot.slane %v3129, 5
      %v4203 = vsel %vm1236, %v4201, %v4202
      %v4204 = vrot.slane %v4202, 4
      %v4205 = vrot.slane %v3130, 5
      %v4206 = vsel %vm1236, %v4204, %v4205
      %v4207 = vrot.slane %v3131, 5
      %v4208 = vrot.slane %v4207, 4
      %v4209 = vrot.slane %v3132, 5
      %v4210 = vsel %vm1236, %v4208, %v4209
      %v4211 = vrot.slane %v4209, 4
      %v4212 = vrot.slane %v3133, 5
      %v4213 = vsel %vm1236, %v4211, %v4212
      %v4214 = vrot.slane %v3134, 5
      %v4215 = vrot.slane %v4214, 4
      %v4216 = vrot.slane %v3135, 5
      %v4217 = vsel %vm1236, %v4215, %v4216
      %v4218 = vrot.slane %v4216, 4
      %v4219 = vrot.slane %v3136, 5
      %v4220 = vsel %vm1236, %v4218, %v4219
      %v4221 = vrot.slane %v3137, 5
      %v4222 = vrot.slane %v4221, 4
      %v4223 = vrot.slane %v3138, 5
      %v4224 = vsel %vm1236, %v4222, %v4223
      %v4225 = vrot.slane %v4223, 4
      %v4226 = vrot.slane %v3139, 5
      %v4227 = vsel %vm1236, %v4225, %v4226
      %v4228 = vrot.slane %v3140, 5
      %v4229 = vrot.slane %v4228, 4
      %v4230 = vrot.slane %v3141, 5
      %v4231 = vsel %vm1236, %v4229, %v4230
      %v4232 = vrot.slane %v4230, 4
      %v4233 = vrot.slane %v3142, 5
      %v4234 = vsel %vm1236, %v4232, %v4233
      %v4235 = vrot.slane %v3143, 5
      %v4236 = vrot.slane %v4235, 4
      %v4237 = vrot.slane %v3144, 5
      %v4238 = vsel %vm1236, %v4236, %v4237
      %v4239 = vrot.slane %v4237, 4
      %v4240 = vrot.slane %v3145, 5
      %v4241 = vsel %vm1236, %v4239, %v4240
      %v4242 = vrot.slane %v3146, 5
      %v4243 = vrot.slane %v4242, 4
      %v4244 = vrot.slane %v3147, 5
      %v4245 = vsel %vm1236, %v4243, %v4244
      %v4246 = vrot.slane %v4244, 4
      %v4247 = vrot.slane %v3148, 5
      %v4248 = vsel %vm1236, %v4246, %v4247
      %v4249 = vrot.slane %v3149, 5
      %v4250 = vrot.slane %v4249, 4
      %v4251 = vrot.slane %v3150, 5
      %v4252 = vsel %vm1236, %v4250, %v4251
      %v4253 = vrot.slane %v4251, 4
      %v4254 = vrot.slane %v3151, 5
      %v4255 = vsel %vm1236, %v4253, %v4254
      %v4256 = vrot.slane %v3152, 5
      %v4257 = vrot.slane %v4256, 4
      %v4258 = vrot.slane %v3153, 5
      %v4259 = vsel %vm1236, %v4257, %v4258
      %v4260 = vrot.slane %v4258, 4
      %v4261 = vrot.slane %v3154, 5
      %v4262 = vsel %vm1236, %v4260, %v4261
      %v4263 = vrot.slane %v3155, 5
      %v4264 = vrot.slane %v4263, 4
      %v4265 = vrot.slane %v3156, 5
      %v4266 = vsel %vm1236, %v4264, %v4265
      %v4267 = vrot.slane %v4265, 4
      %v4268 = vrot.slane %v3157, 5
      %v4269 = vsel %vm1236, %v4267, %v4268
      %v4270 = vrot.slane %v3158, 5
      %v4271 = vrot.slane %v4270, 4
      %v4272 = vrot.slane %v3159, 5
      %v4273 = vsel %vm1236, %v4271, %v4272
      %v4274 = vrot.slane %v4272, 4
      %v4275 = vrot.slane %v3160, 5
      %v4276 = vsel %vm1236, %v4274, %v4275
      %v4277 = vrot.slane %v3161, 5
      %v4278 = vrot.slane %v4277, 4
      %v4279 = vrot.slane %v3162, 5
      %v4280 = vsel %vm1236, %v4278, %v4279
      %v4281 = vrot.slane %v4279, 4
      %v4282 = vrot.slane %v3163, 5
      %v4283 = vsel %vm1236, %v4281, %v4282
      %v4284 = vrot.slane %v3164, 5
      %v4285 = vrot.slane %v4284, 4
      %v4286 = vrot.slane %v3165, 5
      %v4287 = vsel %vm1236, %v4285, %v4286
      %v4288 = vrot.slane %v4286, 4
      %v4289 = vrot.slane %v3166, 5
      %v4290 = vsel %vm1236, %v4288, %v4289
      %v4291 = vrot.slane %v3167, 5
      %v4292 = vrot.slane %v4291, 4
      %v4293 = vrot.slane %v3168, 5
      %v4294 = vsel %vm1236, %v4292, %v4293
      %v4295 = vrot.slane %v4293, 4
      %v4296 = vrot.slane %v3169, 5
      %v4297 = vsel %vm1236, %v4295, %v4296
      %v4298 = vrot.slane %v3170, 5
      %v4299 = vrot.slane %v4298, 4
      %v4300 = vrot.slane %v3171, 5
      %v4301 = vsel %vm1236, %v4299, %v4300
      %v4302 = vrot.slane %v4300, 4
      %v4303 = vrot.slane %v3172, 5
      %v4304 = vsel %vm1236, %v4302, %v4303
      %s4305 = scalar_lea.vmem %s1, 16
      %v4306 = vld [vmem:[%s4305] sm:$0x3]
      %v4307 = vunpack.c.l.b16 %v4196
      %v4308 = vunpack.c.l.b16 %v4199
      %v4309 = vunpack.c.l.b16 %v4203
      %v4310 = vunpack.c.l.b16 %v4206
      %v4311 = vunpack.c.l.b16 %v4210
      %v4312 = vunpack.c.l.b16 %v4213
      %v4313 = vunpack.c.l.b16 %v4217
      %v4314 = vunpack.c.l.b16 %v4220
      %v4315 = vunpack.c.l.b16 %v4224
      %v4316 = vunpack.c.l.b16 %v4227
      %v4317 = vunpack.c.l.b16 %v4231
      %v4318 = vunpack.c.l.b16 %v4234
      %v4319 = vunpack.c.l.b16 %v4238
      %v4320 = vunpack.c.l.b16 %v4241
      %v4321 = vunpack.c.l.b16 %v4245
      %v4322 = vunpack.c.l.b16 %v4248
      %v4323 = vunpack.c.l.b16 %v4252
      %v4324 = vunpack.c.l.b16 %v4255
      %v4325 = vunpack.c.l.b16 %v4259
      %v4326 = vunpack.c.l.b16 %v4262
      %v4327 = vunpack.c.l.b16 %v4266
      %v4328 = vunpack.c.l.b16 %v4269
      %v4329 = vunpack.c.l.b16 %v4273
      %v4330 = vunpack.c.l.b16 %v4276
      %v4331 = vunpack.c.l.b16 %v4280
      %v4332 = vunpack.c.l.b16 %v4283
      %v4333 = vunpack.c.l.b16 %v4287
      %v4334 = vunpack.c.l.b16 %v4290
      %v4335 = vunpack.c.l.b16 %v4294
      %v4336 = vunpack.c.l.b16 %v4297
      %v4337 = vunpack.c.l.b16 %v4301
      %v4338 = vunpack.c.l.b16 %v4304
      %v4339 = vpack.c.b16 %v4308, %v4307
      %v4340 = vpack.c.b16 %v4310, %v4309
      %v4341 = vpack.c.b16 %v4312, %v4311
      %v4342 = vpack.c.b16 %v4314, %v4313
      %v4343 = vpack.c.b16 %v4316, %v4315
      %v4344 = vpack.c.b16 %v4318, %v4317
      %v4345 = vpack.c.b16 %v4320, %v4319
      %v4346 = vpack.c.b16 %v4322, %v4321
      %v4347 = vpack.c.b16 %v4324, %v4323
      %v4348 = vpack.c.b16 %v4326, %v4325
      %v4349 = vpack.c.b16 %v4328, %v4327
      %v4350 = vpack.c.b16 %v4330, %v4329
      %v4351 = vpack.c.b16 %v4332, %v4331
      %v4352 = vpack.c.b16 %v4334, %v4333
      %v4353 = vpack.c.b16 %v4336, %v4335
      %v4354 = vpack.c.b16 %v4338, %v4337
      %v4356 = vsel %vm712, %v4339, 0
      %v4359 = vsel %vm712, %v4340, 0
      %v4362 = vsel %vm712, %v4341, 0
      %v4365 = vsel %vm712, %v4342, 0
      %v4368 = vsel %vm712, %v4343, 0
      %v4371 = vsel %vm712, %v4344, 0
      %v4374 = vsel %vm712, %v4345, 0
      %v4377 = vsel %vm712, %v4346, 0
      %v4380 = vsel %vm712, %v4347, 0
      %v4383 = vsel %vm712, %v4348, 0
      %v4386 = vsel %vm712, %v4349, 0
      %v4389 = vsel %vm712, %v4350, 0
      %v4392 = vsel %vm712, %v4351, 0
      %v4395 = vsel %vm712, %v4352, 0
      %v4398 = vsel %vm712, %v4353, 0
      %v4401 = vsel %vm712, %v4354, 0
      %v4404 = vsel %vm761, %v4306, 0
      %4406 = vmatprep.subr.bf16.mxu0 0
      %4407 = vmatpush1.bf16.msra.mxu0 0
      %4408 = vmatprep.subr.bf16.mxu0 0
      %4409 = vmatpush1.bf16.msra.mxu0 0
      %4410 = vmatprep.subr.bf16.mxu0 0
      %4411 = vmatpush1.bf16.msra.mxu0 0
      %4412 = vmatprep.subr.bf16.mxu0 0
      %4413 = vmatpush1.bf16.msra.mxu0 0
      %4414 = vmatprep.subr.bf16.mxu0 0
      %4415 = vmatpush1.bf16.msra.mxu0 0
      %4416 = vmatprep.subr.bf16.mxu0 0
      %4417 = vmatpush1.bf16.msra.mxu0 0
      %4418 = vmatprep.subr.bf16.mxu0 0
      %4419 = vmatpush1.bf16.msra.mxu0 0
      %4420 = vmatprep.subr.bf16.mxu0 0
      %4421 = vmatpush1.bf16.msra.mxu0 %v4404
      %4422 = vmatprep.subr.bf16.mxu0 0
      %4423 = vmatpush2.bf16.msra.mxu0 0
      %4424 = vmatprep.subr.bf16.mxu0 0
      %4425 = vmatpush2.bf16.msra.mxu0 0
      %4426 = vmatprep.subr.bf16.mxu0 0
      %4427 = vmatpush2.bf16.msra.mxu0 0
      %4428 = vmatprep.subr.bf16.mxu0 0
      %4429 = vmatpush2.bf16.msra.mxu0 0
      %4430 = vmatprep.subr.bf16.mxu0 0
      %4431 = vmatpush2.bf16.msra.mxu0 0
      %4432 = vmatprep.subr.bf16.mxu0 0
      %4433 = vmatpush2.bf16.msra.mxu0 0
      %4434 = vmatprep.subr.bf16.mxu0 0
      %4435 = vmatpush2.bf16.msra.mxu0 0
      %4436 = vmatprep.subr.bf16.mxu0 0
      %4437 = vmatpush2.bf16.msra.mxu0 0
      %4438 = vmatprep.mubr.bf16.mxu0 0
      %4439 = vmatmul.mubr.bf16.gmra.mxu0 %v4356
      %v4440 = vpop.f32.mrf.mxu0
      %v4441 = vadd.f32 0.0, %v4440
      %v4442 = vpop.f32.mrf.mxu0
      %v4443 = vpop.f32.mrf.mxu0
      %v4444 = vadd.f32 0.0, %v4443
      %v4445 = vpop.f32.mrf.mxu0
      %4446 = vmatprep.mubr.bf16.mxu0 0
      %4447 = vmatmul.mubr.bf16.gmra.mxu0 %v4359
      %v4448 = vpop.f32.mrf.mxu0
      %v4449 = vadd.f32 0.0, %v4448
      %v4450 = vpop.f32.mrf.mxu0
      %v4451 = vpop.f32.mrf.mxu0
      %v4452 = vadd.f32 0.0, %v4451
      %v4453 = vpop.f32.mrf.mxu0
      %4454 = vmatprep.mubr.bf16.mxu0 0
      %4455 = vmatmul.mubr.bf16.gmra.mxu0 %v4362
      %v4456 = vpop.f32.mrf.mxu0
      %v4457 = vadd.f32 0.0, %v4456
      %v4458 = vpop.f32.mrf.mxu0
      %v4459 = vpop.f32.mrf.mxu0
      %v4460 = vadd.f32 0.0, %v4459
      %v4461 = vpop.f32.mrf.mxu0
      %4462 = vmatprep.mubr.bf16.mxu0 0
      %4463 = vmatmul.mubr.bf16.gmra.mxu0 %v4365
      %v4464 = vpop.f32.mrf.mxu0
      %v4465 = vadd.f32 0.0, %v4464
      %v4466 = vpop.f32.mrf.mxu0
      %v4467 = vpop.f32.mrf.mxu0
      %v4468 = vadd.f32 0.0, %v4467
      %v4469 = vpop.f32.mrf.mxu0
      %4470 = vmatprep.mubr.bf16.mxu0 0
      %4471 = vmatmul.mubr.bf16.gmra.mxu0 %v4368
      %v4472 = vpop.f32.mrf.mxu0
      %v4473 = vadd.f32 0.0, %v4472
      %v4474 = vpop.f32.mrf.mxu0
      %v4475 = vpop.f32.mrf.mxu0
      %v4476 = vadd.f32 0.0, %v4475
      %v4477 = vpop.f32.mrf.mxu0
      %4478 = vmatprep.mubr.bf16.mxu0 0
      %4479 = vmatmul.mubr.bf16.gmra.mxu0 %v4371
      %v4480 = vpop.f32.mrf.mxu0
      %v4481 = vadd.f32 0.0, %v4480
      %v4482 = vpop.f32.mrf.mxu0
      %v4483 = vpop.f32.mrf.mxu0
      %v4484 = vadd.f32 0.0, %v4483
      %v4485 = vpop.f32.mrf.mxu0
      %4486 = vmatprep.mubr.bf16.mxu0 0
      %4487 = vmatmul.mubr.bf16.gmra.mxu0 %v4374
      %v4488 = vpop.f32.mrf.mxu0
      %v4489 = vadd.f32 0.0, %v4488
      %v4490 = vpop.f32.mrf.mxu0
      %v4491 = vpop.f32.mrf.mxu0
      %v4492 = vadd.f32 0.0, %v4491
      %v4493 = vpop.f32.mrf.mxu0
      %4494 = vmatprep.mubr.bf16.mxu0 0
      %4495 = vmatmul.mubr.bf16.gmra.mxu0 %v4377
      %v4496 = vpop.f32.mrf.mxu0
      %v4497 = vadd.f32 0.0, %v4496
      %v4498 = vpop.f32.mrf.mxu0
      %v4499 = vpop.f32.mrf.mxu0
      %v4500 = vadd.f32 0.0, %v4499
      %v4501 = vpop.f32.mrf.mxu0
      %4502 = vmatprep.mubr.bf16.mxu0 0
      %4503 = vmatmul.mubr.bf16.gmra.mxu0 %v4380
      %v4504 = vpop.f32.mrf.mxu0
      %v4505 = vadd.f32 0.0, %v4504
      %v4506 = vpop.f32.mrf.mxu0
      %v4507 = vpop.f32.mrf.mxu0
      %v4508 = vadd.f32 0.0, %v4507
      %v4509 = vpop.f32.mrf.mxu0
      %4510 = vmatprep.mubr.bf16.mxu0 0
      %4511 = vmatmul.mubr.bf16.gmra.mxu0 %v4383
      %v4512 = vpop.f32.mrf.mxu0
      %v4513 = vadd.f32 0.0, %v4512
      %v4514 = vpop.f32.mrf.mxu0
      %v4515 = vpop.f32.mrf.mxu0
      %v4516 = vadd.f32 0.0, %v4515
      %v4517 = vpop.f32.mrf.mxu0
      %4518 = vmatprep.mubr.bf16.mxu0 0
      %4519 = vmatmul.mubr.bf16.gmra.mxu0 %v4386
      %v4520 = vpop.f32.mrf.mxu0
      %v4521 = vadd.f32 0.0, %v4520
      %v4522 = vpop.f32.mrf.mxu0
      %v4523 = vpop.f32.mrf.mxu0
      %v4524 = vadd.f32 0.0, %v4523
      %v4525 = vpop.f32.mrf.mxu0
      %4526 = vmatprep.mubr.bf16.mxu0 0
      %4527 = vmatmul.mubr.bf16.gmra.mxu0 %v4389
      %v4528 = vpop.f32.mrf.mxu0
      %v4529 = vadd.f32 0.0, %v4528
      %v4530 = vpop.f32.mrf.mxu0
      %v4531 = vpop.f32.mrf.mxu0
      %v4532 = vadd.f32 0.0, %v4531
      %v4533 = vpop.f32.mrf.mxu0
      %4534 = vmatprep.mubr.bf16.mxu0 0
      %4535 = vmatmul.mubr.bf16.gmra.mxu0 %v4392
      %v4536 = vpop.f32.mrf.mxu0
      %v4537 = vadd.f32 0.0, %v4536
      %v4538 = vpop.f32.mrf.mxu0
      %v4539 = vpop.f32.mrf.mxu0
      %v4540 = vadd.f32 0.0, %v4539
      %v4541 = vpop.f32.mrf.mxu0
      %4542 = vmatprep.mubr.bf16.mxu0 0
      %4543 = vmatmul.mubr.bf16.gmra.mxu0 %v4395
      %v4544 = vpop.f32.mrf.mxu0
      %v4545 = vadd.f32 0.0, %v4544
      %v4546 = vpop.f32.mrf.mxu0
      %v4547 = vpop.f32.mrf.mxu0
      %v4548 = vadd.f32 0.0, %v4547
      %v4549 = vpop.f32.mrf.mxu0
      %4550 = vmatprep.mubr.bf16.mxu0 0
      %4551 = vmatmul.mubr.bf16.gmra.mxu0 %v4398
      %v4552 = vpop.f32.mrf.mxu0
      %v4553 = vadd.f32 0.0, %v4552
      %v4554 = vpop.f32.mrf.mxu0
      %v4555 = vpop.f32.mrf.mxu0
      %v4556 = vadd.f32 0.0, %v4555
      %v4557 = vpop.f32.mrf.mxu0
      %4558 = vmatprep.mubr.bf16.mxu0 0
      %4559 = vmatmul.mubr.bf16.gmra.mxu0 %v4401
      %v4560 = vpop.f32.mrf.mxu0
      %v4561 = vadd.f32 0.0, %v4560
      %v4562 = vpop.f32.mrf.mxu0
      %v4563 = vpop.f32.mrf.mxu0
      %v4564 = vadd.f32 0.0, %v4563
      %v4565 = vpop.f32.mrf.mxu0
      %4566 = vdwg.mxu0
      %v4567 = vadd.f32 %v4145, %v4441
      %v4568 = vadd.f32 %v4146, %v4444
      %v4569 = vadd.f32 %v4147, %v4449
      %v4570 = vadd.f32 %v4148, %v4452
      %v4571 = vadd.f32 %v4149, %v4457
      %v4572 = vadd.f32 %v4150, %v4460
      %v4573 = vadd.f32 %v4151, %v4465
      %v4574 = vadd.f32 %v4152, %v4468
      %v4575 = vadd.f32 %v4153, %v4473
      %v4576 = vadd.f32 %v4154, %v4476
      %v4577 = vadd.f32 %v4155, %v4481
      %v4578 = vadd.f32 %v4156, %v4484
      %v4579 = vadd.f32 %v4157, %v4489
      %v4580 = vadd.f32 %v4158, %v4492
      %v4581 = vadd.f32 %v4159, %v4497
      %v4582 = vadd.f32 %v4160, %v4500
      %v4583 = vadd.f32 %v4161, %v4505
      %v4584 = vadd.f32 %v4162, %v4508
      %v4585 = vadd.f32 %v4163, %v4513
      %v4586 = vadd.f32 %v4164, %v4516
      %v4587 = vadd.f32 %v4165, %v4521
      %v4588 = vadd.f32 %v4166, %v4524
      %v4589 = vadd.f32 %v4167, %v4529
      %v4590 = vadd.f32 %v4168, %v4532
      %v4591 = vadd.f32 %v4169, %v4537
      %v4592 = vadd.f32 %v4170, %v4540
      %v4593 = vadd.f32 %v4171, %v4545
      %v4594 = vadd.f32 %v4172, %v4548
      %v4595 = vadd.f32 %v4173, %v4553
      %v4596 = vadd.f32 %v4174, %v4556
      %v4597 = vadd.f32 %v4175, %v4561
      %v4598 = vadd.f32 %v4176, %v4564
      %v4599 = vld [vmem:[%s2] sm:$0x1]
      %v4601 = vlaneseq
      %v4602 = vshrl.u32 %v4601, 7
      %v4603 = vsub.s32 0, %v4602
      %v4604 = vrot.slane %v4599, %v4603
      %v4606 = vmul.f32 %v4567, %v4604
      %v4607 = vmul.f32 %v4568, %v4604
      %v4608 = vmul.f32 %v4569, %v4604
      %v4609 = vmul.f32 %v4570, %v4604
      %v4610 = vmul.f32 %v4571, %v4604
      %v4611 = vmul.f32 %v4572, %v4604
      %v4612 = vmul.f32 %v4573, %v4604
      %v4613 = vmul.f32 %v4574, %v4604
      %v4614 = vmul.f32 %v4575, %v4604
      %v4615 = vmul.f32 %v4576, %v4604
      %v4616 = vmul.f32 %v4577, %v4604
      %v4617 = vmul.f32 %v4578, %v4604
      %v4618 = vmul.f32 %v4579, %v4604
      %v4619 = vmul.f32 %v4580, %v4604
      %v4620 = vmul.f32 %v4581, %v4604
      %v4621 = vmul.f32 %v4582, %v4604
      %v4622 = vmul.f32 %v4583, %v4604
      %v4623 = vmul.f32 %v4584, %v4604
      %v4624 = vmul.f32 %v4585, %v4604
      %v4625 = vmul.f32 %v4586, %v4604
      %v4626 = vmul.f32 %v4587, %v4604
      %v4627 = vmul.f32 %v4588, %v4604
      %v4628 = vmul.f32 %v4589, %v4604
      %v4629 = vmul.f32 %v4590, %v4604
      %v4630 = vmul.f32 %v4591, %v4604
      %v4631 = vmul.f32 %v4592, %v4604
      %v4632 = vmul.f32 %v4593, %v4604
      %v4633 = vmul.f32 %v4594, %v4604
      %v4634 = vmul.f32 %v4595, %v4604
      %v4635 = vmul.f32 %v4596, %v4604
      %v4636 = vmul.f32 %v4597, %v4604
      %v4637 = vmul.f32 %v4598, %v4604
      %v4638 = vld [vmem:[%s3] sm:$0x1]
      %v4640 = vlaneseq
      %v4641 = vshrl.u32 %v4640, 7
      %v4642 = vsub.s32 0, %v4641
      %v4643 = vrot.slane %v4638, %v4642
      %v4645 = vadd.f32 %v4606, %v4643
      %v4646 = vadd.f32 %v4607, %v4643
      %v4647 = vadd.f32 %v4608, %v4643
      %v4648 = vadd.f32 %v4609, %v4643
      %v4649 = vadd.f32 %v4610, %v4643
      %v4650 = vadd.f32 %v4611, %v4643
      %v4651 = vadd.f32 %v4612, %v4643
      %v4652 = vadd.f32 %v4613, %v4643
      %v4653 = vadd.f32 %v4614, %v4643
      %v4654 = vadd.f32 %v4615, %v4643
      %v4655 = vadd.f32 %v4616, %v4643
      %v4656 = vadd.f32 %v4617, %v4643
      %v4657 = vadd.f32 %v4618, %v4643
      %v4658 = vadd.f32 %v4619, %v4643
      %v4659 = vadd.f32 %v4620, %v4643
      %v4660 = vadd.f32 %v4621, %v4643
      %v4661 = vadd.f32 %v4622, %v4643
      %v4662 = vadd.f32 %v4623, %v4643
      %v4663 = vadd.f32 %v4624, %v4643
      %v4664 = vadd.f32 %v4625, %v4643
      %v4665 = vadd.f32 %v4626, %v4643
      %v4666 = vadd.f32 %v4627, %v4643
      %v4667 = vadd.f32 %v4628, %v4643
      %v4668 = vadd.f32 %v4629, %v4643
      %v4669 = vadd.f32 %v4630, %v4643
      %v4670 = vadd.f32 %v4631, %v4643
      %v4671 = vadd.f32 %v4632, %v4643
      %v4672 = vadd.f32 %v4633, %v4643
      %v4673 = vadd.f32 %v4634, %v4643
      %v4674 = vadd.f32 %v4635, %v4643
      %v4675 = vadd.f32 %v4636, %v4643
      %v4676 = vadd.f32 %v4637, %v4643
      %vm4677 = vcmp.gt.f32.partialorder %v4645, 0.0
      %vm4678 = vcmp.gt.f32.partialorder %v4646, 0.0
      %vm4679 = vcmp.gt.f32.partialorder %v4647, 0.0
      %vm4680 = vcmp.gt.f32.partialorder %v4648, 0.0
      %vm4681 = vcmp.gt.f32.partialorder %v4649, 0.0
      %vm4682 = vcmp.gt.f32.partialorder %v4650, 0.0
      %vm4683 = vcmp.gt.f32.partialorder %v4651, 0.0
      %vm4684 = vcmp.gt.f32.partialorder %v4652, 0.0
      %vm4685 = vcmp.gt.f32.partialorder %v4653, 0.0
      %vm4686 = vcmp.gt.f32.partialorder %v4654, 0.0
      %vm4687 = vcmp.gt.f32.partialorder %v4655, 0.0
      %vm4688 = vcmp.gt.f32.partialorder %v4656, 0.0
      %vm4689 = vcmp.gt.f32.partialorder %v4657, 0.0
      %vm4690 = vcmp.gt.f32.partialorder %v4658, 0.0
      %vm4691 = vcmp.gt.f32.partialorder %v4659, 0.0
      %vm4692 = vcmp.gt.f32.partialorder %v4660, 0.0
      %vm4693 = vcmp.gt.f32.partialorder %v4661, 0.0
      %vm4694 = vcmp.gt.f32.partialorder %v4662, 0.0
      %vm4695 = vcmp.gt.f32.partialorder %v4663, 0.0
      %vm4696 = vcmp.gt.f32.partialorder %v4664, 0.0
      %vm4697 = vcmp.gt.f32.partialorder %v4665, 0.0
      %vm4698 = vcmp.gt.f32.partialorder %v4666, 0.0
      %vm4699 = vcmp.gt.f32.partialorder %v4667, 0.0
      %vm4700 = vcmp.gt.f32.partialorder %v4668, 0.0
      %vm4701 = vcmp.gt.f32.partialorder %v4669, 0.0
      %vm4702 = vcmp.gt.f32.partialorder %v4670, 0.0
      %vm4703 = vcmp.gt.f32.partialorder %v4671, 0.0
      %vm4704 = vcmp.gt.f32.partialorder %v4672, 0.0
      %vm4705 = vcmp.gt.f32.partialorder %v4673, 0.0
      %vm4706 = vcmp.gt.f32.partialorder %v4674, 0.0
      %vm4707 = vcmp.gt.f32.partialorder %v4675, 0.0
      %vm4708 = vcmp.gt.f32.partialorder %v4676, 0.0
      %v4709 = vmul.f32 %v4645, 0.01
      %v4710 = vmul.f32 %v4646, 0.01
      %v4711 = vmul.f32 %v4647, 0.01
      %v4712 = vmul.f32 %v4648, 0.01
      %v4713 = vmul.f32 %v4649, 0.01
      %v4714 = vmul.f32 %v4650, 0.01
      %v4715 = vmul.f32 %v4651, 0.01
      %v4716 = vmul.f32 %v4652, 0.01
      %v4717 = vmul.f32 %v4653, 0.01
      %v4718 = vmul.f32 %v4654, 0.01
      %v4719 = vmul.f32 %v4655, 0.01
      %v4720 = vmul.f32 %v4656, 0.01
      %v4721 = vmul.f32 %v4657, 0.01
      %v4722 = vmul.f32 %v4658, 0.01
      %v4723 = vmul.f32 %v4659, 0.01
      %v4724 = vmul.f32 %v4660, 0.01
      %v4725 = vmul.f32 %v4661, 0.01
      %v4726 = vmul.f32 %v4662, 0.01
      %v4727 = vmul.f32 %v4663, 0.01
      %v4728 = vmul.f32 %v4664, 0.01
      %v4729 = vmul.f32 %v4665, 0.01
      %v4730 = vmul.f32 %v4666, 0.01
      %v4731 = vmul.f32 %v4667, 0.01
      %v4732 = vmul.f32 %v4668, 0.01
      %v4733 = vmul.f32 %v4669, 0.01
      %v4734 = vmul.f32 %v4670, 0.01
      %v4735 = vmul.f32 %v4671, 0.01
      %v4736 = vmul.f32 %v4672, 0.01
      %v4737 = vmul.f32 %v4673, 0.01
      %v4738 = vmul.f32 %v4674, 0.01
      %v4739 = vmul.f32 %v4675, 0.01
      %v4740 = vmul.f32 %v4676, 0.01
      %v4741 = vsel %vm4677, %v4645, %v4709
      %v4742 = vsel %vm4678, %v4646, %v4710
      %v4743 = vsel %vm4679, %v4647, %v4711
      %v4744 = vsel %vm4680, %v4648, %v4712
      %v4745 = vsel %vm4681, %v4649, %v4713
      %v4746 = vsel %vm4682, %v4650, %v4714
      %v4747 = vsel %vm4683, %v4651, %v4715
      %v4748 = vsel %vm4684, %v4652, %v4716
      %v4749 = vsel %vm4685, %v4653, %v4717
      %v4750 = vsel %vm4686, %v4654, %v4718
      %v4751 = vsel %vm4687, %v4655, %v4719
      %v4752 = vsel %vm4688, %v4656, %v4720
      %v4753 = vsel %vm4689, %v4657, %v4721
      %v4754 = vsel %vm4690, %v4658, %v4722
      %v4755 = vsel %vm4691, %v4659, %v4723
      %v4756 = vsel %vm4692, %v4660, %v4724
      %v4757 = vsel %vm4693, %v4661, %v4725
      %v4758 = vsel %vm4694, %v4662, %v4726
      %v4759 = vsel %vm4695, %v4663, %v4727
      %v4760 = vsel %vm4696, %v4664, %v4728
      %v4761 = vsel %vm4697, %v4665, %v4729
      %v4762 = vsel %vm4698, %v4666, %v4730
      %v4763 = vsel %vm4699, %v4667, %v4731
      %v4764 = vsel %vm4700, %v4668, %v4732
      %v4765 = vsel %vm4701, %v4669, %v4733
      %v4766 = vsel %vm4702, %v4670, %v4734
      %v4767 = vsel %vm4703, %v4671, %v4735
      %v4768 = vsel %vm4704, %v4672, %v4736
      %v4769 = vsel %vm4705, %v4673, %v4737
      %v4770 = vsel %vm4706, %v4674, %v4738
      %v4771 = vsel %vm4707, %v4675, %v4739
      %v4772 = vsel %vm4708, %v4676, %v4740
      %v4773 = vpack.c.bf16 %v4742, %v4741
      %v4774 = vpack.c.bf16 %v4744, %v4743
      %v4775 = vpack.c.bf16 %v4746, %v4745
      %v4776 = vpack.c.bf16 %v4748, %v4747
      %v4777 = vpack.c.bf16 %v4750, %v4749
      %v4778 = vpack.c.bf16 %v4752, %v4751
      %v4779 = vpack.c.bf16 %v4754, %v4753
      %v4780 = vpack.c.bf16 %v4756, %v4755
      %v4781 = vpack.c.bf16 %v4758, %v4757
      %v4782 = vpack.c.bf16 %v4760, %v4759
      %v4783 = vpack.c.bf16 %v4762, %v4761
      %v4784 = vpack.c.bf16 %v4764, %v4763
      %v4785 = vpack.c.bf16 %v4766, %v4765
      %v4786 = vpack.c.bf16 %v4768, %v4767
      %v4787 = vpack.c.bf16 %v4770, %v4769
      %v4788 = vpack.c.bf16 %v4772, %v4771
      %v4805 = vunpack.c.l.b16 %v4773
      %v4806 = vunpack.c.h.b16 %v4773
      %v4807 = vunpack.c.l.b16 %v4774
      %v4808 = vunpack.c.h.b16 %v4774
      %v4809 = vunpack.c.l.b16 %v4775
      %v4810 = vunpack.c.h.b16 %v4775
      %v4811 = vunpack.c.l.b16 %v4776
      %v4812 = vunpack.c.h.b16 %v4776
      %v4813 = vunpack.c.l.b16 %v4777
      %v4814 = vunpack.c.h.b16 %v4777
      %v4815 = vunpack.c.l.b16 %v4778
      %v4816 = vunpack.c.h.b16 %v4778
      %v4817 = vunpack.c.l.b16 %v4779
      %v4818 = vunpack.c.h.b16 %v4779
      %v4819 = vunpack.c.l.b16 %v4780
      %v4820 = vunpack.c.h.b16 %v4780
      %v4821 = vunpack.c.l.b16 %v4781
      %v4822 = vunpack.c.h.b16 %v4781
      %v4823 = vunpack.c.l.b16 %v4782
      %v4824 = vunpack.c.h.b16 %v4782
      %v4825 = vunpack.c.l.b16 %v4783
      %v4826 = vunpack.c.h.b16 %v4783
      %v4827 = vunpack.c.l.b16 %v4784
      %v4828 = vunpack.c.h.b16 %v4784
      %v4829 = vunpack.c.l.b16 %v4785
      %v4830 = vunpack.c.h.b16 %v4785
      %v4831 = vunpack.c.l.b16 %v4786
      %v4832 = vunpack.c.h.b16 %v4786
      %v4833 = vunpack.c.l.b16 %v4787
      %v4834 = vunpack.c.h.b16 %v4787
      %v4835 = vunpack.c.l.b16 %v4788
      %v4836 = vunpack.c.h.b16 %v4788
      %v4837 = vpack.c.b16 %v4805, %v4805
      %v4838 = vpack.c.b16 %v4806, %v4806
      %v4839 = vpack.c.b16 %v4807, %v4807
      %v4840 = vpack.c.b16 %v4808, %v4808
      %v4841 = vpack.c.b16 %v4809, %v4809
      %v4842 = vpack.c.b16 %v4810, %v4810
      %v4843 = vpack.c.b16 %v4811, %v4811
      %v4844 = vpack.c.b16 %v4812, %v4812
      %v4845 = vpack.c.b16 %v4813, %v4813
      %v4846 = vpack.c.b16 %v4814, %v4814
      %v4847 = vpack.c.b16 %v4815, %v4815
      %v4848 = vpack.c.b16 %v4816, %v4816
      %v4849 = vpack.c.b16 %v4817, %v4817
      %v4850 = vpack.c.b16 %v4818, %v4818
      %v4851 = vpack.c.b16 %v4819, %v4819
      %v4852 = vpack.c.b16 %v4820, %v4820
      %v4853 = vpack.c.b16 %v4821, %v4821
      %v4854 = vpack.c.b16 %v4822, %v4822
      %v4855 = vpack.c.b16 %v4823, %v4823
      %v4856 = vpack.c.b16 %v4824, %v4824
      %v4857 = vpack.c.b16 %v4825, %v4825
      %v4858 = vpack.c.b16 %v4826, %v4826
      %v4859 = vpack.c.b16 %v4827, %v4827
      %v4860 = vpack.c.b16 %v4828, %v4828
      %v4861 = vpack.c.b16 %v4829, %v4829
      %v4862 = vpack.c.b16 %v4830, %v4830
      %v4863 = vpack.c.b16 %v4831, %v4831
      %v4864 = vpack.c.b16 %v4832, %v4832
      %v4865 = vpack.c.b16 %v4833, %v4833
      %v4866 = vpack.c.b16 %v4834, %v4834
      %v4867 = vpack.c.b16 %v4835, %v4835
      %v4868 = vpack.c.b16 %v4836, %v4836
      %4901 = vst [vmem:[%s218] sm:$0xf] %v4837
      %4902 = vst [vmem:[%s218 + $0x4] sm:$0xf] %v4838
      %4903 = vst [vmem:[%s218 + $0x8] sm:$0xf] %v4839
      %4904 = vst [vmem:[%s218 + $0xc] sm:$0xf] %v4840
      %4905 = vst [vmem:[%s218 + $0x10] sm:$0xf] %v4841
      %4906 = vst [vmem:[%s218 + $0x14] sm:$0xf] %v4842
      %4907 = vst [vmem:[%s218 + $0x18] sm:$0xf] %v4843
      %4908 = vst [vmem:[%s218 + $0x1c] sm:$0xf] %v4844
      %4909 = vst [vmem:[%s218 + $0x20] sm:$0xf] %v4845
      %4910 = vst [vmem:[%s218 + $0x24] sm:$0xf] %v4846
      %4911 = vst [vmem:[%s218 + $0x28] sm:$0xf] %v4847
      %4912 = vst [vmem:[%s218 + $0x2c] sm:$0xf] %v4848
      %4913 = vst [vmem:[%s218 + $0x30] sm:$0xf] %v4849
      %4914 = vst [vmem:[%s218 + $0x34] sm:$0xf] %v4850
      %4915 = vst [vmem:[%s218 + $0x38] sm:$0xf] %v4851
      %4916 = vst [vmem:[%s218 + $0x3c] sm:$0xf] %v4852
      %4917 = vst [vmem:[%s218 + $0x40] sm:$0xf] %v4853
      %4918 = vst [vmem:[%s218 + $0x44] sm:$0xf] %v4854
      %4919 = vst [vmem:[%s218 + $0x48] sm:$0xf] %v4855
      %4920 = vst [vmem:[%s218 + $0x4c] sm:$0xf] %v4856
      %4921 = vst [vmem:[%s218 + $0x50] sm:$0xf] %v4857
      %4922 = vst [vmem:[%s218 + $0x54] sm:$0xf] %v4858
      %4923 = vst [vmem:[%s218 + $0x58] sm:$0xf] %v4859
      %4924 = vst [vmem:[%s218 + $0x5c] sm:$0xf] %v4860
      %4925 = vst [vmem:[%s218 + $0x60] sm:$0xf] %v4861
      %4926 = vst [vmem:[%s218 + $0x64] sm:$0xf] %v4862
      %4927 = vst [vmem:[%s218 + $0x68] sm:$0xf] %v4863
      %4928 = vst [vmem:[%s218 + $0x6c] sm:$0xf] %v4864
      %4929 = vst [vmem:[%s218 + $0x70] sm:$0xf] %v4865
      %4930 = vst [vmem:[%s218 + $0x74] sm:$0xf] %v4866
      %4931 = vst [vmem:[%s218 + $0x78] sm:$0xf] %v4867
      %4932 = vst [vmem:[%s218 + $0x7c] sm:$0xf] %v4868
      %s4933 = sadd.s32 %s19, %s20
      %s4934 = smul.u32 32, %s4933
      %p4935 = scmp.lt.s32.totalorder %s4934, 63
      %s4936 = scalar_select %p4935, %s4934, 63
      %s4937 = smul.addr %s4936, 4
      %s4938 = scalar_lea.vmem %s4, %s4937
      // Predicated region
      $region37: #{dbl_forward.5} parent=35 // pred_check
        %p4939 = pneg %p136
      $region38: #{dbl_forward.5} parent=35 // pred_check_branch
        %4941 = sbr.rel (%p4939) target = $region40
      $region39: #{dbl_forward.5} parent=35 // pred_region
        %s4942 = sadd.s32 %s19, %s20
        %s4943 = smul.u32 32, %s4942
      $region40: #{dbl_forward.5} parent=35 // pred_fallthru
        _
    $region36: #{dbl_forward.5} parent=5 // pred_fallthru
      _
    %p4944 = scmp.le.s32.totalorder 2, %s10
    // Predicated region
    $region41: #{dbl_forward.5} parent=5 // pred_check
      %p4945 = pneg %p4944
    $region42: #{dbl_forward.5} parent=5 // pred_check_branch
      %4947 = sbr.rel (%p4945) target = $region44
    $region43: #{dbl_forward.5} parent=5 // pred_region
      %s4948 = ssub.s32 %s10, 2
      // Predicated region
      $region45: #{dbl_forward.5} parent=43 // pred_check
        %p4949 = pneg %p142
      $region46: #{dbl_forward.5} parent=43 // pred_check_branch
        %4951 = sbr.rel (%p4949) target = $region48
      $region47: #{dbl_forward.5} parent=43 // pred_region
        %s4952 = sadd.s32 %s21, %s22
        %s4953 = smul.u32 32, %s4952
        %p4954 = scmp.lt.s32.totalorder %s4953, 63
        %s4955 = scalar_select %p4954, %s4953, 63
        %s4956 = smul.addr %s4955, 4
        %s4957 = scalar_lea.vmem %s4, %s4956
      $region48: #{dbl_forward.5} parent=43 // pred_fallthru
        _
    $region44: #{dbl_forward.5} parent=5 // pred_fallthru
      _
  $region6: #{dbl_forward.5} parent=0 // loop_footer
    %s14 = sadd.s32 1, %s10
  $region7: #{dbl_forward.5} parent=0 // loop_footer_branch
    %9 = sbr.rel target = $region3
  $region8: #{dbl_forward.5} parent=0 // loop_exit
    _

// kernel: dbl_forward.3
$region0: #{dbl_forward.3}
  #allocation0 [shape = 'u32[]', space=smem, size = 0x4, offset = 0x4, fixed_abs, tag = 'smem constant byte address 0x4 - core index']
  #allocation1 [shape = 'u32[144,128]{1,0:T(1,128)}', space=vmem, size = 0x12000, scoped, tag = 'internal scratch']
  %s0 = inlined_call_operand.vmem [shape: bf16[36,18,4], index: 0, kind: input, shape index: {}]
  %s1 = inlined_call_operand.vmem [shape: bf16[9,4,128], index: 1, kind: input, shape index: {}]
  %s2 = inlined_call_operand.vmem [shape: f32[2,1,128], index: 2, kind: output, shape index: {0}]
  %s3 = inlined_call_operand.vmem [shape: f32[2,1,128], index: 3, kind: output, shape index: {1}]
  %4 = xla_tuple %s2, %s3
  %s5 = sld [smem:[#allocation0]]
  $region49: #{dbl_forward.3} parent=0
    _
  %s7 = ssub.s32 1, %s5
  %s8 = scalar_select 0, %s7, %s5
  loop: start=0, step=1, limit=4
  $region2: #{dbl_forward.3} parent=0 // loop_pre_header
    _
  $region3: #{dbl_forward.3} parent=0 // loop_header
    %s10 = sphi 0, %s14
    %p11 = scmp.ge.s32.totalorder %s10, 4
    %s17 = sphi 0, %s29
    %s18 = sphi 0, %s25
    %s19 = sphi 0, %s17
    %s20 = sphi 0, %s18
    %s21 = sphi 0, %s19
    %s22 = sphi 0, %s20
    %s32 = sphi 0, %s34
    %s35 = sphi 0, %s32
    %s36 = sphi 0, %s35
    %s52 = sphi 0, %s36
    %s56 = sphi 0, %s56
    %s58 = sphi 0, %s56
    %s59 = sphi 0, %s58
    %s73 = sphi 0, %s59
    %s81 = sphi 0, %s83
    %s84 = sphi 0, %s81
    %s85 = sphi 0, %s84
    %s101 = sphi 0, %s85
    %s109 = sphi 0, %s111
    %s112 = sphi 0, %s109
    %s113 = sphi 0, %s112
    %s129 = sphi 0, %s113
  $region4: #{dbl_forward.3} parent=0 // loop_header_branch
    %13 = sbr.rel (%p11) target = $region8
  $region5: #{dbl_forward.3} parent=0 // loop_body
    %s15 = ssub.s32 %s10, 1
    %s16 = ssub.s32 %s10, 2
    %s23 = sadd.s32 1, %s18
    %p24 = scmp.ge.s32.totalorder %s23, 1
    %s25 = scalar_select %p24, 0, %s23
    %s26 = sadd.s32 1, %s17
    %s27 = scalar_select %p24, %s26, %s17
    %p28 = scmp.ge.s32.totalorder %s27, 2
    %s29 = scalar_select %p28, 0, %s27
    %s30 = ssub.s32 %s17, %s29
    %p31 = scmp.eq.s32.totalorder %s30, 0
    %s33 = sadd.s32 %s32, 1
    %s34 = scalar_select %p31, %s32, %s33
    %p37 = pneg %p31
    %p38 = scmp.eq.s32.totalorder %s10, 1
    %p39 = por %p37, %p38
    %p40 = scmp.ne.s32.totalorder %s32, %s35
    %p41 = scmp.eq.s32.totalorder %s10, 0
    %p42 = por %p40, %p41
    %p43 = scmp.ne.s32.totalorder %s32, %s35
    %p44 = scmp.eq.s32.totalorder %s15, 1
    %p45 = por %p43, %p44
    %p46 = scmp.ne.s32.totalorder %s35, %s36
    %p47 = scmp.eq.s32.totalorder %s15, 0
    %p48 = por %p46, %p47
    %p49 = scmp.ne.s32.totalorder %s35, %s36
    %p50 = scmp.eq.s32.totalorder %s16, 1
    %p51 = por %p49, %p50
    %p53 = scmp.ne.s32.totalorder %s36, %s52
    %p54 = scmp.eq.s32.totalorder %s16, 0
    %p55 = por %p53, %p54
    %s57 = sadd.s32 %s56, 1
    %p60 = scmp.eq.s32.totalorder %s10, 1
    %p61 = scmp.ne.s32.totalorder %s56, %s58
    %p62 = scmp.eq.s32.totalorder %s10, 0
    %p63 = por %p61, %p62
    %p64 = scmp.ne.s32.totalorder %s56, %s58
    %p65 = scmp.eq.s32.totalorder %s15, 1
    %p66 = por %p64, %p65
    %p67 = scmp.ne.s32.totalorder %s58, %s59
    %p68 = scmp.eq.s32.totalorder %s15, 0
    %p69 = por %p67, %p68
    %p70 = scmp.ne.s32.totalorder %s58, %s59
    %p71 = scmp.eq.s32.totalorder %s16, 1
    %p72 = por %p70, %p71
    %p74 = scmp.ne.s32.totalorder %s59, %s73
    %p75 = scmp.eq.s32.totalorder %s16, 0
    %p76 = por %p74, %p75
    %s77 = sadd.s32 %s17, %s18
    %s78 = sadd.s32 %s29, %s25
    %s79 = ssub.s32 %s77, %s78
    %p80 = scmp.eq.s32.totalorder %s79, 0
    %s82 = sadd.s32 %s81, 1
    %s83 = scalar_select %p80, %s81, %s82
    %p86 = pneg %p80
    %p87 = scmp.eq.s32.totalorder %s10, 1
    %p88 = por %p86, %p87
    %p89 = scmp.ne.s32.totalorder %s81, %s84
    %p90 = scmp.eq.s32.totalorder %s10, 0
    %p91 = por %p89, %p90
    %p92 = scmp.ne.s32.totalorder %s81, %s84
    %p93 = scmp.eq.s32.totalorder %s15, 1
    %p94 = por %p92, %p93
    %p95 = scmp.ne.s32.totalorder %s84, %s85
    %p96 = scmp.eq.s32.totalorder %s15, 0
    %p97 = por %p95, %p96
    %p98 = scmp.ne.s32.totalorder %s84, %s85
    %p99 = scmp.eq.s32.totalorder %s16, 1
    %p100 = por %p98, %p99
    %p102 = scmp.ne.s32.totalorder %s85, %s101
    %p103 = scmp.eq.s32.totalorder %s16, 0
    %p104 = por %p102, %p103
    %s105 = sadd.s32 %s17, %s18
    %s106 = sadd.s32 %s29, %s25
    %s107 = ssub.s32 %s105, %s106
    %p108 = scmp.eq.s32.totalorder %s107, 0
    %s110 = sadd.s32 %s109, 1
    %s111 = scalar_select %p108, %s109, %s110
    %p114 = pneg %p108
    %p115 = scmp.eq.s32.totalorder %s10, 1
    %p116 = por %p114, %p115
    %p117 = scmp.ne.s32.totalorder %s109, %s112
    %p118 = scmp.eq.s32.totalorder %s10, 0
    %p119 = por %p117, %p118
    %p120 = scmp.ne.s32.totalorder %s109, %s112
    %p121 = scmp.eq.s32.totalorder %s15, 1
    %p122 = por %p120, %p121
    %p123 = scmp.ne.s32.totalorder %s112, %s113
    %p124 = scmp.eq.s32.totalorder %s15, 0
    %p125 = por %p123, %p124
    %p126 = scmp.ne.s32.totalorder %s112, %s113
    %p127 = scmp.eq.s32.totalorder %s16, 1
    %p128 = por %p126, %p127
    %p130 = scmp.ne.s32.totalorder %s113, %s129
    %p131 = scmp.eq.s32.totalorder %s16, 0
    %p132 = por %p130, %p131
    %p133 = scmp.le.s32.totalorder 1, %s10
    %p134 = scmp.lt.s32.totalorder %s10, 3
    %p135 = pnand %p133, %p134
    %p136 = pneg %p135
    // Predicated region
    $region9: #{dbl_forward.3} parent=5 // pred_check
      _
    $region10: #{dbl_forward.3} parent=5 // pred_check_branch
      %138 = sbr.rel (%p135) target = $region12
    $region11: #{dbl_forward.3} parent=5 // pred_region
      %s139 = ssub.s32 %s10, 1
      // Predicated region
      $region13: #{dbl_forward.3} parent=11 // pred_check
        %p140 = pneg %p69
      $region14: #{dbl_forward.3} parent=11 // pred_check_branch
        %142 = sbr.rel (%p140) target = $region16
      $region15: #{dbl_forward.3} parent=11 // pred_region
        _
      $region16: #{dbl_forward.3} parent=11 // pred_fallthru
        _
    $region12: #{dbl_forward.3} parent=5 // pred_fallthru
      _
    %p143 = scmp.lt.s32.totalorder %s10, 2
    // Predicated region
    $region17: #{dbl_forward.3} parent=5 // pred_check
      %p144 = pneg %p143
    $region18: #{dbl_forward.3} parent=5 // pred_check_branch
      %146 = sbr.rel (%p144) target = $region20
    $region19: #{dbl_forward.3} parent=5 // pred_region
      // Predicated region
      $region21: #{dbl_forward.3} parent=19 // pred_check
        %p147 = pneg %p42
      $region22: #{dbl_forward.3} parent=19 // pred_check_branch
        %149 = sbr.rel (%p147) target = $region24
      $region23: #{dbl_forward.3} parent=19 // pred_region
        %s150 = smul.u32 18, %s17
        %p151 = scmp.lt.s32.totalorder %s150, 35
        %s152 = scalar_select %p151, %s150, 35
        %s153 = smul.addr %s152, 3
        %s154 = smul.addr %s153, 4
        %s155 = scalar_lea.vmem %s0, %s154
        %s156 = smul.u32 18, %s17
      $region24: #{dbl_forward.3} parent=19 // pred_fallthru
        _
    $region20: #{dbl_forward.3} parent=5 // pred_fallthru
      _
    %p157 = scmp.le.s32.totalorder 1, %s10
    %p158 = scmp.lt.s32.totalorder %s10, 3
    %p159 = pnand %p157, %p158
    %p160 = pneg %p159
    // Predicated region
    $region25: #{dbl_forward.3} parent=5 // pred_check
      _
    $region26: #{dbl_forward.3} parent=5 // pred_check_branch
      %162 = sbr.rel (%p159) target = $region28
    $region27: #{dbl_forward.3} parent=5 // pred_region
      %s163 = ssub.s32 %s10, 1
      %s164 = smul.u32 18, %s19
      %p165 = scmp.lt.s32.totalorder %s164, 35
      %s166 = scalar_select %p165, %s164, 35
      %s167 = smul.addr %s166, 3
      %s168 = smul.addr %s167, 4
      %s169 = scalar_lea.vmem %s0, %s168
      %p170 = pneg %p48
      %p171 = pneg %p45
      %p172 = pneg %p69
      %p173 = pneg %p66
      %p174 = pneg %p97
      %p175 = pneg %p94
      %s176 = sadd.s32 %s19, %s20
      %p177 = scmp.lt.s32.totalorder %s176, 1
      %s178 = scalar_select %p177, %s176, 1
      %s179 = scalar_lea.vmem %s2, %s178
      %p180 = pneg %p125
      %p181 = pneg %p122
      %s182 = sadd.s32 %s19, %s20
      %p183 = scmp.lt.s32.totalorder %s182, 1
      %s184 = scalar_select %p183, %s182, 1
      %s185 = scalar_lea.vmem %s3, %s184
      %s186 = smul.u32 18, %s19
      %p187 = scmp.lt.s32.totalorder %s186, 35
      %s188 = scalar_select %p187, %s186, 35
      %s189 = smul.addr %s188, 3
      %s190 = smul.addr %s189, 4
      %s191 = scalar_lea.vmem %s0, %s190
      %s192 = smul.u32 18, %s19
      %s193 = sadd.s32 %s19, %s20
      %p194 = scmp.lt.s32.totalorder %s193, 1
      %s195 = scalar_select %p194, %s193, 1
      %s196 = scalar_lea.vmem %s2, %s195
      %s197 = sadd.s32 %s19, %s20
      %s198 = sadd.s32 %s19, %s20
      %p199 = scmp.lt.s32.totalorder %s198, 1
      %s200 = scalar_select %p199, %s198, 1
      %s201 = scalar_lea.vmem %s3, %s200
      %s202 = sadd.s32 %s19, %s20
      %s204 = smul.u32 %s20, 16
      %s205 = smul.u32 %s204, 3
      %s206 = smul.addr %s205, 4
      %s207 = scalar_lea.vmem %s191, %s206
      %v208 = vld [vmem:[%s207] sm:$0xf]
      %v209 = vld [vmem:[%s207 + $0x4] sm:$0xf]
      %v210 = vld [vmem:[%s207 + $0x8] sm:$0x1]
      %v211 = vld [vmem:[%s207 + $0xc] sm:$0xf]
      %v212 = vld [vmem:[%s207 + $0x10] sm:$0xf]
      %v213 = vld [vmem:[%s207 + $0x14] sm:$0x1]
      %v214 = vld [vmem:[%s207 + $0x18] sm:$0xf]
      %v215 = vld [vmem:[%s207 + $0x1c] sm:$0xf]
      %v216 = vld [vmem:[%s207 + $0x20] sm:$0x1]
      %v217 = vld [vmem:[%s207 + $0x24] sm:$0xf]
      %v218 = vld [vmem:[%s207 + $0x28] sm:$0xf]
      %v219 = vld [vmem:[%s207 + $0x2c] sm:$0x1]
      %v220 = vld [vmem:[%s207 + $0x30] sm:$0xf]
      %v221 = vld [vmem:[%s207 + $0x34] sm:$0xf]
      %v222 = vld [vmem:[%s207 + $0x38] sm:$0x1]
      %v223 = vld [vmem:[%s207 + $0x3c] sm:$0xf]
      %v224 = vld [vmem:[%s207 + $0x40] sm:$0xf]
      %v225 = vld [vmem:[%s207 + $0x44] sm:$0x1]
      %v226 = vld [vmem:[%s207 + $0x48] sm:$0xf]
      %v227 = vld [vmem:[%s207 + $0x4c] sm:$0xf]
      %v228 = vld [vmem:[%s207 + $0x50] sm:$0x1]
      %v229 = vld [vmem:[%s207 + $0x54] sm:$0xf]
      %v230 = vld [vmem:[%s207 + $0x58] sm:$0xf]
      %v231 = vld [vmem:[%s207 + $0x5c] sm:$0x1]
      %v232 = vld [vmem:[%s207 + $0x60] sm:$0xf]
      %v233 = vld [vmem:[%s207 + $0x64] sm:$0xf]
      %v234 = vld [vmem:[%s207 + $0x68] sm:$0x1]
      %v235 = vld [vmem:[%s207 + $0x6c] sm:$0xf]
      %v236 = vld [vmem:[%s207 + $0x70] sm:$0xf]
      %v237 = vld [vmem:[%s207 + $0x74] sm:$0x1]
      %v238 = vld [vmem:[%s207 + $0x78] sm:$0xf]
      %v239 = vld [vmem:[%s207 + $0x7c] sm:$0xf]
      %v240 = vld [vmem:[%s207 + $0x80] sm:$0x1]
      %v241 = vld [vmem:[%s207 + $0x84] sm:$0xf]
      %v242 = vld [vmem:[%s207 + $0x88] sm:$0xf]
      %v243 = vld [vmem:[%s207 + $0x8c] sm:$0x1]
      %v244 = vld [vmem:[%s207 + $0x90] sm:$0xf]
      %v245 = vld [vmem:[%s207 + $0x94] sm:$0xf]
      %v246 = vld [vmem:[%s207 + $0x98] sm:$0x1]
      %v247 = vld [vmem:[%s207 + $0x9c] sm:$0xf]
      %v248 = vld [vmem:[%s207 + $0xa0] sm:$0xf]
      %v249 = vld [vmem:[%s207 + $0xa4] sm:$0x1]
      %v250 = vld [vmem:[%s207 + $0xa8] sm:$0xf]
      %v251 = vld [vmem:[%s207 + $0xac] sm:$0xf]
      %v252 = vld [vmem:[%s207 + $0xb0] sm:$0x1]
      %v253 = vld [vmem:[%s207 + $0xb4] sm:$0xf]
      %v254 = vld [vmem:[%s207 + $0xb8] sm:$0xf]
      %v255 = vld [vmem:[%s207 + $0xbc] sm:$0x1]
      %v256 = vld [vmem:[%s1] sm:$0x3]
      %vm257 = vsmask.f32 3328
      %vm258 = vsmask.f32 7440
      %vm259 = vmor %vm257, %vm258
      %v261 = vshrl.u32 %v208, 16
      %v263 = vrot.slane %v261, 4
      %v264 = vshll.u32 %v208, 16
      %v266 = vrot.slane %v264, 5
      %v267 = vor.u32 %v263, %v266
      %v268 = vrot.slane %v267, 4
      %v270 = vshll.u32 %v209, 16
      %v272 = vrot.slane %v270, 5
      %v273 = vsel %vm259, %v268, %v272
      %v274 = vshrl.u32 %v209, 16
      %v276 = vrot.slane %v274, 4
      %v277 = vor.u32 %v276, %v272
      %v278 = vrot.slane %v277, 4
      %v280 = vshll.u32 %v210, 16
      %v282 = vrot.slane %v280, 5
      %v283 = vsel %vm259, %v278, %v282
      %v285 = vshrl.u32 %v211, 16
      %v287 = vrot.slane %v285, 4
      %v288 = vshll.u32 %v211, 16
      %v290 = vrot.slane %v288, 5
      %v291 = vor.u32 %v287, %v290
      %v292 = vrot.slane %v291, 4
      %v294 = vshll.u32 %v212, 16
      %v296 = vrot.slane %v294, 5
      %v297 = vsel %vm259, %v292, %v296
      %v298 = vshrl.u32 %v212, 16
      %v300 = vrot.slane %v298, 4
      %v301 = vor.u32 %v300, %v296
      %v302 = vrot.slane %v301, 4
      %v304 = vshll.u32 %v213, 16
      %v306 = vrot.slane %v304, 5
      %v307 = vsel %vm259, %v302, %v306
      %v309 = vshrl.u32 %v214, 16
      %v311 = vrot.slane %v309, 4
      %v312 = vshll.u32 %v214, 16
      %v314 = vrot.slane %v312, 5
      %v315 = vor.u32 %v311, %v314
      %v316 = vrot.slane %v315, 4
      %v318 = vshll.u32 %v215, 16
      %v320 = vrot.slane %v318, 5
      %v321 = vsel %vm259, %v316, %v320
      %v322 = vshrl.u32 %v215, 16
      %v324 = vrot.slane %v322, 4
      %v325 = vor.u32 %v324, %v320
      %v326 = vrot.slane %v325, 4
      %v328 = vshll.u32 %v216, 16
      %v330 = vrot.slane %v328, 5
      %v331 = vsel %vm259, %v326, %v330
      %v333 = vshrl.u32 %v217, 16
      %v335 = vrot.slane %v333, 4
      %v336 = vshll.u32 %v217, 16
      %v338 = vrot.slane %v336, 5
      %v339 = vor.u32 %v335, %v338
      %v340 = vrot.slane %v339, 4
      %v342 = vshll.u32 %v218, 16
      %v344 = vrot.slane %v342, 5
      %v345 = vsel %vm259, %v340, %v344
      %v346 = vshrl.u32 %v218, 16
      %v348 = vrot.slane %v346, 4
      %v349 = vor.u32 %v348, %v344
      %v350 = vrot.slane %v349, 4
      %v352 = vshll.u32 %v219, 16
      %v354 = vrot.slane %v352, 5
      %v355 = vsel %vm259, %v350, %v354
      %v357 = vshrl.u32 %v220, 16
      %v359 = vrot.slane %v357, 4
      %v360 = vshll.u32 %v220, 16
      %v362 = vrot.slane %v360, 5
      %v363 = vor.u32 %v359, %v362
      %v364 = vrot.slane %v363, 4
      %v366 = vshll.u32 %v221, 16
      %v368 = vrot.slane %v366, 5
      %v369 = vsel %vm259, %v364, %v368
      %v370 = vshrl.u32 %v221, 16
      %v372 = vrot.slane %v370, 4
      %v373 = vor.u32 %v372, %v368
      %v374 = vrot.slane %v373, 4
      %v376 = vshll.u32 %v222, 16
      %v378 = vrot.slane %v376, 5
      %v379 = vsel %vm259, %v374, %v378
      %v381 = vshrl.u32 %v223, 16
      %v383 = vrot.slane %v381, 4
      %v384 = vshll.u32 %v223, 16
      %v386 = vrot.slane %v384, 5
      %v387 = vor.u32 %v383, %v386
      %v388 = vrot.slane %v387, 4
      %v390 = vshll.u32 %v224, 16
      %v392 = vrot.slane %v390, 5
      %v393 = vsel %vm259, %v388, %v392
      %v394 = vshrl.u32 %v224, 16
      %v396 = vrot.slane %v394, 4
      %v397 = vor.u32 %v396, %v392
      %v398 = vrot.slane %v397, 4
      %v400 = vshll.u32 %v225, 16
      %v402 = vrot.slane %v400, 5
      %v403 = vsel %vm259, %v398, %v402
      %v405 = vshrl.u32 %v226, 16
      %v407 = vrot.slane %v405, 4
      %v408 = vshll.u32 %v226, 16
      %v410 = vrot.slane %v408, 5
      %v411 = vor.u32 %v407, %v410
      %v412 = vrot.slane %v411, 4
      %v414 = vshll.u32 %v227, 16
      %v416 = vrot.slane %v414, 5
      %v417 = vsel %vm259, %v412, %v416
      %v418 = vshrl.u32 %v227, 16
      %v420 = vrot.slane %v418, 4
      %v421 = vor.u32 %v420, %v416
      %v422 = vrot.slane %v421, 4
      %v424 = vshll.u32 %v228, 16
      %v426 = vrot.slane %v424, 5
      %v427 = vsel %vm259, %v422, %v426
      %v429 = vshrl.u32 %v229, 16
      %v431 = vrot.slane %v429, 4
      %v432 = vshll.u32 %v229, 16
      %v434 = vrot.slane %v432, 5
      %v435 = vor.u32 %v431, %v434
      %v436 = vrot.slane %v435, 4
      %v438 = vshll.u32 %v230, 16
      %v440 = vrot.slane %v438, 5
      %v441 = vsel %vm259, %v436, %v440
      %v442 = vshrl.u32 %v230, 16
      %v444 = vrot.slane %v442, 4
      %v445 = vor.u32 %v444, %v440
      %v446 = vrot.slane %v445, 4
      %v448 = vshll.u32 %v231, 16
      %v450 = vrot.slane %v448, 5
      %v451 = vsel %vm259, %v446, %v450
      %v453 = vshrl.u32 %v232, 16
      %v455 = vrot.slane %v453, 4
      %v456 = vshll.u32 %v232, 16
      %v458 = vrot.slane %v456, 5
      %v459 = vor.u32 %v455, %v458
      %v460 = vrot.slane %v459, 4
      %v462 = vshll.u32 %v233, 16
      %v464 = vrot.slane %v462, 5
      %v465 = vsel %vm259, %v460, %v464
      %v466 = vshrl.u32 %v233, 16
      %v468 = vrot.slane %v466, 4
      %v469 = vor.u32 %v468, %v464
      %v470 = vrot.slane %v469, 4
      %v472 = vshll.u32 %v234, 16
      %v474 = vrot.slane %v472, 5
      %v475 = vsel %vm259, %v470, %v474
      %v477 = vshrl.u32 %v235, 16
      %v479 = vrot.slane %v477, 4
      %v480 = vshll.u32 %v235, 16
      %v482 = vrot.slane %v480, 5
      %v483 = vor.u32 %v479, %v482
      %v484 = vrot.slane %v483, 4
      %v486 = vshll.u32 %v236, 16
      %v488 = vrot.slane %v486, 5
      %v489 = vsel %vm259, %v484, %v488
      %v490 = vshrl.u32 %v236, 16
      %v492 = vrot.slane %v490, 4
      %v493 = vor.u32 %v492, %v488
      %v494 = vrot.slane %v493, 4
      %v496 = vshll.u32 %v237, 16
      %v498 = vrot.slane %v496, 5
      %v499 = vsel %vm259, %v494, %v498
      %v501 = vshrl.u32 %v238, 16
      %v503 = vrot.slane %v501, 4
      %v504 = vshll.u32 %v238, 16
      %v506 = vrot.slane %v504, 5
      %v507 = vor.u32 %v503, %v506
      %v508 = vrot.slane %v507, 4
      %v510 = vshll.u32 %v239, 16
      %v512 = vrot.slane %v510, 5
      %v513 = vsel %vm259, %v508, %v512
      %v514 = vshrl.u32 %v239, 16
      %v516 = vrot.slane %v514, 4
      %v517 = vor.u32 %v516, %v512
      %v518 = vrot.slane %v517, 4
      %v520 = vshll.u32 %v240, 16
      %v522 = vrot.slane %v520, 5
      %v523 = vsel %vm259, %v518, %v522
      %v525 = vshrl.u32 %v241, 16
      %v527 = vrot.slane %v525, 4
      %v528 = vshll.u32 %v241, 16
      %v530 = vrot.slane %v528, 5
      %v531 = vor.u32 %v527, %v530
      %v532 = vrot.slane %v531, 4
      %v534 = vshll.u32 %v242, 16
      %v536 = vrot.slane %v534, 5
      %v537 = vsel %vm259, %v532, %v536
      %v538 = vshrl.u32 %v242, 16
      %v540 = vrot.slane %v538, 4
      %v541 = vor.u32 %v540, %v536
      %v542 = vrot.slane %v541, 4
      %v544 = vshll.u32 %v243, 16
      %v546 = vrot.slane %v544, 5
      %v547 = vsel %vm259, %v542, %v546
      %v549 = vshrl.u32 %v244, 16
      %v551 = vrot.slane %v549, 4
      %v552 = vshll.u32 %v244, 16
      %v554 = vrot.slane %v552, 5
      %v555 = vor.u32 %v551, %v554
      %v556 = vrot.slane %v555, 4
      %v558 = vshll.u32 %v245, 16
      %v560 = vrot.slane %v558, 5
      %v561 = vsel %vm259, %v556, %v560
      %v562 = vshrl.u32 %v245, 16
      %v564 = vrot.slane %v562, 4
      %v565 = vor.u32 %v564, %v560
      %v566 = vrot.slane %v565, 4
      %v568 = vshll.u32 %v246, 16
      %v570 = vrot.slane %v568, 5
      %v571 = vsel %vm259, %v566, %v570
      %v573 = vshrl.u32 %v247, 16
      %v575 = vrot.slane %v573, 4
      %v576 = vshll.u32 %v247, 16
      %v578 = vrot.slane %v576, 5
      %v579 = vor.u32 %v575, %v578
      %v580 = vrot.slane %v579, 4
      %v582 = vshll.u32 %v248, 16
      %v584 = vrot.slane %v582, 5
      %v585 = vsel %vm259, %v580, %v584
      %v586 = vshrl.u32 %v248, 16
      %v588 = vrot.slane %v586, 4
      %v589 = vor.u32 %v588, %v584
      %v590 = vrot.slane %v589, 4
      %v592 = vshll.u32 %v249, 16
      %v594 = vrot.slane %v592, 5
      %v595 = vsel %vm259, %v590, %v594
      %v597 = vshrl.u32 %v250, 16
      %v599 = vrot.slane %v597, 4
      %v600 = vshll.u32 %v250, 16
      %v602 = vrot.slane %v600, 5
      %v603 = vor.u32 %v599, %v602
      %v604 = vrot.slane %v603, 4
      %v606 = vshll.u32 %v251, 16
      %v608 = vrot.slane %v606, 5
      %v609 = vsel %vm259, %v604, %v608
      %v610 = vshrl.u32 %v251, 16
      %v612 = vrot.slane %v610, 4
      %v613 = vor.u32 %v612, %v608
      %v614 = vrot.slane %v613, 4
      %v616 = vshll.u32 %v252, 16
      %v618 = vrot.slane %v616, 5
      %v619 = vsel %vm259, %v614, %v618
      %v621 = vshrl.u32 %v253, 16
      %v623 = vrot.slane %v621, 4
      %v624 = vshll.u32 %v253, 16
      %v626 = vrot.slane %v624, 5
      %v627 = vor.u32 %v623, %v626
      %v628 = vrot.slane %v627, 4
      %v630 = vshll.u32 %v254, 16
      %v632 = vrot.slane %v630, 5
      %v633 = vsel %vm259, %v628, %v632
      %v634 = vshrl.u32 %v254, 16
      %v636 = vrot.slane %v634, 4
      %v637 = vor.u32 %v636, %v632
      %v638 = vrot.slane %v637, 4
      %v640 = vshll.u32 %v255, 16
      %v642 = vrot.slane %v640, 5
      %v643 = vsel %vm259, %v638, %v642
      %s644 = scalar_lea.vmem %s1, 2
      %v645 = vld [vmem:[%s644] sm:$0x3]
      %v646 = vunpack.c.l.b16 %v273
      %v647 = vunpack.c.l.b16 %v283
      %v648 = vunpack.c.l.b16 %v297
      %v649 = vunpack.c.l.b16 %v307
      %v650 = vunpack.c.l.b16 %v321
      %v651 = vunpack.c.l.b16 %v331
      %v652 = vunpack.c.l.b16 %v345
      %v653 = vunpack.c.l.b16 %v355
      %v654 = vunpack.c.l.b16 %v369
      %v655 = vunpack.c.l.b16 %v379
      %v656 = vunpack.c.l.b16 %v393
      %v657 = vunpack.c.l.b16 %v403
      %v658 = vunpack.c.l.b16 %v417
      %v659 = vunpack.c.l.b16 %v427
      %v660 = vunpack.c.l.b16 %v441
      %v661 = vunpack.c.l.b16 %v451
      %v662 = vunpack.c.l.b16 %v465
      %v663 = vunpack.c.l.b16 %v475
      %v664 = vunpack.c.l.b16 %v489
      %v665 = vunpack.c.l.b16 %v499
      %v666 = vunpack.c.l.b16 %v513
      %v667 = vunpack.c.l.b16 %v523
      %v668 = vunpack.c.l.b16 %v537
      %v669 = vunpack.c.l.b16 %v547
      %v670 = vunpack.c.l.b16 %v561
      %v671 = vunpack.c.l.b16 %v571
      %v672 = vunpack.c.l.b16 %v585
      %v673 = vunpack.c.l.b16 %v595
      %v674 = vunpack.c.l.b16 %v609
      %v675 = vunpack.c.l.b16 %v619
      %v676 = vunpack.c.l.b16 %v633
      %v677 = vunpack.c.l.b16 %v643
      %v678 = vpack.c.b16 %v647, %v646
      %v679 = vpack.c.b16 %v649, %v648
      %v680 = vpack.c.b16 %v651, %v650
      %v681 = vpack.c.b16 %v653, %v652
      %v682 = vpack.c.b16 %v655, %v654
      %v683 = vpack.c.b16 %v657, %v656
      %v684 = vpack.c.b16 %v659, %v658
      %v685 = vpack.c.b16 %v661, %v660
      %v686 = vpack.c.b16 %v663, %v662
      %v687 = vpack.c.b16 %v665, %v664
      %v688 = vpack.c.b16 %v667, %v666
      %v689 = vpack.c.b16 %v669, %v668
      %v690 = vpack.c.b16 %v671, %v670
      %v691 = vpack.c.b16 %v673, %v672
      %v692 = vpack.c.b16 %v675, %v674
      %v693 = vpack.c.b16 %v677, %v676
      %vm694 = vcmask 31744
      %v696 = vsel %vm694, %v678, 0
      %v699 = vsel %vm694, %v679, 0
      %v702 = vsel %vm694, %v680, 0
      %v705 = vsel %vm694, %v681, 0
      %v708 = vsel %vm694, %v682, 0
      %v711 = vsel %vm694, %v683, 0
      %v714 = vsel %vm694, %v684, 0
      %v717 = vsel %vm694, %v685, 0
      %v720 = vsel %vm694, %v686, 0
      %v723 = vsel %vm694, %v687, 0
      %v726 = vsel %vm694, %v688, 0
      %v729 = vsel %vm694, %v689, 0
      %v732 = vsel %vm694, %v690, 0
      %v735 = vsel %vm694, %v691, 0
      %v738 = vsel %vm694, %v692, 0
      %v741 = vsel %vm694, %v693, 0
      %vm743 = vcmask 1041408
      %v745 = vsel %vm743, %v645, 0
      %747 = vmatprep.subr.bf16.mxu0 0
      %748 = vmatpush1.bf16.msra.mxu0 0
      %749 = vmatprep.subr.bf16.mxu0 0
      %750 = vmatpush1.bf16.msra.mxu0 0
      %751 = vmatprep.subr.bf16.mxu0 0
      %752 = vmatpush1.bf16.msra.mxu0 0
      %753 = vmatprep.subr.bf16.mxu0 0
      %754 = vmatpush1.bf16.msra.mxu0 0
      %755 = vmatprep.subr.bf16.mxu0 0
      %756 = vmatpush1.bf16.msra.mxu0 0
      %757 = vmatprep.subr.bf16.mxu0 0
      %758 = vmatpush1.bf16.msra.mxu0 0
      %759 = vmatprep.subr.bf16.mxu0 0
      %760 = vmatpush1.bf16.msra.mxu0 0
      %761 = vmatprep.subr.bf16.mxu0 0
      %762 = vmatpush1.bf16.msra.mxu0 %v745
      %763 = vmatprep.subr.bf16.mxu0 0
      %764 = vmatpush2.bf16.msra.mxu0 0
      %765 = vmatprep.subr.bf16.mxu0 0
      %766 = vmatpush2.bf16.msra.mxu0 0
      %767 = vmatprep.subr.bf16.mxu0 0
      %768 = vmatpush2.bf16.msra.mxu0 0
      %769 = vmatprep.subr.bf16.mxu0 0
      %770 = vmatpush2.bf16.msra.mxu0 0
      %771 = vmatprep.subr.bf16.mxu0 0
      %772 = vmatpush2.bf16.msra.mxu0 0
      %773 = vmatprep.subr.bf16.mxu0 0
      %774 = vmatpush2.bf16.msra.mxu0 0
      %775 = vmatprep.subr.bf16.mxu0 0
      %776 = vmatpush2.bf16.msra.mxu0 0
      %777 = vmatprep.subr.bf16.mxu0 0
      %778 = vmatpush2.bf16.msra.mxu0 0
      %779 = vmatprep.mubr.bf16.mxu0 0
      %780 = vmatmul.mubr.bf16.gmra.mxu0 %v696
      %v781 = vpop.f32.mrf.mxu0
      %v782 = vadd.f32 0.0, %v781
      %v783 = vpop.f32.mrf.mxu0
      %v784 = vpop.f32.mrf.mxu0
      %v785 = vadd.f32 0.0, %v784
      %v786 = vpop.f32.mrf.mxu0
      %787 = vmatprep.mubr.bf16.mxu0 0
      %788 = vmatmul.mubr.bf16.gmra.mxu0 %v699
      %v789 = vpop.f32.mrf.mxu0
      %v790 = vadd.f32 0.0, %v789
      %v791 = vpop.f32.mrf.mxu0
      %v792 = vpop.f32.mrf.mxu0
      %v793 = vadd.f32 0.0, %v792
      %v794 = vpop.f32.mrf.mxu0
      %795 = vmatprep.mubr.bf16.mxu0 0
      %796 = vmatmul.mubr.bf16.gmra.mxu0 %v702
      %v797 = vpop.f32.mrf.mxu0
      %v798 = vadd.f32 0.0, %v797
      %v799 = vpop.f32.mrf.mxu0
      %v800 = vpop.f32.mrf.mxu0
      %v801 = vadd.f32 0.0, %v800
      %v802 = vpop.f32.mrf.mxu0
      %803 = vmatprep.mubr.bf16.mxu0 0
      %804 = vmatmul.mubr.bf16.gmra.mxu0 %v705
      %v805 = vpop.f32.mrf.mxu0
      %v806 = vadd.f32 0.0, %v805
      %v807 = vpop.f32.mrf.mxu0
      %v808 = vpop.f32.mrf.mxu0
      %v809 = vadd.f32 0.0, %v808
      %v810 = vpop.f32.mrf.mxu0
      %811 = vmatprep.mubr.bf16.mxu0 0
      %812 = vmatmul.mubr.bf16.gmra.mxu0 %v708
      %v813 = vpop.f32.mrf.mxu0
      %v814 = vadd.f32 0.0, %v813
      %v815 = vpop.f32.mrf.mxu0
      %v816 = vpop.f32.mrf.mxu0
      %v817 = vadd.f32 0.0, %v816
      %v818 = vpop.f32.mrf.mxu0
      %819 = vmatprep.mubr.bf16.mxu0 0
      %820 = vmatmul.mubr.bf16.gmra.mxu0 %v711
      %v821 = vpop.f32.mrf.mxu0
      %v822 = vadd.f32 0.0, %v821
      %v823 = vpop.f32.mrf.mxu0
      %v824 = vpop.f32.mrf.mxu0
      %v825 = vadd.f32 0.0, %v824
      %v826 = vpop.f32.mrf.mxu0
      %827 = vmatprep.mubr.bf16.mxu0 0
      %828 = vmatmul.mubr.bf16.gmra.mxu0 %v714
      %v829 = vpop.f32.mrf.mxu0
      %v830 = vadd.f32 0.0, %v829
      %v831 = vpop.f32.mrf.mxu0
      %v832 = vpop.f32.mrf.mxu0
      %v833 = vadd.f32 0.0, %v832
      %v834 = vpop.f32.mrf.mxu0
      %835 = vmatprep.mubr.bf16.mxu0 0
      %836 = vmatmul.mubr.bf16.gmra.mxu0 %v717
      %v837 = vpop.f32.mrf.mxu0
      %v838 = vadd.f32 0.0, %v837
      %v839 = vpop.f32.mrf.mxu0
      %v840 = vpop.f32.mrf.mxu0
      %v841 = vadd.f32 0.0, %v840
      %v842 = vpop.f32.mrf.mxu0
      %843 = vmatprep.mubr.bf16.mxu0 0
      %844 = vmatmul.mubr.bf16.gmra.mxu0 %v720
      %v845 = vpop.f32.mrf.mxu0
      %v846 = vadd.f32 0.0, %v845
      %v847 = vpop.f32.mrf.mxu0
      %v848 = vpop.f32.mrf.mxu0
      %v849 = vadd.f32 0.0, %v848
      %v850 = vpop.f32.mrf.mxu0
      %851 = vmatprep.mubr.bf16.mxu0 0
      %852 = vmatmul.mubr.bf16.gmra.mxu0 %v723
      %v853 = vpop.f32.mrf.mxu0
      %v854 = vadd.f32 0.0, %v853
      %v855 = vpop.f32.mrf.mxu0
      %v856 = vpop.f32.mrf.mxu0
      %v857 = vadd.f32 0.0, %v856
      %v858 = vpop.f32.mrf.mxu0
      %859 = vmatprep.mubr.bf16.mxu0 0
      %860 = vmatmul.mubr.bf16.gmra.mxu0 %v726
      %v861 = vpop.f32.mrf.mxu0
      %v862 = vadd.f32 0.0, %v861
      %v863 = vpop.f32.mrf.mxu0
      %v864 = vpop.f32.mrf.mxu0
      %v865 = vadd.f32 0.0, %v864
      %v866 = vpop.f32.mrf.mxu0
      %867 = vmatprep.mubr.bf16.mxu0 0
      %868 = vmatmul.mubr.bf16.gmra.mxu0 %v729
      %v869 = vpop.f32.mrf.mxu0
      %v870 = vadd.f32 0.0, %v869
      %v871 = vpop.f32.mrf.mxu0
      %v872 = vpop.f32.mrf.mxu0
      %v873 = vadd.f32 0.0, %v872
      %v874 = vpop.f32.mrf.mxu0
      %875 = vmatprep.mubr.bf16.mxu0 0
      %876 = vmatmul.mubr.bf16.gmra.mxu0 %v732
      %v877 = vpop.f32.mrf.mxu0
      %v878 = vadd.f32 0.0, %v877
      %v879 = vpop.f32.mrf.mxu0
      %v880 = vpop.f32.mrf.mxu0
      %v881 = vadd.f32 0.0, %v880
      %v882 = vpop.f32.mrf.mxu0
      %883 = vmatprep.mubr.bf16.mxu0 0
      %884 = vmatmul.mubr.bf16.gmra.mxu0 %v735
      %v885 = vpop.f32.mrf.mxu0
      %v886 = vadd.f32 0.0, %v885
      %v887 = vpop.f32.mrf.mxu0
      %v888 = vpop.f32.mrf.mxu0
      %v889 = vadd.f32 0.0, %v888
      %v890 = vpop.f32.mrf.mxu0
      %891 = vmatprep.mubr.bf16.mxu0 0
      %892 = vmatmul.mubr.bf16.gmra.mxu0 %v738
      %v893 = vpop.f32.mrf.mxu0
      %v894 = vadd.f32 0.0, %v893
      %v895 = vpop.f32.mrf.mxu0
      %v896 = vpop.f32.mrf.mxu0
      %v897 = vadd.f32 0.0, %v896
      %v898 = vpop.f32.mrf.mxu0
      %899 = vmatprep.mubr.bf16.mxu0 0
      %900 = vmatmul.mubr.bf16.gmra.mxu0 %v741
      %v901 = vpop.f32.mrf.mxu0
      %v902 = vadd.f32 0.0, %v901
      %v903 = vpop.f32.mrf.mxu0
      %v904 = vpop.f32.mrf.mxu0
      %v905 = vadd.f32 0.0, %v904
      %v906 = vpop.f32.mrf.mxu0
      %907 = vdwg.mxu0
      %v940 = vunpack.c.l.b16 %v208
      %v941 = vunpack.c.l.b16 %v209
      %v942 = vunpack.c.l.b16 %v211
      %v943 = vunpack.c.l.b16 %v212
      %v944 = vunpack.c.l.b16 %v214
      %v945 = vunpack.c.l.b16 %v215
      %v946 = vunpack.c.l.b16 %v217
      %v947 = vunpack.c.l.b16 %v218
      %v948 = vunpack.c.l.b16 %v220
      %v949 = vunpack.c.l.b16 %v221
      %v950 = vunpack.c.l.b16 %v223
      %v951 = vunpack.c.l.b16 %v224
      %v952 = vunpack.c.l.b16 %v226
      %v953 = vunpack.c.l.b16 %v227
      %v954 = vunpack.c.l.b16 %v229
      %v955 = vunpack.c.l.b16 %v230
      %v956 = vunpack.c.l.b16 %v232
      %v957 = vunpack.c.l.b16 %v233
      %v958 = vunpack.c.l.b16 %v235
      %v959 = vunpack.c.l.b16 %v236
      %v960 = vunpack.c.l.b16 %v238
      %v961 = vunpack.c.l.b16 %v239
      %v962 = vunpack.c.l.b16 %v241
      %v963 = vunpack.c.l.b16 %v242
      %v964 = vunpack.c.l.b16 %v244
      %v965 = vunpack.c.l.b16 %v245
      %v966 = vunpack.c.l.b16 %v247
      %v967 = vunpack.c.l.b16 %v248
      %v968 = vunpack.c.l.b16 %v250
      %v969 = vunpack.c.l.b16 %v251
      %v970 = vunpack.c.l.b16 %v253
      %v971 = vunpack.c.l.b16 %v254
      %v972 = vpack.c.b16 %v941, %v940
      %v973 = vpack.c.b16 %v943, %v942
      %v974 = vpack.c.b16 %v945, %v944
      %v975 = vpack.c.b16 %v947, %v946
      %v976 = vpack.c.b16 %v949, %v948
      %v977 = vpack.c.b16 %v951, %v950
      %v978 = vpack.c.b16 %v953, %v952
      %v979 = vpack.c.b16 %v955, %v954
      %v980 = vpack.c.b16 %v957, %v956
      %v981 = vpack.c.b16 %v959, %v958
      %v982 = vpack.c.b16 %v961, %v960
      %v983 = vpack.c.b16 %v963, %v962
      %v984 = vpack.c.b16 %v965, %v964
      %v985 = vpack.c.b16 %v967, %v966
      %v986 = vpack.c.b16 %v969, %v968
      %v987 = vpack.c.b16 %v971, %v970
      %v989 = vsel %vm694, %v972, 0
      %v992 = vsel %vm694, %v973, 0
      %v995 = vsel %vm694, %v974, 0
      %v998 = vsel %vm694, %v975, 0
      %v1001 = vsel %vm694, %v976, 0
      %v1004 = vsel %vm694, %v977, 0
      %v1007 = vsel %vm694, %v978, 0
      %v1010 = vsel %vm694, %v979, 0
      %v1013 = vsel %vm694, %v980, 0
      %v1016 = vsel %vm694, %v981, 0
      %v1019 = vsel %vm694, %v982, 0
      %v1022 = vsel %vm694, %v983, 0
      %v1025 = vsel %vm694, %v984, 0
      %v1028 = vsel %vm694, %v985, 0
      %v1031 = vsel %vm694, %v986, 0
      %v1034 = vsel %vm694, %v987, 0
      %v1037 = vsel %vm743, %v256, 0
      %1039 = vmatprep.subr.bf16.mxu0 0
      %1040 = vmatpush1.bf16.msra.mxu0 0
      %1041 = vmatprep.subr.bf16.mxu0 0
      %1042 = vmatpush1.bf16.msra.mxu0 0
      %1043 = vmatprep.subr.bf16.mxu0 0
      %1044 = vmatpush1.bf16.msra.mxu0 0
      %1045 = vmatprep.subr.bf16.mxu0 0
      %1046 = vmatpush1.bf16.msra.mxu0 0
      %1047 = vmatprep.subr.bf16.mxu0 0
      %1048 = vmatpush1.bf16.msra.mxu0 0
      %1049 = vmatprep.subr.bf16.mxu0 0
      %1050 = vmatpush1.bf16.msra.mxu0 0
      %1051 = vmatprep.subr.bf16.mxu0 0
      %1052 = vmatpush1.bf16.msra.mxu0 0
      %1053 = vmatprep.subr.bf16.mxu0 0
      %1054 = vmatpush1.bf16.msra.mxu0 %v1037
      %1055 = vmatprep.subr.bf16.mxu0 0
      %1056 = vmatpush2.bf16.msra.mxu0 0
      %1057 = vmatprep.subr.bf16.mxu0 0
      %1058 = vmatpush2.bf16.msra.mxu0 0
      %1059 = vmatprep.subr.bf16.mxu0 0
      %1060 = vmatpush2.bf16.msra.mxu0 0
      %1061 = vmatprep.subr.bf16.mxu0 0
      %1062 = vmatpush2.bf16.msra.mxu0 0
      %1063 = vmatprep.subr.bf16.mxu0 0
      %1064 = vmatpush2.bf16.msra.mxu0 0
      %1065 = vmatprep.subr.bf16.mxu0 0
      %1066 = vmatpush2.bf16.msra.mxu0 0
      %1067 = vmatprep.subr.bf16.mxu0 0
      %1068 = vmatpush2.bf16.msra.mxu0 0
      %1069 = vmatprep.subr.bf16.mxu0 0
      %1070 = vmatpush2.bf16.msra.mxu0 0
      %1071 = vmatprep.mubr.bf16.mxu0 0
      %1072 = vmatmul.mubr.bf16.gmra.mxu0 %v989
      %v1073 = vpop.f32.mrf.mxu0
      %v1074 = vadd.f32 %v782, %v1073
      %v1075 = vpop.f32.mrf.mxu0
      %v1076 = vpop.f32.mrf.mxu0
      %v1077 = vadd.f32 %v785, %v1076
      %v1078 = vpop.f32.mrf.mxu0
      %1079 = vmatprep.mubr.bf16.mxu0 0
      %1080 = vmatmul.mubr.bf16.gmra.mxu0 %v992
      %v1081 = vpop.f32.mrf.mxu0
      %v1082 = vadd.f32 %v790, %v1081
      %v1083 = vpop.f32.mrf.mxu0
      %v1084 = vpop.f32.mrf.mxu0
      %v1085 = vadd.f32 %v793, %v1084
      %v1086 = vpop.f32.mrf.mxu0
      %1087 = vmatprep.mubr.bf16.mxu0 0
      %1088 = vmatmul.mubr.bf16.gmra.mxu0 %v995
      %v1089 = vpop.f32.mrf.mxu0
      %v1090 = vadd.f32 %v798, %v1089
      %v1091 = vpop.f32.mrf.mxu0
      %v1092 = vpop.f32.mrf.mxu0
      %v1093 = vadd.f32 %v801, %v1092
      %v1094 = vpop.f32.mrf.mxu0
      %1095 = vmatprep.mubr.bf16.mxu0 0
      %1096 = vmatmul.mubr.bf16.gmra.mxu0 %v998
      %v1097 = vpop.f32.mrf.mxu0
      %v1098 = vadd.f32 %v806, %v1097
      %v1099 = vpop.f32.mrf.mxu0
      %v1100 = vpop.f32.mrf.mxu0
      %v1101 = vadd.f32 %v809, %v1100
      %v1102 = vpop.f32.mrf.mxu0
      %1103 = vmatprep.mubr.bf16.mxu0 0
      %1104 = vmatmul.mubr.bf16.gmra.mxu0 %v1001
      %v1105 = vpop.f32.mrf.mxu0
      %v1106 = vadd.f32 %v814, %v1105
      %v1107 = vpop.f32.mrf.mxu0
      %v1108 = vpop.f32.mrf.mxu0
      %v1109 = vadd.f32 %v817, %v1108
      %v1110 = vpop.f32.mrf.mxu0
      %1111 = vmatprep.mubr.bf16.mxu0 0
      %1112 = vmatmul.mubr.bf16.gmra.mxu0 %v1004
      %v1113 = vpop.f32.mrf.mxu0
      %v1114 = vadd.f32 %v822, %v1113
      %v1115 = vpop.f32.mrf.mxu0
      %v1116 = vpop.f32.mrf.mxu0
      %v1117 = vadd.f32 %v825, %v1116
      %v1118 = vpop.f32.mrf.mxu0
      %1119 = vmatprep.mubr.bf16.mxu0 0
      %1120 = vmatmul.mubr.bf16.gmra.mxu0 %v1007
      %v1121 = vpop.f32.mrf.mxu0
      %v1122 = vadd.f32 %v830, %v1121
      %v1123 = vpop.f32.mrf.mxu0
      %v1124 = vpop.f32.mrf.mxu0
      %v1125 = vadd.f32 %v833, %v1124
      %v1126 = vpop.f32.mrf.mxu0
      %1127 = vmatprep.mubr.bf16.mxu0 0
      %1128 = vmatmul.mubr.bf16.gmra.mxu0 %v1010
      %v1129 = vpop.f32.mrf.mxu0
      %v1130 = vadd.f32 %v838, %v1129
      %v1131 = vpop.f32.mrf.mxu0
      %v1132 = vpop.f32.mrf.mxu0
      %v1133 = vadd.f32 %v841, %v1132
      %v1134 = vpop.f32.mrf.mxu0
      %1135 = vmatprep.mubr.bf16.mxu0 0
      %1136 = vmatmul.mubr.bf16.gmra.mxu0 %v1013
      %v1137 = vpop.f32.mrf.mxu0
      %v1138 = vadd.f32 %v846, %v1137
      %v1139 = vpop.f32.mrf.mxu0
      %v1140 = vpop.f32.mrf.mxu0
      %v1141 = vadd.f32 %v849, %v1140
      %v1142 = vpop.f32.mrf.mxu0
      %1143 = vmatprep.mubr.bf16.mxu0 0
      %1144 = vmatmul.mubr.bf16.gmra.mxu0 %v1016
      %v1145 = vpop.f32.mrf.mxu0
      %v1146 = vadd.f32 %v854, %v1145
      %v1147 = vpop.f32.mrf.mxu0
      %v1148 = vpop.f32.mrf.mxu0
      %v1149 = vadd.f32 %v857, %v1148
      %v1150 = vpop.f32.mrf.mxu0
      %1151 = vmatprep.mubr.bf16.mxu0 0
      %1152 = vmatmul.mubr.bf16.gmra.mxu0 %v1019
      %v1153 = vpop.f32.mrf.mxu0
      %v1154 = vadd.f32 %v862, %v1153
      %v1155 = vpop.f32.mrf.mxu0
      %v1156 = vpop.f32.mrf.mxu0
      %v1157 = vadd.f32 %v865, %v1156
      %v1158 = vpop.f32.mrf.mxu0
      %1159 = vmatprep.mubr.bf16.mxu0 0
      %1160 = vmatmul.mubr.bf16.gmra.mxu0 %v1022
      %v1161 = vpop.f32.mrf.mxu0
      %v1162 = vadd.f32 %v870, %v1161
      %v1163 = vpop.f32.mrf.mxu0
      %v1164 = vpop.f32.mrf.mxu0
      %v1165 = vadd.f32 %v873, %v1164
      %v1166 = vpop.f32.mrf.mxu0
      %1167 = vmatprep.mubr.bf16.mxu0 0
      %1168 = vmatmul.mubr.bf16.gmra.mxu0 %v1025
      %v1169 = vpop.f32.mrf.mxu0
      %v1170 = vadd.f32 %v878, %v1169
      %v1171 = vpop.f32.mrf.mxu0
      %v1172 = vpop.f32.mrf.mxu0
      %v1173 = vadd.f32 %v881, %v1172
      %v1174 = vpop.f32.mrf.mxu0
      %1175 = vmatprep.mubr.bf16.mxu0 0
      %1176 = vmatmul.mubr.bf16.gmra.mxu0 %v1028
      %v1177 = vpop.f32.mrf.mxu0
      %v1178 = vadd.f32 %v886, %v1177
      %v1179 = vpop.f32.mrf.mxu0
      %v1180 = vpop.f32.mrf.mxu0
      %v1181 = vadd.f32 %v889, %v1180
      %v1182 = vpop.f32.mrf.mxu0
      %1183 = vmatprep.mubr.bf16.mxu0 0
      %1184 = vmatmul.mubr.bf16.gmra.mxu0 %v1031
      %v1185 = vpop.f32.mrf.mxu0
      %v1186 = vadd.f32 %v894, %v1185
      %v1187 = vpop.f32.mrf.mxu0
      %v1188 = vpop.f32.mrf.mxu0
      %v1189 = vadd.f32 %v897, %v1188
      %v1190 = vpop.f32.mrf.mxu0
      %1191 = vmatprep.mubr.bf16.mxu0 0
      %1192 = vmatmul.mubr.bf16.gmra.mxu0 %v1034
      %v1193 = vpop.f32.mrf.mxu0
      %v1194 = vadd.f32 %v902, %v1193
      %v1195 = vpop.f32.mrf.mxu0
      %v1196 = vpop.f32.mrf.mxu0
      %v1197 = vadd.f32 %v905, %v1196
      %v1198 = vpop.f32.mrf.mxu0
      %1199 = vdwg.mxu0
      %vm1216 = vcmask 1042432
      %vm1217 = vcmask 1046532
      %vm1218 = vmor %vm1216, %vm1217
      %v1219 = vrot.slane %v208, 5
      %v1220 = vrot.slane %v1219, 4
      %v1221 = vrot.slane %v209, 5
      %v1222 = vsel %vm1218, %v1220, %v1221
      %v1223 = vrot.slane %v1221, 4
      %v1224 = vrot.slane %v210, 5
      %v1225 = vsel %vm1218, %v1223, %v1224
      %v1226 = vrot.slane %v211, 5
      %v1227 = vrot.slane %v1226, 4
      %v1228 = vrot.slane %v212, 5
      %v1229 = vsel %vm1218, %v1227, %v1228
      %v1230 = vrot.slane %v1228, 4
      %v1231 = vrot.slane %v213, 5
      %v1232 = vsel %vm1218, %v1230, %v1231
      %v1233 = vrot.slane %v214, 5
      %v1234 = vrot.slane %v1233, 4
      %v1235 = vrot.slane %v215, 5
      %v1236 = vsel %vm1218, %v1234, %v1235
      %v1237 = vrot.slane %v1235, 4
      %v1238 = vrot.slane %v216, 5
      %v1239 = vsel %vm1218, %v1237, %v1238
      %v1240 = vrot.slane %v217, 5
      %v1241 = vrot.slane %v1240, 4
      %v1242 = vrot.slane %v218, 5
      %v1243 = vsel %vm1218, %v1241, %v1242
      %v1244 = vrot.slane %v1242, 4
      %v1245 = vrot.slane %v219, 5
      %v1246 = vsel %vm1218, %v1244, %v1245
      %v1247 = vrot.slane %v220, 5
      %v1248 = vrot.slane %v1247, 4
      %v1249 = vrot.slane %v221, 5
      %v1250 = vsel %vm1218, %v1248, %v1249
      %v1251 = vrot.slane %v1249, 4
      %v1252 = vrot.slane %v222, 5
      %v1253 = vsel %vm1218, %v1251, %v1252
      %v1254 = vrot.slane %v223, 5
      %v1255 = vrot.slane %v1254, 4
      %v1256 = vrot.slane %v224, 5
      %v1257 = vsel %vm1218, %v1255, %v1256
      %v1258 = vrot.slane %v1256, 4
      %v1259 = vrot.slane %v225, 5
      %v1260 = vsel %vm1218, %v1258, %v1259
      %v1261 = vrot.slane %v226, 5
      %v1262 = vrot.slane %v1261, 4
      %v1263 = vrot.slane %v227, 5
      %v1264 = vsel %vm1218, %v1262, %v1263
      %v1265 = vrot.slane %v1263, 4
      %v1266 = vrot.slane %v228, 5
      %v1267 = vsel %vm1218, %v1265, %v1266
      %v1268 = vrot.slane %v229, 5
      %v1269 = vrot.slane %v1268, 4
      %v1270 = vrot.slane %v230, 5
      %v1271 = vsel %vm1218, %v1269, %v1270
      %v1272 = vrot.slane %v1270, 4
      %v1273 = vrot.slane %v231, 5
      %v1274 = vsel %vm1218, %v1272, %v1273
      %v1275 = vrot.slane %v232, 5
      %v1276 = vrot.slane %v1275, 4
      %v1277 = vrot.slane %v233, 5
      %v1278 = vsel %vm1218, %v1276, %v1277
      %v1279 = vrot.slane %v1277, 4
      %v1280 = vrot.slane %v234, 5
      %v1281 = vsel %vm1218, %v1279, %v1280
      %v1282 = vrot.slane %v235, 5
      %v1283 = vrot.slane %v1282, 4
      %v1284 = vrot.slane %v236, 5
      %v1285 = vsel %vm1218, %v1283, %v1284
      %v1286 = vrot.slane %v1284, 4
      %v1287 = vrot.slane %v237, 5
      %v1288 = vsel %vm1218, %v1286, %v1287
      %v1289 = vrot.slane %v238, 5
      %v1290 = vrot.slane %v1289, 4
      %v1291 = vrot.slane %v239, 5
      %v1292 = vsel %vm1218, %v1290, %v1291
      %v1293 = vrot.slane %v1291, 4
      %v1294 = vrot.slane %v240, 5
      %v1295 = vsel %vm1218, %v1293, %v1294
      %v1296 = vrot.slane %v241, 5
      %v1297 = vrot.slane %v1296, 4
      %v1298 = vrot.slane %v242, 5
      %v1299 = vsel %vm1218, %v1297, %v1298
      %v1300 = vrot.slane %v1298, 4
      %v1301 = vrot.slane %v243, 5
      %v1302 = vsel %vm1218, %v1300, %v1301
      %v1303 = vrot.slane %v244, 5
      %v1304 = vrot.slane %v1303, 4
      %v1305 = vrot.slane %v245, 5
      %v1306 = vsel %vm1218, %v1304, %v1305
      %v1307 = vrot.slane %v1305, 4
      %v1308 = vrot.slane %v246, 5
      %v1309 = vsel %vm1218, %v1307, %v1308
      %v1310 = vrot.slane %v247, 5
      %v1311 = vrot.slane %v1310, 4
      %v1312 = vrot.slane %v248, 5
      %v1313 = vsel %vm1218, %v1311, %v1312
      %v1314 = vrot.slane %v1312, 4
      %v1315 = vrot.slane %v249, 5
      %v1316 = vsel %vm1218, %v1314, %v1315
      %v1317 = vrot.slane %v250, 5
      %v1318 = vrot.slane %v1317, 4
      %v1319 = vrot.slane %v251, 5
      %v1320 = vsel %vm1218, %v1318, %v1319
      %v1321 = vrot.slane %v1319, 4
      %v1322 = vrot.slane %v252, 5
      %v1323 = vsel %vm1218, %v1321, %v1322
      %v1324 = vrot.slane %v253, 5
      %v1325 = vrot.slane %v1324, 4
      %v1326 = vrot.slane %v254, 5
      %v1327 = vsel %vm1218, %v1325, %v1326
      %v1328 = vrot.slane %v1326, 4
      %v1329 = vrot.slane %v255, 5
      %v1330 = vsel %vm1218, %v1328, %v1329
      %s1331 = scalar_lea.vmem %s1, 4
      %v1332 = vld [vmem:[%s1331] sm:$0x3]
      %v1333 = vunpack.c.l.b16 %v1222
      %v1334 = vunpack.c.l.b16 %v1225
      %v1335 = vunpack.c.l.b16 %v1229
      %v1336 = vunpack.c.l.b16 %v1232
      %v1337 = vunpack.c.l.b16 %v1236
      %v1338 = vunpack.c.l.b16 %v1239
      %v1339 = vunpack.c.l.b16 %v1243
      %v1340 = vunpack.c.l.b16 %v1246
      %v1341 = vunpack.c.l.b16 %v1250
      %v1342 = vunpack.c.l.b16 %v1253
      %v1343 = vunpack.c.l.b16 %v1257
      %v1344 = vunpack.c.l.b16 %v1260
      %v1345 = vunpack.c.l.b16 %v1264
      %v1346 = vunpack.c.l.b16 %v1267
      %v1347 = vunpack.c.l.b16 %v1271
      %v1348 = vunpack.c.l.b16 %v1274
      %v1349 = vunpack.c.l.b16 %v1278
      %v1350 = vunpack.c.l.b16 %v1281
      %v1351 = vunpack.c.l.b16 %v1285
      %v1352 = vunpack.c.l.b16 %v1288
      %v1353 = vunpack.c.l.b16 %v1292
      %v1354 = vunpack.c.l.b16 %v1295
      %v1355 = vunpack.c.l.b16 %v1299
      %v1356 = vunpack.c.l.b16 %v1302
      %v1357 = vunpack.c.l.b16 %v1306
      %v1358 = vunpack.c.l.b16 %v1309
      %v1359 = vunpack.c.l.b16 %v1313
      %v1360 = vunpack.c.l.b16 %v1316
      %v1361 = vunpack.c.l.b16 %v1320
      %v1362 = vunpack.c.l.b16 %v1323
      %v1363 = vunpack.c.l.b16 %v1327
      %v1364 = vunpack.c.l.b16 %v1330
      %v1365 = vpack.c.b16 %v1334, %v1333
      %v1366 = vpack.c.b16 %v1336, %v1335
      %v1367 = vpack.c.b16 %v1338, %v1337
      %v1368 = vpack.c.b16 %v1340, %v1339
      %v1369 = vpack.c.b16 %v1342, %v1341
      %v1370 = vpack.c.b16 %v1344, %v1343
      %v1371 = vpack.c.b16 %v1346, %v1345
      %v1372 = vpack.c.b16 %v1348, %v1347
      %v1373 = vpack.c.b16 %v1350, %v1349
      %v1374 = vpack.c.b16 %v1352, %v1351
      %v1375 = vpack.c.b16 %v1354, %v1353
      %v1376 = vpack.c.b16 %v1356, %v1355
      %v1377 = vpack.c.b16 %v1358, %v1357
      %v1378 = vpack.c.b16 %v1360, %v1359
      %v1379 = vpack.c.b16 %v1362, %v1361
      %v1380 = vpack.c.b16 %v1364, %v1363
      %v1382 = vsel %vm694, %v1365, 0
      %v1385 = vsel %vm694, %v1366, 0
      %v1388 = vsel %vm694, %v1367, 0
      %v1391 = vsel %vm694, %v1368, 0
      %v1394 = vsel %vm694, %v1369, 0
      %v1397 = vsel %vm694, %v1370, 0
      %v1400 = vsel %vm694, %v1371, 0
      %v1403 = vsel %vm694, %v1372, 0
      %v1406 = vsel %vm694, %v1373, 0
      %v1409 = vsel %vm694, %v1374, 0
      %v1412 = vsel %vm694, %v1375, 0
      %v1415 = vsel %vm694, %v1376, 0
      %v1418 = vsel %vm694, %v1377, 0
      %v1421 = vsel %vm694, %v1378, 0
      %v1424 = vsel %vm694, %v1379, 0
      %v1427 = vsel %vm694, %v1380, 0
      %v1430 = vsel %vm743, %v1332, 0
      %1432 = vmatprep.subr.bf16.mxu0 0
      %1433 = vmatpush1.bf16.msra.mxu0 0
      %1434 = vmatprep.subr.bf16.mxu0 0
      %1435 = vmatpush1.bf16.msra.mxu0 0
      %1436 = vmatprep.subr.bf16.mxu0 0
      %1437 = vmatpush1.bf16.msra.mxu0 0
      %1438 = vmatprep.subr.bf16.mxu0 0
      %1439 = vmatpush1.bf16.msra.mxu0 0
      %1440 = vmatprep.subr.bf16.mxu0 0
      %1441 = vmatpush1.bf16.msra.mxu0 0
      %1442 = vmatprep.subr.bf16.mxu0 0
      %1443 = vmatpush1.bf16.msra.mxu0 0
      %1444 = vmatprep.subr.bf16.mxu0 0
      %1445 = vmatpush1.bf16.msra.mxu0 0
      %1446 = vmatprep.subr.bf16.mxu0 0
      %1447 = vmatpush1.bf16.msra.mxu0 %v1430
      %1448 = vmatprep.subr.bf16.mxu0 0
      %1449 = vmatpush2.bf16.msra.mxu0 0
      %1450 = vmatprep.subr.bf16.mxu0 0
      %1451 = vmatpush2.bf16.msra.mxu0 0
      %1452 = vmatprep.subr.bf16.mxu0 0
      %1453 = vmatpush2.bf16.msra.mxu0 0
      %1454 = vmatprep.subr.bf16.mxu0 0
      %1455 = vmatpush2.bf16.msra.mxu0 0
      %1456 = vmatprep.subr.bf16.mxu0 0
      %1457 = vmatpush2.bf16.msra.mxu0 0
      %1458 = vmatprep.subr.bf16.mxu0 0
      %1459 = vmatpush2.bf16.msra.mxu0 0
      %1460 = vmatprep.subr.bf16.mxu0 0
      %1461 = vmatpush2.bf16.msra.mxu0 0
      %1462 = vmatprep.subr.bf16.mxu0 0
      %1463 = vmatpush2.bf16.msra.mxu0 0
      %1464 = vmatprep.mubr.bf16.mxu0 0
      %1465 = vmatmul.mubr.bf16.gmra.mxu0 %v1382
      %v1466 = vpop.f32.mrf.mxu0
      %v1467 = vadd.f32 0.0, %v1466
      %v1468 = vpop.f32.mrf.mxu0
      %v1469 = vpop.f32.mrf.mxu0
      %v1470 = vadd.f32 0.0, %v1469
      %v1471 = vpop.f32.mrf.mxu0
      %1472 = vmatprep.mubr.bf16.mxu0 0
      %1473 = vmatmul.mubr.bf16.gmra.mxu0 %v1385
      %v1474 = vpop.f32.mrf.mxu0
      %v1475 = vadd.f32 0.0, %v1474
      %v1476 = vpop.f32.mrf.mxu0
      %v1477 = vpop.f32.mrf.mxu0
      %v1478 = vadd.f32 0.0, %v1477
      %v1479 = vpop.f32.mrf.mxu0
      %1480 = vmatprep.mubr.bf16.mxu0 0
      %1481 = vmatmul.mubr.bf16.gmra.mxu0 %v1388
      %v1482 = vpop.f32.mrf.mxu0
      %v1483 = vadd.f32 0.0, %v1482
      %v1484 = vpop.f32.mrf.mxu0
      %v1485 = vpop.f32.mrf.mxu0
      %v1486 = vadd.f32 0.0, %v1485
      %v1487 = vpop.f32.mrf.mxu0
      %1488 = vmatprep.mubr.bf16.mxu0 0
      %1489 = vmatmul.mubr.bf16.gmra.mxu0 %v1391
      %v1490 = vpop.f32.mrf.mxu0
      %v1491 = vadd.f32 0.0, %v1490
      %v1492 = vpop.f32.mrf.mxu0
      %v1493 = vpop.f32.mrf.mxu0
      %v1494 = vadd.f32 0.0, %v1493
      %v1495 = vpop.f32.mrf.mxu0
      %1496 = vmatprep.mubr.bf16.mxu0 0
      %1497 = vmatmul.mubr.bf16.gmra.mxu0 %v1394
      %v1498 = vpop.f32.mrf.mxu0
      %v1499 = vadd.f32 0.0, %v1498
      %v1500 = vpop.f32.mrf.mxu0
      %v1501 = vpop.f32.mrf.mxu0
      %v1502 = vadd.f32 0.0, %v1501
      %v1503 = vpop.f32.mrf.mxu0
      %1504 = vmatprep.mubr.bf16.mxu0 0
      %1505 = vmatmul.mubr.bf16.gmra.mxu0 %v1397
      %v1506 = vpop.f32.mrf.mxu0
      %v1507 = vadd.f32 0.0, %v1506
      %v1508 = vpop.f32.mrf.mxu0
      %v1509 = vpop.f32.mrf.mxu0
      %v1510 = vadd.f32 0.0, %v1509
      %v1511 = vpop.f32.mrf.mxu0
      %1512 = vmatprep.mubr.bf16.mxu0 0
      %1513 = vmatmul.mubr.bf16.gmra.mxu0 %v1400
      %v1514 = vpop.f32.mrf.mxu0
      %v1515 = vadd.f32 0.0, %v1514
      %v1516 = vpop.f32.mrf.mxu0
      %v1517 = vpop.f32.mrf.mxu0
      %v1518 = vadd.f32 0.0, %v1517
      %v1519 = vpop.f32.mrf.mxu0
      %1520 = vmatprep.mubr.bf16.mxu0 0
      %1521 = vmatmul.mubr.bf16.gmra.mxu0 %v1403
      %v1522 = vpop.f32.mrf.mxu0
      %v1523 = vadd.f32 0.0, %v1522
      %v1524 = vpop.f32.mrf.mxu0
      %v1525 = vpop.f32.mrf.mxu0
      %v1526 = vadd.f32 0.0, %v1525
      %v1527 = vpop.f32.mrf.mxu0
      %1528 = vmatprep.mubr.bf16.mxu0 0
      %1529 = vmatmul.mubr.bf16.gmra.mxu0 %v1406
      %v1530 = vpop.f32.mrf.mxu0
      %v1531 = vadd.f32 0.0, %v1530
      %v1532 = vpop.f32.mrf.mxu0
      %v1533 = vpop.f32.mrf.mxu0
      %v1534 = vadd.f32 0.0, %v1533
      %v1535 = vpop.f32.mrf.mxu0
      %1536 = vmatprep.mubr.bf16.mxu0 0
      %1537 = vmatmul.mubr.bf16.gmra.mxu0 %v1409
      %v1538 = vpop.f32.mrf.mxu0
      %v1539 = vadd.f32 0.0, %v1538
      %v1540 = vpop.f32.mrf.mxu0
      %v1541 = vpop.f32.mrf.mxu0
      %v1542 = vadd.f32 0.0, %v1541
      %v1543 = vpop.f32.mrf.mxu0
      %1544 = vmatprep.mubr.bf16.mxu0 0
      %1545 = vmatmul.mubr.bf16.gmra.mxu0 %v1412
      %v1546 = vpop.f32.mrf.mxu0
      %v1547 = vadd.f32 0.0, %v1546
      %v1548 = vpop.f32.mrf.mxu0
      %v1549 = vpop.f32.mrf.mxu0
      %v1550 = vadd.f32 0.0, %v1549
      %v1551 = vpop.f32.mrf.mxu0
      %1552 = vmatprep.mubr.bf16.mxu0 0
      %1553 = vmatmul.mubr.bf16.gmra.mxu0 %v1415
      %v1554 = vpop.f32.mrf.mxu0
      %v1555 = vadd.f32 0.0, %v1554
      %v1556 = vpop.f32.mrf.mxu0
      %v1557 = vpop.f32.mrf.mxu0
      %v1558 = vadd.f32 0.0, %v1557
      %v1559 = vpop.f32.mrf.mxu0
      %1560 = vmatprep.mubr.bf16.mxu0 0
      %1561 = vmatmul.mubr.bf16.gmra.mxu0 %v1418
      %v1562 = vpop.f32.mrf.mxu0
      %v1563 = vadd.f32 0.0, %v1562
      %v1564 = vpop.f32.mrf.mxu0
      %v1565 = vpop.f32.mrf.mxu0
      %v1566 = vadd.f32 0.0, %v1565
      %v1567 = vpop.f32.mrf.mxu0
      %1568 = vmatprep.mubr.bf16.mxu0 0
      %1569 = vmatmul.mubr.bf16.gmra.mxu0 %v1421
      %v1570 = vpop.f32.mrf.mxu0
      %v1571 = vadd.f32 0.0, %v1570
      %v1572 = vpop.f32.mrf.mxu0
      %v1573 = vpop.f32.mrf.mxu0
      %v1574 = vadd.f32 0.0, %v1573
      %v1575 = vpop.f32.mrf.mxu0
      %1576 = vmatprep.mubr.bf16.mxu0 0
      %1577 = vmatmul.mubr.bf16.gmra.mxu0 %v1424
      %v1578 = vpop.f32.mrf.mxu0
      %v1579 = vadd.f32 0.0, %v1578
      %v1580 = vpop.f32.mrf.mxu0
      %v1581 = vpop.f32.mrf.mxu0
      %v1582 = vadd.f32 0.0, %v1581
      %v1583 = vpop.f32.mrf.mxu0
      %1584 = vmatprep.mubr.bf16.mxu0 0
      %1585 = vmatmul.mubr.bf16.gmra.mxu0 %v1427
      %v1586 = vpop.f32.mrf.mxu0
      %v1587 = vadd.f32 0.0, %v1586
      %v1588 = vpop.f32.mrf.mxu0
      %v1589 = vpop.f32.mrf.mxu0
      %v1590 = vadd.f32 0.0, %v1589
      %v1591 = vpop.f32.mrf.mxu0
      %1592 = vdwg.mxu0
      %v1593 = vadd.f32 %v1074, %v1467
      %v1594 = vadd.f32 %v1077, %v1470
      %v1595 = vadd.f32 %v1082, %v1475
      %v1596 = vadd.f32 %v1085, %v1478
      %v1597 = vadd.f32 %v1090, %v1483
      %v1598 = vadd.f32 %v1093, %v1486
      %v1599 = vadd.f32 %v1098, %v1491
      %v1600 = vadd.f32 %v1101, %v1494
      %v1601 = vadd.f32 %v1106, %v1499
      %v1602 = vadd.f32 %v1109, %v1502
      %v1603 = vadd.f32 %v1114, %v1507
      %v1604 = vadd.f32 %v1117, %v1510
      %v1605 = vadd.f32 %v1122, %v1515
      %v1606 = vadd.f32 %v1125, %v1518
      %v1607 = vadd.f32 %v1130, %v1523
      %v1608 = vadd.f32 %v1133, %v1526
      %v1609 = vadd.f32 %v1138, %v1531
      %v1610 = vadd.f32 %v1141, %v1534
      %v1611 = vadd.f32 %v1146, %v1539
      %v1612 = vadd.f32 %v1149, %v1542
      %v1613 = vadd.f32 %v1154, %v1547
      %v1614 = vadd.f32 %v1157, %v1550
      %v1615 = vadd.f32 %v1162, %v1555
      %v1616 = vadd.f32 %v1165, %v1558
      %v1617 = vadd.f32 %v1170, %v1563
      %v1618 = vadd.f32 %v1173, %v1566
      %v1619 = vadd.f32 %v1178, %v1571
      %v1620 = vadd.f32 %v1181, %v1574
      %v1621 = vadd.f32 %v1186, %v1579
      %v1622 = vadd.f32 %v1189, %v1582
      %v1623 = vadd.f32 %v1194, %v1587
      %v1624 = vadd.f32 %v1197, %v1590
      %s1625 = sadd.s32 %s204, 1
      %s1626 = smul.u32 %s1625, 3
      %s1627 = smul.addr %s1626, 4
      %s1628 = scalar_lea.vmem %s191, %s1627
      %v1629 = vld [vmem:[%s1628] sm:$0xf]
      %v1630 = vld [vmem:[%s1628 + $0x4] sm:$0xf]
      %v1631 = vld [vmem:[%s1628 + $0x8] sm:$0x1]
      %v1632 = vld [vmem:[%s1628 + $0xc] sm:$0xf]
      %v1633 = vld [vmem:[%s1628 + $0x10] sm:$0xf]
      %v1634 = vld [vmem:[%s1628 + $0x14] sm:$0x1]
      %v1635 = vld [vmem:[%s1628 + $0x18] sm:$0xf]
      %v1636 = vld [vmem:[%s1628 + $0x1c] sm:$0xf]
      %v1637 = vld [vmem:[%s1628 + $0x20] sm:$0x1]
      %v1638 = vld [vmem:[%s1628 + $0x24] sm:$0xf]
      %v1639 = vld [vmem:[%s1628 + $0x28] sm:$0xf]
      %v1640 = vld [vmem:[%s1628 + $0x2c] sm:$0x1]
      %v1641 = vld [vmem:[%s1628 + $0x30] sm:$0xf]
      %v1642 = vld [vmem:[%s1628 + $0x34] sm:$0xf]
      %v1643 = vld [vmem:[%s1628 + $0x38] sm:$0x1]
      %v1644 = vld [vmem:[%s1628 + $0x3c] sm:$0xf]
      %v1645 = vld [vmem:[%s1628 + $0x40] sm:$0xf]
      %v1646 = vld [vmem:[%s1628 + $0x44] sm:$0x1]
      %v1647 = vld [vmem:[%s1628 + $0x48] sm:$0xf]
      %v1648 = vld [vmem:[%s1628 + $0x4c] sm:$0xf]
      %v1649 = vld [vmem:[%s1628 + $0x50] sm:$0x1]
      %v1650 = vld [vmem:[%s1628 + $0x54] sm:$0xf]
      %v1651 = vld [vmem:[%s1628 + $0x58] sm:$0xf]
      %v1652 = vld [vmem:[%s1628 + $0x5c] sm:$0x1]
      %v1653 = vld [vmem:[%s1628 + $0x60] sm:$0xf]
      %v1654 = vld [vmem:[%s1628 + $0x64] sm:$0xf]
      %v1655 = vld [vmem:[%s1628 + $0x68] sm:$0x1]
      %v1656 = vld [vmem:[%s1628 + $0x6c] sm:$0xf]
      %v1657 = vld [vmem:[%s1628 + $0x70] sm:$0xf]
      %v1658 = vld [vmem:[%s1628 + $0x74] sm:$0x1]
      %v1659 = vld [vmem:[%s1628 + $0x78] sm:$0xf]
      %v1660 = vld [vmem:[%s1628 + $0x7c] sm:$0xf]
      %v1661 = vld [vmem:[%s1628 + $0x80] sm:$0x1]
      %v1662 = vld [vmem:[%s1628 + $0x84] sm:$0xf]
      %v1663 = vld [vmem:[%s1628 + $0x88] sm:$0xf]
      %v1664 = vld [vmem:[%s1628 + $0x8c] sm:$0x1]
      %v1665 = vld [vmem:[%s1628 + $0x90] sm:$0xf]
      %v1666 = vld [vmem:[%s1628 + $0x94] sm:$0xf]
      %v1667 = vld [vmem:[%s1628 + $0x98] sm:$0x1]
      %v1668 = vld [vmem:[%s1628 + $0x9c] sm:$0xf]
      %v1669 = vld [vmem:[%s1628 + $0xa0] sm:$0xf]
      %v1670 = vld [vmem:[%s1628 + $0xa4] sm:$0x1]
      %v1671 = vld [vmem:[%s1628 + $0xa8] sm:$0xf]
      %v1672 = vld [vmem:[%s1628 + $0xac] sm:$0xf]
      %v1673 = vld [vmem:[%s1628 + $0xb0] sm:$0x1]
      %v1674 = vld [vmem:[%s1628 + $0xb4] sm:$0xf]
      %v1675 = vld [vmem:[%s1628 + $0xb8] sm:$0xf]
      %v1676 = vld [vmem:[%s1628 + $0xbc] sm:$0x1]
      %s1677 = scalar_lea.vmem %s1, 6
      %v1678 = vld [vmem:[%s1677] sm:$0x3]
      %v1711 = vunpack.c.l.b16 %v1629
      %v1712 = vunpack.c.l.b16 %v1630
      %v1713 = vunpack.c.l.b16 %v1632
      %v1714 = vunpack.c.l.b16 %v1633
      %v1715 = vunpack.c.l.b16 %v1635
      %v1716 = vunpack.c.l.b16 %v1636
      %v1717 = vunpack.c.l.b16 %v1638
      %v1718 = vunpack.c.l.b16 %v1639
      %v1719 = vunpack.c.l.b16 %v1641
      %v1720 = vunpack.c.l.b16 %v1642
      %v1721 = vunpack.c.l.b16 %v1644
      %v1722 = vunpack.c.l.b16 %v1645
      %v1723 = vunpack.c.l.b16 %v1647
      %v1724 = vunpack.c.l.b16 %v1648
      %v1725 = vunpack.c.l.b16 %v1650
      %v1726 = vunpack.c.l.b16 %v1651
      %v1727 = vunpack.c.l.b16 %v1653
      %v1728 = vunpack.c.l.b16 %v1654
      %v1729 = vunpack.c.l.b16 %v1656
      %v1730 = vunpack.c.l.b16 %v1657
      %v1731 = vunpack.c.l.b16 %v1659
      %v1732 = vunpack.c.l.b16 %v1660
      %v1733 = vunpack.c.l.b16 %v1662
      %v1734 = vunpack.c.l.b16 %v1663
      %v1735 = vunpack.c.l.b16 %v1665
      %v1736 = vunpack.c.l.b16 %v1666
      %v1737 = vunpack.c.l.b16 %v1668
      %v1738 = vunpack.c.l.b16 %v1669
      %v1739 = vunpack.c.l.b16 %v1671
      %v1740 = vunpack.c.l.b16 %v1672
      %v1741 = vunpack.c.l.b16 %v1674
      %v1742 = vunpack.c.l.b16 %v1675
      %v1743 = vpack.c.b16 %v1712, %v1711
      %v1744 = vpack.c.b16 %v1714, %v1713
      %v1745 = vpack.c.b16 %v1716, %v1715
      %v1746 = vpack.c.b16 %v1718, %v1717
      %v1747 = vpack.c.b16 %v1720, %v1719
      %v1748 = vpack.c.b16 %v1722, %v1721
      %v1749 = vpack.c.b16 %v1724, %v1723
      %v1750 = vpack.c.b16 %v1726, %v1725
      %v1751 = vpack.c.b16 %v1728, %v1727
      %v1752 = vpack.c.b16 %v1730, %v1729
      %v1753 = vpack.c.b16 %v1732, %v1731
      %v1754 = vpack.c.b16 %v1734, %v1733
      %v1755 = vpack.c.b16 %v1736, %v1735
      %v1756 = vpack.c.b16 %v1738, %v1737
      %v1757 = vpack.c.b16 %v1740, %v1739
      %v1758 = vpack.c.b16 %v1742, %v1741
      %v1760 = vsel %vm694, %v1743, 0
      %v1763 = vsel %vm694, %v1744, 0
      %v1766 = vsel %vm694, %v1745, 0
      %v1769 = vsel %vm694, %v1746, 0
      %v1772 = vsel %vm694, %v1747, 0
      %v1775 = vsel %vm694, %v1748, 0
      %v1778 = vsel %vm694, %v1749, 0
      %v1781 = vsel %vm694, %v1750, 0
      %v1784 = vsel %vm694, %v1751, 0
      %v1787 = vsel %vm694, %v1752, 0
      %v1790 = vsel %vm694, %v1753, 0
      %v1793 = vsel %vm694, %v1754, 0
      %v1796 = vsel %vm694, %v1755, 0
      %v1799 = vsel %vm694, %v1756, 0
      %v1802 = vsel %vm694, %v1757, 0
      %v1805 = vsel %vm694, %v1758, 0
      %v1808 = vsel %vm743, %v1678, 0
      %1810 = vmatprep.subr.bf16.mxu0 0
      %1811 = vmatpush1.bf16.msra.mxu0 0
      %1812 = vmatprep.subr.bf16.mxu0 0
      %1813 = vmatpush1.bf16.msra.mxu0 0
      %1814 = vmatprep.subr.bf16.mxu0 0
      %1815 = vmatpush1.bf16.msra.mxu0 0
      %1816 = vmatprep.subr.bf16.mxu0 0
      %1817 = vmatpush1.bf16.msra.mxu0 0
      %1818 = vmatprep.subr.bf16.mxu0 0
      %1819 = vmatpush1.bf16.msra.mxu0 0
      %1820 = vmatprep.subr.bf16.mxu0 0
      %1821 = vmatpush1.bf16.msra.mxu0 0
      %1822 = vmatprep.subr.bf16.mxu0 0
      %1823 = vmatpush1.bf16.msra.mxu0 0
      %1824 = vmatprep.subr.bf16.mxu0 0
      %1825 = vmatpush1.bf16.msra.mxu0 %v1808
      %1826 = vmatprep.subr.bf16.mxu0 0
      %1827 = vmatpush2.bf16.msra.mxu0 0
      %1828 = vmatprep.subr.bf16.mxu0 0
      %1829 = vmatpush2.bf16.msra.mxu0 0
      %1830 = vmatprep.subr.bf16.mxu0 0
      %1831 = vmatpush2.bf16.msra.mxu0 0
      %1832 = vmatprep.subr.bf16.mxu0 0
      %1833 = vmatpush2.bf16.msra.mxu0 0
      %1834 = vmatprep.subr.bf16.mxu0 0
      %1835 = vmatpush2.bf16.msra.mxu0 0
      %1836 = vmatprep.subr.bf16.mxu0 0
      %1837 = vmatpush2.bf16.msra.mxu0 0
      %1838 = vmatprep.subr.bf16.mxu0 0
      %1839 = vmatpush2.bf16.msra.mxu0 0
      %1840 = vmatprep.subr.bf16.mxu0 0
      %1841 = vmatpush2.bf16.msra.mxu0 0
      %1842 = vmatprep.mubr.bf16.mxu0 0
      %1843 = vmatmul.mubr.bf16.gmra.mxu0 %v1760
      %v1844 = vpop.f32.mrf.mxu0
      %v1845 = vadd.f32 0.0, %v1844
      %v1846 = vpop.f32.mrf.mxu0
      %v1847 = vpop.f32.mrf.mxu0
      %v1848 = vadd.f32 0.0, %v1847
      %v1849 = vpop.f32.mrf.mxu0
      %1850 = vmatprep.mubr.bf16.mxu0 0
      %1851 = vmatmul.mubr.bf16.gmra.mxu0 %v1763
      %v1852 = vpop.f32.mrf.mxu0
      %v1853 = vadd.f32 0.0, %v1852
      %v1854 = vpop.f32.mrf.mxu0
      %v1855 = vpop.f32.mrf.mxu0
      %v1856 = vadd.f32 0.0, %v1855
      %v1857 = vpop.f32.mrf.mxu0
      %1858 = vmatprep.mubr.bf16.mxu0 0
      %1859 = vmatmul.mubr.bf16.gmra.mxu0 %v1766
      %v1860 = vpop.f32.mrf.mxu0
      %v1861 = vadd.f32 0.0, %v1860
      %v1862 = vpop.f32.mrf.mxu0
      %v1863 = vpop.f32.mrf.mxu0
      %v1864 = vadd.f32 0.0, %v1863
      %v1865 = vpop.f32.mrf.mxu0
      %1866 = vmatprep.mubr.bf16.mxu0 0
      %1867 = vmatmul.mubr.bf16.gmra.mxu0 %v1769
      %v1868 = vpop.f32.mrf.mxu0
      %v1869 = vadd.f32 0.0, %v1868
      %v1870 = vpop.f32.mrf.mxu0
      %v1871 = vpop.f32.mrf.mxu0
      %v1872 = vadd.f32 0.0, %v1871
      %v1873 = vpop.f32.mrf.mxu0
      %1874 = vmatprep.mubr.bf16.mxu0 0
      %1875 = vmatmul.mubr.bf16.gmra.mxu0 %v1772
      %v1876 = vpop.f32.mrf.mxu0
      %v1877 = vadd.f32 0.0, %v1876
      %v1878 = vpop.f32.mrf.mxu0
      %v1879 = vpop.f32.mrf.mxu0
      %v1880 = vadd.f32 0.0, %v1879
      %v1881 = vpop.f32.mrf.mxu0
      %1882 = vmatprep.mubr.bf16.mxu0 0
      %1883 = vmatmul.mubr.bf16.gmra.mxu0 %v1775
      %v1884 = vpop.f32.mrf.mxu0
      %v1885 = vadd.f32 0.0, %v1884
      %v1886 = vpop.f32.mrf.mxu0
      %v1887 = vpop.f32.mrf.mxu0
      %v1888 = vadd.f32 0.0, %v1887
      %v1889 = vpop.f32.mrf.mxu0
      %1890 = vmatprep.mubr.bf16.mxu0 0
      %1891 = vmatmul.mubr.bf16.gmra.mxu0 %v1778
      %v1892 = vpop.f32.mrf.mxu0
      %v1893 = vadd.f32 0.0, %v1892
      %v1894 = vpop.f32.mrf.mxu0
      %v1895 = vpop.f32.mrf.mxu0
      %v1896 = vadd.f32 0.0, %v1895
      %v1897 = vpop.f32.mrf.mxu0
      %1898 = vmatprep.mubr.bf16.mxu0 0
      %1899 = vmatmul.mubr.bf16.gmra.mxu0 %v1781
      %v1900 = vpop.f32.mrf.mxu0
      %v1901 = vadd.f32 0.0, %v1900
      %v1902 = vpop.f32.mrf.mxu0
      %v1903 = vpop.f32.mrf.mxu0
      %v1904 = vadd.f32 0.0, %v1903
      %v1905 = vpop.f32.mrf.mxu0
      %1906 = vmatprep.mubr.bf16.mxu0 0
      %1907 = vmatmul.mubr.bf16.gmra.mxu0 %v1784
      %v1908 = vpop.f32.mrf.mxu0
      %v1909 = vadd.f32 0.0, %v1908
      %v1910 = vpop.f32.mrf.mxu0
      %v1911 = vpop.f32.mrf.mxu0
      %v1912 = vadd.f32 0.0, %v1911
      %v1913 = vpop.f32.mrf.mxu0
      %1914 = vmatprep.mubr.bf16.mxu0 0
      %1915 = vmatmul.mubr.bf16.gmra.mxu0 %v1787
      %v1916 = vpop.f32.mrf.mxu0
      %v1917 = vadd.f32 0.0, %v1916
      %v1918 = vpop.f32.mrf.mxu0
      %v1919 = vpop.f32.mrf.mxu0
      %v1920 = vadd.f32 0.0, %v1919
      %v1921 = vpop.f32.mrf.mxu0
      %1922 = vmatprep.mubr.bf16.mxu0 0
      %1923 = vmatmul.mubr.bf16.gmra.mxu0 %v1790
      %v1924 = vpop.f32.mrf.mxu0
      %v1925 = vadd.f32 0.0, %v1924
      %v1926 = vpop.f32.mrf.mxu0
      %v1927 = vpop.f32.mrf.mxu0
      %v1928 = vadd.f32 0.0, %v1927
      %v1929 = vpop.f32.mrf.mxu0
      %1930 = vmatprep.mubr.bf16.mxu0 0
      %1931 = vmatmul.mubr.bf16.gmra.mxu0 %v1793
      %v1932 = vpop.f32.mrf.mxu0
      %v1933 = vadd.f32 0.0, %v1932
      %v1934 = vpop.f32.mrf.mxu0
      %v1935 = vpop.f32.mrf.mxu0
      %v1936 = vadd.f32 0.0, %v1935
      %v1937 = vpop.f32.mrf.mxu0
      %1938 = vmatprep.mubr.bf16.mxu0 0
      %1939 = vmatmul.mubr.bf16.gmra.mxu0 %v1796
      %v1940 = vpop.f32.mrf.mxu0
      %v1941 = vadd.f32 0.0, %v1940
      %v1942 = vpop.f32.mrf.mxu0
      %v1943 = vpop.f32.mrf.mxu0
      %v1944 = vadd.f32 0.0, %v1943
      %v1945 = vpop.f32.mrf.mxu0
      %1946 = vmatprep.mubr.bf16.mxu0 0
      %1947 = vmatmul.mubr.bf16.gmra.mxu0 %v1799
      %v1948 = vpop.f32.mrf.mxu0
      %v1949 = vadd.f32 0.0, %v1948
      %v1950 = vpop.f32.mrf.mxu0
      %v1951 = vpop.f32.mrf.mxu0
      %v1952 = vadd.f32 0.0, %v1951
      %v1953 = vpop.f32.mrf.mxu0
      %1954 = vmatprep.mubr.bf16.mxu0 0
      %1955 = vmatmul.mubr.bf16.gmra.mxu0 %v1802
      %v1956 = vpop.f32.mrf.mxu0
      %v1957 = vadd.f32 0.0, %v1956
      %v1958 = vpop.f32.mrf.mxu0
      %v1959 = vpop.f32.mrf.mxu0
      %v1960 = vadd.f32 0.0, %v1959
      %v1961 = vpop.f32.mrf.mxu0
      %1962 = vmatprep.mubr.bf16.mxu0 0
      %1963 = vmatmul.mubr.bf16.gmra.mxu0 %v1805
      %v1964 = vpop.f32.mrf.mxu0
      %v1965 = vadd.f32 0.0, %v1964
      %v1966 = vpop.f32.mrf.mxu0
      %v1967 = vpop.f32.mrf.mxu0
      %v1968 = vadd.f32 0.0, %v1967
      %v1969 = vpop.f32.mrf.mxu0
      %1970 = vdwg.mxu0
      %v1971 = vadd.f32 %v1593, %v1845
      %v1972 = vadd.f32 %v1594, %v1848
      %v1973 = vadd.f32 %v1595, %v1853
      %v1974 = vadd.f32 %v1596, %v1856
      %v1975 = vadd.f32 %v1597, %v1861
      %v1976 = vadd.f32 %v1598, %v1864
      %v1977 = vadd.f32 %v1599, %v1869
      %v1978 = vadd.f32 %v1600, %v1872
      %v1979 = vadd.f32 %v1601, %v1877
      %v1980 = vadd.f32 %v1602, %v1880
      %v1981 = vadd.f32 %v1603, %v1885
      %v1982 = vadd.f32 %v1604, %v1888
      %v1983 = vadd.f32 %v1605, %v1893
      %v1984 = vadd.f32 %v1606, %v1896
      %v1985 = vadd.f32 %v1607, %v1901
      %v1986 = vadd.f32 %v1608, %v1904
      %v1987 = vadd.f32 %v1609, %v1909
      %v1988 = vadd.f32 %v1610, %v1912
      %v1989 = vadd.f32 %v1611, %v1917
      %v1990 = vadd.f32 %v1612, %v1920
      %v1991 = vadd.f32 %v1613, %v1925
      %v1992 = vadd.f32 %v1614, %v1928
      %v1993 = vadd.f32 %v1615, %v1933
      %v1994 = vadd.f32 %v1616, %v1936
      %v1995 = vadd.f32 %v1617, %v1941
      %v1996 = vadd.f32 %v1618, %v1944
      %v1997 = vadd.f32 %v1619, %v1949
      %v1998 = vadd.f32 %v1620, %v1952
      %v1999 = vadd.f32 %v1621, %v1957
      %v2000 = vadd.f32 %v1622, %v1960
      %v2001 = vadd.f32 %v1623, %v1965
      %v2002 = vadd.f32 %v1624, %v1968
      %v2004 = vshrl.u32 %v1629, 16
      %v2006 = vrot.slane %v2004, 4
      %v2007 = vshll.u32 %v1629, 16
      %v2009 = vrot.slane %v2007, 5
      %v2010 = vor.u32 %v2006, %v2009
      %v2011 = vrot.slane %v2010, 4
      %v2013 = vshll.u32 %v1630, 16
      %v2015 = vrot.slane %v2013, 5
      %v2016 = vsel %vm259, %v2011, %v2015
      %v2017 = vshrl.u32 %v1630, 16
      %v2019 = vrot.slane %v2017, 4
      %v2020 = vor.u32 %v2019, %v2015
      %v2021 = vrot.slane %v2020, 4
      %v2023 = vshll.u32 %v1631, 16
      %v2025 = vrot.slane %v2023, 5
      %v2026 = vsel %vm259, %v2021, %v2025
      %v2028 = vshrl.u32 %v1632, 16
      %v2030 = vrot.slane %v2028, 4
      %v2031 = vshll.u32 %v1632, 16
      %v2033 = vrot.slane %v2031, 5
      %v2034 = vor.u32 %v2030, %v2033
      %v2035 = vrot.slane %v2034, 4
      %v2037 = vshll.u32 %v1633, 16
      %v2039 = vrot.slane %v2037, 5
      %v2040 = vsel %vm259, %v2035, %v2039
      %v2041 = vshrl.u32 %v1633, 16
      %v2043 = vrot.slane %v2041, 4
      %v2044 = vor.u32 %v2043, %v2039
      %v2045 = vrot.slane %v2044, 4
      %v2047 = vshll.u32 %v1634, 16
      %v2049 = vrot.slane %v2047, 5
      %v2050 = vsel %vm259, %v2045, %v2049
      %v2052 = vshrl.u32 %v1635, 16
      %v2054 = vrot.slane %v2052, 4
      %v2055 = vshll.u32 %v1635, 16
      %v2057 = vrot.slane %v2055, 5
      %v2058 = vor.u32 %v2054, %v2057
      %v2059 = vrot.slane %v2058, 4
      %v2061 = vshll.u32 %v1636, 16
      %v2063 = vrot.slane %v2061, 5
      %v2064 = vsel %vm259, %v2059, %v2063
      %v2065 = vshrl.u32 %v1636, 16
      %v2067 = vrot.slane %v2065, 4
      %v2068 = vor.u32 %v2067, %v2063
      %v2069 = vrot.slane %v2068, 4
      %v2071 = vshll.u32 %v1637, 16
      %v2073 = vrot.slane %v2071, 5
      %v2074 = vsel %vm259, %v2069, %v2073
      %v2076 = vshrl.u32 %v1638, 16
      %v2078 = vrot.slane %v2076, 4
      %v2079 = vshll.u32 %v1638, 16
      %v2081 = vrot.slane %v2079, 5
      %v2082 = vor.u32 %v2078, %v2081
      %v2083 = vrot.slane %v2082, 4
      %v2085 = vshll.u32 %v1639, 16
      %v2087 = vrot.slane %v2085, 5
      %v2088 = vsel %vm259, %v2083, %v2087
      %v2089 = vshrl.u32 %v1639, 16
      %v2091 = vrot.slane %v2089, 4
      %v2092 = vor.u32 %v2091, %v2087
      %v2093 = vrot.slane %v2092, 4
      %v2095 = vshll.u32 %v1640, 16
      %v2097 = vrot.slane %v2095, 5
      %v2098 = vsel %vm259, %v2093, %v2097
      %v2100 = vshrl.u32 %v1641, 16
      %v2102 = vrot.slane %v2100, 4
      %v2103 = vshll.u32 %v1641, 16
      %v2105 = vrot.slane %v2103, 5
      %v2106 = vor.u32 %v2102, %v2105
      %v2107 = vrot.slane %v2106, 4
      %v2109 = vshll.u32 %v1642, 16
      %v2111 = vrot.slane %v2109, 5
      %v2112 = vsel %vm259, %v2107, %v2111
      %v2113 = vshrl.u32 %v1642, 16
      %v2115 = vrot.slane %v2113, 4
      %v2116 = vor.u32 %v2115, %v2111
      %v2117 = vrot.slane %v2116, 4
      %v2119 = vshll.u32 %v1643, 16
      %v2121 = vrot.slane %v2119, 5
      %v2122 = vsel %vm259, %v2117, %v2121
      %v2124 = vshrl.u32 %v1644, 16
      %v2126 = vrot.slane %v2124, 4
      %v2127 = vshll.u32 %v1644, 16
      %v2129 = vrot.slane %v2127, 5
      %v2130 = vor.u32 %v2126, %v2129
      %v2131 = vrot.slane %v2130, 4
      %v2133 = vshll.u32 %v1645, 16
      %v2135 = vrot.slane %v2133, 5
      %v2136 = vsel %vm259, %v2131, %v2135
      %v2137 = vshrl.u32 %v1645, 16
      %v2139 = vrot.slane %v2137, 4
      %v2140 = vor.u32 %v2139, %v2135
      %v2141 = vrot.slane %v2140, 4
      %v2143 = vshll.u32 %v1646, 16
      %v2145 = vrot.slane %v2143, 5
      %v2146 = vsel %vm259, %v2141, %v2145
      %v2148 = vshrl.u32 %v1647, 16
      %v2150 = vrot.slane %v2148, 4
      %v2151 = vshll.u32 %v1647, 16
      %v2153 = vrot.slane %v2151, 5
      %v2154 = vor.u32 %v2150, %v2153
      %v2155 = vrot.slane %v2154, 4
      %v2157 = vshll.u32 %v1648, 16
      %v2159 = vrot.slane %v2157, 5
      %v2160 = vsel %vm259, %v2155, %v2159
      %v2161 = vshrl.u32 %v1648, 16
      %v2163 = vrot.slane %v2161, 4
      %v2164 = vor.u32 %v2163, %v2159
      %v2165 = vrot.slane %v2164, 4
      %v2167 = vshll.u32 %v1649, 16
      %v2169 = vrot.slane %v2167, 5
      %v2170 = vsel %vm259, %v2165, %v2169
      %v2172 = vshrl.u32 %v1650, 16
      %v2174 = vrot.slane %v2172, 4
      %v2175 = vshll.u32 %v1650, 16
      %v2177 = vrot.slane %v2175, 5
      %v2178 = vor.u32 %v2174, %v2177
      %v2179 = vrot.slane %v2178, 4
      %v2181 = vshll.u32 %v1651, 16
      %v2183 = vrot.slane %v2181, 5
      %v2184 = vsel %vm259, %v2179, %v2183
      %v2185 = vshrl.u32 %v1651, 16
      %v2187 = vrot.slane %v2185, 4
      %v2188 = vor.u32 %v2187, %v2183
      %v2189 = vrot.slane %v2188, 4
      %v2191 = vshll.u32 %v1652, 16
      %v2193 = vrot.slane %v2191, 5
      %v2194 = vsel %vm259, %v2189, %v2193
      %v2196 = vshrl.u32 %v1653, 16
      %v2198 = vrot.slane %v2196, 4
      %v2199 = vshll.u32 %v1653, 16
      %v2201 = vrot.slane %v2199, 5
      %v2202 = vor.u32 %v2198, %v2201
      %v2203 = vrot.slane %v2202, 4
      %v2205 = vshll.u32 %v1654, 16
      %v2207 = vrot.slane %v2205, 5
      %v2208 = vsel %vm259, %v2203, %v2207
      %v2209 = vshrl.u32 %v1654, 16
      %v2211 = vrot.slane %v2209, 4
      %v2212 = vor.u32 %v2211, %v2207
      %v2213 = vrot.slane %v2212, 4
      %v2215 = vshll.u32 %v1655, 16
      %v2217 = vrot.slane %v2215, 5
      %v2218 = vsel %vm259, %v2213, %v2217
      %v2220 = vshrl.u32 %v1656, 16
      %v2222 = vrot.slane %v2220, 4
      %v2223 = vshll.u32 %v1656, 16
      %v2225 = vrot.slane %v2223, 5
      %v2226 = vor.u32 %v2222, %v2225
      %v2227 = vrot.slane %v2226, 4
      %v2229 = vshll.u32 %v1657, 16
      %v2231 = vrot.slane %v2229, 5
      %v2232 = vsel %vm259, %v2227, %v2231
      %v2233 = vshrl.u32 %v1657, 16
      %v2235 = vrot.slane %v2233, 4
      %v2236 = vor.u32 %v2235, %v2231
      %v2237 = vrot.slane %v2236, 4
      %v2239 = vshll.u32 %v1658, 16
      %v2241 = vrot.slane %v2239, 5
      %v2242 = vsel %vm259, %v2237, %v2241
      %v2244 = vshrl.u32 %v1659, 16
      %v2246 = vrot.slane %v2244, 4
      %v2247 = vshll.u32 %v1659, 16
      %v2249 = vrot.slane %v2247, 5
      %v2250 = vor.u32 %v2246, %v2249
      %v2251 = vrot.slane %v2250, 4
      %v2253 = vshll.u32 %v1660, 16
      %v2255 = vrot.slane %v2253, 5
      %v2256 = vsel %vm259, %v2251, %v2255
      %v2257 = vshrl.u32 %v1660, 16
      %v2259 = vrot.slane %v2257, 4
      %v2260 = vor.u32 %v2259, %v2255
      %v2261 = vrot.slane %v2260, 4
      %v2263 = vshll.u32 %v1661, 16
      %v2265 = vrot.slane %v2263, 5
      %v2266 = vsel %vm259, %v2261, %v2265
      %v2268 = vshrl.u32 %v1662, 16
      %v2270 = vrot.slane %v2268, 4
      %v2271 = vshll.u32 %v1662, 16
      %v2273 = vrot.slane %v2271, 5
      %v2274 = vor.u32 %v2270, %v2273
      %v2275 = vrot.slane %v2274, 4
      %v2277 = vshll.u32 %v1663, 16
      %v2279 = vrot.slane %v2277, 5
      %v2280 = vsel %vm259, %v2275, %v2279
      %v2281 = vshrl.u32 %v1663, 16
      %v2283 = vrot.slane %v2281, 4
      %v2284 = vor.u32 %v2283, %v2279
      %v2285 = vrot.slane %v2284, 4
      %v2287 = vshll.u32 %v1664, 16
      %v2289 = vrot.slane %v2287, 5
      %v2290 = vsel %vm259, %v2285, %v2289
      %v2292 = vshrl.u32 %v1665, 16
      %v2294 = vrot.slane %v2292, 4
      %v2295 = vshll.u32 %v1665, 16
      %v2297 = vrot.slane %v2295, 5
      %v2298 = vor.u32 %v2294, %v2297
      %v2299 = vrot.slane %v2298, 4
      %v2301 = vshll.u32 %v1666, 16
      %v2303 = vrot.slane %v2301, 5
      %v2304 = vsel %vm259, %v2299, %v2303
      %v2305 = vshrl.u32 %v1666, 16
      %v2307 = vrot.slane %v2305, 4
      %v2308 = vor.u32 %v2307, %v2303
      %v2309 = vrot.slane %v2308, 4
      %v2311 = vshll.u32 %v1667, 16
      %v2313 = vrot.slane %v2311, 5
      %v2314 = vsel %vm259, %v2309, %v2313
      %v2316 = vshrl.u32 %v1668, 16
      %v2318 = vrot.slane %v2316, 4
      %v2319 = vshll.u32 %v1668, 16
      %v2321 = vrot.slane %v2319, 5
      %v2322 = vor.u32 %v2318, %v2321
      %v2323 = vrot.slane %v2322, 4
      %v2325 = vshll.u32 %v1669, 16
      %v2327 = vrot.slane %v2325, 5
      %v2328 = vsel %vm259, %v2323, %v2327
      %v2329 = vshrl.u32 %v1669, 16
      %v2331 = vrot.slane %v2329, 4
      %v2332 = vor.u32 %v2331, %v2327
      %v2333 = vrot.slane %v2332, 4
      %v2335 = vshll.u32 %v1670, 16
      %v2337 = vrot.slane %v2335, 5
      %v2338 = vsel %vm259, %v2333, %v2337
      %v2340 = vshrl.u32 %v1671, 16
      %v2342 = vrot.slane %v2340, 4
      %v2343 = vshll.u32 %v1671, 16
      %v2345 = vrot.slane %v2343, 5
      %v2346 = vor.u32 %v2342, %v2345
      %v2347 = vrot.slane %v2346, 4
      %v2349 = vshll.u32 %v1672, 16
      %v2351 = vrot.slane %v2349, 5
      %v2352 = vsel %vm259, %v2347, %v2351
      %v2353 = vshrl.u32 %v1672, 16
      %v2355 = vrot.slane %v2353, 4
      %v2356 = vor.u32 %v2355, %v2351
      %v2357 = vrot.slane %v2356, 4
      %v2359 = vshll.u32 %v1673, 16
      %v2361 = vrot.slane %v2359, 5
      %v2362 = vsel %vm259, %v2357, %v2361
      %v2364 = vshrl.u32 %v1674, 16
      %v2366 = vrot.slane %v2364, 4
      %v2367 = vshll.u32 %v1674, 16
      %v2369 = vrot.slane %v2367, 5
      %v2370 = vor.u32 %v2366, %v2369
      %v2371 = vrot.slane %v2370, 4
      %v2373 = vshll.u32 %v1675, 16
      %v2375 = vrot.slane %v2373, 5
      %v2376 = vsel %vm259, %v2371, %v2375
      %v2377 = vshrl.u32 %v1675, 16
      %v2379 = vrot.slane %v2377, 4
      %v2380 = vor.u32 %v2379, %v2375
      %v2381 = vrot.slane %v2380, 4
      %v2383 = vshll.u32 %v1676, 16
      %v2385 = vrot.slane %v2383, 5
      %v2386 = vsel %vm259, %v2381, %v2385
      %s2387 = scalar_lea.vmem %s1, 8
      %v2388 = vld [vmem:[%s2387] sm:$0x3]
      %v2389 = vunpack.c.l.b16 %v2016
      %v2390 = vunpack.c.l.b16 %v2026
      %v2391 = vunpack.c.l.b16 %v2040
      %v2392 = vunpack.c.l.b16 %v2050
      %v2393 = vunpack.c.l.b16 %v2064
      %v2394 = vunpack.c.l.b16 %v2074
      %v2395 = vunpack.c.l.b16 %v2088
      %v2396 = vunpack.c.l.b16 %v2098
      %v2397 = vunpack.c.l.b16 %v2112
      %v2398 = vunpack.c.l.b16 %v2122
      %v2399 = vunpack.c.l.b16 %v2136
      %v2400 = vunpack.c.l.b16 %v2146
      %v2401 = vunpack.c.l.b16 %v2160
      %v2402 = vunpack.c.l.b16 %v2170
      %v2403 = vunpack.c.l.b16 %v2184
      %v2404 = vunpack.c.l.b16 %v2194
      %v2405 = vunpack.c.l.b16 %v2208
      %v2406 = vunpack.c.l.b16 %v2218
      %v2407 = vunpack.c.l.b16 %v2232
      %v2408 = vunpack.c.l.b16 %v2242
      %v2409 = vunpack.c.l.b16 %v2256
      %v2410 = vunpack.c.l.b16 %v2266
      %v2411 = vunpack.c.l.b16 %v2280
      %v2412 = vunpack.c.l.b16 %v2290
      %v2413 = vunpack.c.l.b16 %v2304
      %v2414 = vunpack.c.l.b16 %v2314
      %v2415 = vunpack.c.l.b16 %v2328
      %v2416 = vunpack.c.l.b16 %v2338
      %v2417 = vunpack.c.l.b16 %v2352
      %v2418 = vunpack.c.l.b16 %v2362
      %v2419 = vunpack.c.l.b16 %v2376
      %v2420 = vunpack.c.l.b16 %v2386
      %v2421 = vpack.c.b16 %v2390, %v2389
      %v2422 = vpack.c.b16 %v2392, %v2391
      %v2423 = vpack.c.b16 %v2394, %v2393
      %v2424 = vpack.c.b16 %v2396, %v2395
      %v2425 = vpack.c.b16 %v2398, %v2397
      %v2426 = vpack.c.b16 %v2400, %v2399
      %v2427 = vpack.c.b16 %v2402, %v2401
      %v2428 = vpack.c.b16 %v2404, %v2403
      %v2429 = vpack.c.b16 %v2406, %v2405
      %v2430 = vpack.c.b16 %v2408, %v2407
      %v2431 = vpack.c.b16 %v2410, %v2409
      %v2432 = vpack.c.b16 %v2412, %v2411
      %v2433 = vpack.c.b16 %v2414, %v2413
      %v2434 = vpack.c.b16 %v2416, %v2415
      %v2435 = vpack.c.b16 %v2418, %v2417
      %v2436 = vpack.c.b16 %v2420, %v2419
      %v2438 = vsel %vm694, %v2421, 0
      %v2441 = vsel %vm694, %v2422, 0
      %v2444 = vsel %vm694, %v2423, 0
      %v2447 = vsel %vm694, %v2424, 0
      %v2450 = vsel %vm694, %v2425, 0
      %v2453 = vsel %vm694, %v2426, 0
      %v2456 = vsel %vm694, %v2427, 0
      %v2459 = vsel %vm694, %v2428, 0
      %v2462 = vsel %vm694, %v2429, 0
      %v2465 = vsel %vm694, %v2430, 0
      %v2468 = vsel %vm694, %v2431, 0
      %v2471 = vsel %vm694, %v2432, 0
      %v2474 = vsel %vm694, %v2433, 0
      %v2477 = vsel %vm694, %v2434, 0
      %v2480 = vsel %vm694, %v2435, 0
      %v2483 = vsel %vm694, %v2436, 0
      %v2486 = vsel %vm743, %v2388, 0
      %2488 = vmatprep.subr.bf16.mxu0 0
      %2489 = vmatpush1.bf16.msra.mxu0 0
      %2490 = vmatprep.subr.bf16.mxu0 0
      %2491 = vmatpush1.bf16.msra.mxu0 0
      %2492 = vmatprep.subr.bf16.mxu0 0
      %2493 = vmatpush1.bf16.msra.mxu0 0
      %2494 = vmatprep.subr.bf16.mxu0 0
      %2495 = vmatpush1.bf16.msra.mxu0 0
      %2496 = vmatprep.subr.bf16.mxu0 0
      %2497 = vmatpush1.bf16.msra.mxu0 0
      %2498 = vmatprep.subr.bf16.mxu0 0
      %2499 = vmatpush1.bf16.msra.mxu0 0
      %2500 = vmatprep.subr.bf16.mxu0 0
      %2501 = vmatpush1.bf16.msra.mxu0 0
      %2502 = vmatprep.subr.bf16.mxu0 0
      %2503 = vmatpush1.bf16.msra.mxu0 %v2486
      %2504 = vmatprep.subr.bf16.mxu0 0
      %2505 = vmatpush2.bf16.msra.mxu0 0
      %2506 = vmatprep.subr.bf16.mxu0 0
      %2507 = vmatpush2.bf16.msra.mxu0 0
      %2508 = vmatprep.subr.bf16.mxu0 0
      %2509 = vmatpush2.bf16.msra.mxu0 0
      %2510 = vmatprep.subr.bf16.mxu0 0
      %2511 = vmatpush2.bf16.msra.mxu0 0
      %2512 = vmatprep.subr.bf16.mxu0 0
      %2513 = vmatpush2.bf16.msra.mxu0 0
      %2514 = vmatprep.subr.bf16.mxu0 0
      %2515 = vmatpush2.bf16.msra.mxu0 0
      %2516 = vmatprep.subr.bf16.mxu0 0
      %2517 = vmatpush2.bf16.msra.mxu0 0
      %2518 = vmatprep.subr.bf16.mxu0 0
      %2519 = vmatpush2.bf16.msra.mxu0 0
      %2520 = vmatprep.mubr.bf16.mxu0 0
      %2521 = vmatmul.mubr.bf16.gmra.mxu0 %v2438
      %v2522 = vpop.f32.mrf.mxu0
      %v2523 = vadd.f32 0.0, %v2522
      %v2524 = vpop.f32.mrf.mxu0
      %v2525 = vpop.f32.mrf.mxu0
      %v2526 = vadd.f32 0.0, %v2525
      %v2527 = vpop.f32.mrf.mxu0
      %2528 = vmatprep.mubr.bf16.mxu0 0
      %2529 = vmatmul.mubr.bf16.gmra.mxu0 %v2441
      %v2530 = vpop.f32.mrf.mxu0
      %v2531 = vadd.f32 0.0, %v2530
      %v2532 = vpop.f32.mrf.mxu0
      %v2533 = vpop.f32.mrf.mxu0
      %v2534 = vadd.f32 0.0, %v2533
      %v2535 = vpop.f32.mrf.mxu0
      %2536 = vmatprep.mubr.bf16.mxu0 0
      %2537 = vmatmul.mubr.bf16.gmra.mxu0 %v2444
      %v2538 = vpop.f32.mrf.mxu0
      %v2539 = vadd.f32 0.0, %v2538
      %v2540 = vpop.f32.mrf.mxu0
      %v2541 = vpop.f32.mrf.mxu0
      %v2542 = vadd.f32 0.0, %v2541
      %v2543 = vpop.f32.mrf.mxu0
      %2544 = vmatprep.mubr.bf16.mxu0 0
      %2545 = vmatmul.mubr.bf16.gmra.mxu0 %v2447
      %v2546 = vpop.f32.mrf.mxu0
      %v2547 = vadd.f32 0.0, %v2546
      %v2548 = vpop.f32.mrf.mxu0
      %v2549 = vpop.f32.mrf.mxu0
      %v2550 = vadd.f32 0.0, %v2549
      %v2551 = vpop.f32.mrf.mxu0
      %2552 = vmatprep.mubr.bf16.mxu0 0
      %2553 = vmatmul.mubr.bf16.gmra.mxu0 %v2450
      %v2554 = vpop.f32.mrf.mxu0
      %v2555 = vadd.f32 0.0, %v2554
      %v2556 = vpop.f32.mrf.mxu0
      %v2557 = vpop.f32.mrf.mxu0
      %v2558 = vadd.f32 0.0, %v2557
      %v2559 = vpop.f32.mrf.mxu0
      %2560 = vmatprep.mubr.bf16.mxu0 0
      %2561 = vmatmul.mubr.bf16.gmra.mxu0 %v2453
      %v2562 = vpop.f32.mrf.mxu0
      %v2563 = vadd.f32 0.0, %v2562
      %v2564 = vpop.f32.mrf.mxu0
      %v2565 = vpop.f32.mrf.mxu0
      %v2566 = vadd.f32 0.0, %v2565
      %v2567 = vpop.f32.mrf.mxu0
      %2568 = vmatprep.mubr.bf16.mxu0 0
      %2569 = vmatmul.mubr.bf16.gmra.mxu0 %v2456
      %v2570 = vpop.f32.mrf.mxu0
      %v2571 = vadd.f32 0.0, %v2570
      %v2572 = vpop.f32.mrf.mxu0
      %v2573 = vpop.f32.mrf.mxu0
      %v2574 = vadd.f32 0.0, %v2573
      %v2575 = vpop.f32.mrf.mxu0
      %2576 = vmatprep.mubr.bf16.mxu0 0
      %2577 = vmatmul.mubr.bf16.gmra.mxu0 %v2459
      %v2578 = vpop.f32.mrf.mxu0
      %v2579 = vadd.f32 0.0, %v2578
      %v2580 = vpop.f32.mrf.mxu0
      %v2581 = vpop.f32.mrf.mxu0
      %v2582 = vadd.f32 0.0, %v2581
      %v2583 = vpop.f32.mrf.mxu0
      %2584 = vmatprep.mubr.bf16.mxu0 0
      %2585 = vmatmul.mubr.bf16.gmra.mxu0 %v2462
      %v2586 = vpop.f32.mrf.mxu0
      %v2587 = vadd.f32 0.0, %v2586
      %v2588 = vpop.f32.mrf.mxu0
      %v2589 = vpop.f32.mrf.mxu0
      %v2590 = vadd.f32 0.0, %v2589
      %v2591 = vpop.f32.mrf.mxu0
      %2592 = vmatprep.mubr.bf16.mxu0 0
      %2593 = vmatmul.mubr.bf16.gmra.mxu0 %v2465
      %v2594 = vpop.f32.mrf.mxu0
      %v2595 = vadd.f32 0.0, %v2594
      %v2596 = vpop.f32.mrf.mxu0
      %v2597 = vpop.f32.mrf.mxu0
      %v2598 = vadd.f32 0.0, %v2597
      %v2599 = vpop.f32.mrf.mxu0
      %2600 = vmatprep.mubr.bf16.mxu0 0
      %2601 = vmatmul.mubr.bf16.gmra.mxu0 %v2468
      %v2602 = vpop.f32.mrf.mxu0
      %v2603 = vadd.f32 0.0, %v2602
      %v2604 = vpop.f32.mrf.mxu0
      %v2605 = vpop.f32.mrf.mxu0
      %v2606 = vadd.f32 0.0, %v2605
      %v2607 = vpop.f32.mrf.mxu0
      %2608 = vmatprep.mubr.bf16.mxu0 0
      %2609 = vmatmul.mubr.bf16.gmra.mxu0 %v2471
      %v2610 = vpop.f32.mrf.mxu0
      %v2611 = vadd.f32 0.0, %v2610
      %v2612 = vpop.f32.mrf.mxu0
      %v2613 = vpop.f32.mrf.mxu0
      %v2614 = vadd.f32 0.0, %v2613
      %v2615 = vpop.f32.mrf.mxu0
      %2616 = vmatprep.mubr.bf16.mxu0 0
      %2617 = vmatmul.mubr.bf16.gmra.mxu0 %v2474
      %v2618 = vpop.f32.mrf.mxu0
      %v2619 = vadd.f32 0.0, %v2618
      %v2620 = vpop.f32.mrf.mxu0
      %v2621 = vpop.f32.mrf.mxu0
      %v2622 = vadd.f32 0.0, %v2621
      %v2623 = vpop.f32.mrf.mxu0
      %2624 = vmatprep.mubr.bf16.mxu0 0
      %2625 = vmatmul.mubr.bf16.gmra.mxu0 %v2477
      %v2626 = vpop.f32.mrf.mxu0
      %v2627 = vadd.f32 0.0, %v2626
      %v2628 = vpop.f32.mrf.mxu0
      %v2629 = vpop.f32.mrf.mxu0
      %v2630 = vadd.f32 0.0, %v2629
      %v2631 = vpop.f32.mrf.mxu0
      %2632 = vmatprep.mubr.bf16.mxu0 0
      %2633 = vmatmul.mubr.bf16.gmra.mxu0 %v2480
      %v2634 = vpop.f32.mrf.mxu0
      %v2635 = vadd.f32 0.0, %v2634
      %v2636 = vpop.f32.mrf.mxu0
      %v2637 = vpop.f32.mrf.mxu0
      %v2638 = vadd.f32 0.0, %v2637
      %v2639 = vpop.f32.mrf.mxu0
      %2640 = vmatprep.mubr.bf16.mxu0 0
      %2641 = vmatmul.mubr.bf16.gmra.mxu0 %v2483
      %v2642 = vpop.f32.mrf.mxu0
      %v2643 = vadd.f32 0.0, %v2642
      %v2644 = vpop.f32.mrf.mxu0
      %v2645 = vpop.f32.mrf.mxu0
      %v2646 = vadd.f32 0.0, %v2645
      %v2647 = vpop.f32.mrf.mxu0
      %2648 = vdwg.mxu0
      %v2649 = vadd.f32 %v1971, %v2523
      %v2650 = vadd.f32 %v1972, %v2526
      %v2651 = vadd.f32 %v1973, %v2531
      %v2652 = vadd.f32 %v1974, %v2534
      %v2653 = vadd.f32 %v1975, %v2539
      %v2654 = vadd.f32 %v1976, %v2542
      %v2655 = vadd.f32 %v1977, %v2547
      %v2656 = vadd.f32 %v1978, %v2550
      %v2657 = vadd.f32 %v1979, %v2555
      %v2658 = vadd.f32 %v1980, %v2558
      %v2659 = vadd.f32 %v1981, %v2563
      %v2660 = vadd.f32 %v1982, %v2566
      %v2661 = vadd.f32 %v1983, %v2571
      %v2662 = vadd.f32 %v1984, %v2574
      %v2663 = vadd.f32 %v1985, %v2579
      %v2664 = vadd.f32 %v1986, %v2582
      %v2665 = vadd.f32 %v1987, %v2587
      %v2666 = vadd.f32 %v1988, %v2590
      %v2667 = vadd.f32 %v1989, %v2595
      %v2668 = vadd.f32 %v1990, %v2598
      %v2669 = vadd.f32 %v1991, %v2603
      %v2670 = vadd.f32 %v1992, %v2606
      %v2671 = vadd.f32 %v1993, %v2611
      %v2672 = vadd.f32 %v1994, %v2614
      %v2673 = vadd.f32 %v1995, %v2619
      %v2674 = vadd.f32 %v1996, %v2622
      %v2675 = vadd.f32 %v1997, %v2627
      %v2676 = vadd.f32 %v1998, %v2630
      %v2677 = vadd.f32 %v1999, %v2635
      %v2678 = vadd.f32 %v2000, %v2638
      %v2679 = vadd.f32 %v2001, %v2643
      %v2680 = vadd.f32 %v2002, %v2646
      %v2697 = vrot.slane %v1629, 5
      %v2698 = vrot.slane %v2697, 4
      %v2699 = vrot.slane %v1630, 5
      %v2700 = vsel %vm1218, %v2698, %v2699
      %v2701 = vrot.slane %v2699, 4
      %v2702 = vrot.slane %v1631, 5
      %v2703 = vsel %vm1218, %v2701, %v2702
      %v2704 = vrot.slane %v1632, 5
      %v2705 = vrot.slane %v2704, 4
      %v2706 = vrot.slane %v1633, 5
      %v2707 = vsel %vm1218, %v2705, %v2706
      %v2708 = vrot.slane %v2706, 4
      %v2709 = vrot.slane %v1634, 5
      %v2710 = vsel %vm1218, %v2708, %v2709
      %v2711 = vrot.slane %v1635, 5
      %v2712 = vrot.slane %v2711, 4
      %v2713 = vrot.slane %v1636, 5
      %v2714 = vsel %vm1218, %v2712, %v2713
      %v2715 = vrot.slane %v2713, 4
      %v2716 = vrot.slane %v1637, 5
      %v2717 = vsel %vm1218, %v2715, %v2716
      %v2718 = vrot.slane %v1638, 5
      %v2719 = vrot.slane %v2718, 4
      %v2720 = vrot.slane %v1639, 5
      %v2721 = vsel %vm1218, %v2719, %v2720
      %v2722 = vrot.slane %v2720, 4
      %v2723 = vrot.slane %v1640, 5
      %v2724 = vsel %vm1218, %v2722, %v2723
      %v2725 = vrot.slane %v1641, 5
      %v2726 = vrot.slane %v2725, 4
      %v2727 = vrot.slane %v1642, 5
      %v2728 = vsel %vm1218, %v2726, %v2727
      %v2729 = vrot.slane %v2727, 4
      %v2730 = vrot.slane %v1643, 5
      %v2731 = vsel %vm1218, %v2729, %v2730
      %v2732 = vrot.slane %v1644, 5
      %v2733 = vrot.slane %v2732, 4
      %v2734 = vrot.slane %v1645, 5
      %v2735 = vsel %vm1218, %v2733, %v2734
      %v2736 = vrot.slane %v2734, 4
      %v2737 = vrot.slane %v1646, 5
      %v2738 = vsel %vm1218, %v2736, %v2737
      %v2739 = vrot.slane %v1647, 5
      %v2740 = vrot.slane %v2739, 4
      %v2741 = vrot.slane %v1648, 5
      %v2742 = vsel %vm1218, %v2740, %v2741
      %v2743 = vrot.slane %v2741, 4
      %v2744 = vrot.slane %v1649, 5
      %v2745 = vsel %vm1218, %v2743, %v2744
      %v2746 = vrot.slane %v1650, 5
      %v2747 = vrot.slane %v2746, 4
      %v2748 = vrot.slane %v1651, 5
      %v2749 = vsel %vm1218, %v2747, %v2748
      %v2750 = vrot.slane %v2748, 4
      %v2751 = vrot.slane %v1652, 5
      %v2752 = vsel %vm1218, %v2750, %v2751
      %v2753 = vrot.slane %v1653, 5
      %v2754 = vrot.slane %v2753, 4
      %v2755 = vrot.slane %v1654, 5
      %v2756 = vsel %vm1218, %v2754, %v2755
      %v2757 = vrot.slane %v2755, 4
      %v2758 = vrot.slane %v1655, 5
      %v2759 = vsel %vm1218, %v2757, %v2758
      %v2760 = vrot.slane %v1656, 5
      %v2761 = vrot.slane %v2760, 4
      %v2762 = vrot.slane %v1657, 5
      %v2763 = vsel %vm1218, %v2761, %v2762
      %v2764 = vrot.slane %v2762, 4
      %v2765 = vrot.slane %v1658, 5
      %v2766 = vsel %vm1218, %v2764, %v2765
      %v2767 = vrot.slane %v1659, 5
      %v2768 = vrot.slane %v2767, 4
      %v2769 = vrot.slane %v1660, 5
      %v2770 = vsel %vm1218, %v2768, %v2769
      %v2771 = vrot.slane %v2769, 4
      %v2772 = vrot.slane %v1661, 5
      %v2773 = vsel %vm1218, %v2771, %v2772
      %v2774 = vrot.slane %v1662, 5
      %v2775 = vrot.slane %v2774, 4
      %v2776 = vrot.slane %v1663, 5
      %v2777 = vsel %vm1218, %v2775, %v2776
      %v2778 = vrot.slane %v2776, 4
      %v2779 = vrot.slane %v1664, 5
      %v2780 = vsel %vm1218, %v2778, %v2779
      %v2781 = vrot.slane %v1665, 5
      %v2782 = vrot.slane %v2781, 4
      %v2783 = vrot.slane %v1666, 5
      %v2784 = vsel %vm1218, %v2782, %v2783
      %v2785 = vrot.slane %v2783, 4
      %v2786 = vrot.slane %v1667, 5
      %v2787 = vsel %vm1218, %v2785, %v2786
      %v2788 = vrot.slane %v1668, 5
      %v2789 = vrot.slane %v2788, 4
      %v2790 = vrot.slane %v1669, 5
      %v2791 = vsel %vm1218, %v2789, %v2790
      %v2792 = vrot.slane %v2790, 4
      %v2793 = vrot.slane %v1670, 5
      %v2794 = vsel %vm1218, %v2792, %v2793
      %v2795 = vrot.slane %v1671, 5
      %v2796 = vrot.slane %v2795, 4
      %v2797 = vrot.slane %v1672, 5
      %v2798 = vsel %vm1218, %v2796, %v2797
      %v2799 = vrot.slane %v2797, 4
      %v2800 = vrot.slane %v1673, 5
      %v2801 = vsel %vm1218, %v2799, %v2800
      %v2802 = vrot.slane %v1674, 5
      %v2803 = vrot.slane %v2802, 4
      %v2804 = vrot.slane %v1675, 5
      %v2805 = vsel %vm1218, %v2803, %v2804
      %v2806 = vrot.slane %v2804, 4
      %v2807 = vrot.slane %v1676, 5
      %v2808 = vsel %vm1218, %v2806, %v2807
      %s2809 = scalar_lea.vmem %s1, 10
      %v2810 = vld [vmem:[%s2809] sm:$0x3]
      %v2811 = vunpack.c.l.b16 %v2700
      %v2812 = vunpack.c.l.b16 %v2703
      %v2813 = vunpack.c.l.b16 %v2707
      %v2814 = vunpack.c.l.b16 %v2710
      %v2815 = vunpack.c.l.b16 %v2714
      %v2816 = vunpack.c.l.b16 %v2717
      %v2817 = vunpack.c.l.b16 %v2721
      %v2818 = vunpack.c.l.b16 %v2724
      %v2819 = vunpack.c.l.b16 %v2728
      %v2820 = vunpack.c.l.b16 %v2731
      %v2821 = vunpack.c.l.b16 %v2735
      %v2822 = vunpack.c.l.b16 %v2738
      %v2823 = vunpack.c.l.b16 %v2742
      %v2824 = vunpack.c.l.b16 %v2745
      %v2825 = vunpack.c.l.b16 %v2749
      %v2826 = vunpack.c.l.b16 %v2752
      %v2827 = vunpack.c.l.b16 %v2756
      %v2828 = vunpack.c.l.b16 %v2759
      %v2829 = vunpack.c.l.b16 %v2763
      %v2830 = vunpack.c.l.b16 %v2766
      %v2831 = vunpack.c.l.b16 %v2770
      %v2832 = vunpack.c.l.b16 %v2773
      %v2833 = vunpack.c.l.b16 %v2777
      %v2834 = vunpack.c.l.b16 %v2780
      %v2835 = vunpack.c.l.b16 %v2784
      %v2836 = vunpack.c.l.b16 %v2787
      %v2837 = vunpack.c.l.b16 %v2791
      %v2838 = vunpack.c.l.b16 %v2794
      %v2839 = vunpack.c.l.b16 %v2798
      %v2840 = vunpack.c.l.b16 %v2801
      %v2841 = vunpack.c.l.b16 %v2805
      %v2842 = vunpack.c.l.b16 %v2808
      %v2843 = vpack.c.b16 %v2812, %v2811
      %v2844 = vpack.c.b16 %v2814, %v2813
      %v2845 = vpack.c.b16 %v2816, %v2815
      %v2846 = vpack.c.b16 %v2818, %v2817
      %v2847 = vpack.c.b16 %v2820, %v2819
      %v2848 = vpack.c.b16 %v2822, %v2821
      %v2849 = vpack.c.b16 %v2824, %v2823
      %v2850 = vpack.c.b16 %v2826, %v2825
      %v2851 = vpack.c.b16 %v2828, %v2827
      %v2852 = vpack.c.b16 %v2830, %v2829
      %v2853 = vpack.c.b16 %v2832, %v2831
      %v2854 = vpack.c.b16 %v2834, %v2833
      %v2855 = vpack.c.b16 %v2836, %v2835
      %v2856 = vpack.c.b16 %v2838, %v2837
      %v2857 = vpack.c.b16 %v2840, %v2839
      %v2858 = vpack.c.b16 %v2842, %v2841
      %v2860 = vsel %vm694, %v2843, 0
      %v2863 = vsel %vm694, %v2844, 0
      %v2866 = vsel %vm694, %v2845, 0
      %v2869 = vsel %vm694, %v2846, 0
      %v2872 = vsel %vm694, %v2847, 0
      %v2875 = vsel %vm694, %v2848, 0
      %v2878 = vsel %vm694, %v2849, 0
      %v2881 = vsel %vm694, %v2850, 0
      %v2884 = vsel %vm694, %v2851, 0
      %v2887 = vsel %vm694, %v2852, 0
      %v2890 = vsel %vm694, %v2853, 0
      %v2893 = vsel %vm694, %v2854, 0
      %v2896 = vsel %vm694, %v2855, 0
      %v2899 = vsel %vm694, %v2856, 0
      %v2902 = vsel %vm694, %v2857, 0
      %v2905 = vsel %vm694, %v2858, 0
      %v2908 = vsel %vm743, %v2810, 0
      %2910 = vmatprep.subr.bf16.mxu0 0
      %2911 = vmatpush1.bf16.msra.mxu0 0
      %2912 = vmatprep.subr.bf16.mxu0 0
      %2913 = vmatpush1.bf16.msra.mxu0 0
      %2914 = vmatprep.subr.bf16.mxu0 0
      %2915 = vmatpush1.bf16.msra.mxu0 0
      %2916 = vmatprep.subr.bf16.mxu0 0
      %2917 = vmatpush1.bf16.msra.mxu0 0
      %2918 = vmatprep.subr.bf16.mxu0 0
      %2919 = vmatpush1.bf16.msra.mxu0 0
      %2920 = vmatprep.subr.bf16.mxu0 0
      %2921 = vmatpush1.bf16.msra.mxu0 0
      %2922 = vmatprep.subr.bf16.mxu0 0
      %2923 = vmatpush1.bf16.msra.mxu0 0
      %2924 = vmatprep.subr.bf16.mxu0 0
      %2925 = vmatpush1.bf16.msra.mxu0 %v2908
      %2926 = vmatprep.subr.bf16.mxu0 0
      %2927 = vmatpush2.bf16.msra.mxu0 0
      %2928 = vmatprep.subr.bf16.mxu0 0
      %2929 = vmatpush2.bf16.msra.mxu0 0
      %2930 = vmatprep.subr.bf16.mxu0 0
      %2931 = vmatpush2.bf16.msra.mxu0 0
      %2932 = vmatprep.subr.bf16.mxu0 0
      %2933 = vmatpush2.bf16.msra.mxu0 0
      %2934 = vmatprep.subr.bf16.mxu0 0
      %2935 = vmatpush2.bf16.msra.mxu0 0
      %2936 = vmatprep.subr.bf16.mxu0 0
      %2937 = vmatpush2.bf16.msra.mxu0 0
      %2938 = vmatprep.subr.bf16.mxu0 0
      %2939 = vmatpush2.bf16.msra.mxu0 0
      %2940 = vmatprep.subr.bf16.mxu0 0
      %2941 = vmatpush2.bf16.msra.mxu0 0
      %2942 = vmatprep.mubr.bf16.mxu0 0
      %2943 = vmatmul.mubr.bf16.gmra.mxu0 %v2860
      %v2944 = vpop.f32.mrf.mxu0
      %v2945 = vadd.f32 0.0, %v2944
      %v2946 = vpop.f32.mrf.mxu0
      %v2947 = vpop.f32.mrf.mxu0
      %v2948 = vadd.f32 0.0, %v2947
      %v2949 = vpop.f32.mrf.mxu0
      %2950 = vmatprep.mubr.bf16.mxu0 0
      %2951 = vmatmul.mubr.bf16.gmra.mxu0 %v2863
      %v2952 = vpop.f32.mrf.mxu0
      %v2953 = vadd.f32 0.0, %v2952
      %v2954 = vpop.f32.mrf.mxu0
      %v2955 = vpop.f32.mrf.mxu0
      %v2956 = vadd.f32 0.0, %v2955
      %v2957 = vpop.f32.mrf.mxu0
      %2958 = vmatprep.mubr.bf16.mxu0 0
      %2959 = vmatmul.mubr.bf16.gmra.mxu0 %v2866
      %v2960 = vpop.f32.mrf.mxu0
      %v2961 = vadd.f32 0.0, %v2960
      %v2962 = vpop.f32.mrf.mxu0
      %v2963 = vpop.f32.mrf.mxu0
      %v2964 = vadd.f32 0.0, %v2963
      %v2965 = vpop.f32.mrf.mxu0
      %2966 = vmatprep.mubr.bf16.mxu0 0
      %2967 = vmatmul.mubr.bf16.gmra.mxu0 %v2869
      %v2968 = vpop.f32.mrf.mxu0
      %v2969 = vadd.f32 0.0, %v2968
      %v2970 = vpop.f32.mrf.mxu0
      %v2971 = vpop.f32.mrf.mxu0
      %v2972 = vadd.f32 0.0, %v2971
      %v2973 = vpop.f32.mrf.mxu0
      %2974 = vmatprep.mubr.bf16.mxu0 0
      %2975 = vmatmul.mubr.bf16.gmra.mxu0 %v2872
      %v2976 = vpop.f32.mrf.mxu0
      %v2977 = vadd.f32 0.0, %v2976
      %v2978 = vpop.f32.mrf.mxu0
      %v2979 = vpop.f32.mrf.mxu0
      %v2980 = vadd.f32 0.0, %v2979
      %v2981 = vpop.f32.mrf.mxu0
      %2982 = vmatprep.mubr.bf16.mxu0 0
      %2983 = vmatmul.mubr.bf16.gmra.mxu0 %v2875
      %v2984 = vpop.f32.mrf.mxu0
      %v2985 = vadd.f32 0.0, %v2984
      %v2986 = vpop.f32.mrf.mxu0
      %v2987 = vpop.f32.mrf.mxu0
      %v2988 = vadd.f32 0.0, %v2987
      %v2989 = vpop.f32.mrf.mxu0
      %2990 = vmatprep.mubr.bf16.mxu0 0
      %2991 = vmatmul.mubr.bf16.gmra.mxu0 %v2878
      %v2992 = vpop.f32.mrf.mxu0
      %v2993 = vadd.f32 0.0, %v2992
      %v2994 = vpop.f32.mrf.mxu0
      %v2995 = vpop.f32.mrf.mxu0
      %v2996 = vadd.f32 0.0, %v2995
      %v2997 = vpop.f32.mrf.mxu0
      %2998 = vmatprep.mubr.bf16.mxu0 0
      %2999 = vmatmul.mubr.bf16.gmra.mxu0 %v2881
      %v3000 = vpop.f32.mrf.mxu0
      %v3001 = vadd.f32 0.0, %v3000
      %v3002 = vpop.f32.mrf.mxu0
      %v3003 = vpop.f32.mrf.mxu0
      %v3004 = vadd.f32 0.0, %v3003
      %v3005 = vpop.f32.mrf.mxu0
      %3006 = vmatprep.mubr.bf16.mxu0 0
      %3007 = vmatmul.mubr.bf16.gmra.mxu0 %v2884
      %v3008 = vpop.f32.mrf.mxu0
      %v3009 = vadd.f32 0.0, %v3008
      %v3010 = vpop.f32.mrf.mxu0
      %v3011 = vpop.f32.mrf.mxu0
      %v3012 = vadd.f32 0.0, %v3011
      %v3013 = vpop.f32.mrf.mxu0
      %3014 = vmatprep.mubr.bf16.mxu0 0
      %3015 = vmatmul.mubr.bf16.gmra.mxu0 %v2887
      %v3016 = vpop.f32.mrf.mxu0
      %v3017 = vadd.f32 0.0, %v3016
      %v3018 = vpop.f32.mrf.mxu0
      %v3019 = vpop.f32.mrf.mxu0
      %v3020 = vadd.f32 0.0, %v3019
      %v3021 = vpop.f32.mrf.mxu0
      %3022 = vmatprep.mubr.bf16.mxu0 0
      %3023 = vmatmul.mubr.bf16.gmra.mxu0 %v2890
      %v3024 = vpop.f32.mrf.mxu0
      %v3025 = vadd.f32 0.0, %v3024
      %v3026 = vpop.f32.mrf.mxu0
      %v3027 = vpop.f32.mrf.mxu0
      %v3028 = vadd.f32 0.0, %v3027
      %v3029 = vpop.f32.mrf.mxu0
      %3030 = vmatprep.mubr.bf16.mxu0 0
      %3031 = vmatmul.mubr.bf16.gmra.mxu0 %v2893
      %v3032 = vpop.f32.mrf.mxu0
      %v3033 = vadd.f32 0.0, %v3032
      %v3034 = vpop.f32.mrf.mxu0
      %v3035 = vpop.f32.mrf.mxu0
      %v3036 = vadd.f32 0.0, %v3035
      %v3037 = vpop.f32.mrf.mxu0
      %3038 = vmatprep.mubr.bf16.mxu0 0
      %3039 = vmatmul.mubr.bf16.gmra.mxu0 %v2896
      %v3040 = vpop.f32.mrf.mxu0
      %v3041 = vadd.f32 0.0, %v3040
      %v3042 = vpop.f32.mrf.mxu0
      %v3043 = vpop.f32.mrf.mxu0
      %v3044 = vadd.f32 0.0, %v3043
      %v3045 = vpop.f32.mrf.mxu0
      %3046 = vmatprep.mubr.bf16.mxu0 0
      %3047 = vmatmul.mubr.bf16.gmra.mxu0 %v2899
      %v3048 = vpop.f32.mrf.mxu0
      %v3049 = vadd.f32 0.0, %v3048
      %v3050 = vpop.f32.mrf.mxu0
      %v3051 = vpop.f32.mrf.mxu0
      %v3052 = vadd.f32 0.0, %v3051
      %v3053 = vpop.f32.mrf.mxu0
      %3054 = vmatprep.mubr.bf16.mxu0 0
      %3055 = vmatmul.mubr.bf16.gmra.mxu0 %v2902
      %v3056 = vpop.f32.mrf.mxu0
      %v3057 = vadd.f32 0.0, %v3056
      %v3058 = vpop.f32.mrf.mxu0
      %v3059 = vpop.f32.mrf.mxu0
      %v3060 = vadd.f32 0.0, %v3059
      %v3061 = vpop.f32.mrf.mxu0
      %3062 = vmatprep.mubr.bf16.mxu0 0
      %3063 = vmatmul.mubr.bf16.gmra.mxu0 %v2905
      %v3064 = vpop.f32.mrf.mxu0
      %v3065 = vadd.f32 0.0, %v3064
      %v3066 = vpop.f32.mrf.mxu0
      %v3067 = vpop.f32.mrf.mxu0
      %v3068 = vadd.f32 0.0, %v3067
      %v3069 = vpop.f32.mrf.mxu0
      %3070 = vdwg.mxu0
      %v3071 = vadd.f32 %v2649, %v2945
      %v3072 = vadd.f32 %v2650, %v2948
      %v3073 = vadd.f32 %v2651, %v2953
      %v3074 = vadd.f32 %v2652, %v2956
      %v3075 = vadd.f32 %v2653, %v2961
      %v3076 = vadd.f32 %v2654, %v2964
      %v3077 = vadd.f32 %v2655, %v2969
      %v3078 = vadd.f32 %v2656, %v2972
      %v3079 = vadd.f32 %v2657, %v2977
      %v3080 = vadd.f32 %v2658, %v2980
      %v3081 = vadd.f32 %v2659, %v2985
      %v3082 = vadd.f32 %v2660, %v2988
      %v3083 = vadd.f32 %v2661, %v2993
      %v3084 = vadd.f32 %v2662, %v2996
      %v3085 = vadd.f32 %v2663, %v3001
      %v3086 = vadd.f32 %v2664, %v3004
      %v3087 = vadd.f32 %v2665, %v3009
      %v3088 = vadd.f32 %v2666, %v3012
      %v3089 = vadd.f32 %v2667, %v3017
      %v3090 = vadd.f32 %v2668, %v3020
      %v3091 = vadd.f32 %v2669, %v3025
      %v3092 = vadd.f32 %v2670, %v3028
      %v3093 = vadd.f32 %v2671, %v3033
      %v3094 = vadd.f32 %v2672, %v3036
      %v3095 = vadd.f32 %v2673, %v3041
      %v3096 = vadd.f32 %v2674, %v3044
      %v3097 = vadd.f32 %v2675, %v3049
      %v3098 = vadd.f32 %v2676, %v3052
      %v3099 = vadd.f32 %v2677, %v3057
      %v3100 = vadd.f32 %v2678, %v3060
      %v3101 = vadd.f32 %v2679, %v3065
      %v3102 = vadd.f32 %v2680, %v3068
      %s3103 = sadd.s32 %s204, 2
      %s3104 = smul.u32 %s3103, 3
      %s3105 = smul.addr %s3104, 4
      %s3106 = scalar_lea.vmem %s191, %s3105
      %v3107 = vld [vmem:[%s3106] sm:$0xf]
      %v3108 = vld [vmem:[%s3106 + $0x4] sm:$0xf]
      %v3109 = vld [vmem:[%s3106 + $0x8] sm:$0x1]
      %v3110 = vld [vmem:[%s3106 + $0xc] sm:$0xf]
      %v3111 = vld [vmem:[%s3106 + $0x10] sm:$0xf]
      %v3112 = vld [vmem:[%s3106 + $0x14] sm:$0x1]
      %v3113 = vld [vmem:[%s3106 + $0x18] sm:$0xf]
      %v3114 = vld [vmem:[%s3106 + $0x1c] sm:$0xf]
      %v3115 = vld [vmem:[%s3106 + $0x20] sm:$0x1]
      %v3116 = vld [vmem:[%s3106 + $0x24] sm:$0xf]
      %v3117 = vld [vmem:[%s3106 + $0x28] sm:$0xf]
      %v3118 = vld [vmem:[%s3106 + $0x2c] sm:$0x1]
      %v3119 = vld [vmem:[%s3106 + $0x30] sm:$0xf]
      %v3120 = vld [vmem:[%s3106 + $0x34] sm:$0xf]
      %v3121 = vld [vmem:[%s3106 + $0x38] sm:$0x1]
      %v3122 = vld [vmem:[%s3106 + $0x3c] sm:$0xf]
      %v3123 = vld [vmem:[%s3106 + $0x40] sm:$0xf]
      %v3124 = vld [vmem:[%s3106 + $0x44] sm:$0x1]
      %v3125 = vld [vmem:[%s3106 + $0x48] sm:$0xf]
      %v3126 = vld [vmem:[%s3106 + $0x4c] sm:$0xf]
      %v3127 = vld [vmem:[%s3106 + $0x50] sm:$0x1]
      %v3128 = vld [vmem:[%s3106 + $0x54] sm:$0xf]
      %v3129 = vld [vmem:[%s3106 + $0x58] sm:$0xf]
      %v3130 = vld [vmem:[%s3106 + $0x5c] sm:$0x1]
      %v3131 = vld [vmem:[%s3106 + $0x60] sm:$0xf]
      %v3132 = vld [vmem:[%s3106 + $0x64] sm:$0xf]
      %v3133 = vld [vmem:[%s3106 + $0x68] sm:$0x1]
      %v3134 = vld [vmem:[%s3106 + $0x6c] sm:$0xf]
      %v3135 = vld [vmem:[%s3106 + $0x70] sm:$0xf]
      %v3136 = vld [vmem:[%s3106 + $0x74] sm:$0x1]
      %v3137 = vld [vmem:[%s3106 + $0x78] sm:$0xf]
      %v3138 = vld [vmem:[%s3106 + $0x7c] sm:$0xf]
      %v3139 = vld [vmem:[%s3106 + $0x80] sm:$0x1]
      %v3140 = vld [vmem:[%s3106 + $0x84] sm:$0xf]
      %v3141 = vld [vmem:[%s3106 + $0x88] sm:$0xf]
      %v3142 = vld [vmem:[%s3106 + $0x8c] sm:$0x1]
      %v3143 = vld [vmem:[%s3106 + $0x90] sm:$0xf]
      %v3144 = vld [vmem:[%s3106 + $0x94] sm:$0xf]
      %v3145 = vld [vmem:[%s3106 + $0x98] sm:$0x1]
      %v3146 = vld [vmem:[%s3106 + $0x9c] sm:$0xf]
      %v3147 = vld [vmem:[%s3106 + $0xa0] sm:$0xf]
      %v3148 = vld [vmem:[%s3106 + $0xa4] sm:$0x1]
      %v3149 = vld [vmem:[%s3106 + $0xa8] sm:$0xf]
      %v3150 = vld [vmem:[%s3106 + $0xac] sm:$0xf]
      %v3151 = vld [vmem:[%s3106 + $0xb0] sm:$0x1]
      %v3152 = vld [vmem:[%s3106 + $0xb4] sm:$0xf]
      %v3153 = vld [vmem:[%s3106 + $0xb8] sm:$0xf]
      %v3154 = vld [vmem:[%s3106 + $0xbc] sm:$0x1]
      %s3155 = scalar_lea.vmem %s1, 12
      %v3156 = vld [vmem:[%s3155] sm:$0x3]
      %v3189 = vunpack.c.l.b16 %v3107
      %v3190 = vunpack.c.l.b16 %v3108
      %v3191 = vunpack.c.l.b16 %v3110
      %v3192 = vunpack.c.l.b16 %v3111
      %v3193 = vunpack.c.l.b16 %v3113
      %v3194 = vunpack.c.l.b16 %v3114
      %v3195 = vunpack.c.l.b16 %v3116
      %v3196 = vunpack.c.l.b16 %v3117
      %v3197 = vunpack.c.l.b16 %v3119
      %v3198 = vunpack.c.l.b16 %v3120
      %v3199 = vunpack.c.l.b16 %v3122
      %v3200 = vunpack.c.l.b16 %v3123
      %v3201 = vunpack.c.l.b16 %v3125
      %v3202 = vunpack.c.l.b16 %v3126
      %v3203 = vunpack.c.l.b16 %v3128
      %v3204 = vunpack.c.l.b16 %v3129
      %v3205 = vunpack.c.l.b16 %v3131
      %v3206 = vunpack.c.l.b16 %v3132
      %v3207 = vunpack.c.l.b16 %v3134
      %v3208 = vunpack.c.l.b16 %v3135
      %v3209 = vunpack.c.l.b16 %v3137
      %v3210 = vunpack.c.l.b16 %v3138
      %v3211 = vunpack.c.l.b16 %v3140
      %v3212 = vunpack.c.l.b16 %v3141
      %v3213 = vunpack.c.l.b16 %v3143
      %v3214 = vunpack.c.l.b16 %v3144
      %v3215 = vunpack.c.l.b16 %v3146
      %v3216 = vunpack.c.l.b16 %v3147
      %v3217 = vunpack.c.l.b16 %v3149
      %v3218 = vunpack.c.l.b16 %v3150
      %v3219 = vunpack.c.l.b16 %v3152
      %v3220 = vunpack.c.l.b16 %v3153
      %v3221 = vpack.c.b16 %v3190, %v3189
      %v3222 = vpack.c.b16 %v3192, %v3191
      %v3223 = vpack.c.b16 %v3194, %v3193
      %v3224 = vpack.c.b16 %v3196, %v3195
      %v3225 = vpack.c.b16 %v3198, %v3197
      %v3226 = vpack.c.b16 %v3200, %v3199
      %v3227 = vpack.c.b16 %v3202, %v3201
      %v3228 = vpack.c.b16 %v3204, %v3203
      %v3229 = vpack.c.b16 %v3206, %v3205
      %v3230 = vpack.c.b16 %v3208, %v3207
      %v3231 = vpack.c.b16 %v3210, %v3209
      %v3232 = vpack.c.b16 %v3212, %v3211
      %v3233 = vpack.c.b16 %v3214, %v3213
      %v3234 = vpack.c.b16 %v3216, %v3215
      %v3235 = vpack.c.b16 %v3218, %v3217
      %v3236 = vpack.c.b16 %v3220, %v3219
      %v3238 = vsel %vm694, %v3221, 0
      %v3241 = vsel %vm694, %v3222, 0
      %v3244 = vsel %vm694, %v3223, 0
      %v3247 = vsel %vm694, %v3224, 0
      %v3250 = vsel %vm694, %v3225, 0
      %v3253 = vsel %vm694, %v3226, 0
      %v3256 = vsel %vm694, %v3227, 0
      %v3259 = vsel %vm694, %v3228, 0
      %v3262 = vsel %vm694, %v3229, 0
      %v3265 = vsel %vm694, %v3230, 0
      %v3268 = vsel %vm694, %v3231, 0
      %v3271 = vsel %vm694, %v3232, 0
      %v3274 = vsel %vm694, %v3233, 0
      %v3277 = vsel %vm694, %v3234, 0
      %v3280 = vsel %vm694, %v3235, 0
      %v3283 = vsel %vm694, %v3236, 0
      %v3286 = vsel %vm743, %v3156, 0
      %3288 = vmatprep.subr.bf16.mxu0 0
      %3289 = vmatpush1.bf16.msra.mxu0 0
      %3290 = vmatprep.subr.bf16.mxu0 0
      %3291 = vmatpush1.bf16.msra.mxu0 0
      %3292 = vmatprep.subr.bf16.mxu0 0
      %3293 = vmatpush1.bf16.msra.mxu0 0
      %3294 = vmatprep.subr.bf16.mxu0 0
      %3295 = vmatpush1.bf16.msra.mxu0 0
      %3296 = vmatprep.subr.bf16.mxu0 0
      %3297 = vmatpush1.bf16.msra.mxu0 0
      %3298 = vmatprep.subr.bf16.mxu0 0
      %3299 = vmatpush1.bf16.msra.mxu0 0
      %3300 = vmatprep.subr.bf16.mxu0 0
      %3301 = vmatpush1.bf16.msra.mxu0 0
      %3302 = vmatprep.subr.bf16.mxu0 0
      %3303 = vmatpush1.bf16.msra.mxu0 %v3286
      %3304 = vmatprep.subr.bf16.mxu0 0
      %3305 = vmatpush2.bf16.msra.mxu0 0
      %3306 = vmatprep.subr.bf16.mxu0 0
      %3307 = vmatpush2.bf16.msra.mxu0 0
      %3308 = vmatprep.subr.bf16.mxu0 0
      %3309 = vmatpush2.bf16.msra.mxu0 0
      %3310 = vmatprep.subr.bf16.mxu0 0
      %3311 = vmatpush2.bf16.msra.mxu0 0
      %3312 = vmatprep.subr.bf16.mxu0 0
      %3313 = vmatpush2.bf16.msra.mxu0 0
      %3314 = vmatprep.subr.bf16.mxu0 0
      %3315 = vmatpush2.bf16.msra.mxu0 0
      %3316 = vmatprep.subr.bf16.mxu0 0
      %3317 = vmatpush2.bf16.msra.mxu0 0
      %3318 = vmatprep.subr.bf16.mxu0 0
      %3319 = vmatpush2.bf16.msra.mxu0 0
      %3320 = vmatprep.mubr.bf16.mxu0 0
      %3321 = vmatmul.mubr.bf16.gmra.mxu0 %v3238
      %v3322 = vpop.f32.mrf.mxu0
      %v3323 = vadd.f32 0.0, %v3322
      %v3324 = vpop.f32.mrf.mxu0
      %v3325 = vpop.f32.mrf.mxu0
      %v3326 = vadd.f32 0.0, %v3325
      %v3327 = vpop.f32.mrf.mxu0
      %3328 = vmatprep.mubr.bf16.mxu0 0
      %3329 = vmatmul.mubr.bf16.gmra.mxu0 %v3241
      %v3330 = vpop.f32.mrf.mxu0
      %v3331 = vadd.f32 0.0, %v3330
      %v3332 = vpop.f32.mrf.mxu0
      %v3333 = vpop.f32.mrf.mxu0
      %v3334 = vadd.f32 0.0, %v3333
      %v3335 = vpop.f32.mrf.mxu0
      %3336 = vmatprep.mubr.bf16.mxu0 0
      %3337 = vmatmul.mubr.bf16.gmra.mxu0 %v3244
      %v3338 = vpop.f32.mrf.mxu0
      %v3339 = vadd.f32 0.0, %v3338
      %v3340 = vpop.f32.mrf.mxu0
      %v3341 = vpop.f32.mrf.mxu0
      %v3342 = vadd.f32 0.0, %v3341
      %v3343 = vpop.f32.mrf.mxu0
      %3344 = vmatprep.mubr.bf16.mxu0 0
      %3345 = vmatmul.mubr.bf16.gmra.mxu0 %v3247
      %v3346 = vpop.f32.mrf.mxu0
      %v3347 = vadd.f32 0.0, %v3346
      %v3348 = vpop.f32.mrf.mxu0
      %v3349 = vpop.f32.mrf.mxu0
      %v3350 = vadd.f32 0.0, %v3349
      %v3351 = vpop.f32.mrf.mxu0
      %3352 = vmatprep.mubr.bf16.mxu0 0
      %3353 = vmatmul.mubr.bf16.gmra.mxu0 %v3250
      %v3354 = vpop.f32.mrf.mxu0
      %v3355 = vadd.f32 0.0, %v3354
      %v3356 = vpop.f32.mrf.mxu0
      %v3357 = vpop.f32.mrf.mxu0
      %v3358 = vadd.f32 0.0, %v3357
      %v3359 = vpop.f32.mrf.mxu0
      %3360 = vmatprep.mubr.bf16.mxu0 0
      %3361 = vmatmul.mubr.bf16.gmra.mxu0 %v3253
      %v3362 = vpop.f32.mrf.mxu0
      %v3363 = vadd.f32 0.0, %v3362
      %v3364 = vpop.f32.mrf.mxu0
      %v3365 = vpop.f32.mrf.mxu0
      %v3366 = vadd.f32 0.0, %v3365
      %v3367 = vpop.f32.mrf.mxu0
      %3368 = vmatprep.mubr.bf16.mxu0 0
      %3369 = vmatmul.mubr.bf16.gmra.mxu0 %v3256
      %v3370 = vpop.f32.mrf.mxu0
      %v3371 = vadd.f32 0.0, %v3370
      %v3372 = vpop.f32.mrf.mxu0
      %v3373 = vpop.f32.mrf.mxu0
      %v3374 = vadd.f32 0.0, %v3373
      %v3375 = vpop.f32.mrf.mxu0
      %3376 = vmatprep.mubr.bf16.mxu0 0
      %3377 = vmatmul.mubr.bf16.gmra.mxu0 %v3259
      %v3378 = vpop.f32.mrf.mxu0
      %v3379 = vadd.f32 0.0, %v3378
      %v3380 = vpop.f32.mrf.mxu0
      %v3381 = vpop.f32.mrf.mxu0
      %v3382 = vadd.f32 0.0, %v3381
      %v3383 = vpop.f32.mrf.mxu0
      %3384 = vmatprep.mubr.bf16.mxu0 0
      %3385 = vmatmul.mubr.bf16.gmra.mxu0 %v3262
      %v3386 = vpop.f32.mrf.mxu0
      %v3387 = vadd.f32 0.0, %v3386
      %v3388 = vpop.f32.mrf.mxu0
      %v3389 = vpop.f32.mrf.mxu0
      %v3390 = vadd.f32 0.0, %v3389
      %v3391 = vpop.f32.mrf.mxu0
      %3392 = vmatprep.mubr.bf16.mxu0 0
      %3393 = vmatmul.mubr.bf16.gmra.mxu0 %v3265
      %v3394 = vpop.f32.mrf.mxu0
      %v3395 = vadd.f32 0.0, %v3394
      %v3396 = vpop.f32.mrf.mxu0
      %v3397 = vpop.f32.mrf.mxu0
      %v3398 = vadd.f32 0.0, %v3397
      %v3399 = vpop.f32.mrf.mxu0
      %3400 = vmatprep.mubr.bf16.mxu0 0
      %3401 = vmatmul.mubr.bf16.gmra.mxu0 %v3268
      %v3402 = vpop.f32.mrf.mxu0
      %v3403 = vadd.f32 0.0, %v3402
      %v3404 = vpop.f32.mrf.mxu0
      %v3405 = vpop.f32.mrf.mxu0
      %v3406 = vadd.f32 0.0, %v3405
      %v3407 = vpop.f32.mrf.mxu0
      %3408 = vmatprep.mubr.bf16.mxu0 0
      %3409 = vmatmul.mubr.bf16.gmra.mxu0 %v3271
      %v3410 = vpop.f32.mrf.mxu0
      %v3411 = vadd.f32 0.0, %v3410
      %v3412 = vpop.f32.mrf.mxu0
      %v3413 = vpop.f32.mrf.mxu0
      %v3414 = vadd.f32 0.0, %v3413
      %v3415 = vpop.f32.mrf.mxu0
      %3416 = vmatprep.mubr.bf16.mxu0 0
      %3417 = vmatmul.mubr.bf16.gmra.mxu0 %v3274
      %v3418 = vpop.f32.mrf.mxu0
      %v3419 = vadd.f32 0.0, %v3418
      %v3420 = vpop.f32.mrf.mxu0
      %v3421 = vpop.f32.mrf.mxu0
      %v3422 = vadd.f32 0.0, %v3421
      %v3423 = vpop.f32.mrf.mxu0
      %3424 = vmatprep.mubr.bf16.mxu0 0
      %3425 = vmatmul.mubr.bf16.gmra.mxu0 %v3277
      %v3426 = vpop.f32.mrf.mxu0
      %v3427 = vadd.f32 0.0, %v3426
      %v3428 = vpop.f32.mrf.mxu0
      %v3429 = vpop.f32.mrf.mxu0
      %v3430 = vadd.f32 0.0, %v3429
      %v3431 = vpop.f32.mrf.mxu0
      %3432 = vmatprep.mubr.bf16.mxu0 0
      %3433 = vmatmul.mubr.bf16.gmra.mxu0 %v3280
      %v3434 = vpop.f32.mrf.mxu0
      %v3435 = vadd.f32 0.0, %v3434
      %v3436 = vpop.f32.mrf.mxu0
      %v3437 = vpop.f32.mrf.mxu0
      %v3438 = vadd.f32 0.0, %v3437
      %v3439 = vpop.f32.mrf.mxu0
      %3440 = vmatprep.mubr.bf16.mxu0 0
      %3441 = vmatmul.mubr.bf16.gmra.mxu0 %v3283
      %v3442 = vpop.f32.mrf.mxu0
      %v3443 = vadd.f32 0.0, %v3442
      %v3444 = vpop.f32.mrf.mxu0
      %v3445 = vpop.f32.mrf.mxu0
      %v3446 = vadd.f32 0.0, %v3445
      %v3447 = vpop.f32.mrf.mxu0
      %3448 = vdwg.mxu0
      %v3449 = vadd.f32 %v3071, %v3323
      %v3450 = vadd.f32 %v3072, %v3326
      %v3451 = vadd.f32 %v3073, %v3331
      %v3452 = vadd.f32 %v3074, %v3334
      %v3453 = vadd.f32 %v3075, %v3339
      %v3454 = vadd.f32 %v3076, %v3342
      %v3455 = vadd.f32 %v3077, %v3347
      %v3456 = vadd.f32 %v3078, %v3350
      %v3457 = vadd.f32 %v3079, %v3355
      %v3458 = vadd.f32 %v3080, %v3358
      %v3459 = vadd.f32 %v3081, %v3363
      %v3460 = vadd.f32 %v3082, %v3366
      %v3461 = vadd.f32 %v3083, %v3371
      %v3462 = vadd.f32 %v3084, %v3374
      %v3463 = vadd.f32 %v3085, %v3379
      %v3464 = vadd.f32 %v3086, %v3382
      %v3465 = vadd.f32 %v3087, %v3387
      %v3466 = vadd.f32 %v3088, %v3390
      %v3467 = vadd.f32 %v3089, %v3395
      %v3468 = vadd.f32 %v3090, %v3398
      %v3469 = vadd.f32 %v3091, %v3403
      %v3470 = vadd.f32 %v3092, %v3406
      %v3471 = vadd.f32 %v3093, %v3411
      %v3472 = vadd.f32 %v3094, %v3414
      %v3473 = vadd.f32 %v3095, %v3419
      %v3474 = vadd.f32 %v3096, %v3422
      %v3475 = vadd.f32 %v3097, %v3427
      %v3476 = vadd.f32 %v3098, %v3430
      %v3477 = vadd.f32 %v3099, %v3435
      %v3478 = vadd.f32 %v3100, %v3438
      %v3479 = vadd.f32 %v3101, %v3443
      %v3480 = vadd.f32 %v3102, %v3446
      %v3482 = vshrl.u32 %v3107, 16
      %v3484 = vrot.slane %v3482, 4
      %v3485 = vshll.u32 %v3107, 16
      %v3487 = vrot.slane %v3485, 5
      %v3488 = vor.u32 %v3484, %v3487
      %v3489 = vrot.slane %v3488, 4
      %v3491 = vshll.u32 %v3108, 16
      %v3493 = vrot.slane %v3491, 5
      %v3494 = vsel %vm259, %v3489, %v3493
      %v3495 = vshrl.u32 %v3108, 16
      %v3497 = vrot.slane %v3495, 4
      %v3498 = vor.u32 %v3497, %v3493
      %v3499 = vrot.slane %v3498, 4
      %v3501 = vshll.u32 %v3109, 16
      %v3503 = vrot.slane %v3501, 5
      %v3504 = vsel %vm259, %v3499, %v3503
      %v3506 = vshrl.u32 %v3110, 16
      %v3508 = vrot.slane %v3506, 4
      %v3509 = vshll.u32 %v3110, 16
      %v3511 = vrot.slane %v3509, 5
      %v3512 = vor.u32 %v3508, %v3511
      %v3513 = vrot.slane %v3512, 4
      %v3515 = vshll.u32 %v3111, 16
      %v3517 = vrot.slane %v3515, 5
      %v3518 = vsel %vm259, %v3513, %v3517
      %v3519 = vshrl.u32 %v3111, 16
      %v3521 = vrot.slane %v3519, 4
      %v3522 = vor.u32 %v3521, %v3517
      %v3523 = vrot.slane %v3522, 4
      %v3525 = vshll.u32 %v3112, 16
      %v3527 = vrot.slane %v3525, 5
      %v3528 = vsel %vm259, %v3523, %v3527
      %v3530 = vshrl.u32 %v3113, 16
      %v3532 = vrot.slane %v3530, 4
      %v3533 = vshll.u32 %v3113, 16
      %v3535 = vrot.slane %v3533, 5
      %v3536 = vor.u32 %v3532, %v3535
      %v3537 = vrot.slane %v3536, 4
      %v3539 = vshll.u32 %v3114, 16
      %v3541 = vrot.slane %v3539, 5
      %v3542 = vsel %vm259, %v3537, %v3541
      %v3543 = vshrl.u32 %v3114, 16
      %v3545 = vrot.slane %v3543, 4
      %v3546 = vor.u32 %v3545, %v3541
      %v3547 = vrot.slane %v3546, 4
      %v3549 = vshll.u32 %v3115, 16
      %v3551 = vrot.slane %v3549, 5
      %v3552 = vsel %vm259, %v3547, %v3551
      %v3554 = vshrl.u32 %v3116, 16
      %v3556 = vrot.slane %v3554, 4
      %v3557 = vshll.u32 %v3116, 16
      %v3559 = vrot.slane %v3557, 5
      %v3560 = vor.u32 %v3556, %v3559
      %v3561 = vrot.slane %v3560, 4
      %v3563 = vshll.u32 %v3117, 16
      %v3565 = vrot.slane %v3563, 5
      %v3566 = vsel %vm259, %v3561, %v3565
      %v3567 = vshrl.u32 %v3117, 16
      %v3569 = vrot.slane %v3567, 4
      %v3570 = vor.u32 %v3569, %v3565
      %v3571 = vrot.slane %v3570, 4
      %v3573 = vshll.u32 %v3118, 16
      %v3575 = vrot.slane %v3573, 5
      %v3576 = vsel %vm259, %v3571, %v3575
      %v3578 = vshrl.u32 %v3119, 16
      %v3580 = vrot.slane %v3578, 4
      %v3581 = vshll.u32 %v3119, 16
      %v3583 = vrot.slane %v3581, 5
      %v3584 = vor.u32 %v3580, %v3583
      %v3585 = vrot.slane %v3584, 4
      %v3587 = vshll.u32 %v3120, 16
      %v3589 = vrot.slane %v3587, 5
      %v3590 = vsel %vm259, %v3585, %v3589
      %v3591 = vshrl.u32 %v3120, 16
      %v3593 = vrot.slane %v3591, 4
      %v3594 = vor.u32 %v3593, %v3589
      %v3595 = vrot.slane %v3594, 4
      %v3597 = vshll.u32 %v3121, 16
      %v3599 = vrot.slane %v3597, 5
      %v3600 = vsel %vm259, %v3595, %v3599
      %v3602 = vshrl.u32 %v3122, 16
      %v3604 = vrot.slane %v3602, 4
      %v3605 = vshll.u32 %v3122, 16
      %v3607 = vrot.slane %v3605, 5
      %v3608 = vor.u32 %v3604, %v3607
      %v3609 = vrot.slane %v3608, 4
      %v3611 = vshll.u32 %v3123, 16
      %v3613 = vrot.slane %v3611, 5
      %v3614 = vsel %vm259, %v3609, %v3613
      %v3615 = vshrl.u32 %v3123, 16
      %v3617 = vrot.slane %v3615, 4
      %v3618 = vor.u32 %v3617, %v3613
      %v3619 = vrot.slane %v3618, 4
      %v3621 = vshll.u32 %v3124, 16
      %v3623 = vrot.slane %v3621, 5
      %v3624 = vsel %vm259, %v3619, %v3623
      %v3626 = vshrl.u32 %v3125, 16
      %v3628 = vrot.slane %v3626, 4
      %v3629 = vshll.u32 %v3125, 16
      %v3631 = vrot.slane %v3629, 5
      %v3632 = vor.u32 %v3628, %v3631
      %v3633 = vrot.slane %v3632, 4
      %v3635 = vshll.u32 %v3126, 16
      %v3637 = vrot.slane %v3635, 5
      %v3638 = vsel %vm259, %v3633, %v3637
      %v3639 = vshrl.u32 %v3126, 16
      %v3641 = vrot.slane %v3639, 4
      %v3642 = vor.u32 %v3641, %v3637
      %v3643 = vrot.slane %v3642, 4
      %v3645 = vshll.u32 %v3127, 16
      %v3647 = vrot.slane %v3645, 5
      %v3648 = vsel %vm259, %v3643, %v3647
      %v3650 = vshrl.u32 %v3128, 16
      %v3652 = vrot.slane %v3650, 4
      %v3653 = vshll.u32 %v3128, 16
      %v3655 = vrot.slane %v3653, 5
      %v3656 = vor.u32 %v3652, %v3655
      %v3657 = vrot.slane %v3656, 4
      %v3659 = vshll.u32 %v3129, 16
      %v3661 = vrot.slane %v3659, 5
      %v3662 = vsel %vm259, %v3657, %v3661
      %v3663 = vshrl.u32 %v3129, 16
      %v3665 = vrot.slane %v3663, 4
      %v3666 = vor.u32 %v3665, %v3661
      %v3667 = vrot.slane %v3666, 4
      %v3669 = vshll.u32 %v3130, 16
      %v3671 = vrot.slane %v3669, 5
      %v3672 = vsel %vm259, %v3667, %v3671
      %v3674 = vshrl.u32 %v3131, 16
      %v3676 = vrot.slane %v3674, 4
      %v3677 = vshll.u32 %v3131, 16
      %v3679 = vrot.slane %v3677, 5
      %v3680 = vor.u32 %v3676, %v3679
      %v3681 = vrot.slane %v3680, 4
      %v3683 = vshll.u32 %v3132, 16
      %v3685 = vrot.slane %v3683, 5
      %v3686 = vsel %vm259, %v3681, %v3685
      %v3687 = vshrl.u32 %v3132, 16
      %v3689 = vrot.slane %v3687, 4
      %v3690 = vor.u32 %v3689, %v3685
      %v3691 = vrot.slane %v3690, 4
      %v3693 = vshll.u32 %v3133, 16
      %v3695 = vrot.slane %v3693, 5
      %v3696 = vsel %vm259, %v3691, %v3695
      %v3698 = vshrl.u32 %v3134, 16
      %v3700 = vrot.slane %v3698, 4
      %v3701 = vshll.u32 %v3134, 16
      %v3703 = vrot.slane %v3701, 5
      %v3704 = vor.u32 %v3700, %v3703
      %v3705 = vrot.slane %v3704, 4
      %v3707 = vshll.u32 %v3135, 16
      %v3709 = vrot.slane %v3707, 5
      %v3710 = vsel %vm259, %v3705, %v3709
      %v3711 = vshrl.u32 %v3135, 16
      %v3713 = vrot.slane %v3711, 4
      %v3714 = vor.u32 %v3713, %v3709
      %v3715 = vrot.slane %v3714, 4
      %v3717 = vshll.u32 %v3136, 16
      %v3719 = vrot.slane %v3717, 5
      %v3720 = vsel %vm259, %v3715, %v3719
      %v3722 = vshrl.u32 %v3137, 16
      %v3724 = vrot.slane %v3722, 4
      %v3725 = vshll.u32 %v3137, 16
      %v3727 = vrot.slane %v3725, 5
      %v3728 = vor.u32 %v3724, %v3727
      %v3729 = vrot.slane %v3728, 4
      %v3731 = vshll.u32 %v3138, 16
      %v3733 = vrot.slane %v3731, 5
      %v3734 = vsel %vm259, %v3729, %v3733
      %v3735 = vshrl.u32 %v3138, 16
      %v3737 = vrot.slane %v3735, 4
      %v3738 = vor.u32 %v3737, %v3733
      %v3739 = vrot.slane %v3738, 4
      %v3741 = vshll.u32 %v3139, 16
      %v3743 = vrot.slane %v3741, 5
      %v3744 = vsel %vm259, %v3739, %v3743
      %v3746 = vshrl.u32 %v3140, 16
      %v3748 = vrot.slane %v3746, 4
      %v3749 = vshll.u32 %v3140, 16
      %v3751 = vrot.slane %v3749, 5
      %v3752 = vor.u32 %v3748, %v3751
      %v3753 = vrot.slane %v3752, 4
      %v3755 = vshll.u32 %v3141, 16
      %v3757 = vrot.slane %v3755, 5
      %v3758 = vsel %vm259, %v3753, %v3757
      %v3759 = vshrl.u32 %v3141, 16
      %v3761 = vrot.slane %v3759, 4
      %v3762 = vor.u32 %v3761, %v3757
      %v3763 = vrot.slane %v3762, 4
      %v3765 = vshll.u32 %v3142, 16
      %v3767 = vrot.slane %v3765, 5
      %v3768 = vsel %vm259, %v3763, %v3767
      %v3770 = vshrl.u32 %v3143, 16
      %v3772 = vrot.slane %v3770, 4
      %v3773 = vshll.u32 %v3143, 16
      %v3775 = vrot.slane %v3773, 5
      %v3776 = vor.u32 %v3772, %v3775
      %v3777 = vrot.slane %v3776, 4
      %v3779 = vshll.u32 %v3144, 16
      %v3781 = vrot.slane %v3779, 5
      %v3782 = vsel %vm259, %v3777, %v3781
      %v3783 = vshrl.u32 %v3144, 16
      %v3785 = vrot.slane %v3783, 4
      %v3786 = vor.u32 %v3785, %v3781
      %v3787 = vrot.slane %v3786, 4
      %v3789 = vshll.u32 %v3145, 16
      %v3791 = vrot.slane %v3789, 5
      %v3792 = vsel %vm259, %v3787, %v3791
      %v3794 = vshrl.u32 %v3146, 16
      %v3796 = vrot.slane %v3794, 4
      %v3797 = vshll.u32 %v3146, 16
      %v3799 = vrot.slane %v3797, 5
      %v3800 = vor.u32 %v3796, %v3799
      %v3801 = vrot.slane %v3800, 4
      %v3803 = vshll.u32 %v3147, 16
      %v3805 = vrot.slane %v3803, 5
      %v3806 = vsel %vm259, %v3801, %v3805
      %v3807 = vshrl.u32 %v3147, 16
      %v3809 = vrot.slane %v3807, 4
      %v3810 = vor.u32 %v3809, %v3805
      %v3811 = vrot.slane %v3810, 4
      %v3813 = vshll.u32 %v3148, 16
      %v3815 = vrot.slane %v3813, 5
      %v3816 = vsel %vm259, %v3811, %v3815
      %v3818 = vshrl.u32 %v3149, 16
      %v3820 = vrot.slane %v3818, 4
      %v3821 = vshll.u32 %v3149, 16
      %v3823 = vrot.slane %v3821, 5
      %v3824 = vor.u32 %v3820, %v3823
      %v3825 = vrot.slane %v3824, 4
      %v3827 = vshll.u32 %v3150, 16
      %v3829 = vrot.slane %v3827, 5
      %v3830 = vsel %vm259, %v3825, %v3829
      %v3831 = vshrl.u32 %v3150, 16
      %v3833 = vrot.slane %v3831, 4
      %v3834 = vor.u32 %v3833, %v3829
      %v3835 = vrot.slane %v3834, 4
      %v3837 = vshll.u32 %v3151, 16
      %v3839 = vrot.slane %v3837, 5
      %v3840 = vsel %vm259, %v3835, %v3839
      %v3842 = vshrl.u32 %v3152, 16
      %v3844 = vrot.slane %v3842, 4
      %v3845 = vshll.u32 %v3152, 16
      %v3847 = vrot.slane %v3845, 5
      %v3848 = vor.u32 %v3844, %v3847
      %v3849 = vrot.slane %v3848, 4
      %v3851 = vshll.u32 %v3153, 16
      %v3853 = vrot.slane %v3851, 5
      %v3854 = vsel %vm259, %v3849, %v3853
      %v3855 = vshrl.u32 %v3153, 16
      %v3857 = vrot.slane %v3855, 4
      %v3858 = vor.u32 %v3857, %v3853
      %v3859 = vrot.slane %v3858, 4
      %v3861 = vshll.u32 %v3154, 16
      %v3863 = vrot.slane %v3861, 5
      %v3864 = vsel %vm259, %v3859, %v3863
      %s3865 = scalar_lea.vmem %s1, 14
      %v3866 = vld [vmem:[%s3865] sm:$0x3]
      %v3867 = vunpack.c.l.b16 %v3494
      %v3868 = vunpack.c.l.b16 %v3504
      %v3869 = vunpack.c.l.b16 %v3518
      %v3870 = vunpack.c.l.b16 %v3528
      %v3871 = vunpack.c.l.b16 %v3542
      %v3872 = vunpack.c.l.b16 %v3552
      %v3873 = vunpack.c.l.b16 %v3566
      %v3874 = vunpack.c.l.b16 %v3576
      %v3875 = vunpack.c.l.b16 %v3590
      %v3876 = vunpack.c.l.b16 %v3600
      %v3877 = vunpack.c.l.b16 %v3614
      %v3878 = vunpack.c.l.b16 %v3624
      %v3879 = vunpack.c.l.b16 %v3638
      %v3880 = vunpack.c.l.b16 %v3648
      %v3881 = vunpack.c.l.b16 %v3662
      %v3882 = vunpack.c.l.b16 %v3672
      %v3883 = vunpack.c.l.b16 %v3686
      %v3884 = vunpack.c.l.b16 %v3696
      %v3885 = vunpack.c.l.b16 %v3710
      %v3886 = vunpack.c.l.b16 %v3720
      %v3887 = vunpack.c.l.b16 %v3734
      %v3888 = vunpack.c.l.b16 %v3744
      %v3889 = vunpack.c.l.b16 %v3758
      %v3890 = vunpack.c.l.b16 %v3768
      %v3891 = vunpack.c.l.b16 %v3782
      %v3892 = vunpack.c.l.b16 %v3792
      %v3893 = vunpack.c.l.b16 %v3806
      %v3894 = vunpack.c.l.b16 %v3816
      %v3895 = vunpack.c.l.b16 %v3830
      %v3896 = vunpack.c.l.b16 %v3840
      %v3897 = vunpack.c.l.b16 %v3854
      %v3898 = vunpack.c.l.b16 %v3864
      %v3899 = vpack.c.b16 %v3868, %v3867
      %v3900 = vpack.c.b16 %v3870, %v3869
      %v3901 = vpack.c.b16 %v3872, %v3871
      %v3902 = vpack.c.b16 %v3874, %v3873
      %v3903 = vpack.c.b16 %v3876, %v3875
      %v3904 = vpack.c.b16 %v3878, %v3877
      %v3905 = vpack.c.b16 %v3880, %v3879
      %v3906 = vpack.c.b16 %v3882, %v3881
      %v3907 = vpack.c.b16 %v3884, %v3883
      %v3908 = vpack.c.b16 %v3886, %v3885
      %v3909 = vpack.c.b16 %v3888, %v3887
      %v3910 = vpack.c.b16 %v3890, %v3889
      %v3911 = vpack.c.b16 %v3892, %v3891
      %v3912 = vpack.c.b16 %v3894, %v3893
      %v3913 = vpack.c.b16 %v3896, %v3895
      %v3914 = vpack.c.b16 %v3898, %v3897
      %v3916 = vsel %vm694, %v3899, 0
      %v3919 = vsel %vm694, %v3900, 0
      %v3922 = vsel %vm694, %v3901, 0
      %v3925 = vsel %vm694, %v3902, 0
      %v3928 = vsel %vm694, %v3903, 0
      %v3931 = vsel %vm694, %v3904, 0
      %v3934 = vsel %vm694, %v3905, 0
      %v3937 = vsel %vm694, %v3906, 0
      %v3940 = vsel %vm694, %v3907, 0
      %v3943 = vsel %vm694, %v3908, 0
      %v3946 = vsel %vm694, %v3909, 0
      %v3949 = vsel %vm694, %v3910, 0
      %v3952 = vsel %vm694, %v3911, 0
      %v3955 = vsel %vm694, %v3912, 0
      %v3958 = vsel %vm694, %v3913, 0
      %v3961 = vsel %vm694, %v3914, 0
      %v3964 = vsel %vm743, %v3866, 0
      %3966 = vmatprep.subr.bf16.mxu0 0
      %3967 = vmatpush1.bf16.msra.mxu0 0
      %3968 = vmatprep.subr.bf16.mxu0 0
      %3969 = vmatpush1.bf16.msra.mxu0 0
      %3970 = vmatprep.subr.bf16.mxu0 0
      %3971 = vmatpush1.bf16.msra.mxu0 0
      %3972 = vmatprep.subr.bf16.mxu0 0
      %3973 = vmatpush1.bf16.msra.mxu0 0
      %3974 = vmatprep.subr.bf16.mxu0 0
      %3975 = vmatpush1.bf16.msra.mxu0 0
      %3976 = vmatprep.subr.bf16.mxu0 0
      %3977 = vmatpush1.bf16.msra.mxu0 0
      %3978 = vmatprep.subr.bf16.mxu0 0
      %3979 = vmatpush1.bf16.msra.mxu0 0
      %3980 = vmatprep.subr.bf16.mxu0 0
      %3981 = vmatpush1.bf16.msra.mxu0 %v3964
      %3982 = vmatprep.subr.bf16.mxu0 0
      %3983 = vmatpush2.bf16.msra.mxu0 0
      %3984 = vmatprep.subr.bf16.mxu0 0
      %3985 = vmatpush2.bf16.msra.mxu0 0
      %3986 = vmatprep.subr.bf16.mxu0 0
      %3987 = vmatpush2.bf16.msra.mxu0 0
      %3988 = vmatprep.subr.bf16.mxu0 0
      %3989 = vmatpush2.bf16.msra.mxu0 0
      %3990 = vmatprep.subr.bf16.mxu0 0
      %3991 = vmatpush2.bf16.msra.mxu0 0
      %3992 = vmatprep.subr.bf16.mxu0 0
      %3993 = vmatpush2.bf16.msra.mxu0 0
      %3994 = vmatprep.subr.bf16.mxu0 0
      %3995 = vmatpush2.bf16.msra.mxu0 0
      %3996 = vmatprep.subr.bf16.mxu0 0
      %3997 = vmatpush2.bf16.msra.mxu0 0
      %3998 = vmatprep.mubr.bf16.mxu0 0
      %3999 = vmatmul.mubr.bf16.gmra.mxu0 %v3916
      %v4000 = vpop.f32.mrf.mxu0
      %v4001 = vadd.f32 0.0, %v4000
      %v4002 = vpop.f32.mrf.mxu0
      %v4003 = vpop.f32.mrf.mxu0
      %v4004 = vadd.f32 0.0, %v4003
      %v4005 = vpop.f32.mrf.mxu0
      %4006 = vmatprep.mubr.bf16.mxu0 0
      %4007 = vmatmul.mubr.bf16.gmra.mxu0 %v3919
      %v4008 = vpop.f32.mrf.mxu0
      %v4009 = vadd.f32 0.0, %v4008
      %v4010 = vpop.f32.mrf.mxu0
      %v4011 = vpop.f32.mrf.mxu0
      %v4012 = vadd.f32 0.0, %v4011
      %v4013 = vpop.f32.mrf.mxu0
      %4014 = vmatprep.mubr.bf16.mxu0 0
      %4015 = vmatmul.mubr.bf16.gmra.mxu0 %v3922
      %v4016 = vpop.f32.mrf.mxu0
      %v4017 = vadd.f32 0.0, %v4016
      %v4018 = vpop.f32.mrf.mxu0
      %v4019 = vpop.f32.mrf.mxu0
      %v4020 = vadd.f32 0.0, %v4019
      %v4021 = vpop.f32.mrf.mxu0
      %4022 = vmatprep.mubr.bf16.mxu0 0
      %4023 = vmatmul.mubr.bf16.gmra.mxu0 %v3925
      %v4024 = vpop.f32.mrf.mxu0
      %v4025 = vadd.f32 0.0, %v4024
      %v4026 = vpop.f32.mrf.mxu0
      %v4027 = vpop.f32.mrf.mxu0
      %v4028 = vadd.f32 0.0, %v4027
      %v4029 = vpop.f32.mrf.mxu0
      %4030 = vmatprep.mubr.bf16.mxu0 0
      %4031 = vmatmul.mubr.bf16.gmra.mxu0 %v3928
      %v4032 = vpop.f32.mrf.mxu0
      %v4033 = vadd.f32 0.0, %v4032
      %v4034 = vpop.f32.mrf.mxu0
      %v4035 = vpop.f32.mrf.mxu0
      %v4036 = vadd.f32 0.0, %v4035
      %v4037 = vpop.f32.mrf.mxu0
      %4038 = vmatprep.mubr.bf16.mxu0 0
      %4039 = vmatmul.mubr.bf16.gmra.mxu0 %v3931
      %v4040 = vpop.f32.mrf.mxu0
      %v4041 = vadd.f32 0.0, %v4040
      %v4042 = vpop.f32.mrf.mxu0
      %v4043 = vpop.f32.mrf.mxu0
      %v4044 = vadd.f32 0.0, %v4043
      %v4045 = vpop.f32.mrf.mxu0
      %4046 = vmatprep.mubr.bf16.mxu0 0
      %4047 = vmatmul.mubr.bf16.gmra.mxu0 %v3934
      %v4048 = vpop.f32.mrf.mxu0
      %v4049 = vadd.f32 0.0, %v4048
      %v4050 = vpop.f32.mrf.mxu0
      %v4051 = vpop.f32.mrf.mxu0
      %v4052 = vadd.f32 0.0, %v4051
      %v4053 = vpop.f32.mrf.mxu0
      %4054 = vmatprep.mubr.bf16.mxu0 0
      %4055 = vmatmul.mubr.bf16.gmra.mxu0 %v3937
      %v4056 = vpop.f32.mrf.mxu0
      %v4057 = vadd.f32 0.0, %v4056
      %v4058 = vpop.f32.mrf.mxu0
      %v4059 = vpop.f32.mrf.mxu0
      %v4060 = vadd.f32 0.0, %v4059
      %v4061 = vpop.f32.mrf.mxu0
      %4062 = vmatprep.mubr.bf16.mxu0 0
      %4063 = vmatmul.mubr.bf16.gmra.mxu0 %v3940
      %v4064 = vpop.f32.mrf.mxu0
      %v4065 = vadd.f32 0.0, %v4064
      %v4066 = vpop.f32.mrf.mxu0
      %v4067 = vpop.f32.mrf.mxu0
      %v4068 = vadd.f32 0.0, %v4067
      %v4069 = vpop.f32.mrf.mxu0
      %4070 = vmatprep.mubr.bf16.mxu0 0
      %4071 = vmatmul.mubr.bf16.gmra.mxu0 %v3943
      %v4072 = vpop.f32.mrf.mxu0
      %v4073 = vadd.f32 0.0, %v4072
      %v4074 = vpop.f32.mrf.mxu0
      %v4075 = vpop.f32.mrf.mxu0
      %v4076 = vadd.f32 0.0, %v4075
      %v4077 = vpop.f32.mrf.mxu0
      %4078 = vmatprep.mubr.bf16.mxu0 0
      %4079 = vmatmul.mubr.bf16.gmra.mxu0 %v3946
      %v4080 = vpop.f32.mrf.mxu0
      %v4081 = vadd.f32 0.0, %v4080
      %v4082 = vpop.f32.mrf.mxu0
      %v4083 = vpop.f32.mrf.mxu0
      %v4084 = vadd.f32 0.0, %v4083
      %v4085 = vpop.f32.mrf.mxu0
      %4086 = vmatprep.mubr.bf16.mxu0 0
      %4087 = vmatmul.mubr.bf16.gmra.mxu0 %v3949
      %v4088 = vpop.f32.mrf.mxu0
      %v4089 = vadd.f32 0.0, %v4088
      %v4090 = vpop.f32.mrf.mxu0
      %v4091 = vpop.f32.mrf.mxu0
      %v4092 = vadd.f32 0.0, %v4091
      %v4093 = vpop.f32.mrf.mxu0
      %4094 = vmatprep.mubr.bf16.mxu0 0
      %4095 = vmatmul.mubr.bf16.gmra.mxu0 %v3952
      %v4096 = vpop.f32.mrf.mxu0
      %v4097 = vadd.f32 0.0, %v4096
      %v4098 = vpop.f32.mrf.mxu0
      %v4099 = vpop.f32.mrf.mxu0
      %v4100 = vadd.f32 0.0, %v4099
      %v4101 = vpop.f32.mrf.mxu0
      %4102 = vmatprep.mubr.bf16.mxu0 0
      %4103 = vmatmul.mubr.bf16.gmra.mxu0 %v3955
      %v4104 = vpop.f32.mrf.mxu0
      %v4105 = vadd.f32 0.0, %v4104
      %v4106 = vpop.f32.mrf.mxu0
      %v4107 = vpop.f32.mrf.mxu0
      %v4108 = vadd.f32 0.0, %v4107
      %v4109 = vpop.f32.mrf.mxu0
      %4110 = vmatprep.mubr.bf16.mxu0 0
      %4111 = vmatmul.mubr.bf16.gmra.mxu0 %v3958
      %v4112 = vpop.f32.mrf.mxu0
      %v4113 = vadd.f32 0.0, %v4112
      %v4114 = vpop.f32.mrf.mxu0
      %v4115 = vpop.f32.mrf.mxu0
      %v4116 = vadd.f32 0.0, %v4115
      %v4117 = vpop.f32.mrf.mxu0
      %4118 = vmatprep.mubr.bf16.mxu0 0
      %4119 = vmatmul.mubr.bf16.gmra.mxu0 %v3961
      %v4120 = vpop.f32.mrf.mxu0
      %v4121 = vadd.f32 0.0, %v4120
      %v4122 = vpop.f32.mrf.mxu0
      %v4123 = vpop.f32.mrf.mxu0
      %v4124 = vadd.f32 0.0, %v4123
      %v4125 = vpop.f32.mrf.mxu0
      %4126 = vdwg.mxu0
      %v4127 = vadd.f32 %v3449, %v4001
      %v4128 = vadd.f32 %v3450, %v4004
      %v4129 = vadd.f32 %v3451, %v4009
      %v4130 = vadd.f32 %v3452, %v4012
      %v4131 = vadd.f32 %v3453, %v4017
      %v4132 = vadd.f32 %v3454, %v4020
      %v4133 = vadd.f32 %v3455, %v4025
      %v4134 = vadd.f32 %v3456, %v4028
      %v4135 = vadd.f32 %v3457, %v4033
      %v4136 = vadd.f32 %v3458, %v4036
      %v4137 = vadd.f32 %v3459, %v4041
      %v4138 = vadd.f32 %v3460, %v4044
      %v4139 = vadd.f32 %v3461, %v4049
      %v4140 = vadd.f32 %v3462, %v4052
      %v4141 = vadd.f32 %v3463, %v4057
      %v4142 = vadd.f32 %v3464, %v4060
      %v4143 = vadd.f32 %v3465, %v4065
      %v4144 = vadd.f32 %v3466, %v4068
      %v4145 = vadd.f32 %v3467, %v4073
      %v4146 = vadd.f32 %v3468, %v4076
      %v4147 = vadd.f32 %v3469, %v4081
      %v4148 = vadd.f32 %v3470, %v4084
      %v4149 = vadd.f32 %v3471, %v4089
      %v4150 = vadd.f32 %v3472, %v4092
      %v4151 = vadd.f32 %v3473, %v4097
      %v4152 = vadd.f32 %v3474, %v4100
      %v4153 = vadd.f32 %v3475, %v4105
      %v4154 = vadd.f32 %v3476, %v4108
      %v4155 = vadd.f32 %v3477, %v4113
      %v4156 = vadd.f32 %v3478, %v4116
      %v4157 = vadd.f32 %v3479, %v4121
      %v4158 = vadd.f32 %v3480, %v4124
      %v4175 = vrot.slane %v3107, 5
      %v4176 = vrot.slane %v4175, 4
      %v4177 = vrot.slane %v3108, 5
      %v4178 = vsel %vm1218, %v4176, %v4177
      %v4179 = vrot.slane %v4177, 4
      %v4180 = vrot.slane %v3109, 5
      %v4181 = vsel %vm1218, %v4179, %v4180
      %v4182 = vrot.slane %v3110, 5
      %v4183 = vrot.slane %v4182, 4
      %v4184 = vrot.slane %v3111, 5
      %v4185 = vsel %vm1218, %v4183, %v4184
      %v4186 = vrot.slane %v4184, 4
      %v4187 = vrot.slane %v3112, 5
      %v4188 = vsel %vm1218, %v4186, %v4187
      %v4189 = vrot.slane %v3113, 5
      %v4190 = vrot.slane %v4189, 4
      %v4191 = vrot.slane %v3114, 5
      %v4192 = vsel %vm1218, %v4190, %v4191
      %v4193 = vrot.slane %v4191, 4
      %v4194 = vrot.slane %v3115, 5
      %v4195 = vsel %vm1218, %v4193, %v4194
      %v4196 = vrot.slane %v3116, 5
      %v4197 = vrot.slane %v4196, 4
      %v4198 = vrot.slane %v3117, 5
      %v4199 = vsel %vm1218, %v4197, %v4198
      %v4200 = vrot.slane %v4198, 4
      %v4201 = vrot.slane %v3118, 5
      %v4202 = vsel %vm1218, %v4200, %v4201
      %v4203 = vrot.slane %v3119, 5
      %v4204 = vrot.slane %v4203, 4
      %v4205 = vrot.slane %v3120, 5
      %v4206 = vsel %vm1218, %v4204, %v4205
      %v4207 = vrot.slane %v4205, 4
      %v4208 = vrot.slane %v3121, 5
      %v4209 = vsel %vm1218, %v4207, %v4208
      %v4210 = vrot.slane %v3122, 5
      %v4211 = vrot.slane %v4210, 4
      %v4212 = vrot.slane %v3123, 5
      %v4213 = vsel %vm1218, %v4211, %v4212
      %v4214 = vrot.slane %v4212, 4
      %v4215 = vrot.slane %v3124, 5
      %v4216 = vsel %vm1218, %v4214, %v4215
      %v4217 = vrot.slane %v3125, 5
      %v4218 = vrot.slane %v4217, 4
      %v4219 = vrot.slane %v3126, 5
      %v4220 = vsel %vm1218, %v4218, %v4219
      %v4221 = vrot.slane %v4219, 4
      %v4222 = vrot.slane %v3127, 5
      %v4223 = vsel %vm1218, %v4221, %v4222
      %v4224 = vrot.slane %v3128, 5
      %v4225 = vrot.slane %v4224, 4
      %v4226 = vrot.slane %v3129, 5
      %v4227 = vsel %vm1218, %v4225, %v4226
      %v4228 = vrot.slane %v4226, 4
      %v4229 = vrot.slane %v3130, 5
      %v4230 = vsel %vm1218, %v4228, %v4229
      %v4231 = vrot.slane %v3131, 5
      %v4232 = vrot.slane %v4231, 4
      %v4233 = vrot.slane %v3132, 5
      %v4234 = vsel %vm1218, %v4232, %v4233
      %v4235 = vrot.slane %v4233, 4
      %v4236 = vrot.slane %v3133, 5
      %v4237 = vsel %vm1218, %v4235, %v4236
      %v4238 = vrot.slane %v3134, 5
      %v4239 = vrot.slane %v4238, 4
      %v4240 = vrot.slane %v3135, 5
      %v4241 = vsel %vm1218, %v4239, %v4240
      %v4242 = vrot.slane %v4240, 4
      %v4243 = vrot.slane %v3136, 5
      %v4244 = vsel %vm1218, %v4242, %v4243
      %v4245 = vrot.slane %v3137, 5
      %v4246 = vrot.slane %v4245, 4
      %v4247 = vrot.slane %v3138, 5
      %v4248 = vsel %vm1218, %v4246, %v4247
      %v4249 = vrot.slane %v4247, 4
      %v4250 = vrot.slane %v3139, 5
      %v4251 = vsel %vm1218, %v4249, %v4250
      %v4252 = vrot.slane %v3140, 5
      %v4253 = vrot.slane %v4252, 4
      %v4254 = vrot.slane %v3141, 5
      %v4255 = vsel %vm1218, %v4253, %v4254
      %v4256 = vrot.slane %v4254, 4
      %v4257 = vrot.slane %v3142, 5
      %v4258 = vsel %vm1218, %v4256, %v4257
      %v4259 = vrot.slane %v3143, 5
      %v4260 = vrot.slane %v4259, 4
      %v4261 = vrot.slane %v3144, 5
      %v4262 = vsel %vm1218, %v4260, %v4261
      %v4263 = vrot.slane %v4261, 4
      %v4264 = vrot.slane %v3145, 5
      %v4265 = vsel %vm1218, %v4263, %v4264
      %v4266 = vrot.slane %v3146, 5
      %v4267 = vrot.slane %v4266, 4
      %v4268 = vrot.slane %v3147, 5
      %v4269 = vsel %vm1218, %v4267, %v4268
      %v4270 = vrot.slane %v4268, 4
      %v4271 = vrot.slane %v3148, 5
      %v4272 = vsel %vm1218, %v4270, %v4271
      %v4273 = vrot.slane %v3149, 5
      %v4274 = vrot.slane %v4273, 4
      %v4275 = vrot.slane %v3150, 5
      %v4276 = vsel %vm1218, %v4274, %v4275
      %v4277 = vrot.slane %v4275, 4
      %v4278 = vrot.slane %v3151, 5
      %v4279 = vsel %vm1218, %v4277, %v4278
      %v4280 = vrot.slane %v3152, 5
      %v4281 = vrot.slane %v4280, 4
      %v4282 = vrot.slane %v3153, 5
      %v4283 = vsel %vm1218, %v4281, %v4282
      %v4284 = vrot.slane %v4282, 4
      %v4285 = vrot.slane %v3154, 5
      %v4286 = vsel %vm1218, %v4284, %v4285
      %s4287 = scalar_lea.vmem %s1, 16
      %v4288 = vld [vmem:[%s4287] sm:$0x3]
      %v4289 = vunpack.c.l.b16 %v4178
      %v4290 = vunpack.c.l.b16 %v4181
      %v4291 = vunpack.c.l.b16 %v4185
      %v4292 = vunpack.c.l.b16 %v4188
      %v4293 = vunpack.c.l.b16 %v4192
      %v4294 = vunpack.c.l.b16 %v4195
      %v4295 = vunpack.c.l.b16 %v4199
      %v4296 = vunpack.c.l.b16 %v4202
      %v4297 = vunpack.c.l.b16 %v4206
      %v4298 = vunpack.c.l.b16 %v4209
      %v4299 = vunpack.c.l.b16 %v4213
      %v4300 = vunpack.c.l.b16 %v4216
      %v4301 = vunpack.c.l.b16 %v4220
      %v4302 = vunpack.c.l.b16 %v4223
      %v4303 = vunpack.c.l.b16 %v4227
      %v4304 = vunpack.c.l.b16 %v4230
      %v4305 = vunpack.c.l.b16 %v4234
      %v4306 = vunpack.c.l.b16 %v4237
      %v4307 = vunpack.c.l.b16 %v4241
      %v4308 = vunpack.c.l.b16 %v4244
      %v4309 = vunpack.c.l.b16 %v4248
      %v4310 = vunpack.c.l.b16 %v4251
      %v4311 = vunpack.c.l.b16 %v4255
      %v4312 = vunpack.c.l.b16 %v4258
      %v4313 = vunpack.c.l.b16 %v4262
      %v4314 = vunpack.c.l.b16 %v4265
      %v4315 = vunpack.c.l.b16 %v4269
      %v4316 = vunpack.c.l.b16 %v4272
      %v4317 = vunpack.c.l.b16 %v4276
      %v4318 = vunpack.c.l.b16 %v4279
      %v4319 = vunpack.c.l.b16 %v4283
      %v4320 = vunpack.c.l.b16 %v4286
      %v4321 = vpack.c.b16 %v4290, %v4289
      %v4322 = vpack.c.b16 %v4292, %v4291
      %v4323 = vpack.c.b16 %v4294, %v4293
      %v4324 = vpack.c.b16 %v4296, %v4295
      %v4325 = vpack.c.b16 %v4298, %v4297
      %v4326 = vpack.c.b16 %v4300, %v4299
      %v4327 = vpack.c.b16 %v4302, %v4301
      %v4328 = vpack.c.b16 %v4304, %v4303
      %v4329 = vpack.c.b16 %v4306, %v4305
      %v4330 = vpack.c.b16 %v4308, %v4307
      %v4331 = vpack.c.b16 %v4310, %v4309
      %v4332 = vpack.c.b16 %v4312, %v4311
      %v4333 = vpack.c.b16 %v4314, %v4313
      %v4334 = vpack.c.b16 %v4316, %v4315
      %v4335 = vpack.c.b16 %v4318, %v4317
      %v4336 = vpack.c.b16 %v4320, %v4319
      %v4338 = vsel %vm694, %v4321, 0
      %v4341 = vsel %vm694, %v4322, 0
      %v4344 = vsel %vm694, %v4323, 0
      %v4347 = vsel %vm694, %v4324, 0
      %v4350 = vsel %vm694, %v4325, 0
      %v4353 = vsel %vm694, %v4326, 0
      %v4356 = vsel %vm694, %v4327, 0
      %v4359 = vsel %vm694, %v4328, 0
      %v4362 = vsel %vm694, %v4329, 0
      %v4365 = vsel %vm694, %v4330, 0
      %v4368 = vsel %vm694, %v4331, 0
      %v4371 = vsel %vm694, %v4332, 0
      %v4374 = vsel %vm694, %v4333, 0
      %v4377 = vsel %vm694, %v4334, 0
      %v4380 = vsel %vm694, %v4335, 0
      %v4383 = vsel %vm694, %v4336, 0
      %v4386 = vsel %vm743, %v4288, 0
      %4388 = vmatprep.subr.bf16.mxu0 0
      %4389 = vmatpush1.bf16.msra.mxu0 0
      %4390 = vmatprep.subr.bf16.mxu0 0
      %4391 = vmatpush1.bf16.msra.mxu0 0
      %4392 = vmatprep.subr.bf16.mxu0 0
      %4393 = vmatpush1.bf16.msra.mxu0 0
      %4394 = vmatprep.subr.bf16.mxu0 0
      %4395 = vmatpush1.bf16.msra.mxu0 0
      %4396 = vmatprep.subr.bf16.mxu0 0
      %4397 = vmatpush1.bf16.msra.mxu0 0
      %4398 = vmatprep.subr.bf16.mxu0 0
      %4399 = vmatpush1.bf16.msra.mxu0 0
      %4400 = vmatprep.subr.bf16.mxu0 0
      %4401 = vmatpush1.bf16.msra.mxu0 0
      %4402 = vmatprep.subr.bf16.mxu0 0
      %4403 = vmatpush1.bf16.msra.mxu0 %v4386
      %4404 = vmatprep.subr.bf16.mxu0 0
      %4405 = vmatpush2.bf16.msra.mxu0 0
      %4406 = vmatprep.subr.bf16.mxu0 0
      %4407 = vmatpush2.bf16.msra.mxu0 0
      %4408 = vmatprep.subr.bf16.mxu0 0
      %4409 = vmatpush2.bf16.msra.mxu0 0
      %4410 = vmatprep.subr.bf16.mxu0 0
      %4411 = vmatpush2.bf16.msra.mxu0 0
      %4412 = vmatprep.subr.bf16.mxu0 0
      %4413 = vmatpush2.bf16.msra.mxu0 0
      %4414 = vmatprep.subr.bf16.mxu0 0
      %4415 = vmatpush2.bf16.msra.mxu0 0
      %4416 = vmatprep.subr.bf16.mxu0 0
      %4417 = vmatpush2.bf16.msra.mxu0 0
      %4418 = vmatprep.subr.bf16.mxu0 0
      %4419 = vmatpush2.bf16.msra.mxu0 0
      %4420 = vmatprep.mubr.bf16.mxu0 0
      %4421 = vmatmul.mubr.bf16.gmra.mxu0 %v4338
      %v4422 = vpop.f32.mrf.mxu0
      %v4423 = vadd.f32 0.0, %v4422
      %v4424 = vpop.f32.mrf.mxu0
      %v4425 = vpop.f32.mrf.mxu0
      %v4426 = vadd.f32 0.0, %v4425
      %v4427 = vpop.f32.mrf.mxu0
      %4428 = vmatprep.mubr.bf16.mxu0 0
      %4429 = vmatmul.mubr.bf16.gmra.mxu0 %v4341
      %v4430 = vpop.f32.mrf.mxu0
      %v4431 = vadd.f32 0.0, %v4430
      %v4432 = vpop.f32.mrf.mxu0
      %v4433 = vpop.f32.mrf.mxu0
      %v4434 = vadd.f32 0.0, %v4433
      %v4435 = vpop.f32.mrf.mxu0
      %4436 = vmatprep.mubr.bf16.mxu0 0
      %4437 = vmatmul.mubr.bf16.gmra.mxu0 %v4344
      %v4438 = vpop.f32.mrf.mxu0
      %v4439 = vadd.f32 0.0, %v4438
      %v4440 = vpop.f32.mrf.mxu0
      %v4441 = vpop.f32.mrf.mxu0
      %v4442 = vadd.f32 0.0, %v4441
      %v4443 = vpop.f32.mrf.mxu0
      %4444 = vmatprep.mubr.bf16.mxu0 0
      %4445 = vmatmul.mubr.bf16.gmra.mxu0 %v4347
      %v4446 = vpop.f32.mrf.mxu0
      %v4447 = vadd.f32 0.0, %v4446
      %v4448 = vpop.f32.mrf.mxu0
      %v4449 = vpop.f32.mrf.mxu0
      %v4450 = vadd.f32 0.0, %v4449
      %v4451 = vpop.f32.mrf.mxu0
      %4452 = vmatprep.mubr.bf16.mxu0 0
      %4453 = vmatmul.mubr.bf16.gmra.mxu0 %v4350
      %v4454 = vpop.f32.mrf.mxu0
      %v4455 = vadd.f32 0.0, %v4454
      %v4456 = vpop.f32.mrf.mxu0
      %v4457 = vpop.f32.mrf.mxu0
      %v4458 = vadd.f32 0.0, %v4457
      %v4459 = vpop.f32.mrf.mxu0
      %4460 = vmatprep.mubr.bf16.mxu0 0
      %4461 = vmatmul.mubr.bf16.gmra.mxu0 %v4353
      %v4462 = vpop.f32.mrf.mxu0
      %v4463 = vadd.f32 0.0, %v4462
      %v4464 = vpop.f32.mrf.mxu0
      %v4465 = vpop.f32.mrf.mxu0
      %v4466 = vadd.f32 0.0, %v4465
      %v4467 = vpop.f32.mrf.mxu0
      %4468 = vmatprep.mubr.bf16.mxu0 0
      %4469 = vmatmul.mubr.bf16.gmra.mxu0 %v4356
      %v4470 = vpop.f32.mrf.mxu0
      %v4471 = vadd.f32 0.0, %v4470
      %v4472 = vpop.f32.mrf.mxu0
      %v4473 = vpop.f32.mrf.mxu0
      %v4474 = vadd.f32 0.0, %v4473
      %v4475 = vpop.f32.mrf.mxu0
      %4476 = vmatprep.mubr.bf16.mxu0 0
      %4477 = vmatmul.mubr.bf16.gmra.mxu0 %v4359
      %v4478 = vpop.f32.mrf.mxu0
      %v4479 = vadd.f32 0.0, %v4478
      %v4480 = vpop.f32.mrf.mxu0
      %v4481 = vpop.f32.mrf.mxu0
      %v4482 = vadd.f32 0.0, %v4481
      %v4483 = vpop.f32.mrf.mxu0
      %4484 = vmatprep.mubr.bf16.mxu0 0
      %4485 = vmatmul.mubr.bf16.gmra.mxu0 %v4362
      %v4486 = vpop.f32.mrf.mxu0
      %v4487 = vadd.f32 0.0, %v4486
      %v4488 = vpop.f32.mrf.mxu0
      %v4489 = vpop.f32.mrf.mxu0
      %v4490 = vadd.f32 0.0, %v4489
      %v4491 = vpop.f32.mrf.mxu0
      %4492 = vmatprep.mubr.bf16.mxu0 0
      %4493 = vmatmul.mubr.bf16.gmra.mxu0 %v4365
      %v4494 = vpop.f32.mrf.mxu0
      %v4495 = vadd.f32 0.0, %v4494
      %v4496 = vpop.f32.mrf.mxu0
      %v4497 = vpop.f32.mrf.mxu0
      %v4498 = vadd.f32 0.0, %v4497
      %v4499 = vpop.f32.mrf.mxu0
      %4500 = vmatprep.mubr.bf16.mxu0 0
      %4501 = vmatmul.mubr.bf16.gmra.mxu0 %v4368
      %v4502 = vpop.f32.mrf.mxu0
      %v4503 = vadd.f32 0.0, %v4502
      %v4504 = vpop.f32.mrf.mxu0
      %v4505 = vpop.f32.mrf.mxu0
      %v4506 = vadd.f32 0.0, %v4505
      %v4507 = vpop.f32.mrf.mxu0
      %4508 = vmatprep.mubr.bf16.mxu0 0
      %4509 = vmatmul.mubr.bf16.gmra.mxu0 %v4371
      %v4510 = vpop.f32.mrf.mxu0
      %v4511 = vadd.f32 0.0, %v4510
      %v4512 = vpop.f32.mrf.mxu0
      %v4513 = vpop.f32.mrf.mxu0
      %v4514 = vadd.f32 0.0, %v4513
      %v4515 = vpop.f32.mrf.mxu0
      %4516 = vmatprep.mubr.bf16.mxu0 0
      %4517 = vmatmul.mubr.bf16.gmra.mxu0 %v4374
      %v4518 = vpop.f32.mrf.mxu0
      %v4519 = vadd.f32 0.0, %v4518
      %v4520 = vpop.f32.mrf.mxu0
      %v4521 = vpop.f32.mrf.mxu0
      %v4522 = vadd.f32 0.0, %v4521
      %v4523 = vpop.f32.mrf.mxu0
      %4524 = vmatprep.mubr.bf16.mxu0 0
      %4525 = vmatmul.mubr.bf16.gmra.mxu0 %v4377
      %v4526 = vpop.f32.mrf.mxu0
      %v4527 = vadd.f32 0.0, %v4526
      %v4528 = vpop.f32.mrf.mxu0
      %v4529 = vpop.f32.mrf.mxu0
      %v4530 = vadd.f32 0.0, %v4529
      %v4531 = vpop.f32.mrf.mxu0
      %4532 = vmatprep.mubr.bf16.mxu0 0
      %4533 = vmatmul.mubr.bf16.gmra.mxu0 %v4380
      %v4534 = vpop.f32.mrf.mxu0
      %v4535 = vadd.f32 0.0, %v4534
      %v4536 = vpop.f32.mrf.mxu0
      %v4537 = vpop.f32.mrf.mxu0
      %v4538 = vadd.f32 0.0, %v4537
      %v4539 = vpop.f32.mrf.mxu0
      %4540 = vmatprep.mubr.bf16.mxu0 0
      %4541 = vmatmul.mubr.bf16.gmra.mxu0 %v4383
      %v4542 = vpop.f32.mrf.mxu0
      %v4543 = vadd.f32 0.0, %v4542
      %v4544 = vpop.f32.mrf.mxu0
      %v4545 = vpop.f32.mrf.mxu0
      %v4546 = vadd.f32 0.0, %v4545
      %v4547 = vpop.f32.mrf.mxu0
      %4548 = vdwg.mxu0
      %v4549 = vadd.f32 %v4127, %v4423
      %v4550 = vadd.f32 %v4128, %v4426
      %v4551 = vadd.f32 %v4129, %v4431
      %v4552 = vadd.f32 %v4130, %v4434
      %v4553 = vadd.f32 %v4131, %v4439
      %v4554 = vadd.f32 %v4132, %v4442
      %v4555 = vadd.f32 %v4133, %v4447
      %v4556 = vadd.f32 %v4134, %v4450
      %v4557 = vadd.f32 %v4135, %v4455
      %v4558 = vadd.f32 %v4136, %v4458
      %v4559 = vadd.f32 %v4137, %v4463
      %v4560 = vadd.f32 %v4138, %v4466
      %v4561 = vadd.f32 %v4139, %v4471
      %v4562 = vadd.f32 %v4140, %v4474
      %v4563 = vadd.f32 %v4141, %v4479
      %v4564 = vadd.f32 %v4142, %v4482
      %v4565 = vadd.f32 %v4143, %v4487
      %v4566 = vadd.f32 %v4144, %v4490
      %v4567 = vadd.f32 %v4145, %v4495
      %v4568 = vadd.f32 %v4146, %v4498
      %v4569 = vadd.f32 %v4147, %v4503
      %v4570 = vadd.f32 %v4148, %v4506
      %v4571 = vadd.f32 %v4149, %v4511
      %v4572 = vadd.f32 %v4150, %v4514
      %v4573 = vadd.f32 %v4151, %v4519
      %v4574 = vadd.f32 %v4152, %v4522
      %v4575 = vadd.f32 %v4153, %v4527
      %v4576 = vadd.f32 %v4154, %v4530
      %v4577 = vadd.f32 %v4155, %v4535
      %v4578 = vadd.f32 %v4156, %v4538
      %v4579 = vadd.f32 %v4157, %v4543
      %v4580 = vadd.f32 %v4158, %v4546
      %v4581 = vlaneseq
      %v4582 = vshrl.u32 %v4581, 7
      %v4583 = vadd.s32 %v4582, 8
      %v4584 = vadd.s32 %v4582, 16
      %v4585 = vadd.s32 %v4582, 24
      %v4586 = vadd.s32 %v4582, 32
      %v4587 = vadd.s32 %v4582, 40
      %v4588 = vadd.s32 %v4582, 48
      %v4589 = vadd.s32 %v4582, 56
      %v4590 = vadd.s32 %v4582, 64
      %v4591 = vadd.s32 %v4582, 72
      %v4592 = vadd.s32 %v4582, 80
      %v4593 = vadd.s32 %v4582, 88
      %v4594 = vadd.s32 %v4582, 96
      %v4595 = vadd.s32 %v4582, 104
      %v4596 = vadd.s32 %v4582, 112
      %v4597 = vadd.s32 %v4582, 120
      %v4598 = vadd.s32 %v4582, 128
      %v4599 = vadd.s32 %v4582, 136
      %v4600 = vadd.s32 %v4582, 144
      %v4601 = vadd.s32 %v4582, 152
      %v4602 = vadd.s32 %v4582, 160
      %v4603 = vadd.s32 %v4582, 168
      %v4604 = vadd.s32 %v4582, 176
      %v4605 = vadd.s32 %v4582, 184
      %v4606 = vadd.s32 %v4582, 192
      %v4607 = vadd.s32 %v4582, 200
      %v4608 = vadd.s32 %v4582, 208
      %v4609 = vadd.s32 %v4582, 216
      %v4610 = vadd.s32 %v4582, 224
      %v4611 = vadd.s32 %v4582, 232
      %v4612 = vadd.s32 %v4582, 240
      %v4613 = vadd.s32 %v4582, 248
      %s4614 = ssub.s32 16, %s204
      %s4615 = smul.u32 %s4614, 16
      %p4616 = scmp.gt.s32.totalorder %s4615, 0
      %s4617 = scalar_select %p4616, %s4615, 0
      %p4618 = scmp.lt.s32.totalorder %s4617, 256
      %s4619 = scalar_select %p4618, %s4617, 256
      %v4620 = vstv %s4619
      %vm4621 = vcmp.lt.s32.totalorder %v4582, %v4620
      %vm4622 = vcmp.lt.s32.totalorder %v4583, %v4620
      %vm4623 = vcmp.lt.s32.totalorder %v4584, %v4620
      %vm4624 = vcmp.lt.s32.totalorder %v4585, %v4620
      %vm4625 = vcmp.lt.s32.totalorder %v4586, %v4620
      %vm4626 = vcmp.lt.s32.totalorder %v4587, %v4620
      %vm4627 = vcmp.lt.s32.totalorder %v4588, %v4620
      %vm4628 = vcmp.lt.s32.totalorder %v4589, %v4620
      %vm4629 = vcmp.lt.s32.totalorder %v4590, %v4620
      %vm4630 = vcmp.lt.s32.totalorder %v4591, %v4620
      %vm4631 = vcmp.lt.s32.totalorder %v4592, %v4620
      %vm4632 = vcmp.lt.s32.totalorder %v4593, %v4620
      %vm4633 = vcmp.lt.s32.totalorder %v4594, %v4620
      %vm4634 = vcmp.lt.s32.totalorder %v4595, %v4620
      %vm4635 = vcmp.lt.s32.totalorder %v4596, %v4620
      %vm4636 = vcmp.lt.s32.totalorder %v4597, %v4620
      %vm4637 = vcmp.lt.s32.totalorder %v4598, %v4620
      %vm4638 = vcmp.lt.s32.totalorder %v4599, %v4620
      %vm4639 = vcmp.lt.s32.totalorder %v4600, %v4620
      %vm4640 = vcmp.lt.s32.totalorder %v4601, %v4620
      %vm4641 = vcmp.lt.s32.totalorder %v4602, %v4620
      %vm4642 = vcmp.lt.s32.totalorder %v4603, %v4620
      %vm4643 = vcmp.lt.s32.totalorder %v4604, %v4620
      %vm4644 = vcmp.lt.s32.totalorder %v4605, %v4620
      %vm4645 = vcmp.lt.s32.totalorder %v4606, %v4620
      %vm4646 = vcmp.lt.s32.totalorder %v4607, %v4620
      %vm4647 = vcmp.lt.s32.totalorder %v4608, %v4620
      %vm4648 = vcmp.lt.s32.totalorder %v4609, %v4620
      %vm4649 = vcmp.lt.s32.totalorder %v4610, %v4620
      %vm4650 = vcmp.lt.s32.totalorder %v4611, %v4620
      %vm4651 = vcmp.lt.s32.totalorder %v4612, %v4620
      %vm4652 = vcmp.lt.s32.totalorder %v4613, %v4620
      %v4653 = vsel %vm4621, %v4549, 0.0
      %v4654 = vsel %vm4622, %v4550, 0.0
      %v4655 = vsel %vm4623, %v4551, 0.0
      %v4656 = vsel %vm4624, %v4552, 0.0
      %v4657 = vsel %vm4625, %v4553, 0.0
      %v4658 = vsel %vm4626, %v4554, 0.0
      %v4659 = vsel %vm4627, %v4555, 0.0
      %v4660 = vsel %vm4628, %v4556, 0.0
      %v4661 = vsel %vm4629, %v4557, 0.0
      %v4662 = vsel %vm4630, %v4558, 0.0
      %v4663 = vsel %vm4631, %v4559, 0.0
      %v4664 = vsel %vm4632, %v4560, 0.0
      %v4665 = vsel %vm4633, %v4561, 0.0
      %v4666 = vsel %vm4634, %v4562, 0.0
      %v4667 = vsel %vm4635, %v4563, 0.0
      %v4668 = vsel %vm4636, %v4564, 0.0
      %v4669 = vsel %vm4637, %v4565, 0.0
      %v4670 = vsel %vm4638, %v4566, 0.0
      %v4671 = vsel %vm4639, %v4567, 0.0
      %v4672 = vsel %vm4640, %v4568, 0.0
      %v4673 = vsel %vm4641, %v4569, 0.0
      %v4674 = vsel %vm4642, %v4570, 0.0
      %v4675 = vsel %vm4643, %v4571, 0.0
      %v4676 = vsel %vm4644, %v4572, 0.0
      %v4677 = vsel %vm4645, %v4573, 0.0
      %v4678 = vsel %vm4646, %v4574, 0.0
      %v4679 = vsel %vm4647, %v4575, 0.0
      %v4680 = vsel %vm4648, %v4576, 0.0
      %v4681 = vsel %vm4649, %v4577, 0.0
      %v4682 = vsel %vm4650, %v4578, 0.0
      %v4683 = vsel %vm4651, %v4579, 0.0
      %v4684 = vsel %vm4652, %v4580, 0.0
      %v4685 = vadd.f32 %v4653, %v4654
      %v4686 = vadd.f32 %v4685, %v4655
      %v4687 = vadd.f32 %v4686, %v4656
      %v4688 = vadd.f32 %v4687, %v4657
      %v4689 = vadd.f32 %v4688, %v4658
      %v4690 = vadd.f32 %v4689, %v4659
      %v4691 = vadd.f32 %v4690, %v4660
      %v4692 = vadd.f32 %v4691, %v4661
      %v4693 = vadd.f32 %v4692, %v4662
      %v4694 = vadd.f32 %v4693, %v4663
      %v4695 = vadd.f32 %v4694, %v4664
      %v4696 = vadd.f32 %v4695, %v4665
      %v4697 = vadd.f32 %v4696, %v4666
      %v4698 = vadd.f32 %v4697, %v4667
      %v4699 = vadd.f32 %v4698, %v4668
      %v4700 = vadd.f32 %v4699, %v4669
      %v4701 = vadd.f32 %v4700, %v4670
      %v4702 = vadd.f32 %v4701, %v4671
      %v4703 = vadd.f32 %v4702, %v4672
      %v4704 = vadd.f32 %v4703, %v4673
      %v4705 = vadd.f32 %v4704, %v4674
      %v4706 = vadd.f32 %v4705, %v4675
      %v4707 = vadd.f32 %v4706, %v4676
      %v4708 = vadd.f32 %v4707, %v4677
      %v4709 = vadd.f32 %v4708, %v4678
      %v4710 = vadd.f32 %v4709, %v4679
      %v4711 = vadd.f32 %v4710, %v4680
      %v4712 = vadd.f32 %v4711, %v4681
      %v4713 = vadd.f32 %v4712, %v4682
      %v4714 = vadd.f32 %v4713, %v4683
      %v4715 = vadd.f32 %v4714, %v4684
      %v4716 = vrot.slane %v4715, 4
      %v4717 = vadd.f32 %v4715, %v4716
      %v4718 = vrot.slane %v4717, 2
      %v4719 = vadd.f32 %v4717, %v4718
      %v4720 = vrot.slane %v4719, 1
      %v4721 = vadd.f32 %v4719, %v4720
      %4722 = vst [vmem:[%s196] sm:$0x1] %v4721
      %v4723 = vmul.f32 %v4653, %v4653
      %v4724 = vmul.f32 %v4654, %v4654
      %v4725 = vmul.f32 %v4655, %v4655
      %v4726 = vmul.f32 %v4656, %v4656
      %v4727 = vmul.f32 %v4657, %v4657
      %v4728 = vmul.f32 %v4658, %v4658
      %v4729 = vmul.f32 %v4659, %v4659
      %v4730 = vmul.f32 %v4660, %v4660
      %v4731 = vmul.f32 %v4661, %v4661
      %v4732 = vmul.f32 %v4662, %v4662
      %v4733 = vmul.f32 %v4663, %v4663
      %v4734 = vmul.f32 %v4664, %v4664
      %v4735 = vmul.f32 %v4665, %v4665
      %v4736 = vmul.f32 %v4666, %v4666
      %v4737 = vmul.f32 %v4667, %v4667
      %v4738 = vmul.f32 %v4668, %v4668
      %v4739 = vmul.f32 %v4669, %v4669
      %v4740 = vmul.f32 %v4670, %v4670
      %v4741 = vmul.f32 %v4671, %v4671
      %v4742 = vmul.f32 %v4672, %v4672
      %v4743 = vmul.f32 %v4673, %v4673
      %v4744 = vmul.f32 %v4674, %v4674
      %v4745 = vmul.f32 %v4675, %v4675
      %v4746 = vmul.f32 %v4676, %v4676
      %v4747 = vmul.f32 %v4677, %v4677
      %v4748 = vmul.f32 %v4678, %v4678
      %v4749 = vmul.f32 %v4679, %v4679
      %v4750 = vmul.f32 %v4680, %v4680
      %v4751 = vmul.f32 %v4681, %v4681
      %v4752 = vmul.f32 %v4682, %v4682
      %v4753 = vmul.f32 %v4683, %v4683
      %v4754 = vmul.f32 %v4684, %v4684
      %v4755 = vadd.f32 %v4723, %v4724
      %v4756 = vadd.f32 %v4755, %v4725
      %v4757 = vadd.f32 %v4756, %v4726
      %v4758 = vadd.f32 %v4757, %v4727
      %v4759 = vadd.f32 %v4758, %v4728
      %v4760 = vadd.f32 %v4759, %v4729
      %v4761 = vadd.f32 %v4760, %v4730
      %v4762 = vadd.f32 %v4761, %v4731
      %v4763 = vadd.f32 %v4762, %v4732
      %v4764 = vadd.f32 %v4763, %v4733
      %v4765 = vadd.f32 %v4764, %v4734
      %v4766 = vadd.f32 %v4765, %v4735
      %v4767 = vadd.f32 %v4766, %v4736
      %v4768 = vadd.f32 %v4767, %v4737
      %v4769 = vadd.f32 %v4768, %v4738
      %v4770 = vadd.f32 %v4769, %v4739
      %v4771 = vadd.f32 %v4770, %v4740
      %v4772 = vadd.f32 %v4771, %v4741
      %v4773 = vadd.f32 %v4772, %v4742
      %v4774 = vadd.f32 %v4773, %v4743
      %v4775 = vadd.f32 %v4774, %v4744
      %v4776 = vadd.f32 %v4775, %v4745
      %v4777 = vadd.f32 %v4776, %v4746
      %v4778 = vadd.f32 %v4777, %v4747
      %v4779 = vadd.f32 %v4778, %v4748
      %v4780 = vadd.f32 %v4779, %v4749
      %v4781 = vadd.f32 %v4780, %v4750
      %v4782 = vadd.f32 %v4781, %v4751
      %v4783 = vadd.f32 %v4782, %v4752
      %v4784 = vadd.f32 %v4783, %v4753
      %v4785 = vadd.f32 %v4784, %v4754
      %v4786 = vrot.slane %v4785, 4
      %v4787 = vadd.f32 %v4785, %v4786
      %v4788 = vrot.slane %v4787, 2
      %v4789 = vadd.f32 %v4787, %v4788
      %v4790 = vrot.slane %v4789, 1
      %v4791 = vadd.f32 %v4789, %v4790
      %4792 = vst [vmem:[%s201] sm:$0x1] %v4791
      %s4793 = sadd.s32 %s19, %s20
      %p4794 = scmp.lt.s32.totalorder %s4793, 1
      %s4795 = scalar_select %p4794, %s4793, 1
      %s4796 = scalar_lea.vmem %s2, %s4795
      %s4797 = sadd.s32 %s19, %s20
      %p4798 = scmp.lt.s32.totalorder %s4797, 1
      %s4799 = scalar_select %p4798, %s4797, 1
      %s4800 = scalar_lea.vmem %s3, %s4799
      // Predicated region
      $region29: #{dbl_forward.3} parent=27 // pred_check
        %p4801 = pneg %p94
      $region30: #{dbl_forward.3} parent=27 // pred_check_branch
        %4803 = sbr.rel (%p4801) target = $region32
      $region31: #{dbl_forward.3} parent=27 // pred_region
        %s4804 = sadd.s32 %s19, %s20
      $region32: #{dbl_forward.3} parent=27 // pred_fallthru
        _
      // Predicated region
      $region33: #{dbl_forward.3} parent=27 // pred_check
        %p4805 = pneg %p122
      $region34: #{dbl_forward.3} parent=27 // pred_check_branch
        %4807 = sbr.rel (%p4805) target = $region36
      $region35: #{dbl_forward.3} parent=27 // pred_region
        %s4808 = sadd.s32 %s19, %s20
      $region36: #{dbl_forward.3} parent=27 // pred_fallthru
        _
    $region28: #{dbl_forward.3} parent=5 // pred_fallthru
      _
    %p4809 = scmp.le.s32.totalorder 2, %s10
    // Predicated region
    $region37: #{dbl_forward.3} parent=5 // pred_check
      %p4810 = pneg %p4809
    $region38: #{dbl_forward.3} parent=5 // pred_check_branch
      %4812 = sbr.rel (%p4810) target = $region40
    $region39: #{dbl_forward.3} parent=5 // pred_region
      %s4813 = ssub.s32 %s10, 2
      // Predicated region
      $region41: #{dbl_forward.3} parent=39 // pred_check
        %p4814 = pneg %p100
      $region42: #{dbl_forward.3} parent=39 // pred_check_branch
        %4816 = sbr.rel (%p4814) target = $region44
      $region43: #{dbl_forward.3} parent=39 // pred_region
        %s4817 = sadd.s32 %s21, %s22
        %p4818 = scmp.lt.s32.totalorder %s4817, 1
        %s4819 = scalar_select %p4818, %s4817, 1
        %s4820 = scalar_lea.vmem %s2, %s4819
      $region44: #{dbl_forward.3} parent=39 // pred_fallthru
        _
      // Predicated region
      $region45: #{dbl_forward.3} parent=39 // pred_check
        %p4821 = pneg %p128
      $region46: #{dbl_forward.3} parent=39 // pred_check_branch
        %4823 = sbr.rel (%p4821) target = $region48
      $region47: #{dbl_forward.3} parent=39 // pred_region
        %s4824 = sadd.s32 %s21, %s22
        %p4825 = scmp.lt.s32.totalorder %s4824, 1
        %s4826 = scalar_select %p4825, %s4824, 1
        %s4827 = scalar_lea.vmem %s3, %s4826
      $region48: #{dbl_forward.3} parent=39 // pred_fallthru
        _
    $region40: #{dbl_forward.3} parent=5 // pred_fallthru
      _
  $region6: #{dbl_forward.3} parent=0 // loop_footer
    %s14 = sadd.s32 1, %s10
  $region7: #{dbl_forward.3} parent=0 // loop_footer_branch
    %9 = sbr.rel target = $region3
  $region8: #{dbl_forward.3} parent=0 // loop_exit
    _

</llo_original>
